<compile_context>
chip_gen: v7x
topology: tpu7x:2x2x1
jax: 0.10.0
libtpu: 0.0.40
codegen_flags: <defaults>
</compile_context>

<pallas_src>
import numpy as np

import jax
import jax.numpy as jnp
from jax import lax
from jax.experimental import pallas as pl
from jax.experimental.pallas import tpu as pltpu

LANE = 128
EPS = 1e-5
CIN_PAD = 8                       # lane group per tap (>= real cin of every layer)

# static network configuration
N_BATCH = 2
H0, W0 = 16, 16                   # spatial size for block-1 convs
H1, W1 = 8, 8                     # spatial size after pool1
C_OUT_FINAL = 16
_TAPS = tuple((dy, dx) for dy in (-1, 0, 1) for dx in (-1, 0, 1))


# ----------------------------- fused Pallas kernel ------------------------- #

def _conv3x3_bn_relu(a, w_ref, gb_ref, mask_ref, layer, n, h, w):
    """3x3 / stride-1 / pad-1 conv (taps K-packed -> ONE MXU matmul) + training-
    mode BN folded into one scale/shift pass + ReLU.

    a        : (m, 128) f32 flat NHWC activation, real channels in lanes
               [0, CIN_PAD), zeros elsewhere (m = n*h*w)
    w_ref    : (3, 128, 128) bf16 packed weights, row = tap*CIN_PAD + cin
    gb_ref   : (6, 128) f32, rows 2*layer / 2*layer+1 = gamma / beta
    mask_ref : (m, 9) f32 boundary-mask columns, column order == _TAPS
    """
    m = n * h * w
    lhs = None
    for t, (dy, dx) in enumerate(_TAPS):
        s = dy * w + dx                       # flat-row offset of this tap
        tap = a if s == 0 else pltpu.roll(a, shift=(-s) % m, axis=0)
        if (dy, dx) != (0, 0):                # zero out-of-image rows (also kills
            tap = tap * mask_ref[:, t:t + 1]  # cross-image wrap of the roll)
        if t:                                 # place cin lanes at [t*8, t*8+8)
            tap = pltpu.roll(tap, shift=t * CIN_PAD, axis=1)
        lhs = tap if lhs is None else lhs + tap

    # single bf16 MXU matmul per layer, f32 accumulation
    acc = jnp.dot(lhs.astype(jnp.bfloat16), w_ref[layer],
                  preferred_element_type=jnp.float32)          # (m, 128) f32

    # training-mode BatchNorm2d folded to one scale/shift + ReLU pass.
    # (conv bias cancels exactly under the batch-mean subtraction, so it is
    #  never added.)
    inv_m = 1.0 / m
    s1 = jnp.sum(acc, axis=0, keepdims=True)                   # (1, 128)
    s2 = jnp.sum(acc * acc, axis=0, keepdims=True)             # (1, 128)
    mean = s1 * inv_m
    var = jnp.maximum(s2 * inv_m - mean * mean, 0.0)
    gamma = gb_ref[2 * layer:2 * layer + 1, :]
    beta = gb_ref[2 * layer + 1:2 * layer + 2, :]
    scale = gamma * lax.rsqrt(var + EPS)                       # EUP rsqrt
    shift = beta - mean * scale
    # padded lanes (c >= Cout) stay exactly 0: gamma/beta/weights zero-padded.
    return jnp.maximum(acc * scale + shift, 0.0)               # (m, 128) f32


def _max_pool_2x2_compact(a, sel_ref, n, h, w):
    """2x2 / stride-2 max pool + lane-dense compaction via one bf16 matmul."""
    m = n * h * w
    # pairwise max along W (adjacent flat rows), then along H (rows w apart);
    # wrapped rows only land in positions the selection matmul discards.
    m1 = jnp.maximum(a, pltpu.roll(a, shift=m - 1, axis=0))
    m2 = jnp.maximum(m1, pltpu.roll(m1, shift=m - w, axis=0))
    # host-precomputed one-hot selection of the (i even, j even) anchor rows.
    return jnp.dot(sel_ref[...], m2.astype(jnp.bfloat16),
                   preferred_element_type=jnp.float32)         # (m//4, 128) f32


def convnet_kernel(x_ref, w_ref, gb_ref, mask01_ref, mask2_ref, sel_ref, o_ref):
    a = x_ref[...].astype(jnp.float32)                            # (512, 128) f32
    a = _conv3x3_bn_relu(a, w_ref, gb_ref, mask01_ref, 0, N_BATCH, H0, W0)
    a = _conv3x3_bn_relu(a, w_ref, gb_ref, mask01_ref, 1, N_BATCH, H0, W0)
    a = _max_pool_2x2_compact(a, sel_ref, N_BATCH, H0, W0)        # (128, 128)
    a = _conv3x3_bn_relu(a, w_ref, gb_ref, mask2_ref, 2, N_BATCH, H1, W1)
    o_ref[...] = a                                                # (128, 128) f32


# --------------------------- host-side constant prep ------------------------ #

def _pack_weights(params):
    """(3, 128, 128) bf16; per layer row = tap*CIN_PAD + cin, col = cout."""
    mats = []
    for name in ("conv1_1", "conv1_2", "conv2_1"):
        w = params[name]["w"]                                    # (cout, cin, 3, 3)
        cout, cin = w.shape[0], w.shape[1]
        w = jnp.pad(w, ((0, 0), (0, CIN_PAD - cin), (0, 0), (0, 0)))
        wt = jnp.transpose(w, (2, 3, 1, 0)).reshape(9 * CIN_PAD, cout)
        wt = jnp.pad(wt, ((0, LANE - 9 * CIN_PAD), (0, LANE - cout)))
        mats.append(wt.astype(jnp.bfloat16))
    return jnp.stack(mats, axis=0)


def _pack_gamma_beta(params):
    rows = []
    for name in ("conv1_1", "conv1_2", "conv2_1"):
        p = params[name]
        cout = p["gamma"].shape[0]
        rows.append(jnp.pad(p["gamma"].astype(jnp.float32), (0, LANE - cout)))
        rows.append(jnp.pad(p["beta"].astype(jnp.float32), (0, LANE - cout)))
    return jnp.stack(rows, axis=0)                               # (6, 128) f32


def _tap_masks_np(n, h, w):
    """(n*h*w, 9) f32; column t = 1.0 where tap t stays inside the image."""
    m = n * h * w
    r = np.arange(m)
    ii = (r // w) % h
    jj = r % w
    cols = []
    for dy, dx in _TAPS:
        ok = (ii + dy >= 0) & (ii + dy <= h - 1) & (jj + dx >= 0) & (jj + dx <= w - 1)
        cols.append(ok.astype(np.float32))
    return np.stack(cols, axis=1)


def _pool_sel_np(n, h, w):
    """(n*(h//2)*(w//2), n*h*w) one-hot selecting the 2x2-pool anchor rows."""
    ho, wo = h // 2, w // 2
    mo, m = n * ho * wo, n * h * w
    q = np.arange(mo)
    nq = q // (ho * wo)
    iq = (q // wo) % ho
    jq = q % wo
    anchor = (nq * h + 2 * iq) * w + 2 * jq
    sel = np.zeros((mo, m), np.float32)
    sel[q, anchor] = 1.0
    return sel


# ------------------------------ JAX wrapper --------------------------------- #

@jax.jit
def convnet_forward(params, x_nchw):
    n, c, h, w = x_nchw.shape                                   # (2, 4, 16, 16)
    # NCHW -> flat (N*H*W, 128) lane-dense, channel-zero-padded, bf16 input
    x = jnp.transpose(x_nchw, (0, 2, 3, 1)).reshape(n * h * w, c)
    x = jnp.pad(x.astype(jnp.bfloat16), ((0, 0), (0, LANE - c)))  # (512, 128)

    w_packed = _pack_weights(params)                             # (3,128,128) bf16
    gb = _pack_gamma_beta(params)                                # (6,128)     f32
    mask01 = jnp.asarray(_tap_masks_np(n, h, w), jnp.float32)    # (512, 9)
    mask2 = jnp.asarray(_tap_masks_np(n, h // 2, w // 2), jnp.float32)  # (128, 9)
    sel = jnp.asarray(_pool_sel_np(n, h, w), jnp.bfloat16)       # (128, 512)

    m_out = n * (h // 2) * (w // 2)
    vmem = pl.BlockSpec(memory_space=pltpu.MemorySpace.VMEM)
    out_flat = pl.pallas_call(
        convnet_kernel,
        out_shape=jax.ShapeDtypeStruct((m_out, LANE), jnp.float32),
        in_specs=[vmem, vmem, vmem, vmem, vmem, vmem],
        out_specs=vmem,
    )(x, w_packed, gb, mask01, mask2, sel)

    out = out_flat[:, :C_OUT_FINAL].reshape(n, h // 2, w // 2, C_OUT_FINAL)
    return jnp.transpose(out, (0, 3, 1, 2))                      # NCHW (2,16,8,8)


# ----------------------- pure-JAX reference (for checking) ------------------ #

def _reference_forward(params, x):
    def conv_bn_relu(y, p):
        y = lax.conv_general_dilated(
            y, p["w"], window_strides=(1, 1), padding=((1, 1), (1, 1)),
            dimension_numbers=("NCHW", "OIHW", "NCHW"))
        y = y + p["b"][None, :, None, None]
        mean = jnp.mean(y, axis=(0, 2, 3), keepdims=True)
        var = jnp.mean(jnp.square(y - mean), axis=(0, 2, 3), keepdims=True)
        y = (y - mean) * lax.rsqrt(var + EPS)
        y = y * p["gamma"][None, :, None, None] + p["beta"][None, :, None, None]
        return jnp.maximum(y, 0.0)

    y = conv_bn_relu(x, params["conv1_1"])
    y = conv_bn_relu(y, params["conv1_2"])
    y = lax.reduce_window(y, -jnp.inf, lax.max,
                          window_dimensions=(1, 1, 2, 2),
                          window_strides=(1, 1, 2, 2), padding="VALID")
    y = conv_bn_relu(y, params["conv2_1"])
    return y


# --------------------------- parameters & main ------------------------------ #

def init_params(key):
    def conv_p(k, cin, cout, ks):
        kw_, kb, kg, kbt = jax.random.split(k, 4)
        return dict(
            w=0.1 * jax.random.normal(kw_, (cout, cin, ks, ks), jnp.float32),
            b=0.05 * jax.random.normal(kb, (cout,), jnp.float32),
            gamma=1.0 + 0.1 * jax.random.normal(kg, (cout,), jnp.float32),
            beta=0.05 * jax.random.normal(kbt, (cout,), jnp.float32),
        )
    k1, k2, k3 = jax.random.split(key, 3)
    return dict(
        conv1_1=conv_p(k1, 4, 8, 3),
        conv1_2=conv_p(k2, 8, 8, 3),
        conv2_1=conv_p(k3, 8, 16, 3),
    )


if __name__ == "__main__":
    key = jax.random.PRNGKey(0)
    pkey, xkey = jax.random.split(key)
    params = init_params(pkey)
    x = jax.random.normal(xkey, (2, 4, 16, 16), jnp.float32)  # NCHW, like PyTorch

    out = convnet_forward(params, x)
    out = jax.block_until_ready(out)

    assert out.shape == (2, 16, 8, 8), out.shape
    assert out.dtype == jnp.float32
    assert bool(jnp.all(jnp.isfinite(out)))
    assert bool(jnp.all(out >= 0.0))          # final ReLU

    # loose tolerance: kernel quantizes matmul operands to bf16
    ref = _reference_forward(params, x)
    max_err = float(jnp.max(jnp.abs(out - ref)))
    assert max_err < 0.1, max_err

    print("KERNEL_OK")
</pallas_src>

<mosaic_0001>
module attributes {stable_mosaic.version = 11 : i64} {
  func.func @convnet_kernel(%arg0: memref<512x128xbf16, #tpu.memory_space<vmem>>, %arg1: memref<3x128x128xbf16, #tpu.memory_space<vmem>>, %arg2: memref<6x128xf32, #tpu.memory_space<vmem>>, %arg3: memref<512x9xf32, #tpu.memory_space<vmem>>, %arg4: memref<128x9xf32, #tpu.memory_space<vmem>>, %arg5: memref<128x512xbf16, #tpu.memory_space<vmem>>, %arg6: memref<128x128xf32, #tpu.memory_space<vmem>>) attributes {dimension_semantics = [], scalar_prefetch = 0 : i64, scratch_operands = 0 : i64, tpu.core_type = #tpu.core_type<tc>} {
    %c0 = arith.constant 0 : index
    %c0_0 = arith.constant 0 : index
    %0 = vector.load %arg0[%c0, %c0_0] : memref<512x128xbf16, #tpu.memory_space<vmem>>, vector<512x128xbf16>
    %1 = arith.extf %0 : vector<512x128xbf16> to vector<512x128xf32>
    %c17_i32 = arith.constant 17 : i32
    %2 = tpu.dynamic_rotate %1 by %c17_i32 dim 0 : vector<512x128xf32>, i32 -> vector<512x128xf32>
    %c0_1 = arith.constant 0 : index
    %c0_2 = arith.constant 0 : index
    %3 = vector.load %arg3[%c0_1, %c0_2] : memref<512x9xf32, #tpu.memory_space<vmem>>, vector<512x1xf32>
    %4 = vector.broadcast %3 : vector<512x1xf32> to vector<512x128xf32>
    %5 = arith.mulf %2, %4 : vector<512x128xf32>
    %c16_i32 = arith.constant 16 : i32
    %6 = tpu.dynamic_rotate %1 by %c16_i32 dim 0 : vector<512x128xf32>, i32 -> vector<512x128xf32>
    %c0_3 = arith.constant 0 : index
    %c1 = arith.constant 1 : index
    %7 = vector.load %arg3[%c0_3, %c1] : memref<512x9xf32, #tpu.memory_space<vmem>>, vector<512x1xf32>
    %8 = vector.broadcast %7 : vector<512x1xf32> to vector<512x128xf32>
    %9 = arith.mulf %6, %8 : vector<512x128xf32>
    %c8_i32 = arith.constant 8 : i32
    %10 = tpu.dynamic_rotate %9 by %c8_i32 dim 1 : vector<512x128xf32>, i32 -> vector<512x128xf32>
    %11 = arith.addf %5, %10 : vector<512x128xf32>
    %c15_i32 = arith.constant 15 : i32
    %12 = tpu.dynamic_rotate %1 by %c15_i32 dim 0 : vector<512x128xf32>, i32 -> vector<512x128xf32>
    %c0_4 = arith.constant 0 : index
    %c2 = arith.constant 2 : index
    %13 = vector.load %arg3[%c0_4, %c2] : memref<512x9xf32, #tpu.memory_space<vmem>>, vector<512x1xf32>
    %14 = vector.broadcast %13 : vector<512x1xf32> to vector<512x128xf32>
    %15 = arith.mulf %12, %14 : vector<512x128xf32>
    %c16_i32_5 = arith.constant 16 : i32
    %16 = tpu.dynamic_rotate %15 by %c16_i32_5 dim 1 : vector<512x128xf32>, i32 -> vector<512x128xf32>
    %17 = arith.addf %11, %16 : vector<512x128xf32>
    %c1_i32 = arith.constant 1 : i32
    %18 = tpu.dynamic_rotate %1 by %c1_i32 dim 0 : vector<512x128xf32>, i32 -> vector<512x128xf32>
    %c0_6 = arith.constant 0 : index
    %c3 = arith.constant 3 : index
    %19 = vector.load %arg3[%c0_6, %c3] : memref<512x9xf32, #tpu.memory_space<vmem>>, vector<512x1xf32>
    %20 = vector.broadcast %19 : vector<512x1xf32> to vector<512x128xf32>
    %21 = arith.mulf %18, %20 : vector<512x128xf32>
    %c24_i32 = arith.constant 24 : i32
    %22 = tpu.dynamic_rotate %21 by %c24_i32 dim 1 : vector<512x128xf32>, i32 -> vector<512x128xf32>
    %23 = arith.addf %17, %22 : vector<512x128xf32>
    %c32_i32 = arith.constant 32 : i32
    %24 = tpu.dynamic_rotate %1 by %c32_i32 dim 1 : vector<512x128xf32>, i32 -> vector<512x128xf32>
    %25 = arith.addf %23, %24 : vector<512x128xf32>
    %c511_i32 = arith.constant 511 : i32
    %26 = tpu.dynamic_rotate %1 by %c511_i32 dim 0 : vector<512x128xf32>, i32 -> vector<512x128xf32>
    %c0_7 = arith.constant 0 : index
    %c5 = arith.constant 5 : index
    %27 = vector.load %arg3[%c0_7, %c5] : memref<512x9xf32, #tpu.memory_space<vmem>>, vector<512x1xf32>
    %28 = vector.broadcast %27 : vector<512x1xf32> to vector<512x128xf32>
    %29 = arith.mulf %26, %28 : vector<512x128xf32>
    %c40_i32 = arith.constant 40 : i32
    %30 = tpu.dynamic_rotate %29 by %c40_i32 dim 1 : vector<512x128xf32>, i32 -> vector<512x128xf32>
    %31 = arith.addf %25, %30 : vector<512x128xf32>
    %c497_i32 = arith.constant 497 : i32
    %32 = tpu.dynamic_rotate %1 by %c497_i32 dim 0 : vector<512x128xf32>, i32 -> vector<512x128xf32>
    %c0_8 = arith.constant 0 : index
    %c6 = arith.constant 6 : index
    %33 = vector.load %arg3[%c0_8, %c6] : memref<512x9xf32, #tpu.memory_space<vmem>>, vector<512x1xf32>
    %34 = vector.broadcast %33 : vector<512x1xf32> to vector<512x128xf32>
    %35 = arith.mulf %32, %34 : vector<512x128xf32>
    %c48_i32 = arith.constant 48 : i32
    %36 = tpu.dynamic_rotate %35 by %c48_i32 dim 1 : vector<512x128xf32>, i32 -> vector<512x128xf32>
    %37 = arith.addf %31, %36 : vector<512x128xf32>
    %c496_i32 = arith.constant 496 : i32
    %38 = tpu.dynamic_rotate %1 by %c496_i32 dim 0 : vector<512x128xf32>, i32 -> vector<512x128xf32>
    %c0_9 = arith.constant 0 : index
    %c7 = arith.constant 7 : index
    %39 = vector.load %arg3[%c0_9, %c7] : memref<512x9xf32, #tpu.memory_space<vmem>>, vector<512x1xf32>
    %40 = vector.broadcast %39 : vector<512x1xf32> to vector<512x128xf32>
    %41 = arith.mulf %38, %40 : vector<512x128xf32>
    %c56_i32 = arith.constant 56 : i32
    %42 = tpu.dynamic_rotate %41 by %c56_i32 dim 1 : vector<512x128xf32>, i32 -> vector<512x128xf32>
    %43 = arith.addf %37, %42 : vector<512x128xf32>
    %c495_i32 = arith.constant 495 : i32
    %44 = tpu.dynamic_rotate %1 by %c495_i32 dim 0 : vector<512x128xf32>, i32 -> vector<512x128xf32>
    %c0_10 = arith.constant 0 : index
    %c8 = arith.constant 8 : index
    %45 = vector.load %arg3[%c0_10, %c8] : memref<512x9xf32, #tpu.memory_space<vmem>>, vector<512x1xf32>
    %46 = vector.broadcast %45 : vector<512x1xf32> to vector<512x128xf32>
    %47 = arith.mulf %44, %46 : vector<512x128xf32>
    %c64_i32 = arith.constant 64 : i32
    %48 = tpu.dynamic_rotate %47 by %c64_i32 dim 1 : vector<512x128xf32>, i32 -> vector<512x128xf32>
    %49 = arith.addf %43, %48 : vector<512x128xf32>
    %50 = arith.truncf %49 : vector<512x128xf32> to vector<512x128xbf16>
    %c0_11 = arith.constant 0 : index
    %c0_12 = arith.constant 0 : index
    %c0_13 = arith.constant 0 : index
    %51 = vector.load %arg1[%c0_11, %c0_12, %c0_13] : memref<3x128x128xbf16, #tpu.memory_space<vmem>>, vector<1x128x128xbf16>
    %52 = vector.shape_cast %51 : vector<1x128x128xbf16> to vector<128x128xbf16>
    %cst = arith.constant dense<0.000000e+00> : vector<512x128xf32>
    %53 = tpu.matmul %50, %52, %cst {dimension_numbers = #tpu.dot_dimension_numbers<[1], [0], [0], [1], [0, 0, 1, 1], [], []>} : vector<512x128xbf16>, vector<128x128xbf16>, vector<512x128xf32> -> vector<512x128xf32>
    %cst_14 = arith.constant dense<0.000000e+00> : vector<128xf32>
    %54 = vector.multi_reduction <add>, %53, %cst_14 [0] : vector<512x128xf32> to vector<128xf32>
    %55 = vector.shape_cast %54 : vector<128xf32> to vector<1x128xf32>
    %56 = arith.mulf %53, %53 : vector<512x128xf32>
    %cst_15 = arith.constant dense<0.000000e+00> : vector<128xf32>
    %57 = vector.multi_reduction <add>, %56, %cst_15 [0] : vector<512x128xf32> to vector<128xf32>
    %58 = vector.shape_cast %57 : vector<128xf32> to vector<1x128xf32>
    %cst_16 = arith.constant 0.001953125 : f32
    %59 = vector.broadcast %cst_16 : f32 to vector<1x128xf32>
    %60 = arith.mulf %55, %59 : vector<1x128xf32>
    %cst_17 = arith.constant 0.001953125 : f32
    %61 = vector.broadcast %cst_17 : f32 to vector<1x128xf32>
    %62 = arith.mulf %58, %61 : vector<1x128xf32>
    %63 = arith.mulf %60, %60 : vector<1x128xf32>
    %64 = arith.subf %62, %63 : vector<1x128xf32>
    %cst_18 = arith.constant 0.000000e+00 : f32
    %65 = vector.broadcast %cst_18 : f32 to vector<1x128xf32>
    %66 = arith.maximumf %64, %65 : vector<1x128xf32>
    %c0_19 = arith.constant 0 : index
    %c0_20 = arith.constant 0 : index
    %67 = vector.load %arg2[%c0_19, %c0_20] : memref<6x128xf32, #tpu.memory_space<vmem>>, vector<1x128xf32>
    %c1_21 = arith.constant 1 : index
    %c0_22 = arith.constant 0 : index
    %68 = vector.load %arg2[%c1_21, %c0_22] : memref<6x128xf32, #tpu.memory_space<vmem>>, vector<1x128xf32>
    %cst_23 = arith.constant 9.99999974E-6 : f32
    %69 = vector.broadcast %cst_23 : f32 to vector<1x128xf32>
    %70 = arith.addf %66, %69 : vector<1x128xf32>
    %71 = math.rsqrt %70 : vector<1x128xf32>
    %72 = arith.mulf %67, %71 : vector<1x128xf32>
    %73 = arith.mulf %60, %72 : vector<1x128xf32>
    %74 = arith.subf %68, %73 : vector<1x128xf32>
    %75 = vector.broadcast %72 : vector<1x128xf32> to vector<512x128xf32>
    %76 = arith.mulf %53, %75 : vector<512x128xf32>
    %77 = vector.broadcast %74 : vector<1x128xf32> to vector<512x128xf32>
    %78 = arith.addf %76, %77 : vector<512x128xf32>
    %cst_24 = arith.constant 0.000000e+00 : f32
    %79 = vector.broadcast %cst_24 : f32 to vector<512x128xf32>
    %80 = arith.maximumf %78, %79 : vector<512x128xf32>
    %c17_i32_25 = arith.constant 17 : i32
    %81 = tpu.dynamic_rotate %80 by %c17_i32_25 dim 0 : vector<512x128xf32>, i32 -> vector<512x128xf32>
    %c0_26 = arith.constant 0 : index
    %c0_27 = arith.constant 0 : index
    %82 = vector.load %arg3[%c0_26, %c0_27] : memref<512x9xf32, #tpu.memory_space<vmem>>, vector<512x1xf32>
    %83 = vector.broadcast %82 : vector<512x1xf32> to vector<512x128xf32>
    %84 = arith.mulf %81, %83 : vector<512x128xf32>
    %c16_i32_28 = arith.constant 16 : i32
    %85 = tpu.dynamic_rotate %80 by %c16_i32_28 dim 0 : vector<512x128xf32>, i32 -> vector<512x128xf32>
    %c0_29 = arith.constant 0 : index
    %c1_30 = arith.constant 1 : index
    %86 = vector.load %arg3[%c0_29, %c1_30] : memref<512x9xf32, #tpu.memory_space<vmem>>, vector<512x1xf32>
    %87 = vector.broadcast %86 : vector<512x1xf32> to vector<512x128xf32>
    %88 = arith.mulf %85, %87 : vector<512x128xf32>
    %c8_i32_31 = arith.constant 8 : i32
    %89 = tpu.dynamic_rotate %88 by %c8_i32_31 dim 1 : vector<512x128xf32>, i32 -> vector<512x128xf32>
    %90 = arith.addf %84, %89 : vector<512x128xf32>
    %c15_i32_32 = arith.constant 15 : i32
    %91 = tpu.dynamic_rotate %80 by %c15_i32_32 dim 0 : vector<512x128xf32>, i32 -> vector<512x128xf32>
    %c0_33 = arith.constant 0 : index
    %c2_34 = arith.constant 2 : index
    %92 = vector.load %arg3[%c0_33, %c2_34] : memref<512x9xf32, #tpu.memory_space<vmem>>, vector<512x1xf32>
    %93 = vector.broadcast %92 : vector<512x1xf32> to vector<512x128xf32>
    %94 = arith.mulf %91, %93 : vector<512x128xf32>
    %c16_i32_35 = arith.constant 16 : i32
    %95 = tpu.dynamic_rotate %94 by %c16_i32_35 dim 1 : vector<512x128xf32>, i32 -> vector<512x128xf32>
    %96 = arith.addf %90, %95 : vector<512x128xf32>
    %c1_i32_36 = arith.constant 1 : i32
    %97 = tpu.dynamic_rotate %80 by %c1_i32_36 dim 0 : vector<512x128xf32>, i32 -> vector<512x128xf32>
    %c0_37 = arith.constant 0 : index
    %c3_38 = arith.constant 3 : index
    %98 = vector.load %arg3[%c0_37, %c3_38] : memref<512x9xf32, #tpu.memory_space<vmem>>, vector<512x1xf32>
    %99 = vector.broadcast %98 : vector<512x1xf32> to vector<512x128xf32>
    %100 = arith.mulf %97, %99 : vector<512x128xf32>
    %c24_i32_39 = arith.constant 24 : i32
    %101 = tpu.dynamic_rotate %100 by %c24_i32_39 dim 1 : vector<512x128xf32>, i32 -> vector<512x128xf32>
    %102 = arith.addf %96, %101 : vector<512x128xf32>
    %c32_i32_40 = arith.constant 32 : i32
    %103 = tpu.dynamic_rotate %80 by %c32_i32_40 dim 1 : vector<512x128xf32>, i32 -> vector<512x128xf32>
    %104 = arith.addf %102, %103 : vector<512x128xf32>
    %c511_i32_41 = arith.constant 511 : i32
    %105 = tpu.dynamic_rotate %80 by %c511_i32_41 dim 0 : vector<512x128xf32>, i32 -> vector<512x128xf32>
    %c0_42 = arith.constant 0 : index
    %c5_43 = arith.constant 5 : index
    %106 = vector.load %arg3[%c0_42, %c5_43] : memref<512x9xf32, #tpu.memory_space<vmem>>, vector<512x1xf32>
    %107 = vector.broadcast %106 : vector<512x1xf32> to vector<512x128xf32>
    %108 = arith.mulf %105, %107 : vector<512x128xf32>
    %c40_i32_44 = arith.constant 40 : i32
    %109 = tpu.dynamic_rotate %108 by %c40_i32_44 dim 1 : vector<512x128xf32>, i32 -> vector<512x128xf32>
    %110 = arith.addf %104, %109 : vector<512x128xf32>
    %c497_i32_45 = arith.constant 497 : i32
    %111 = tpu.dynamic_rotate %80 by %c497_i32_45 dim 0 : vector<512x128xf32>, i32 -> vector<512x128xf32>
    %c0_46 = arith.constant 0 : index
    %c6_47 = arith.constant 6 : index
    %112 = vector.load %arg3[%c0_46, %c6_47] : memref<512x9xf32, #tpu.memory_space<vmem>>, vector<512x1xf32>
    %113 = vector.broadcast %112 : vector<512x1xf32> to vector<512x128xf32>
    %114 = arith.mulf %111, %113 : vector<512x128xf32>
    %c48_i32_48 = arith.constant 48 : i32
    %115 = tpu.dynamic_rotate %114 by %c48_i32_48 dim 1 : vector<512x128xf32>, i32 -> vector<512x128xf32>
    %116 = arith.addf %110, %115 : vector<512x128xf32>
    %c496_i32_49 = arith.constant 496 : i32
    %117 = tpu.dynamic_rotate %80 by %c496_i32_49 dim 0 : vector<512x128xf32>, i32 -> vector<512x128xf32>
    %c0_50 = arith.constant 0 : index
    %c7_51 = arith.constant 7 : index
    %118 = vector.load %arg3[%c0_50, %c7_51] : memref<512x9xf32, #tpu.memory_space<vmem>>, vector<512x1xf32>
    %119 = vector.broadcast %118 : vector<512x1xf32> to vector<512x128xf32>
    %120 = arith.mulf %117, %119 : vector<512x128xf32>
    %c56_i32_52 = arith.constant 56 : i32
    %121 = tpu.dynamic_rotate %120 by %c56_i32_52 dim 1 : vector<512x128xf32>, i32 -> vector<512x128xf32>
    %122 = arith.addf %116, %121 : vector<512x128xf32>
    %c495_i32_53 = arith.constant 495 : i32
    %123 = tpu.dynamic_rotate %80 by %c495_i32_53 dim 0 : vector<512x128xf32>, i32 -> vector<512x128xf32>
    %c0_54 = arith.constant 0 : index
    %c8_55 = arith.constant 8 : index
    %124 = vector.load %arg3[%c0_54, %c8_55] : memref<512x9xf32, #tpu.memory_space<vmem>>, vector<512x1xf32>
    %125 = vector.broadcast %124 : vector<512x1xf32> to vector<512x128xf32>
    %126 = arith.mulf %123, %125 : vector<512x128xf32>
    %c64_i32_56 = arith.constant 64 : i32
    %127 = tpu.dynamic_rotate %126 by %c64_i32_56 dim 1 : vector<512x128xf32>, i32 -> vector<512x128xf32>
    %128 = arith.addf %122, %127 : vector<512x128xf32>
    %129 = arith.truncf %128 : vector<512x128xf32> to vector<512x128xbf16>
    %c1_57 = arith.constant 1 : index
    %c0_58 = arith.constant 0 : index
    %c0_59 = arith.constant 0 : index
    %130 = vector.load %arg1[%c1_57, %c0_58, %c0_59] : memref<3x128x128xbf16, #tpu.memory_space<vmem>>, vector<1x128x128xbf16>
    %131 = vector.shape_cast %130 : vector<1x128x128xbf16> to vector<128x128xbf16>
    %cst_60 = arith.constant dense<0.000000e+00> : vector<512x128xf32>
    %132 = tpu.matmul %129, %131, %cst_60 {dimension_numbers = #tpu.dot_dimension_numbers<[1], [0], [0], [1], [0, 0, 1, 1], [], []>} : vector<512x128xbf16>, vector<128x128xbf16>, vector<512x128xf32> -> vector<512x128xf32>
    %cst_61 = arith.constant dense<0.000000e+00> : vector<128xf32>
    %133 = vector.multi_reduction <add>, %132, %cst_61 [0] : vector<512x128xf32> to vector<128xf32>
    %134 = vector.shape_cast %133 : vector<128xf32> to vector<1x128xf32>
    %135 = arith.mulf %132, %132 : vector<512x128xf32>
    %cst_62 = arith.constant dense<0.000000e+00> : vector<128xf32>
    %136 = vector.multi_reduction <add>, %135, %cst_62 [0] : vector<512x128xf32> to vector<128xf32>
    %137 = vector.shape_cast %136 : vector<128xf32> to vector<1x128xf32>
    %cst_63 = arith.constant 0.001953125 : f32
    %138 = vector.broadcast %cst_63 : f32 to vector<1x128xf32>
    %139 = arith.mulf %134, %138 : vector<1x128xf32>
    %cst_64 = arith.constant 0.001953125 : f32
    %140 = vector.broadcast %cst_64 : f32 to vector<1x128xf32>
    %141 = arith.mulf %137, %140 : vector<1x128xf32>
    %142 = arith.mulf %139, %139 : vector<1x128xf32>
    %143 = arith.subf %141, %142 : vector<1x128xf32>
    %cst_65 = arith.constant 0.000000e+00 : f32
    %144 = vector.broadcast %cst_65 : f32 to vector<1x128xf32>
    %145 = arith.maximumf %143, %144 : vector<1x128xf32>
    %c2_66 = arith.constant 2 : index
    %c0_67 = arith.constant 0 : index
    %146 = vector.load %arg2[%c2_66, %c0_67] : memref<6x128xf32, #tpu.memory_space<vmem>>, vector<1x128xf32>
    %c3_68 = arith.constant 3 : index
    %c0_69 = arith.constant 0 : index
    %147 = vector.load %arg2[%c3_68, %c0_69] : memref<6x128xf32, #tpu.memory_space<vmem>>, vector<1x128xf32>
    %cst_70 = arith.constant 9.99999974E-6 : f32
    %148 = vector.broadcast %cst_70 : f32 to vector<1x128xf32>
    %149 = arith.addf %145, %148 : vector<1x128xf32>
    %150 = math.rsqrt %149 : vector<1x128xf32>
    %151 = arith.mulf %146, %150 : vector<1x128xf32>
    %152 = arith.mulf %139, %151 : vector<1x128xf32>
    %153 = arith.subf %147, %152 : vector<1x128xf32>
    %154 = vector.broadcast %151 : vector<1x128xf32> to vector<512x128xf32>
    %155 = arith.mulf %132, %154 : vector<512x128xf32>
    %156 = vector.broadcast %153 : vector<1x128xf32> to vector<512x128xf32>
    %157 = arith.addf %155, %156 : vector<512x128xf32>
    %cst_71 = arith.constant 0.000000e+00 : f32
    %158 = vector.broadcast %cst_71 : f32 to vector<512x128xf32>
    %159 = arith.maximumf %157, %158 : vector<512x128xf32>
    %c511_i32_72 = arith.constant 511 : i32
    %160 = tpu.dynamic_rotate %159 by %c511_i32_72 dim 0 : vector<512x128xf32>, i32 -> vector<512x128xf32>
    %161 = arith.maximumf %159, %160 : vector<512x128xf32>
    %c496_i32_73 = arith.constant 496 : i32
    %162 = tpu.dynamic_rotate %161 by %c496_i32_73 dim 0 : vector<512x128xf32>, i32 -> vector<512x128xf32>
    %163 = arith.maximumf %161, %162 : vector<512x128xf32>
    %c0_74 = arith.constant 0 : index
    %c0_75 = arith.constant 0 : index
    %164 = vector.load %arg5[%c0_74, %c0_75] : memref<128x512xbf16, #tpu.memory_space<vmem>>, vector<128x512xbf16>
    %165 = arith.truncf %163 : vector<512x128xf32> to vector<512x128xbf16>
    %cst_76 = arith.constant dense<0.000000e+00> : vector<128x128xf32>
    %166 = tpu.matmul %164, %165, %cst_76 {dimension_numbers = #tpu.dot_dimension_numbers<[1], [0], [0], [1], [0, 0, 1, 1], [], []>} : vector<128x512xbf16>, vector<512x128xbf16>, vector<128x128xf32> -> vector<128x128xf32>
    %c9_i32 = arith.constant 9 : i32
    %167 = tpu.dynamic_rotate %166 by %c9_i32 dim 0 : vector<128x128xf32>, i32 -> vector<128x128xf32>
    %c0_77 = arith.constant 0 : index
    %c0_78 = arith.constant 0 : index
    %168 = vector.load %arg4[%c0_77, %c0_78] : memref<128x9xf32, #tpu.memory_space<vmem>>, vector<128x1xf32>
    %169 = vector.broadcast %168 : vector<128x1xf32> to vector<128x128xf32>
    %170 = arith.mulf %167, %169 : vector<128x128xf32>
    %c8_i32_79 = arith.constant 8 : i32
    %171 = tpu.dynamic_rotate %166 by %c8_i32_79 dim 0 : vector<128x128xf32>, i32 -> vector<128x128xf32>
    %c0_80 = arith.constant 0 : index
    %c1_81 = arith.constant 1 : index
    %172 = vector.load %arg4[%c0_80, %c1_81] : memref<128x9xf32, #tpu.memory_space<vmem>>, vector<128x1xf32>
    %173 = vector.broadcast %172 : vector<128x1xf32> to vector<128x128xf32>
    %174 = arith.mulf %171, %173 : vector<128x128xf32>
    %c8_i32_82 = arith.constant 8 : i32
    %175 = tpu.dynamic_rotate %174 by %c8_i32_82 dim 1 : vector<128x128xf32>, i32 -> vector<128x128xf32>
    %176 = arith.addf %170, %175 : vector<128x128xf32>
    %c7_i32 = arith.constant 7 : i32
    %177 = tpu.dynamic_rotate %166 by %c7_i32 dim 0 : vector<128x128xf32>, i32 -> vector<128x128xf32>
    %c0_83 = arith.constant 0 : index
    %c2_84 = arith.constant 2 : index
    %178 = vector.load %arg4[%c0_83, %c2_84] : memref<128x9xf32, #tpu.memory_space<vmem>>, vector<128x1xf32>
    %179 = vector.broadcast %178 : vector<128x1xf32> to vector<128x128xf32>
    %180 = arith.mulf %177, %179 : vector<128x128xf32>
    %c16_i32_85 = arith.constant 16 : i32
    %181 = tpu.dynamic_rotate %180 by %c16_i32_85 dim 1 : vector<128x128xf32>, i32 -> vector<128x128xf32>
    %182 = arith.addf %176, %181 : vector<128x128xf32>
    %c1_i32_86 = arith.constant 1 : i32
    %183 = tpu.dynamic_rotate %166 by %c1_i32_86 dim 0 : vector<128x128xf32>, i32 -> vector<128x128xf32>
    %c0_87 = arith.constant 0 : index
    %c3_88 = arith.constant 3 : index
    %184 = vector.load %arg4[%c0_87, %c3_88] : memref<128x9xf32, #tpu.memory_space<vmem>>, vector<128x1xf32>
    %185 = vector.broadcast %184 : vector<128x1xf32> to vector<128x128xf32>
    %186 = arith.mulf %183, %185 : vector<128x128xf32>
    %c24_i32_89 = arith.constant 24 : i32
    %187 = tpu.dynamic_rotate %186 by %c24_i32_89 dim 1 : vector<128x128xf32>, i32 -> vector<128x128xf32>
    %188 = arith.addf %182, %187 : vector<128x128xf32>
    %c32_i32_90 = arith.constant 32 : i32
    %189 = tpu.dynamic_rotate %166 by %c32_i32_90 dim 1 : vector<128x128xf32>, i32 -> vector<128x128xf32>
    %190 = arith.addf %188, %189 : vector<128x128xf32>
    %c127_i32 = arith.constant 127 : i32
    %191 = tpu.dynamic_rotate %166 by %c127_i32 dim 0 : vector<128x128xf32>, i32 -> vector<128x128xf32>
    %c0_91 = arith.constant 0 : index
    %c5_92 = arith.constant 5 : index
    %192 = vector.load %arg4[%c0_91, %c5_92] : memref<128x9xf32, #tpu.memory_space<vmem>>, vector<128x1xf32>
    %193 = vector.broadcast %192 : vector<128x1xf32> to vector<128x128xf32>
    %194 = arith.mulf %191, %193 : vector<128x128xf32>
    %c40_i32_93 = arith.constant 40 : i32
    %195 = tpu.dynamic_rotate %194 by %c40_i32_93 dim 1 : vector<128x128xf32>, i32 -> vector<128x128xf32>
    %196 = arith.addf %190, %195 : vector<128x128xf32>
    %c121_i32 = arith.constant 121 : i32
    %197 = tpu.dynamic_rotate %166 by %c121_i32 dim 0 : vector<128x128xf32>, i32 -> vector<128x128xf32>
    %c0_94 = arith.constant 0 : index
    %c6_95 = arith.constant 6 : index
    %198 = vector.load %arg4[%c0_94, %c6_95] : memref<128x9xf32, #tpu.memory_space<vmem>>, vector<128x1xf32>
    %199 = vector.broadcast %198 : vector<128x1xf32> to vector<128x128xf32>
    %200 = arith.mulf %197, %199 : vector<128x128xf32>
    %c48_i32_96 = arith.constant 48 : i32
    %201 = tpu.dynamic_rotate %200 by %c48_i32_96 dim 1 : vector<128x128xf32>, i32 -> vector<128x128xf32>
    %202 = arith.addf %196, %201 : vector<128x128xf32>
    %c120_i32 = arith.constant 120 : i32
    %203 = tpu.dynamic_rotate %166 by %c120_i32 dim 0 : vector<128x128xf32>, i32 -> vector<128x128xf32>
    %c0_97 = arith.constant 0 : index
    %c7_98 = arith.constant 7 : index
    %204 = vector.load %arg4[%c0_97, %c7_98] : memref<128x9xf32, #tpu.memory_space<vmem>>, vector<128x1xf32>
    %205 = vector.broadcast %204 : vector<128x1xf32> to vector<128x128xf32>
    %206 = arith.mulf %203, %205 : vector<128x128xf32>
    %c56_i32_99 = arith.constant 56 : i32
    %207 = tpu.dynamic_rotate %206 by %c56_i32_99 dim 1 : vector<128x128xf32>, i32 -> vector<128x128xf32>
    %208 = arith.addf %202, %207 : vector<128x128xf32>
    %c119_i32 = arith.constant 119 : i32
    %209 = tpu.dynamic_rotate %166 by %c119_i32 dim 0 : vector<128x128xf32>, i32 -> vector<128x128xf32>
    %c0_100 = arith.constant 0 : index
    %c8_101 = arith.constant 8 : index
    %210 = vector.load %arg4[%c0_100, %c8_101] : memref<128x9xf32, #tpu.memory_space<vmem>>, vector<128x1xf32>
    %211 = vector.broadcast %210 : vector<128x1xf32> to vector<128x128xf32>
    %212 = arith.mulf %209, %211 : vector<128x128xf32>
    %c64_i32_102 = arith.constant 64 : i32
    %213 = tpu.dynamic_rotate %212 by %c64_i32_102 dim 1 : vector<128x128xf32>, i32 -> vector<128x128xf32>
    %214 = arith.addf %208, %213 : vector<128x128xf32>
    %215 = arith.truncf %214 : vector<128x128xf32> to vector<128x128xbf16>
    %c2_103 = arith.constant 2 : index
    %c0_104 = arith.constant 0 : index
    %c0_105 = arith.constant 0 : index
    %216 = vector.load %arg1[%c2_103, %c0_104, %c0_105] : memref<3x128x128xbf16, #tpu.memory_space<vmem>>, vector<1x128x128xbf16>
    %217 = vector.shape_cast %216 : vector<1x128x128xbf16> to vector<128x128xbf16>
    %cst_106 = arith.constant dense<0.000000e+00> : vector<128x128xf32>
    %218 = tpu.matmul %215, %217, %cst_106 {dimension_numbers = #tpu.dot_dimension_numbers<[1], [0], [0], [1], [0, 0, 1, 1], [], []>} : vector<128x128xbf16>, vector<128x128xbf16>, vector<128x128xf32> -> vector<128x128xf32>
    %cst_107 = arith.constant dense<0.000000e+00> : vector<128xf32>
    %219 = vector.multi_reduction <add>, %218, %cst_107 [0] : vector<128x128xf32> to vector<128xf32>
    %220 = vector.shape_cast %219 : vector<128xf32> to vector<1x128xf32>
    %221 = arith.mulf %218, %218 : vector<128x128xf32>
    %cst_108 = arith.constant dense<0.000000e+00> : vector<128xf32>
    %222 = vector.multi_reduction <add>, %221, %cst_108 [0] : vector<128x128xf32> to vector<128xf32>
    %223 = vector.shape_cast %222 : vector<128xf32> to vector<1x128xf32>
    %cst_109 = arith.constant 7.812500e-03 : f32
    %224 = vector.broadcast %cst_109 : f32 to vector<1x128xf32>
    %225 = arith.mulf %220, %224 : vector<1x128xf32>
    %cst_110 = arith.constant 7.812500e-03 : f32
    %226 = vector.broadcast %cst_110 : f32 to vector<1x128xf32>
    %227 = arith.mulf %223, %226 : vector<1x128xf32>
    %228 = arith.mulf %225, %225 : vector<1x128xf32>
    %229 = arith.subf %227, %228 : vector<1x128xf32>
    %cst_111 = arith.constant 0.000000e+00 : f32
    %230 = vector.broadcast %cst_111 : f32 to vector<1x128xf32>
    %231 = arith.maximumf %229, %230 : vector<1x128xf32>
    %c4 = arith.constant 4 : index
    %c0_112 = arith.constant 0 : index
    %232 = vector.load %arg2[%c4, %c0_112] : memref<6x128xf32, #tpu.memory_space<vmem>>, vector<1x128xf32>
    %c5_113 = arith.constant 5 : index
    %c0_114 = arith.constant 0 : index
    %233 = vector.load %arg2[%c5_113, %c0_114] : memref<6x128xf32, #tpu.memory_space<vmem>>, vector<1x128xf32>
    %cst_115 = arith.constant 9.99999974E-6 : f32
    %234 = vector.broadcast %cst_115 : f32 to vector<1x128xf32>
    %235 = arith.addf %231, %234 : vector<1x128xf32>
    %236 = math.rsqrt %235 : vector<1x128xf32>
    %237 = arith.mulf %232, %236 : vector<1x128xf32>
    %238 = arith.mulf %225, %237 : vector<1x128xf32>
    %239 = arith.subf %233, %238 : vector<1x128xf32>
    %240 = vector.broadcast %237 : vector<1x128xf32> to vector<128x128xf32>
    %241 = arith.mulf %218, %240 : vector<128x128xf32>
    %242 = vector.broadcast %239 : vector<1x128xf32> to vector<128x128xf32>
    %243 = arith.addf %241, %242 : vector<128x128xf32>
    %cst_116 = arith.constant 0.000000e+00 : f32
    %244 = vector.broadcast %cst_116 : f32 to vector<128x128xf32>
    %245 = arith.maximumf %243, %244 : vector<128x128xf32>
    %c0_117 = arith.constant 0 : index
    %c0_118 = arith.constant 0 : index
    %246 = vector.load %arg6[%c0_117, %c0_118] : memref<128x128xf32, #tpu.memory_space<vmem>>, vector<128x128xf32>
    tpu.vector_store %arg6[%c0_117, %c0_118], %245 {strides = array<i32>} : memref<128x128xf32, #tpu.memory_space<vmem>>, vector<128x128xf32>,
    return
  }
}

</mosaic_0001>

<llo_original>
// kernel: convnet_forward.1
$region0: #{convnet_forward.1}
  #allocation0 [shape = 'u32[]', space=smem, size = 0x4, offset = 0x4, fixed_abs, tag = 'smem constant byte address 0x4 - core index']
  #allocation1 [shape = 'u32[144,128]{1,0:T(1,128)}', space=vmem, size = 0x12000, scoped, tag = 'internal scratch']
  %s0 = inlined_call_operand.vmem [shape: bf16[512,128], index: 0, kind: input, shape index: {}]
  %s1 = inlined_call_operand.vmem [shape: bf16[3,128,128], index: 1, kind: input, shape index: {}]
  %s2 = inlined_call_operand.vmem [shape: f32[6,128], index: 2, kind: input, shape index: {}]
  %s3 = inlined_call_operand.vmem [shape: f32[512,9], index: 3, kind: input, shape index: {}]
  %s4 = inlined_call_operand.vmem [shape: f32[128,9], index: 4, kind: input, shape index: {}]
  %s5 = inlined_call_operand.vmem [shape: bf16[128,512], index: 5, kind: input, shape index: {}]
  %s6 = inlined_call_operand.hbm [shape: f32[128,128], index: 6, kind: output, shape index: {}]
  %s7 = sld [smem:[#allocation0]]
  $region34: #{convnet_forward.1} parent=0
    _
  %s9 = ssub.s32 1, %s7
  %s10 = scalar_select 0, %s9, %s7
  $region1: #{convnet_forward.1} parent=0
    #allocation2 [shape = 'u8[65536]{0}', space=vmem, size = 0x10000, scoped, tag = 'output window, operand 0, single buffered']
    #allocation3 [shape = 's32[1]{0}', space=sflag, size = 0x4, scoped, tag = 'scoped memory for convnet_forward.1']
    %11 = vsyncpa [#allocation3], 0
    // Predicated region
    $region2: #{convnet_forward.1} parent=1 // pred_check
      _
    $region3: #{convnet_forward.1} parent=1 // pred_check_branch
      %13 = sbr.rel (0) target = $region5
    $region4: #{convnet_forward.1} parent=1 // pred_region
      _
    $region5: #{convnet_forward.1} parent=1 // pred_fallthru
      _
    // Predicated region
    $region6: #{convnet_forward.1} parent=1 // pred_check
      _
    $region7: #{convnet_forward.1} parent=1 // pred_check_branch
      %15 = sbr.rel (0) target = $region9
    $region8: #{convnet_forward.1} parent=1 // pred_region
      _
    $region9: #{convnet_forward.1} parent=1 // pred_fallthru
      _
    // Predicated region
    $region10: #{convnet_forward.1} parent=1 // pred_check
      _
    $region11: #{convnet_forward.1} parent=1 // pred_check_branch
      %17 = sbr.rel (0) target = $region13
    $region12: #{convnet_forward.1} parent=1 // pred_region
      _
    $region13: #{convnet_forward.1} parent=1 // pred_fallthru
      _
    // Predicated region
    $region14: #{convnet_forward.1} parent=1 // pred_check
      _
    $region15: #{convnet_forward.1} parent=1 // pred_check_branch
      %19 = sbr.rel (0) target = $region17
    $region16: #{convnet_forward.1} parent=1 // pred_region
      _
    $region17: #{convnet_forward.1} parent=1 // pred_fallthru
      _
    // Predicated region
    $region18: #{convnet_forward.1} parent=1 // pred_check
      _
    $region19: #{convnet_forward.1} parent=1 // pred_check_branch
      %21 = sbr.rel (0) target = $region21
    $region20: #{convnet_forward.1} parent=1 // pred_region
      _
    $region21: #{convnet_forward.1} parent=1 // pred_fallthru
      _
    // Predicated region
    $region22: #{convnet_forward.1} parent=1 // pred_check
      _
    $region23: #{convnet_forward.1} parent=1 // pred_check_branch
      %23 = sbr.rel (0) target = $region25
    $region24: #{convnet_forward.1} parent=1 // pred_region
      _
    $region25: #{convnet_forward.1} parent=1 // pred_fallthru
      _
    %v25 = vld [vmem:[%s0] sm:$0xf]
    %v26 = vld [vmem:[%s0 + $0x4] sm:$0xf]
    %v27 = vld [vmem:[%s0 + $0x8] sm:$0xf]
    %v28 = vld [vmem:[%s0 + $0xc] sm:$0xf]
    %v29 = vld [vmem:[%s0 + $0x10] sm:$0xf]
    %v30 = vld [vmem:[%s0 + $0x14] sm:$0xf]
    %v31 = vld [vmem:[%s0 + $0x18] sm:$0xf]
    %v32 = vld [vmem:[%s0 + $0x1c] sm:$0xf]
    %v33 = vld [vmem:[%s0 + $0x20] sm:$0xf]
    %v34 = vld [vmem:[%s0 + $0x24] sm:$0xf]
    %v35 = vld [vmem:[%s0 + $0x28] sm:$0xf]
    %v36 = vld [vmem:[%s0 + $0x2c] sm:$0xf]
    %v37 = vld [vmem:[%s0 + $0x30] sm:$0xf]
    %v38 = vld [vmem:[%s0 + $0x34] sm:$0xf]
    %v39 = vld [vmem:[%s0 + $0x38] sm:$0xf]
    %v40 = vld [vmem:[%s0 + $0x3c] sm:$0xf]
    %v41 = vld [vmem:[%s0 + $0x40] sm:$0xf]
    %v42 = vld [vmem:[%s0 + $0x44] sm:$0xf]
    %v43 = vld [vmem:[%s0 + $0x48] sm:$0xf]
    %v44 = vld [vmem:[%s0 + $0x4c] sm:$0xf]
    %v45 = vld [vmem:[%s0 + $0x50] sm:$0xf]
    %v46 = vld [vmem:[%s0 + $0x54] sm:$0xf]
    %v47 = vld [vmem:[%s0 + $0x58] sm:$0xf]
    %v48 = vld [vmem:[%s0 + $0x5c] sm:$0xf]
    %v49 = vld [vmem:[%s0 + $0x60] sm:$0xf]
    %v50 = vld [vmem:[%s0 + $0x64] sm:$0xf]
    %v51 = vld [vmem:[%s0 + $0x68] sm:$0xf]
    %v52 = vld [vmem:[%s0 + $0x6c] sm:$0xf]
    %v53 = vld [vmem:[%s0 + $0x70] sm:$0xf]
    %v54 = vld [vmem:[%s0 + $0x74] sm:$0xf]
    %v55 = vld [vmem:[%s0 + $0x78] sm:$0xf]
    %v56 = vld [vmem:[%s0 + $0x7c] sm:$0xf]
    %v57 = vld [vmem:[%s0 + $0x80] sm:$0xf]
    %v58 = vld [vmem:[%s0 + $0x84] sm:$0xf]
    %v59 = vld [vmem:[%s0 + $0x88] sm:$0xf]
    %v60 = vld [vmem:[%s0 + $0x8c] sm:$0xf]
    %v61 = vld [vmem:[%s0 + $0x90] sm:$0xf]
    %v62 = vld [vmem:[%s0 + $0x94] sm:$0xf]
    %v63 = vld [vmem:[%s0 + $0x98] sm:$0xf]
    %v64 = vld [vmem:[%s0 + $0x9c] sm:$0xf]
    %v65 = vld [vmem:[%s0 + $0xa0] sm:$0xf]
    %v66 = vld [vmem:[%s0 + $0xa4] sm:$0xf]
    %v67 = vld [vmem:[%s0 + $0xa8] sm:$0xf]
    %v68 = vld [vmem:[%s0 + $0xac] sm:$0xf]
    %v69 = vld [vmem:[%s0 + $0xb0] sm:$0xf]
    %v70 = vld [vmem:[%s0 + $0xb4] sm:$0xf]
    %v71 = vld [vmem:[%s0 + $0xb8] sm:$0xf]
    %v72 = vld [vmem:[%s0 + $0xbc] sm:$0xf]
    %v73 = vld [vmem:[%s0 + $0xc0] sm:$0xf]
    %v74 = vld [vmem:[%s0 + $0xc4] sm:$0xf]
    %v75 = vld [vmem:[%s0 + $0xc8] sm:$0xf]
    %v76 = vld [vmem:[%s0 + $0xcc] sm:$0xf]
    %v77 = vld [vmem:[%s0 + $0xd0] sm:$0xf]
    %v78 = vld [vmem:[%s0 + $0xd4] sm:$0xf]
    %v79 = vld [vmem:[%s0 + $0xd8] sm:$0xf]
    %v80 = vld [vmem:[%s0 + $0xdc] sm:$0xf]
    %v81 = vld [vmem:[%s0 + $0xe0] sm:$0xf]
    %v82 = vld [vmem:[%s0 + $0xe4] sm:$0xf]
    %v83 = vld [vmem:[%s0 + $0xe8] sm:$0xf]
    %v84 = vld [vmem:[%s0 + $0xec] sm:$0xf]
    %v85 = vld [vmem:[%s0 + $0xf0] sm:$0xf]
    %v86 = vld [vmem:[%s0 + $0xf4] sm:$0xf]
    %v87 = vld [vmem:[%s0 + $0xf8] sm:$0xf]
    %v88 = vld [vmem:[%s0 + $0xfc] sm:$0xf]
    %v89 = vunpack.c.l.bf16 %v25
    %v90 = vunpack.c.l.bf16 %v26
    %v91 = vunpack.c.l.bf16 %v27
    %v92 = vunpack.c.l.bf16 %v28
    %v93 = vunpack.c.l.bf16 %v29
    %v94 = vunpack.c.l.bf16 %v30
    %v95 = vunpack.c.l.bf16 %v31
    %v96 = vunpack.c.l.bf16 %v32
    %v97 = vunpack.c.l.bf16 %v33
    %v98 = vunpack.c.l.bf16 %v34
    %v99 = vunpack.c.l.bf16 %v35
    %v100 = vunpack.c.l.bf16 %v36
    %v101 = vunpack.c.l.bf16 %v37
    %v102 = vunpack.c.l.bf16 %v38
    %v103 = vunpack.c.l.bf16 %v39
    %v104 = vunpack.c.l.bf16 %v40
    %v105 = vunpack.c.l.bf16 %v41
    %v106 = vunpack.c.l.bf16 %v42
    %v107 = vunpack.c.l.bf16 %v43
    %v108 = vunpack.c.l.bf16 %v44
    %v109 = vunpack.c.l.bf16 %v45
    %v110 = vunpack.c.l.bf16 %v46
    %v111 = vunpack.c.l.bf16 %v47
    %v112 = vunpack.c.l.bf16 %v48
    %v113 = vunpack.c.l.bf16 %v49
    %v114 = vunpack.c.l.bf16 %v50
    %v115 = vunpack.c.l.bf16 %v51
    %v116 = vunpack.c.l.bf16 %v52
    %v117 = vunpack.c.l.bf16 %v53
    %v118 = vunpack.c.l.bf16 %v54
    %v119 = vunpack.c.l.bf16 %v55
    %v120 = vunpack.c.l.bf16 %v56
    %v121 = vunpack.c.l.bf16 %v57
    %v122 = vunpack.c.l.bf16 %v58
    %v123 = vunpack.c.l.bf16 %v59
    %v124 = vunpack.c.l.bf16 %v60
    %v125 = vunpack.c.l.bf16 %v61
    %v126 = vunpack.c.l.bf16 %v62
    %v127 = vunpack.c.l.bf16 %v63
    %v128 = vunpack.c.l.bf16 %v64
    %v129 = vunpack.c.l.bf16 %v65
    %v130 = vunpack.c.l.bf16 %v66
    %v131 = vunpack.c.l.bf16 %v67
    %v132 = vunpack.c.l.bf16 %v68
    %v133 = vunpack.c.l.bf16 %v69
    %v134 = vunpack.c.l.bf16 %v70
    %v135 = vunpack.c.l.bf16 %v71
    %v136 = vunpack.c.l.bf16 %v72
    %v137 = vunpack.c.l.bf16 %v73
    %v138 = vunpack.c.l.bf16 %v74
    %v139 = vunpack.c.l.bf16 %v75
    %v140 = vunpack.c.l.bf16 %v76
    %v141 = vunpack.c.l.bf16 %v77
    %v142 = vunpack.c.l.bf16 %v78
    %v143 = vunpack.c.l.bf16 %v79
    %v144 = vunpack.c.l.bf16 %v80
    %v145 = vunpack.c.l.bf16 %v81
    %v146 = vunpack.c.l.bf16 %v82
    %v147 = vunpack.c.l.bf16 %v83
    %v148 = vunpack.c.l.bf16 %v84
    %v149 = vunpack.c.l.bf16 %v85
    %v150 = vunpack.c.l.bf16 %v86
    %v151 = vunpack.c.l.bf16 %v87
    %v152 = vunpack.c.l.bf16 %v88
    %v153 = vrot.slane %v89, 7
    %v154 = vrot.slane %v90, 7
    %v155 = vrot.slane %v91, 7
    %v156 = vrot.slane %v92, 7
    %v157 = vrot.slane %v93, 7
    %v158 = vrot.slane %v94, 7
    %v159 = vrot.slane %v95, 7
    %v160 = vrot.slane %v96, 7
    %v161 = vrot.slane %v97, 7
    %v162 = vrot.slane %v98, 7
    %v163 = vrot.slane %v99, 7
    %v164 = vrot.slane %v100, 7
    %v165 = vrot.slane %v101, 7
    %v166 = vrot.slane %v102, 7
    %v167 = vrot.slane %v103, 7
    %v168 = vrot.slane %v104, 7
    %v169 = vrot.slane %v105, 7
    %v170 = vrot.slane %v106, 7
    %v171 = vrot.slane %v107, 7
    %v172 = vrot.slane %v108, 7
    %v173 = vrot.slane %v109, 7
    %v174 = vrot.slane %v110, 7
    %v175 = vrot.slane %v111, 7
    %v176 = vrot.slane %v112, 7
    %v177 = vrot.slane %v113, 7
    %v178 = vrot.slane %v114, 7
    %v179 = vrot.slane %v115, 7
    %v180 = vrot.slane %v116, 7
    %v181 = vrot.slane %v117, 7
    %v182 = vrot.slane %v118, 7
    %v183 = vrot.slane %v119, 7
    %v184 = vrot.slane %v120, 7
    %v185 = vrot.slane %v121, 7
    %v186 = vrot.slane %v122, 7
    %v187 = vrot.slane %v123, 7
    %v188 = vrot.slane %v124, 7
    %v189 = vrot.slane %v125, 7
    %v190 = vrot.slane %v126, 7
    %v191 = vrot.slane %v127, 7
    %v192 = vrot.slane %v128, 7
    %v193 = vrot.slane %v129, 7
    %v194 = vrot.slane %v130, 7
    %v195 = vrot.slane %v131, 7
    %v196 = vrot.slane %v132, 7
    %v197 = vrot.slane %v133, 7
    %v198 = vrot.slane %v134, 7
    %v199 = vrot.slane %v135, 7
    %v200 = vrot.slane %v136, 7
    %v201 = vrot.slane %v137, 7
    %v202 = vrot.slane %v138, 7
    %v203 = vrot.slane %v139, 7
    %v204 = vrot.slane %v140, 7
    %v205 = vrot.slane %v141, 7
    %v206 = vrot.slane %v142, 7
    %v207 = vrot.slane %v143, 7
    %v208 = vrot.slane %v144, 7
    %v209 = vrot.slane %v145, 7
    %v210 = vrot.slane %v146, 7
    %v211 = vrot.slane %v147, 7
    %v212 = vrot.slane %v148, 7
    %v213 = vrot.slane %v149, 7
    %v214 = vrot.slane %v150, 7
    %v215 = vrot.slane %v151, 7
    %v216 = vrot.slane %v152, 7
    %v217 = vlaneseq
    %v218 = vshrl.u32 %v217, 7
    %vm219 = vcmp.lt.s32.totalorder %v218, 1
    %v220 = vsel %vm219, %v215, %v216
    %v221 = vsel %vm219, %v214, %v215
    %v222 = vsel %vm219, %v213, %v214
    %v223 = vsel %vm219, %v212, %v213
    %v224 = vsel %vm219, %v211, %v212
    %v225 = vsel %vm219, %v210, %v211
    %v226 = vsel %vm219, %v209, %v210
    %v227 = vsel %vm219, %v208, %v209
    %v228 = vsel %vm219, %v207, %v208
    %v229 = vsel %vm219, %v206, %v207
    %v230 = vsel %vm219, %v205, %v206
    %v231 = vsel %vm219, %v204, %v205
    %v232 = vsel %vm219, %v203, %v204
    %v233 = vsel %vm219, %v202, %v203
    %v234 = vsel %vm219, %v201, %v202
    %v235 = vsel %vm219, %v200, %v201
    %v236 = vsel %vm219, %v199, %v200
    %v237 = vsel %vm219, %v198, %v199
    %v238 = vsel %vm219, %v197, %v198
    %v239 = vsel %vm219, %v196, %v197
    %v240 = vsel %vm219, %v195, %v196
    %v241 = vsel %vm219, %v194, %v195
    %v242 = vsel %vm219, %v193, %v194
    %v243 = vsel %vm219, %v192, %v193
    %v244 = vsel %vm219, %v191, %v192
    %v245 = vsel %vm219, %v190, %v191
    %v246 = vsel %vm219, %v189, %v190
    %v247 = vsel %vm219, %v188, %v189
    %v248 = vsel %vm219, %v187, %v188
    %v249 = vsel %vm219, %v186, %v187
    %v250 = vsel %vm219, %v185, %v186
    %v251 = vsel %vm219, %v184, %v185
    %v252 = vsel %vm219, %v183, %v184
    %v253 = vsel %vm219, %v182, %v183
    %v254 = vsel %vm219, %v181, %v182
    %v255 = vsel %vm219, %v180, %v181
    %v256 = vsel %vm219, %v179, %v180
    %v257 = vsel %vm219, %v178, %v179
    %v258 = vsel %vm219, %v177, %v178
    %v259 = vsel %vm219, %v176, %v177
    %v260 = vsel %vm219, %v175, %v176
    %v261 = vsel %vm219, %v174, %v175
    %v262 = vsel %vm219, %v173, %v174
    %v263 = vsel %vm219, %v172, %v173
    %v264 = vsel %vm219, %v171, %v172
    %v265 = vsel %vm219, %v170, %v171
    %v266 = vsel %vm219, %v169, %v170
    %v267 = vsel %vm219, %v168, %v169
    %v268 = vsel %vm219, %v167, %v168
    %v269 = vsel %vm219, %v166, %v167
    %v270 = vsel %vm219, %v165, %v166
    %v271 = vsel %vm219, %v164, %v165
    %v272 = vsel %vm219, %v163, %v164
    %v273 = vsel %vm219, %v162, %v163
    %v274 = vsel %vm219, %v161, %v162
    %v275 = vsel %vm219, %v160, %v161
    %v276 = vsel %vm219, %v159, %v160
    %v277 = vsel %vm219, %v158, %v159
    %v278 = vsel %vm219, %v157, %v158
    %v279 = vsel %vm219, %v156, %v157
    %v280 = vsel %vm219, %v155, %v156
    %v281 = vsel %vm219, %v154, %v155
    %v282 = vsel %vm219, %v153, %v154
    %v283 = vsel %vm219, %v216, %v153
    %v284 = vld [vmem:[%s3] sm:$0xff]
    %v285 = vld [vmem:[%s3 + $0x8] sm:$0xff]
    %v286 = vld [vmem:[%s3 + $0x10] sm:$0xff]
    %v287 = vld [vmem:[%s3 + $0x18] sm:$0xff]
    %v288 = vld [vmem:[%s3 + $0x20] sm:$0xff]
    %v289 = vld [vmem:[%s3 + $0x28] sm:$0xff]
    %v290 = vld [vmem:[%s3 + $0x30] sm:$0xff]
    %v291 = vld [vmem:[%s3 + $0x38] sm:$0xff]
    %v292 = vld [vmem:[%s3 + $0x40] sm:$0xff]
    %v293 = vld [vmem:[%s3 + $0x48] sm:$0xff]
    %v294 = vld [vmem:[%s3 + $0x50] sm:$0xff]
    %v295 = vld [vmem:[%s3 + $0x58] sm:$0xff]
    %v296 = vld [vmem:[%s3 + $0x60] sm:$0xff]
    %v297 = vld [vmem:[%s3 + $0x68] sm:$0xff]
    %v298 = vld [vmem:[%s3 + $0x70] sm:$0xff]
    %v299 = vld [vmem:[%s3 + $0x78] sm:$0xff]
    %v300 = vld [vmem:[%s3 + $0x80] sm:$0xff]
    %v301 = vld [vmem:[%s3 + $0x88] sm:$0xff]
    %v302 = vld [vmem:[%s3 + $0x90] sm:$0xff]
    %v303 = vld [vmem:[%s3 + $0x98] sm:$0xff]
    %v304 = vld [vmem:[%s3 + $0xa0] sm:$0xff]
    %v305 = vld [vmem:[%s3 + $0xa8] sm:$0xff]
    %v306 = vld [vmem:[%s3 + $0xb0] sm:$0xff]
    %v307 = vld [vmem:[%s3 + $0xb8] sm:$0xff]
    %v308 = vld [vmem:[%s3 + $0xc0] sm:$0xff]
    %v309 = vld [vmem:[%s3 + $0xc8] sm:$0xff]
    %v310 = vld [vmem:[%s3 + $0xd0] sm:$0xff]
    %v311 = vld [vmem:[%s3 + $0xd8] sm:$0xff]
    %v312 = vld [vmem:[%s3 + $0xe0] sm:$0xff]
    %v313 = vld [vmem:[%s3 + $0xe8] sm:$0xff]
    %v314 = vld [vmem:[%s3 + $0xf0] sm:$0xff]
    %v315 = vld [vmem:[%s3 + $0xf8] sm:$0xff]
    %v316 = vld [vmem:[%s3 + $0x100] sm:$0xff]
    %v317 = vld [vmem:[%s3 + $0x108] sm:$0xff]
    %v318 = vld [vmem:[%s3 + $0x110] sm:$0xff]
    %v319 = vld [vmem:[%s3 + $0x118] sm:$0xff]
    %v320 = vld [vmem:[%s3 + $0x120] sm:$0xff]
    %v321 = vld [vmem:[%s3 + $0x128] sm:$0xff]
    %v322 = vld [vmem:[%s3 + $0x130] sm:$0xff]
    %v323 = vld [vmem:[%s3 + $0x138] sm:$0xff]
    %v324 = vld [vmem:[%s3 + $0x140] sm:$0xff]
    %v325 = vld [vmem:[%s3 + $0x148] sm:$0xff]
    %v326 = vld [vmem:[%s3 + $0x150] sm:$0xff]
    %v327 = vld [vmem:[%s3 + $0x158] sm:$0xff]
    %v328 = vld [vmem:[%s3 + $0x160] sm:$0xff]
    %v329 = vld [vmem:[%s3 + $0x168] sm:$0xff]
    %v330 = vld [vmem:[%s3 + $0x170] sm:$0xff]
    %v331 = vld [vmem:[%s3 + $0x178] sm:$0xff]
    %v332 = vld [vmem:[%s3 + $0x180] sm:$0xff]
    %v333 = vld [vmem:[%s3 + $0x188] sm:$0xff]
    %v334 = vld [vmem:[%s3 + $0x190] sm:$0xff]
    %v335 = vld [vmem:[%s3 + $0x198] sm:$0xff]
    %v336 = vld [vmem:[%s3 + $0x1a0] sm:$0xff]
    %v337 = vld [vmem:[%s3 + $0x1a8] sm:$0xff]
    %v338 = vld [vmem:[%s3 + $0x1b0] sm:$0xff]
    %v339 = vld [vmem:[%s3 + $0x1b8] sm:$0xff]
    %v340 = vld [vmem:[%s3 + $0x1c0] sm:$0xff]
    %v341 = vld [vmem:[%s3 + $0x1c8] sm:$0xff]
    %v342 = vld [vmem:[%s3 + $0x1d0] sm:$0xff]
    %v343 = vld [vmem:[%s3 + $0x1d8] sm:$0xff]
    %v344 = vld [vmem:[%s3 + $0x1e0] sm:$0xff]
    %v345 = vld [vmem:[%s3 + $0x1e8] sm:$0xff]
    %v346 = vld [vmem:[%s3 + $0x1f0] sm:$0xff]
    %v347 = vld [vmem:[%s3 + $0x1f8] sm:$0xff]
    %349 = vset.pattern.permute.xlu0 0
    %350 = vperm.xlu0 %349, %v284
    %v351 = vpop.permute.xlu0 %350
    %354 = vset.pattern.permute.xlu0 0
    %355 = vperm.xlu0 %354, %v285
    %v356 = vpop.permute.xlu0 %355
    %359 = vset.pattern.permute.xlu0 0
    %360 = vperm.xlu0 %359, %v286
    %v361 = vpop.permute.xlu0 %360
    %364 = vset.pattern.permute.xlu0 0
    %365 = vperm.xlu0 %364, %v287
    %v366 = vpop.permute.xlu0 %365
    %369 = vset.pattern.permute.xlu0 0
    %370 = vperm.xlu0 %369, %v288
    %v371 = vpop.permute.xlu0 %370
    %374 = vset.pattern.permute.xlu0 0
    %375 = vperm.xlu0 %374, %v289
    %v376 = vpop.permute.xlu0 %375
    %379 = vset.pattern.permute.xlu0 0
    %380 = vperm.xlu0 %379, %v290
    %v381 = vpop.permute.xlu0 %380
    %384 = vset.pattern.permute.xlu0 0
    %385 = vperm.xlu0 %384, %v291
    %v386 = vpop.permute.xlu0 %385
    %389 = vset.pattern.permute.xlu0 0
    %390 = vperm.xlu0 %389, %v292
    %v391 = vpop.permute.xlu0 %390
    %394 = vset.pattern.permute.xlu0 0
    %395 = vperm.xlu0 %394, %v293
    %v396 = vpop.permute.xlu0 %395
    %399 = vset.pattern.permute.xlu0 0
    %400 = vperm.xlu0 %399, %v294
    %v401 = vpop.permute.xlu0 %400
    %404 = vset.pattern.permute.xlu0 0
    %405 = vperm.xlu0 %404, %v295
    %v406 = vpop.permute.xlu0 %405
    %409 = vset.pattern.permute.xlu0 0
    %410 = vperm.xlu0 %409, %v296
    %v411 = vpop.permute.xlu0 %410
    %414 = vset.pattern.permute.xlu0 0
    %415 = vperm.xlu0 %414, %v297
    %v416 = vpop.permute.xlu0 %415
    %419 = vset.pattern.permute.xlu0 0
    %420 = vperm.xlu0 %419, %v298
    %v421 = vpop.permute.xlu0 %420
    %424 = vset.pattern.permute.xlu0 0
    %425 = vperm.xlu0 %424, %v299
    %v426 = vpop.permute.xlu0 %425
    %429 = vset.pattern.permute.xlu0 0
    %430 = vperm.xlu0 %429, %v300
    %v431 = vpop.permute.xlu0 %430
    %434 = vset.pattern.permute.xlu0 0
    %435 = vperm.xlu0 %434, %v301
    %v436 = vpop.permute.xlu0 %435
    %439 = vset.pattern.permute.xlu0 0
    %440 = vperm.xlu0 %439, %v302
    %v441 = vpop.permute.xlu0 %440
    %444 = vset.pattern.permute.xlu0 0
    %445 = vperm.xlu0 %444, %v303
    %v446 = vpop.permute.xlu0 %445
    %449 = vset.pattern.permute.xlu0 0
    %450 = vperm.xlu0 %449, %v304
    %v451 = vpop.permute.xlu0 %450
    %454 = vset.pattern.permute.xlu0 0
    %455 = vperm.xlu0 %454, %v305
    %v456 = vpop.permute.xlu0 %455
    %459 = vset.pattern.permute.xlu0 0
    %460 = vperm.xlu0 %459, %v306
    %v461 = vpop.permute.xlu0 %460
    %464 = vset.pattern.permute.xlu0 0
    %465 = vperm.xlu0 %464, %v307
    %v466 = vpop.permute.xlu0 %465
    %469 = vset.pattern.permute.xlu0 0
    %470 = vperm.xlu0 %469, %v308
    %v471 = vpop.permute.xlu0 %470
    %474 = vset.pattern.permute.xlu0 0
    %475 = vperm.xlu0 %474, %v309
    %v476 = vpop.permute.xlu0 %475
    %479 = vset.pattern.permute.xlu0 0
    %480 = vperm.xlu0 %479, %v310
    %v481 = vpop.permute.xlu0 %480
    %484 = vset.pattern.permute.xlu0 0
    %485 = vperm.xlu0 %484, %v311
    %v486 = vpop.permute.xlu0 %485
    %489 = vset.pattern.permute.xlu0 0
    %490 = vperm.xlu0 %489, %v312
    %v491 = vpop.permute.xlu0 %490
    %494 = vset.pattern.permute.xlu0 0
    %495 = vperm.xlu0 %494, %v313
    %v496 = vpop.permute.xlu0 %495
    %499 = vset.pattern.permute.xlu0 0
    %500 = vperm.xlu0 %499, %v314
    %v501 = vpop.permute.xlu0 %500
    %504 = vset.pattern.permute.xlu0 0
    %505 = vperm.xlu0 %504, %v315
    %v506 = vpop.permute.xlu0 %505
    %509 = vset.pattern.permute.xlu0 0
    %510 = vperm.xlu0 %509, %v316
    %v511 = vpop.permute.xlu0 %510
    %514 = vset.pattern.permute.xlu0 0
    %515 = vperm.xlu0 %514, %v317
    %v516 = vpop.permute.xlu0 %515
    %519 = vset.pattern.permute.xlu0 0
    %520 = vperm.xlu0 %519, %v318
    %v521 = vpop.permute.xlu0 %520
    %524 = vset.pattern.permute.xlu0 0
    %525 = vperm.xlu0 %524, %v319
    %v526 = vpop.permute.xlu0 %525
    %529 = vset.pattern.permute.xlu0 0
    %530 = vperm.xlu0 %529, %v320
    %v531 = vpop.permute.xlu0 %530
    %534 = vset.pattern.permute.xlu0 0
    %535 = vperm.xlu0 %534, %v321
    %v536 = vpop.permute.xlu0 %535
    %539 = vset.pattern.permute.xlu0 0
    %540 = vperm.xlu0 %539, %v322
    %v541 = vpop.permute.xlu0 %540
    %544 = vset.pattern.permute.xlu0 0
    %545 = vperm.xlu0 %544, %v323
    %v546 = vpop.permute.xlu0 %545
    %549 = vset.pattern.permute.xlu0 0
    %550 = vperm.xlu0 %549, %v324
    %v551 = vpop.permute.xlu0 %550
    %554 = vset.pattern.permute.xlu0 0
    %555 = vperm.xlu0 %554, %v325
    %v556 = vpop.permute.xlu0 %555
    %559 = vset.pattern.permute.xlu0 0
    %560 = vperm.xlu0 %559, %v326
    %v561 = vpop.permute.xlu0 %560
    %564 = vset.pattern.permute.xlu0 0
    %565 = vperm.xlu0 %564, %v327
    %v566 = vpop.permute.xlu0 %565
    %569 = vset.pattern.permute.xlu0 0
    %570 = vperm.xlu0 %569, %v328
    %v571 = vpop.permute.xlu0 %570
    %574 = vset.pattern.permute.xlu0 0
    %575 = vperm.xlu0 %574, %v329
    %v576 = vpop.permute.xlu0 %575
    %579 = vset.pattern.permute.xlu0 0
    %580 = vperm.xlu0 %579, %v330
    %v581 = vpop.permute.xlu0 %580
    %584 = vset.pattern.permute.xlu0 0
    %585 = vperm.xlu0 %584, %v331
    %v586 = vpop.permute.xlu0 %585
    %589 = vset.pattern.permute.xlu0 0
    %590 = vperm.xlu0 %589, %v332
    %v591 = vpop.permute.xlu0 %590
    %594 = vset.pattern.permute.xlu0 0
    %595 = vperm.xlu0 %594, %v333
    %v596 = vpop.permute.xlu0 %595
    %599 = vset.pattern.permute.xlu0 0
    %600 = vperm.xlu0 %599, %v334
    %v601 = vpop.permute.xlu0 %600
    %604 = vset.pattern.permute.xlu0 0
    %605 = vperm.xlu0 %604, %v335
    %v606 = vpop.permute.xlu0 %605
    %609 = vset.pattern.permute.xlu0 0
    %610 = vperm.xlu0 %609, %v336
    %v611 = vpop.permute.xlu0 %610
    %614 = vset.pattern.permute.xlu0 0
    %615 = vperm.xlu0 %614, %v337
    %v616 = vpop.permute.xlu0 %615
    %619 = vset.pattern.permute.xlu0 0
    %620 = vperm.xlu0 %619, %v338
    %v621 = vpop.permute.xlu0 %620
    %624 = vset.pattern.permute.xlu0 0
    %625 = vperm.xlu0 %624, %v339
    %v626 = vpop.permute.xlu0 %625
    %629 = vset.pattern.permute.xlu0 0
    %630 = vperm.xlu0 %629, %v340
    %v631 = vpop.permute.xlu0 %630
    %634 = vset.pattern.permute.xlu0 0
    %635 = vperm.xlu0 %634, %v341
    %v636 = vpop.permute.xlu0 %635
    %639 = vset.pattern.permute.xlu0 0
    %640 = vperm.xlu0 %639, %v342
    %v641 = vpop.permute.xlu0 %640
    %644 = vset.pattern.permute.xlu0 0
    %645 = vperm.xlu0 %644, %v343
    %v646 = vpop.permute.xlu0 %645
    %649 = vset.pattern.permute.xlu0 0
    %650 = vperm.xlu0 %649, %v344
    %v651 = vpop.permute.xlu0 %650
    %654 = vset.pattern.permute.xlu0 0
    %655 = vperm.xlu0 %654, %v345
    %v656 = vpop.permute.xlu0 %655
    %659 = vset.pattern.permute.xlu0 0
    %660 = vperm.xlu0 %659, %v346
    %v661 = vpop.permute.xlu0 %660
    %664 = vset.pattern.permute.xlu0 0
    %665 = vperm.xlu0 %664, %v347
    %v666 = vpop.permute.xlu0 %665
    %v668 = vmul.f32 %v221, %v351
    %v669 = vmul.f32 %v220, %v356
    %v670 = vmul.f32 %v283, %v361
    %v671 = vmul.f32 %v282, %v366
    %v672 = vmul.f32 %v281, %v371
    %v673 = vmul.f32 %v280, %v376
    %v674 = vmul.f32 %v279, %v381
    %v675 = vmul.f32 %v278, %v386
    %v676 = vmul.f32 %v277, %v391
    %v677 = vmul.f32 %v276, %v396
    %v678 = vmul.f32 %v275, %v401
    %v679 = vmul.f32 %v274, %v406
    %v680 = vmul.f32 %v273, %v411
    %v681 = vmul.f32 %v272, %v416
    %v682 = vmul.f32 %v271, %v421
    %v683 = vmul.f32 %v270, %v426
    %v684 = vmul.f32 %v269, %v431
    %v685 = vmul.f32 %v268, %v436
    %v686 = vmul.f32 %v267, %v441
    %v687 = vmul.f32 %v266, %v446
    %v688 = vmul.f32 %v265, %v451
    %v689 = vmul.f32 %v264, %v456
    %v690 = vmul.f32 %v263, %v461
    %v691 = vmul.f32 %v262, %v466
    %v692 = vmul.f32 %v261, %v471
    %v693 = vmul.f32 %v260, %v476
    %v694 = vmul.f32 %v259, %v481
    %v695 = vmul.f32 %v258, %v486
    %v696 = vmul.f32 %v257, %v491
    %v697 = vmul.f32 %v256, %v496
    %v698 = vmul.f32 %v255, %v501
    %v699 = vmul.f32 %v254, %v506
    %v700 = vmul.f32 %v253, %v511
    %v701 = vmul.f32 %v252, %v516
    %v702 = vmul.f32 %v251, %v521
    %v703 = vmul.f32 %v250, %v526
    %v704 = vmul.f32 %v249, %v531
    %v705 = vmul.f32 %v248, %v536
    %v706 = vmul.f32 %v247, %v541
    %v707 = vmul.f32 %v246, %v546
    %v708 = vmul.f32 %v245, %v551
    %v709 = vmul.f32 %v244, %v556
    %v710 = vmul.f32 %v243, %v561
    %v711 = vmul.f32 %v242, %v566
    %v712 = vmul.f32 %v241, %v571
    %v713 = vmul.f32 %v240, %v576
    %v714 = vmul.f32 %v239, %v581
    %v715 = vmul.f32 %v238, %v586
    %v716 = vmul.f32 %v237, %v591
    %v717 = vmul.f32 %v236, %v596
    %v718 = vmul.f32 %v235, %v601
    %v719 = vmul.f32 %v234, %v606
    %v720 = vmul.f32 %v233, %v611
    %v721 = vmul.f32 %v232, %v616
    %v722 = vmul.f32 %v231, %v621
    %v723 = vmul.f32 %v230, %v626
    %v724 = vmul.f32 %v229, %v631
    %v725 = vmul.f32 %v228, %v636
    %v726 = vmul.f32 %v227, %v641
    %v727 = vmul.f32 %v226, %v646
    %v728 = vmul.f32 %v225, %v651
    %v729 = vmul.f32 %v224, %v656
    %v730 = vmul.f32 %v223, %v661
    %v731 = vmul.f32 %v222, %v666
    %732 = vset.pattern.permute.xlu0 1
    %733 = vperm.xlu0 %732, %v284
    %v734 = vpop.permute.xlu0 %733
    %736 = vset.pattern.permute.xlu0 1
    %737 = vperm.xlu0 %736, %v285
    %v738 = vpop.permute.xlu0 %737
    %740 = vset.pattern.permute.xlu0 1
    %741 = vperm.xlu0 %740, %v286
    %v742 = vpop.permute.xlu0 %741
    %744 = vset.pattern.permute.xlu0 1
    %745 = vperm.xlu0 %744, %v287
    %v746 = vpop.permute.xlu0 %745
    %748 = vset.pattern.permute.xlu0 1
    %749 = vperm.xlu0 %748, %v288
    %v750 = vpop.permute.xlu0 %749
    %752 = vset.pattern.permute.xlu0 1
    %753 = vperm.xlu0 %752, %v289
    %v754 = vpop.permute.xlu0 %753
    %756 = vset.pattern.permute.xlu0 1
    %757 = vperm.xlu0 %756, %v290
    %v758 = vpop.permute.xlu0 %757
    %760 = vset.pattern.permute.xlu0 1
    %761 = vperm.xlu0 %760, %v291
    %v762 = vpop.permute.xlu0 %761
    %764 = vset.pattern.permute.xlu0 1
    %765 = vperm.xlu0 %764, %v292
    %v766 = vpop.permute.xlu0 %765
    %768 = vset.pattern.permute.xlu0 1
    %769 = vperm.xlu0 %768, %v293
    %v770 = vpop.permute.xlu0 %769
    %772 = vset.pattern.permute.xlu0 1
    %773 = vperm.xlu0 %772, %v294
    %v774 = vpop.permute.xlu0 %773
    %776 = vset.pattern.permute.xlu0 1
    %777 = vperm.xlu0 %776, %v295
    %v778 = vpop.permute.xlu0 %777
    %780 = vset.pattern.permute.xlu0 1
    %781 = vperm.xlu0 %780, %v296
    %v782 = vpop.permute.xlu0 %781
    %784 = vset.pattern.permute.xlu0 1
    %785 = vperm.xlu0 %784, %v297
    %v786 = vpop.permute.xlu0 %785
    %788 = vset.pattern.permute.xlu0 1
    %789 = vperm.xlu0 %788, %v298
    %v790 = vpop.permute.xlu0 %789
    %792 = vset.pattern.permute.xlu0 1
    %793 = vperm.xlu0 %792, %v299
    %v794 = vpop.permute.xlu0 %793
    %796 = vset.pattern.permute.xlu0 1
    %797 = vperm.xlu0 %796, %v300
    %v798 = vpop.permute.xlu0 %797
    %800 = vset.pattern.permute.xlu0 1
    %801 = vperm.xlu0 %800, %v301
    %v802 = vpop.permute.xlu0 %801
    %804 = vset.pattern.permute.xlu0 1
    %805 = vperm.xlu0 %804, %v302
    %v806 = vpop.permute.xlu0 %805
    %808 = vset.pattern.permute.xlu0 1
    %809 = vperm.xlu0 %808, %v303
    %v810 = vpop.permute.xlu0 %809
    %812 = vset.pattern.permute.xlu0 1
    %813 = vperm.xlu0 %812, %v304
    %v814 = vpop.permute.xlu0 %813
    %816 = vset.pattern.permute.xlu0 1
    %817 = vperm.xlu0 %816, %v305
    %v818 = vpop.permute.xlu0 %817
    %820 = vset.pattern.permute.xlu0 1
    %821 = vperm.xlu0 %820, %v306
    %v822 = vpop.permute.xlu0 %821
    %824 = vset.pattern.permute.xlu0 1
    %825 = vperm.xlu0 %824, %v307
    %v826 = vpop.permute.xlu0 %825
    %828 = vset.pattern.permute.xlu0 1
    %829 = vperm.xlu0 %828, %v308
    %v830 = vpop.permute.xlu0 %829
    %832 = vset.pattern.permute.xlu0 1
    %833 = vperm.xlu0 %832, %v309
    %v834 = vpop.permute.xlu0 %833
    %836 = vset.pattern.permute.xlu0 1
    %837 = vperm.xlu0 %836, %v310
    %v838 = vpop.permute.xlu0 %837
    %840 = vset.pattern.permute.xlu0 1
    %841 = vperm.xlu0 %840, %v311
    %v842 = vpop.permute.xlu0 %841
    %844 = vset.pattern.permute.xlu0 1
    %845 = vperm.xlu0 %844, %v312
    %v846 = vpop.permute.xlu0 %845
    %848 = vset.pattern.permute.xlu0 1
    %849 = vperm.xlu0 %848, %v313
    %v850 = vpop.permute.xlu0 %849
    %852 = vset.pattern.permute.xlu0 1
    %853 = vperm.xlu0 %852, %v314
    %v854 = vpop.permute.xlu0 %853
    %856 = vset.pattern.permute.xlu0 1
    %857 = vperm.xlu0 %856, %v315
    %v858 = vpop.permute.xlu0 %857
    %860 = vset.pattern.permute.xlu0 1
    %861 = vperm.xlu0 %860, %v316
    %v862 = vpop.permute.xlu0 %861
    %864 = vset.pattern.permute.xlu0 1
    %865 = vperm.xlu0 %864, %v317
    %v866 = vpop.permute.xlu0 %865
    %868 = vset.pattern.permute.xlu0 1
    %869 = vperm.xlu0 %868, %v318
    %v870 = vpop.permute.xlu0 %869
    %872 = vset.pattern.permute.xlu0 1
    %873 = vperm.xlu0 %872, %v319
    %v874 = vpop.permute.xlu0 %873
    %876 = vset.pattern.permute.xlu0 1
    %877 = vperm.xlu0 %876, %v320
    %v878 = vpop.permute.xlu0 %877
    %880 = vset.pattern.permute.xlu0 1
    %881 = vperm.xlu0 %880, %v321
    %v882 = vpop.permute.xlu0 %881
    %884 = vset.pattern.permute.xlu0 1
    %885 = vperm.xlu0 %884, %v322
    %v886 = vpop.permute.xlu0 %885
    %888 = vset.pattern.permute.xlu0 1
    %889 = vperm.xlu0 %888, %v323
    %v890 = vpop.permute.xlu0 %889
    %892 = vset.pattern.permute.xlu0 1
    %893 = vperm.xlu0 %892, %v324
    %v894 = vpop.permute.xlu0 %893
    %896 = vset.pattern.permute.xlu0 1
    %897 = vperm.xlu0 %896, %v325
    %v898 = vpop.permute.xlu0 %897
    %900 = vset.pattern.permute.xlu0 1
    %901 = vperm.xlu0 %900, %v326
    %v902 = vpop.permute.xlu0 %901
    %904 = vset.pattern.permute.xlu0 1
    %905 = vperm.xlu0 %904, %v327
    %v906 = vpop.permute.xlu0 %905
    %908 = vset.pattern.permute.xlu0 1
    %909 = vperm.xlu0 %908, %v328
    %v910 = vpop.permute.xlu0 %909
    %912 = vset.pattern.permute.xlu0 1
    %913 = vperm.xlu0 %912, %v329
    %v914 = vpop.permute.xlu0 %913
    %916 = vset.pattern.permute.xlu0 1
    %917 = vperm.xlu0 %916, %v330
    %v918 = vpop.permute.xlu0 %917
    %920 = vset.pattern.permute.xlu0 1
    %921 = vperm.xlu0 %920, %v331
    %v922 = vpop.permute.xlu0 %921
    %924 = vset.pattern.permute.xlu0 1
    %925 = vperm.xlu0 %924, %v332
    %v926 = vpop.permute.xlu0 %925
    %928 = vset.pattern.permute.xlu0 1
    %929 = vperm.xlu0 %928, %v333
    %v930 = vpop.permute.xlu0 %929
    %932 = vset.pattern.permute.xlu0 1
    %933 = vperm.xlu0 %932, %v334
    %v934 = vpop.permute.xlu0 %933
    %936 = vset.pattern.permute.xlu0 1
    %937 = vperm.xlu0 %936, %v335
    %v938 = vpop.permute.xlu0 %937
    %940 = vset.pattern.permute.xlu0 1
    %941 = vperm.xlu0 %940, %v336
    %v942 = vpop.permute.xlu0 %941
    %944 = vset.pattern.permute.xlu0 1
    %945 = vperm.xlu0 %944, %v337
    %v946 = vpop.permute.xlu0 %945
    %948 = vset.pattern.permute.xlu0 1
    %949 = vperm.xlu0 %948, %v338
    %v950 = vpop.permute.xlu0 %949
    %952 = vset.pattern.permute.xlu0 1
    %953 = vperm.xlu0 %952, %v339
    %v954 = vpop.permute.xlu0 %953
    %956 = vset.pattern.permute.xlu0 1
    %957 = vperm.xlu0 %956, %v340
    %v958 = vpop.permute.xlu0 %957
    %960 = vset.pattern.permute.xlu0 1
    %961 = vperm.xlu0 %960, %v341
    %v962 = vpop.permute.xlu0 %961
    %964 = vset.pattern.permute.xlu0 1
    %965 = vperm.xlu0 %964, %v342
    %v966 = vpop.permute.xlu0 %965
    %968 = vset.pattern.permute.xlu0 1
    %969 = vperm.xlu0 %968, %v343
    %v970 = vpop.permute.xlu0 %969
    %972 = vset.pattern.permute.xlu0 1
    %973 = vperm.xlu0 %972, %v344
    %v974 = vpop.permute.xlu0 %973
    %976 = vset.pattern.permute.xlu0 1
    %977 = vperm.xlu0 %976, %v345
    %v978 = vpop.permute.xlu0 %977
    %980 = vset.pattern.permute.xlu0 1
    %981 = vperm.xlu0 %980, %v346
    %v982 = vpop.permute.xlu0 %981
    %984 = vset.pattern.permute.xlu0 1
    %985 = vperm.xlu0 %984, %v347
    %v986 = vpop.permute.xlu0 %985
    %v988 = vmul.f32 %v151, %v734
    %v989 = vmul.f32 %v152, %v738
    %v990 = vmul.f32 %v89, %v742
    %v991 = vmul.f32 %v90, %v746
    %v992 = vmul.f32 %v91, %v750
    %v993 = vmul.f32 %v92, %v754
    %v994 = vmul.f32 %v93, %v758
    %v995 = vmul.f32 %v94, %v762
    %v996 = vmul.f32 %v95, %v766
    %v997 = vmul.f32 %v96, %v770
    %v998 = vmul.f32 %v97, %v774
    %v999 = vmul.f32 %v98, %v778
    %v1000 = vmul.f32 %v99, %v782
    %v1001 = vmul.f32 %v100, %v786
    %v1002 = vmul.f32 %v101, %v790
    %v1003 = vmul.f32 %v102, %v794
    %v1004 = vmul.f32 %v103, %v798
    %v1005 = vmul.f32 %v104, %v802
    %v1006 = vmul.f32 %v105, %v806
    %v1007 = vmul.f32 %v106, %v810
    %v1008 = vmul.f32 %v107, %v814
    %v1009 = vmul.f32 %v108, %v818
    %v1010 = vmul.f32 %v109, %v822
    %v1011 = vmul.f32 %v110, %v826
    %v1012 = vmul.f32 %v111, %v830
    %v1013 = vmul.f32 %v112, %v834
    %v1014 = vmul.f32 %v113, %v838
    %v1015 = vmul.f32 %v114, %v842
    %v1016 = vmul.f32 %v115, %v846
    %v1017 = vmul.f32 %v116, %v850
    %v1018 = vmul.f32 %v117, %v854
    %v1019 = vmul.f32 %v118, %v858
    %v1020 = vmul.f32 %v119, %v862
    %v1021 = vmul.f32 %v120, %v866
    %v1022 = vmul.f32 %v121, %v870
    %v1023 = vmul.f32 %v122, %v874
    %v1024 = vmul.f32 %v123, %v878
    %v1025 = vmul.f32 %v124, %v882
    %v1026 = vmul.f32 %v125, %v886
    %v1027 = vmul.f32 %v126, %v890
    %v1028 = vmul.f32 %v127, %v894
    %v1029 = vmul.f32 %v128, %v898
    %v1030 = vmul.f32 %v129, %v902
    %v1031 = vmul.f32 %v130, %v906
    %v1032 = vmul.f32 %v131, %v910
    %v1033 = vmul.f32 %v132, %v914
    %v1034 = vmul.f32 %v133, %v918
    %v1035 = vmul.f32 %v134, %v922
    %v1036 = vmul.f32 %v135, %v926
    %v1037 = vmul.f32 %v136, %v930
    %v1038 = vmul.f32 %v137, %v934
    %v1039 = vmul.f32 %v138, %v938
    %v1040 = vmul.f32 %v139, %v942
    %v1041 = vmul.f32 %v140, %v946
    %v1042 = vmul.f32 %v141, %v950
    %v1043 = vmul.f32 %v142, %v954
    %v1044 = vmul.f32 %v143, %v958
    %v1045 = vmul.f32 %v144, %v962
    %v1046 = vmul.f32 %v145, %v966
    %v1047 = vmul.f32 %v146, %v970
    %v1048 = vmul.f32 %v147, %v974
    %v1049 = vmul.f32 %v148, %v978
    %v1050 = vmul.f32 %v149, %v982
    %v1051 = vmul.f32 %v150, %v986
    %1052 = vrot.lane.b32.xlu0 %v988, 8
    %v1053 = vpop.permute.xlu0 %1052
    %1054 = vrot.lane.b32.xlu0 %v989, 8
    %v1055 = vpop.permute.xlu0 %1054
    %1056 = vrot.lane.b32.xlu0 %v990, 8
    %v1057 = vpop.permute.xlu0 %1056
    %1058 = vrot.lane.b32.xlu0 %v991, 8
    %v1059 = vpop.permute.xlu0 %1058
    %1060 = vrot.lane.b32.xlu0 %v992, 8
    %v1061 = vpop.permute.xlu0 %1060
    %1062 = vrot.lane.b32.xlu0 %v993, 8
    %v1063 = vpop.permute.xlu0 %1062
    %1064 = vrot.lane.b32.xlu0 %v994, 8
    %v1065 = vpop.permute.xlu0 %1064
    %1066 = vrot.lane.b32.xlu0 %v995, 8
    %v1067 = vpop.permute.xlu0 %1066
    %1068 = vrot.lane.b32.xlu0 %v996, 8
    %v1069 = vpop.permute.xlu0 %1068
    %1070 = vrot.lane.b32.xlu0 %v997, 8
    %v1071 = vpop.permute.xlu0 %1070
    %1072 = vrot.lane.b32.xlu0 %v998, 8
    %v1073 = vpop.permute.xlu0 %1072
    %1074 = vrot.lane.b32.xlu0 %v999, 8
    %v1075 = vpop.permute.xlu0 %1074
    %1076 = vrot.lane.b32.xlu0 %v1000, 8
    %v1077 = vpop.permute.xlu0 %1076
    %1078 = vrot.lane.b32.xlu0 %v1001, 8
    %v1079 = vpop.permute.xlu0 %1078
    %1080 = vrot.lane.b32.xlu0 %v1002, 8
    %v1081 = vpop.permute.xlu0 %1080
    %1082 = vrot.lane.b32.xlu0 %v1003, 8
    %v1083 = vpop.permute.xlu0 %1082
    %1084 = vrot.lane.b32.xlu0 %v1004, 8
    %v1085 = vpop.permute.xlu0 %1084
    %1086 = vrot.lane.b32.xlu0 %v1005, 8
    %v1087 = vpop.permute.xlu0 %1086
    %1088 = vrot.lane.b32.xlu0 %v1006, 8
    %v1089 = vpop.permute.xlu0 %1088
    %1090 = vrot.lane.b32.xlu0 %v1007, 8
    %v1091 = vpop.permute.xlu0 %1090
    %1092 = vrot.lane.b32.xlu0 %v1008, 8
    %v1093 = vpop.permute.xlu0 %1092
    %1094 = vrot.lane.b32.xlu0 %v1009, 8
    %v1095 = vpop.permute.xlu0 %1094
    %1096 = vrot.lane.b32.xlu0 %v1010, 8
    %v1097 = vpop.permute.xlu0 %1096
    %1098 = vrot.lane.b32.xlu0 %v1011, 8
    %v1099 = vpop.permute.xlu0 %1098
    %1100 = vrot.lane.b32.xlu0 %v1012, 8
    %v1101 = vpop.permute.xlu0 %1100
    %1102 = vrot.lane.b32.xlu0 %v1013, 8
    %v1103 = vpop.permute.xlu0 %1102
    %1104 = vrot.lane.b32.xlu0 %v1014, 8
    %v1105 = vpop.permute.xlu0 %1104
    %1106 = vrot.lane.b32.xlu0 %v1015, 8
    %v1107 = vpop.permute.xlu0 %1106
    %1108 = vrot.lane.b32.xlu0 %v1016, 8
    %v1109 = vpop.permute.xlu0 %1108
    %1110 = vrot.lane.b32.xlu0 %v1017, 8
    %v1111 = vpop.permute.xlu0 %1110
    %1112 = vrot.lane.b32.xlu0 %v1018, 8
    %v1113 = vpop.permute.xlu0 %1112
    %1114 = vrot.lane.b32.xlu0 %v1019, 8
    %v1115 = vpop.permute.xlu0 %1114
    %1116 = vrot.lane.b32.xlu0 %v1020, 8
    %v1117 = vpop.permute.xlu0 %1116
    %1118 = vrot.lane.b32.xlu0 %v1021, 8
    %v1119 = vpop.permute.xlu0 %1118
    %1120 = vrot.lane.b32.xlu0 %v1022, 8
    %v1121 = vpop.permute.xlu0 %1120
    %1122 = vrot.lane.b32.xlu0 %v1023, 8
    %v1123 = vpop.permute.xlu0 %1122
    %1124 = vrot.lane.b32.xlu0 %v1024, 8
    %v1125 = vpop.permute.xlu0 %1124
    %1126 = vrot.lane.b32.xlu0 %v1025, 8
    %v1127 = vpop.permute.xlu0 %1126
    %1128 = vrot.lane.b32.xlu0 %v1026, 8
    %v1129 = vpop.permute.xlu0 %1128
    %1130 = vrot.lane.b32.xlu0 %v1027, 8
    %v1131 = vpop.permute.xlu0 %1130
    %1132 = vrot.lane.b32.xlu0 %v1028, 8
    %v1133 = vpop.permute.xlu0 %1132
    %1134 = vrot.lane.b32.xlu0 %v1029, 8
    %v1135 = vpop.permute.xlu0 %1134
    %1136 = vrot.lane.b32.xlu0 %v1030, 8
    %v1137 = vpop.permute.xlu0 %1136
    %1138 = vrot.lane.b32.xlu0 %v1031, 8
    %v1139 = vpop.permute.xlu0 %1138
    %1140 = vrot.lane.b32.xlu0 %v1032, 8
    %v1141 = vpop.permute.xlu0 %1140
    %1142 = vrot.lane.b32.xlu0 %v1033, 8
    %v1143 = vpop.permute.xlu0 %1142
    %1144 = vrot.lane.b32.xlu0 %v1034, 8
    %v1145 = vpop.permute.xlu0 %1144
    %1146 = vrot.lane.b32.xlu0 %v1035, 8
    %v1147 = vpop.permute.xlu0 %1146
    %1148 = vrot.lane.b32.xlu0 %v1036, 8
    %v1149 = vpop.permute.xlu0 %1148
    %1150 = vrot.lane.b32.xlu0 %v1037, 8
    %v1151 = vpop.permute.xlu0 %1150
    %1152 = vrot.lane.b32.xlu0 %v1038, 8
    %v1153 = vpop.permute.xlu0 %1152
    %1154 = vrot.lane.b32.xlu0 %v1039, 8
    %v1155 = vpop.permute.xlu0 %1154
    %1156 = vrot.lane.b32.xlu0 %v1040, 8
    %v1157 = vpop.permute.xlu0 %1156
    %1158 = vrot.lane.b32.xlu0 %v1041, 8
    %v1159 = vpop.permute.xlu0 %1158
    %1160 = vrot.lane.b32.xlu0 %v1042, 8
    %v1161 = vpop.permute.xlu0 %1160
    %1162 = vrot.lane.b32.xlu0 %v1043, 8
    %v1163 = vpop.permute.xlu0 %1162
    %1164 = vrot.lane.b32.xlu0 %v1044, 8
    %v1165 = vpop.permute.xlu0 %1164
    %1166 = vrot.lane.b32.xlu0 %v1045, 8
    %v1167 = vpop.permute.xlu0 %1166
    %1168 = vrot.lane.b32.xlu0 %v1046, 8
    %v1169 = vpop.permute.xlu0 %1168
    %1170 = vrot.lane.b32.xlu0 %v1047, 8
    %v1171 = vpop.permute.xlu0 %1170
    %1172 = vrot.lane.b32.xlu0 %v1048, 8
    %v1173 = vpop.permute.xlu0 %1172
    %1174 = vrot.lane.b32.xlu0 %v1049, 8
    %v1175 = vpop.permute.xlu0 %1174
    %1176 = vrot.lane.b32.xlu0 %v1050, 8
    %v1177 = vpop.permute.xlu0 %1176
    %1178 = vrot.lane.b32.xlu0 %v1051, 8
    %v1179 = vpop.permute.xlu0 %1178
    %v1180 = vadd.f32 %v668, %v1053
    %v1181 = vadd.f32 %v669, %v1055
    %v1182 = vadd.f32 %v670, %v1057
    %v1183 = vadd.f32 %v671, %v1059
    %v1184 = vadd.f32 %v672, %v1061
    %v1185 = vadd.f32 %v673, %v1063
    %v1186 = vadd.f32 %v674, %v1065
    %v1187 = vadd.f32 %v675, %v1067
    %v1188 = vadd.f32 %v676, %v1069
    %v1189 = vadd.f32 %v677, %v1071
    %v1190 = vadd.f32 %v678, %v1073
    %v1191 = vadd.f32 %v679, %v1075
    %v1192 = vadd.f32 %v680, %v1077
    %v1193 = vadd.f32 %v681, %v1079
    %v1194 = vadd.f32 %v682, %v1081
    %v1195 = vadd.f32 %v683, %v1083
    %v1196 = vadd.f32 %v684, %v1085
    %v1197 = vadd.f32 %v685, %v1087
    %v1198 = vadd.f32 %v686, %v1089
    %v1199 = vadd.f32 %v687, %v1091
    %v1200 = vadd.f32 %v688, %v1093
    %v1201 = vadd.f32 %v689, %v1095
    %v1202 = vadd.f32 %v690, %v1097
    %v1203 = vadd.f32 %v691, %v1099
    %v1204 = vadd.f32 %v692, %v1101
    %v1205 = vadd.f32 %v693, %v1103
    %v1206 = vadd.f32 %v694, %v1105
    %v1207 = vadd.f32 %v695, %v1107
    %v1208 = vadd.f32 %v696, %v1109
    %v1209 = vadd.f32 %v697, %v1111
    %v1210 = vadd.f32 %v698, %v1113
    %v1211 = vadd.f32 %v699, %v1115
    %v1212 = vadd.f32 %v700, %v1117
    %v1213 = vadd.f32 %v701, %v1119
    %v1214 = vadd.f32 %v702, %v1121
    %v1215 = vadd.f32 %v703, %v1123
    %v1216 = vadd.f32 %v704, %v1125
    %v1217 = vadd.f32 %v705, %v1127
    %v1218 = vadd.f32 %v706, %v1129
    %v1219 = vadd.f32 %v707, %v1131
    %v1220 = vadd.f32 %v708, %v1133
    %v1221 = vadd.f32 %v709, %v1135
    %v1222 = vadd.f32 %v710, %v1137
    %v1223 = vadd.f32 %v711, %v1139
    %v1224 = vadd.f32 %v712, %v1141
    %v1225 = vadd.f32 %v713, %v1143
    %v1226 = vadd.f32 %v714, %v1145
    %v1227 = vadd.f32 %v715, %v1147
    %v1228 = vadd.f32 %v716, %v1149
    %v1229 = vadd.f32 %v717, %v1151
    %v1230 = vadd.f32 %v718, %v1153
    %v1231 = vadd.f32 %v719, %v1155
    %v1232 = vadd.f32 %v720, %v1157
    %v1233 = vadd.f32 %v721, %v1159
    %v1234 = vadd.f32 %v722, %v1161
    %v1235 = vadd.f32 %v723, %v1163
    %v1236 = vadd.f32 %v724, %v1165
    %v1237 = vadd.f32 %v725, %v1167
    %v1238 = vadd.f32 %v726, %v1169
    %v1239 = vadd.f32 %v727, %v1171
    %v1240 = vadd.f32 %v728, %v1173
    %v1241 = vadd.f32 %v729, %v1175
    %v1242 = vadd.f32 %v730, %v1177
    %v1243 = vadd.f32 %v731, %v1179
    %v1244 = vrot.slane %v89, 1
    %v1245 = vrot.slane %v90, 1
    %v1246 = vrot.slane %v91, 1
    %v1247 = vrot.slane %v92, 1
    %v1248 = vrot.slane %v93, 1
    %v1249 = vrot.slane %v94, 1
    %v1250 = vrot.slane %v95, 1
    %v1251 = vrot.slane %v96, 1
    %v1252 = vrot.slane %v97, 1
    %v1253 = vrot.slane %v98, 1
    %v1254 = vrot.slane %v99, 1
    %v1255 = vrot.slane %v100, 1
    %v1256 = vrot.slane %v101, 1
    %v1257 = vrot.slane %v102, 1
    %v1258 = vrot.slane %v103, 1
    %v1259 = vrot.slane %v104, 1
    %v1260 = vrot.slane %v105, 1
    %v1261 = vrot.slane %v106, 1
    %v1262 = vrot.slane %v107, 1
    %v1263 = vrot.slane %v108, 1
    %v1264 = vrot.slane %v109, 1
    %v1265 = vrot.slane %v110, 1
    %v1266 = vrot.slane %v111, 1
    %v1267 = vrot.slane %v112, 1
    %v1268 = vrot.slane %v113, 1
    %v1269 = vrot.slane %v114, 1
    %v1270 = vrot.slane %v115, 1
    %v1271 = vrot.slane %v116, 1
    %v1272 = vrot.slane %v117, 1
    %v1273 = vrot.slane %v118, 1
    %v1274 = vrot.slane %v119, 1
    %v1275 = vrot.slane %v120, 1
    %v1276 = vrot.slane %v121, 1
    %v1277 = vrot.slane %v122, 1
    %v1278 = vrot.slane %v123, 1
    %v1279 = vrot.slane %v124, 1
    %v1280 = vrot.slane %v125, 1
    %v1281 = vrot.slane %v126, 1
    %v1282 = vrot.slane %v127, 1
    %v1283 = vrot.slane %v128, 1
    %v1284 = vrot.slane %v129, 1
    %v1285 = vrot.slane %v130, 1
    %v1286 = vrot.slane %v131, 1
    %v1287 = vrot.slane %v132, 1
    %v1288 = vrot.slane %v133, 1
    %v1289 = vrot.slane %v134, 1
    %v1290 = vrot.slane %v135, 1
    %v1291 = vrot.slane %v136, 1
    %v1292 = vrot.slane %v137, 1
    %v1293 = vrot.slane %v138, 1
    %v1294 = vrot.slane %v139, 1
    %v1295 = vrot.slane %v140, 1
    %v1296 = vrot.slane %v141, 1
    %v1297 = vrot.slane %v142, 1
    %v1298 = vrot.slane %v143, 1
    %v1299 = vrot.slane %v144, 1
    %v1300 = vrot.slane %v145, 1
    %v1301 = vrot.slane %v146, 1
    %v1302 = vrot.slane %v147, 1
    %v1303 = vrot.slane %v148, 1
    %v1304 = vrot.slane %v149, 1
    %v1305 = vrot.slane %v150, 1
    %v1306 = vrot.slane %v151, 1
    %v1307 = vrot.slane %v152, 1
    %vm1308 = vcmp.lt.s32.totalorder %v218, 7
    %v1309 = vsel %vm1308, %v1306, %v1307
    %v1310 = vsel %vm1308, %v1305, %v1306
    %v1311 = vsel %vm1308, %v1304, %v1305
    %v1312 = vsel %vm1308, %v1303, %v1304
    %v1313 = vsel %vm1308, %v1302, %v1303
    %v1314 = vsel %vm1308, %v1301, %v1302
    %v1315 = vsel %vm1308, %v1300, %v1301
    %v1316 = vsel %vm1308, %v1299, %v1300
    %v1317 = vsel %vm1308, %v1298, %v1299
    %v1318 = vsel %vm1308, %v1297, %v1298
    %v1319 = vsel %vm1308, %v1296, %v1297
    %v1320 = vsel %vm1308, %v1295, %v1296
    %v1321 = vsel %vm1308, %v1294, %v1295
    %v1322 = vsel %vm1308, %v1293, %v1294
    %v1323 = vsel %vm1308, %v1292, %v1293
    %v1324 = vsel %vm1308, %v1291, %v1292
    %v1325 = vsel %vm1308, %v1290, %v1291
    %v1326 = vsel %vm1308, %v1289, %v1290
    %v1327 = vsel %vm1308, %v1288, %v1289
    %v1328 = vsel %vm1308, %v1287, %v1288
    %v1329 = vsel %vm1308, %v1286, %v1287
    %v1330 = vsel %vm1308, %v1285, %v1286
    %v1331 = vsel %vm1308, %v1284, %v1285
    %v1332 = vsel %vm1308, %v1283, %v1284
    %v1333 = vsel %vm1308, %v1282, %v1283
    %v1334 = vsel %vm1308, %v1281, %v1282
    %v1335 = vsel %vm1308, %v1280, %v1281
    %v1336 = vsel %vm1308, %v1279, %v1280
    %v1337 = vsel %vm1308, %v1278, %v1279
    %v1338 = vsel %vm1308, %v1277, %v1278
    %v1339 = vsel %vm1308, %v1276, %v1277
    %v1340 = vsel %vm1308, %v1275, %v1276
    %v1341 = vsel %vm1308, %v1274, %v1275
    %v1342 = vsel %vm1308, %v1273, %v1274
    %v1343 = vsel %vm1308, %v1272, %v1273
    %v1344 = vsel %vm1308, %v1271, %v1272
    %v1345 = vsel %vm1308, %v1270, %v1271
    %v1346 = vsel %vm1308, %v1269, %v1270
    %v1347 = vsel %vm1308, %v1268, %v1269
    %v1348 = vsel %vm1308, %v1267, %v1268
    %v1349 = vsel %vm1308, %v1266, %v1267
    %v1350 = vsel %vm1308, %v1265, %v1266
    %v1351 = vsel %vm1308, %v1264, %v1265
    %v1352 = vsel %vm1308, %v1263, %v1264
    %v1353 = vsel %vm1308, %v1262, %v1263
    %v1354 = vsel %vm1308, %v1261, %v1262
    %v1355 = vsel %vm1308, %v1260, %v1261
    %v1356 = vsel %vm1308, %v1259, %v1260
    %v1357 = vsel %vm1308, %v1258, %v1259
    %v1358 = vsel %vm1308, %v1257, %v1258
    %v1359 = vsel %vm1308, %v1256, %v1257
    %v1360 = vsel %vm1308, %v1255, %v1256
    %v1361 = vsel %vm1308, %v1254, %v1255
    %v1362 = vsel %vm1308, %v1253, %v1254
    %v1363 = vsel %vm1308, %v1252, %v1253
    %v1364 = vsel %vm1308, %v1251, %v1252
    %v1365 = vsel %vm1308, %v1250, %v1251
    %v1366 = vsel %vm1308, %v1249, %v1250
    %v1367 = vsel %vm1308, %v1248, %v1249
    %v1368 = vsel %vm1308, %v1247, %v1248
    %v1369 = vsel %vm1308, %v1246, %v1247
    %v1370 = vsel %vm1308, %v1245, %v1246
    %v1371 = vsel %vm1308, %v1244, %v1245
    %v1372 = vsel %vm1308, %v1307, %v1244
    %1373 = vset.pattern.permute.xlu0 2
    %1374 = vperm.xlu0 %1373, %v284
    %v1375 = vpop.permute.xlu0 %1374
    %1377 = vset.pattern.permute.xlu0 2
    %1378 = vperm.xlu0 %1377, %v285
    %v1379 = vpop.permute.xlu0 %1378
    %1381 = vset.pattern.permute.xlu0 2
    %1382 = vperm.xlu0 %1381, %v286
    %v1383 = vpop.permute.xlu0 %1382
    %1385 = vset.pattern.permute.xlu0 2
    %1386 = vperm.xlu0 %1385, %v287
    %v1387 = vpop.permute.xlu0 %1386
    %1389 = vset.pattern.permute.xlu0 2
    %1390 = vperm.xlu0 %1389, %v288
    %v1391 = vpop.permute.xlu0 %1390
    %1393 = vset.pattern.permute.xlu0 2
    %1394 = vperm.xlu0 %1393, %v289
    %v1395 = vpop.permute.xlu0 %1394
    %1397 = vset.pattern.permute.xlu0 2
    %1398 = vperm.xlu0 %1397, %v290
    %v1399 = vpop.permute.xlu0 %1398
    %1401 = vset.pattern.permute.xlu0 2
    %1402 = vperm.xlu0 %1401, %v291
    %v1403 = vpop.permute.xlu0 %1402
    %1405 = vset.pattern.permute.xlu0 2
    %1406 = vperm.xlu0 %1405, %v292
    %v1407 = vpop.permute.xlu0 %1406
    %1409 = vset.pattern.permute.xlu0 2
    %1410 = vperm.xlu0 %1409, %v293
    %v1411 = vpop.permute.xlu0 %1410
    %1413 = vset.pattern.permute.xlu0 2
    %1414 = vperm.xlu0 %1413, %v294
    %v1415 = vpop.permute.xlu0 %1414
    %1417 = vset.pattern.permute.xlu0 2
    %1418 = vperm.xlu0 %1417, %v295
    %v1419 = vpop.permute.xlu0 %1418
    %1421 = vset.pattern.permute.xlu0 2
    %1422 = vperm.xlu0 %1421, %v296
    %v1423 = vpop.permute.xlu0 %1422
    %1425 = vset.pattern.permute.xlu0 2
    %1426 = vperm.xlu0 %1425, %v297
    %v1427 = vpop.permute.xlu0 %1426
    %1429 = vset.pattern.permute.xlu0 2
    %1430 = vperm.xlu0 %1429, %v298
    %v1431 = vpop.permute.xlu0 %1430
    %1433 = vset.pattern.permute.xlu0 2
    %1434 = vperm.xlu0 %1433, %v299
    %v1435 = vpop.permute.xlu0 %1434
    %1437 = vset.pattern.permute.xlu0 2
    %1438 = vperm.xlu0 %1437, %v300
    %v1439 = vpop.permute.xlu0 %1438
    %1441 = vset.pattern.permute.xlu0 2
    %1442 = vperm.xlu0 %1441, %v301
    %v1443 = vpop.permute.xlu0 %1442
    %1445 = vset.pattern.permute.xlu0 2
    %1446 = vperm.xlu0 %1445, %v302
    %v1447 = vpop.permute.xlu0 %1446
    %1449 = vset.pattern.permute.xlu0 2
    %1450 = vperm.xlu0 %1449, %v303
    %v1451 = vpop.permute.xlu0 %1450
    %1453 = vset.pattern.permute.xlu0 2
    %1454 = vperm.xlu0 %1453, %v304
    %v1455 = vpop.permute.xlu0 %1454
    %1457 = vset.pattern.permute.xlu0 2
    %1458 = vperm.xlu0 %1457, %v305
    %v1459 = vpop.permute.xlu0 %1458
    %1461 = vset.pattern.permute.xlu0 2
    %1462 = vperm.xlu0 %1461, %v306
    %v1463 = vpop.permute.xlu0 %1462
    %1465 = vset.pattern.permute.xlu0 2
    %1466 = vperm.xlu0 %1465, %v307
    %v1467 = vpop.permute.xlu0 %1466
    %1469 = vset.pattern.permute.xlu0 2
    %1470 = vperm.xlu0 %1469, %v308
    %v1471 = vpop.permute.xlu0 %1470
    %1473 = vset.pattern.permute.xlu0 2
    %1474 = vperm.xlu0 %1473, %v309
    %v1475 = vpop.permute.xlu0 %1474
    %1477 = vset.pattern.permute.xlu0 2
    %1478 = vperm.xlu0 %1477, %v310
    %v1479 = vpop.permute.xlu0 %1478
    %1481 = vset.pattern.permute.xlu0 2
    %1482 = vperm.xlu0 %1481, %v311
    %v1483 = vpop.permute.xlu0 %1482
    %1485 = vset.pattern.permute.xlu0 2
    %1486 = vperm.xlu0 %1485, %v312
    %v1487 = vpop.permute.xlu0 %1486
    %1489 = vset.pattern.permute.xlu0 2
    %1490 = vperm.xlu0 %1489, %v313
    %v1491 = vpop.permute.xlu0 %1490
    %1493 = vset.pattern.permute.xlu0 2
    %1494 = vperm.xlu0 %1493, %v314
    %v1495 = vpop.permute.xlu0 %1494
    %1497 = vset.pattern.permute.xlu0 2
    %1498 = vperm.xlu0 %1497, %v315
    %v1499 = vpop.permute.xlu0 %1498
    %1501 = vset.pattern.permute.xlu0 2
    %1502 = vperm.xlu0 %1501, %v316
    %v1503 = vpop.permute.xlu0 %1502
    %1505 = vset.pattern.permute.xlu0 2
    %1506 = vperm.xlu0 %1505, %v317
    %v1507 = vpop.permute.xlu0 %1506
    %1509 = vset.pattern.permute.xlu0 2
    %1510 = vperm.xlu0 %1509, %v318
    %v1511 = vpop.permute.xlu0 %1510
    %1513 = vset.pattern.permute.xlu0 2
    %1514 = vperm.xlu0 %1513, %v319
    %v1515 = vpop.permute.xlu0 %1514
    %1517 = vset.pattern.permute.xlu0 2
    %1518 = vperm.xlu0 %1517, %v320
    %v1519 = vpop.permute.xlu0 %1518
    %1521 = vset.pattern.permute.xlu0 2
    %1522 = vperm.xlu0 %1521, %v321
    %v1523 = vpop.permute.xlu0 %1522
    %1525 = vset.pattern.permute.xlu0 2
    %1526 = vperm.xlu0 %1525, %v322
    %v1527 = vpop.permute.xlu0 %1526
    %1529 = vset.pattern.permute.xlu0 2
    %1530 = vperm.xlu0 %1529, %v323
    %v1531 = vpop.permute.xlu0 %1530
    %1533 = vset.pattern.permute.xlu0 2
    %1534 = vperm.xlu0 %1533, %v324
    %v1535 = vpop.permute.xlu0 %1534
    %1537 = vset.pattern.permute.xlu0 2
    %1538 = vperm.xlu0 %1537, %v325
    %v1539 = vpop.permute.xlu0 %1538
    %1541 = vset.pattern.permute.xlu0 2
    %1542 = vperm.xlu0 %1541, %v326
    %v1543 = vpop.permute.xlu0 %1542
    %1545 = vset.pattern.permute.xlu0 2
    %1546 = vperm.xlu0 %1545, %v327
    %v1547 = vpop.permute.xlu0 %1546
    %1549 = vset.pattern.permute.xlu0 2
    %1550 = vperm.xlu0 %1549, %v328
    %v1551 = vpop.permute.xlu0 %1550
    %1553 = vset.pattern.permute.xlu0 2
    %1554 = vperm.xlu0 %1553, %v329
    %v1555 = vpop.permute.xlu0 %1554
    %1557 = vset.pattern.permute.xlu0 2
    %1558 = vperm.xlu0 %1557, %v330
    %v1559 = vpop.permute.xlu0 %1558
    %1561 = vset.pattern.permute.xlu0 2
    %1562 = vperm.xlu0 %1561, %v331
    %v1563 = vpop.permute.xlu0 %1562
    %1565 = vset.pattern.permute.xlu0 2
    %1566 = vperm.xlu0 %1565, %v332
    %v1567 = vpop.permute.xlu0 %1566
    %1569 = vset.pattern.permute.xlu0 2
    %1570 = vperm.xlu0 %1569, %v333
    %v1571 = vpop.permute.xlu0 %1570
    %1573 = vset.pattern.permute.xlu0 2
    %1574 = vperm.xlu0 %1573, %v334
    %v1575 = vpop.permute.xlu0 %1574
    %1577 = vset.pattern.permute.xlu0 2
    %1578 = vperm.xlu0 %1577, %v335
    %v1579 = vpop.permute.xlu0 %1578
    %1581 = vset.pattern.permute.xlu0 2
    %1582 = vperm.xlu0 %1581, %v336
    %v1583 = vpop.permute.xlu0 %1582
    %1585 = vset.pattern.permute.xlu0 2
    %1586 = vperm.xlu0 %1585, %v337
    %v1587 = vpop.permute.xlu0 %1586
    %1589 = vset.pattern.permute.xlu0 2
    %1590 = vperm.xlu0 %1589, %v338
    %v1591 = vpop.permute.xlu0 %1590
    %1593 = vset.pattern.permute.xlu0 2
    %1594 = vperm.xlu0 %1593, %v339
    %v1595 = vpop.permute.xlu0 %1594
    %1597 = vset.pattern.permute.xlu0 2
    %1598 = vperm.xlu0 %1597, %v340
    %v1599 = vpop.permute.xlu0 %1598
    %1601 = vset.pattern.permute.xlu0 2
    %1602 = vperm.xlu0 %1601, %v341
    %v1603 = vpop.permute.xlu0 %1602
    %1605 = vset.pattern.permute.xlu0 2
    %1606 = vperm.xlu0 %1605, %v342
    %v1607 = vpop.permute.xlu0 %1606
    %1609 = vset.pattern.permute.xlu0 2
    %1610 = vperm.xlu0 %1609, %v343
    %v1611 = vpop.permute.xlu0 %1610
    %1613 = vset.pattern.permute.xlu0 2
    %1614 = vperm.xlu0 %1613, %v344
    %v1615 = vpop.permute.xlu0 %1614
    %1617 = vset.pattern.permute.xlu0 2
    %1618 = vperm.xlu0 %1617, %v345
    %v1619 = vpop.permute.xlu0 %1618
    %1621 = vset.pattern.permute.xlu0 2
    %1622 = vperm.xlu0 %1621, %v346
    %v1623 = vpop.permute.xlu0 %1622
    %1625 = vset.pattern.permute.xlu0 2
    %1626 = vperm.xlu0 %1625, %v347
    %v1627 = vpop.permute.xlu0 %1626
    %v1629 = vmul.f32 %v1309, %v1375
    %v1630 = vmul.f32 %v1372, %v1379
    %v1631 = vmul.f32 %v1371, %v1383
    %v1632 = vmul.f32 %v1370, %v1387
    %v1633 = vmul.f32 %v1369, %v1391
    %v1634 = vmul.f32 %v1368, %v1395
    %v1635 = vmul.f32 %v1367, %v1399
    %v1636 = vmul.f32 %v1366, %v1403
    %v1637 = vmul.f32 %v1365, %v1407
    %v1638 = vmul.f32 %v1364, %v1411
    %v1639 = vmul.f32 %v1363, %v1415
    %v1640 = vmul.f32 %v1362, %v1419
    %v1641 = vmul.f32 %v1361, %v1423
    %v1642 = vmul.f32 %v1360, %v1427
    %v1643 = vmul.f32 %v1359, %v1431
    %v1644 = vmul.f32 %v1358, %v1435
    %v1645 = vmul.f32 %v1357, %v1439
    %v1646 = vmul.f32 %v1356, %v1443
    %v1647 = vmul.f32 %v1355, %v1447
    %v1648 = vmul.f32 %v1354, %v1451
    %v1649 = vmul.f32 %v1353, %v1455
    %v1650 = vmul.f32 %v1352, %v1459
    %v1651 = vmul.f32 %v1351, %v1463
    %v1652 = vmul.f32 %v1350, %v1467
    %v1653 = vmul.f32 %v1349, %v1471
    %v1654 = vmul.f32 %v1348, %v1475
    %v1655 = vmul.f32 %v1347, %v1479
    %v1656 = vmul.f32 %v1346, %v1483
    %v1657 = vmul.f32 %v1345, %v1487
    %v1658 = vmul.f32 %v1344, %v1491
    %v1659 = vmul.f32 %v1343, %v1495
    %v1660 = vmul.f32 %v1342, %v1499
    %v1661 = vmul.f32 %v1341, %v1503
    %v1662 = vmul.f32 %v1340, %v1507
    %v1663 = vmul.f32 %v1339, %v1511
    %v1664 = vmul.f32 %v1338, %v1515
    %v1665 = vmul.f32 %v1337, %v1519
    %v1666 = vmul.f32 %v1336, %v1523
    %v1667 = vmul.f32 %v1335, %v1527
    %v1668 = vmul.f32 %v1334, %v1531
    %v1669 = vmul.f32 %v1333, %v1535
    %v1670 = vmul.f32 %v1332, %v1539
    %v1671 = vmul.f32 %v1331, %v1543
    %v1672 = vmul.f32 %v1330, %v1547
    %v1673 = vmul.f32 %v1329, %v1551
    %v1674 = vmul.f32 %v1328, %v1555
    %v1675 = vmul.f32 %v1327, %v1559
    %v1676 = vmul.f32 %v1326, %v1563
    %v1677 = vmul.f32 %v1325, %v1567
    %v1678 = vmul.f32 %v1324, %v1571
    %v1679 = vmul.f32 %v1323, %v1575
    %v1680 = vmul.f32 %v1322, %v1579
    %v1681 = vmul.f32 %v1321, %v1583
    %v1682 = vmul.f32 %v1320, %v1587
    %v1683 = vmul.f32 %v1319, %v1591
    %v1684 = vmul.f32 %v1318, %v1595
    %v1685 = vmul.f32 %v1317, %v1599
    %v1686 = vmul.f32 %v1316, %v1603
    %v1687 = vmul.f32 %v1315, %v1607
    %v1688 = vmul.f32 %v1314, %v1611
    %v1689 = vmul.f32 %v1313, %v1615
    %v1690 = vmul.f32 %v1312, %v1619
    %v1691 = vmul.f32 %v1311, %v1623
    %v1692 = vmul.f32 %v1310, %v1627
    %1693 = vrot.lane.b32.xlu0 %v1629, 16
    %v1694 = vpop.permute.xlu0 %1693
    %1695 = vrot.lane.b32.xlu0 %v1630, 16
    %v1696 = vpop.permute.xlu0 %1695
    %1697 = vrot.lane.b32.xlu0 %v1631, 16
    %v1698 = vpop.permute.xlu0 %1697
    %1699 = vrot.lane.b32.xlu0 %v1632, 16
    %v1700 = vpop.permute.xlu0 %1699
    %1701 = vrot.lane.b32.xlu0 %v1633, 16
    %v1702 = vpop.permute.xlu0 %1701
    %1703 = vrot.lane.b32.xlu0 %v1634, 16
    %v1704 = vpop.permute.xlu0 %1703
    %1705 = vrot.lane.b32.xlu0 %v1635, 16
    %v1706 = vpop.permute.xlu0 %1705
    %1707 = vrot.lane.b32.xlu0 %v1636, 16
    %v1708 = vpop.permute.xlu0 %1707
    %1709 = vrot.lane.b32.xlu0 %v1637, 16
    %v1710 = vpop.permute.xlu0 %1709
    %1711 = vrot.lane.b32.xlu0 %v1638, 16
    %v1712 = vpop.permute.xlu0 %1711
    %1713 = vrot.lane.b32.xlu0 %v1639, 16
    %v1714 = vpop.permute.xlu0 %1713
    %1715 = vrot.lane.b32.xlu0 %v1640, 16
    %v1716 = vpop.permute.xlu0 %1715
    %1717 = vrot.lane.b32.xlu0 %v1641, 16
    %v1718 = vpop.permute.xlu0 %1717
    %1719 = vrot.lane.b32.xlu0 %v1642, 16
    %v1720 = vpop.permute.xlu0 %1719
    %1721 = vrot.lane.b32.xlu0 %v1643, 16
    %v1722 = vpop.permute.xlu0 %1721
    %1723 = vrot.lane.b32.xlu0 %v1644, 16
    %v1724 = vpop.permute.xlu0 %1723
    %1725 = vrot.lane.b32.xlu0 %v1645, 16
    %v1726 = vpop.permute.xlu0 %1725
    %1727 = vrot.lane.b32.xlu0 %v1646, 16
    %v1728 = vpop.permute.xlu0 %1727
    %1729 = vrot.lane.b32.xlu0 %v1647, 16
    %v1730 = vpop.permute.xlu0 %1729
    %1731 = vrot.lane.b32.xlu0 %v1648, 16
    %v1732 = vpop.permute.xlu0 %1731
    %1733 = vrot.lane.b32.xlu0 %v1649, 16
    %v1734 = vpop.permute.xlu0 %1733
    %1735 = vrot.lane.b32.xlu0 %v1650, 16
    %v1736 = vpop.permute.xlu0 %1735
    %1737 = vrot.lane.b32.xlu0 %v1651, 16
    %v1738 = vpop.permute.xlu0 %1737
    %1739 = vrot.lane.b32.xlu0 %v1652, 16
    %v1740 = vpop.permute.xlu0 %1739
    %1741 = vrot.lane.b32.xlu0 %v1653, 16
    %v1742 = vpop.permute.xlu0 %1741
    %1743 = vrot.lane.b32.xlu0 %v1654, 16
    %v1744 = vpop.permute.xlu0 %1743
    %1745 = vrot.lane.b32.xlu0 %v1655, 16
    %v1746 = vpop.permute.xlu0 %1745
    %1747 = vrot.lane.b32.xlu0 %v1656, 16
    %v1748 = vpop.permute.xlu0 %1747
    %1749 = vrot.lane.b32.xlu0 %v1657, 16
    %v1750 = vpop.permute.xlu0 %1749
    %1751 = vrot.lane.b32.xlu0 %v1658, 16
    %v1752 = vpop.permute.xlu0 %1751
    %1753 = vrot.lane.b32.xlu0 %v1659, 16
    %v1754 = vpop.permute.xlu0 %1753
    %1755 = vrot.lane.b32.xlu0 %v1660, 16
    %v1756 = vpop.permute.xlu0 %1755
    %1757 = vrot.lane.b32.xlu0 %v1661, 16
    %v1758 = vpop.permute.xlu0 %1757
    %1759 = vrot.lane.b32.xlu0 %v1662, 16
    %v1760 = vpop.permute.xlu0 %1759
    %1761 = vrot.lane.b32.xlu0 %v1663, 16
    %v1762 = vpop.permute.xlu0 %1761
    %1763 = vrot.lane.b32.xlu0 %v1664, 16
    %v1764 = vpop.permute.xlu0 %1763
    %1765 = vrot.lane.b32.xlu0 %v1665, 16
    %v1766 = vpop.permute.xlu0 %1765
    %1767 = vrot.lane.b32.xlu0 %v1666, 16
    %v1768 = vpop.permute.xlu0 %1767
    %1769 = vrot.lane.b32.xlu0 %v1667, 16
    %v1770 = vpop.permute.xlu0 %1769
    %1771 = vrot.lane.b32.xlu0 %v1668, 16
    %v1772 = vpop.permute.xlu0 %1771
    %1773 = vrot.lane.b32.xlu0 %v1669, 16
    %v1774 = vpop.permute.xlu0 %1773
    %1775 = vrot.lane.b32.xlu0 %v1670, 16
    %v1776 = vpop.permute.xlu0 %1775
    %1777 = vrot.lane.b32.xlu0 %v1671, 16
    %v1778 = vpop.permute.xlu0 %1777
    %1779 = vrot.lane.b32.xlu0 %v1672, 16
    %v1780 = vpop.permute.xlu0 %1779
    %1781 = vrot.lane.b32.xlu0 %v1673, 16
    %v1782 = vpop.permute.xlu0 %1781
    %1783 = vrot.lane.b32.xlu0 %v1674, 16
    %v1784 = vpop.permute.xlu0 %1783
    %1785 = vrot.lane.b32.xlu0 %v1675, 16
    %v1786 = vpop.permute.xlu0 %1785
    %1787 = vrot.lane.b32.xlu0 %v1676, 16
    %v1788 = vpop.permute.xlu0 %1787
    %1789 = vrot.lane.b32.xlu0 %v1677, 16
    %v1790 = vpop.permute.xlu0 %1789
    %1791 = vrot.lane.b32.xlu0 %v1678, 16
    %v1792 = vpop.permute.xlu0 %1791
    %1793 = vrot.lane.b32.xlu0 %v1679, 16
    %v1794 = vpop.permute.xlu0 %1793
    %1795 = vrot.lane.b32.xlu0 %v1680, 16
    %v1796 = vpop.permute.xlu0 %1795
    %1797 = vrot.lane.b32.xlu0 %v1681, 16
    %v1798 = vpop.permute.xlu0 %1797
    %1799 = vrot.lane.b32.xlu0 %v1682, 16
    %v1800 = vpop.permute.xlu0 %1799
    %1801 = vrot.lane.b32.xlu0 %v1683, 16
    %v1802 = vpop.permute.xlu0 %1801
    %1803 = vrot.lane.b32.xlu0 %v1684, 16
    %v1804 = vpop.permute.xlu0 %1803
    %1805 = vrot.lane.b32.xlu0 %v1685, 16
    %v1806 = vpop.permute.xlu0 %1805
    %1807 = vrot.lane.b32.xlu0 %v1686, 16
    %v1808 = vpop.permute.xlu0 %1807
    %1809 = vrot.lane.b32.xlu0 %v1687, 16
    %v1810 = vpop.permute.xlu0 %1809
    %1811 = vrot.lane.b32.xlu0 %v1688, 16
    %v1812 = vpop.permute.xlu0 %1811
    %1813 = vrot.lane.b32.xlu0 %v1689, 16
    %v1814 = vpop.permute.xlu0 %1813
    %1815 = vrot.lane.b32.xlu0 %v1690, 16
    %v1816 = vpop.permute.xlu0 %1815
    %1817 = vrot.lane.b32.xlu0 %v1691, 16
    %v1818 = vpop.permute.xlu0 %1817
    %1819 = vrot.lane.b32.xlu0 %v1692, 16
    %v1820 = vpop.permute.xlu0 %1819
    %v1821 = vadd.f32 %v1180, %v1694
    %v1822 = vadd.f32 %v1181, %v1696
    %v1823 = vadd.f32 %v1182, %v1698
    %v1824 = vadd.f32 %v1183, %v1700
    %v1825 = vadd.f32 %v1184, %v1702
    %v1826 = vadd.f32 %v1185, %v1704
    %v1827 = vadd.f32 %v1186, %v1706
    %v1828 = vadd.f32 %v1187, %v1708
    %v1829 = vadd.f32 %v1188, %v1710
    %v1830 = vadd.f32 %v1189, %v1712
    %v1831 = vadd.f32 %v1190, %v1714
    %v1832 = vadd.f32 %v1191, %v1716
    %v1833 = vadd.f32 %v1192, %v1718
    %v1834 = vadd.f32 %v1193, %v1720
    %v1835 = vadd.f32 %v1194, %v1722
    %v1836 = vadd.f32 %v1195, %v1724
    %v1837 = vadd.f32 %v1196, %v1726
    %v1838 = vadd.f32 %v1197, %v1728
    %v1839 = vadd.f32 %v1198, %v1730
    %v1840 = vadd.f32 %v1199, %v1732
    %v1841 = vadd.f32 %v1200, %v1734
    %v1842 = vadd.f32 %v1201, %v1736
    %v1843 = vadd.f32 %v1202, %v1738
    %v1844 = vadd.f32 %v1203, %v1740
    %v1845 = vadd.f32 %v1204, %v1742
    %v1846 = vadd.f32 %v1205, %v1744
    %v1847 = vadd.f32 %v1206, %v1746
    %v1848 = vadd.f32 %v1207, %v1748
    %v1849 = vadd.f32 %v1208, %v1750
    %v1850 = vadd.f32 %v1209, %v1752
    %v1851 = vadd.f32 %v1210, %v1754
    %v1852 = vadd.f32 %v1211, %v1756
    %v1853 = vadd.f32 %v1212, %v1758
    %v1854 = vadd.f32 %v1213, %v1760
    %v1855 = vadd.f32 %v1214, %v1762
    %v1856 = vadd.f32 %v1215, %v1764
    %v1857 = vadd.f32 %v1216, %v1766
    %v1858 = vadd.f32 %v1217, %v1768
    %v1859 = vadd.f32 %v1218, %v1770
    %v1860 = vadd.f32 %v1219, %v1772
    %v1861 = vadd.f32 %v1220, %v1774
    %v1862 = vadd.f32 %v1221, %v1776
    %v1863 = vadd.f32 %v1222, %v1778
    %v1864 = vadd.f32 %v1223, %v1780
    %v1865 = vadd.f32 %v1224, %v1782
    %v1866 = vadd.f32 %v1225, %v1784
    %v1867 = vadd.f32 %v1226, %v1786
    %v1868 = vadd.f32 %v1227, %v1788
    %v1869 = vadd.f32 %v1228, %v1790
    %v1870 = vadd.f32 %v1229, %v1792
    %v1871 = vadd.f32 %v1230, %v1794
    %v1872 = vadd.f32 %v1231, %v1796
    %v1873 = vadd.f32 %v1232, %v1798
    %v1874 = vadd.f32 %v1233, %v1800
    %v1875 = vadd.f32 %v1234, %v1802
    %v1876 = vadd.f32 %v1235, %v1804
    %v1877 = vadd.f32 %v1236, %v1806
    %v1878 = vadd.f32 %v1237, %v1808
    %v1879 = vadd.f32 %v1238, %v1810
    %v1880 = vadd.f32 %v1239, %v1812
    %v1881 = vadd.f32 %v1240, %v1814
    %v1882 = vadd.f32 %v1241, %v1816
    %v1883 = vadd.f32 %v1242, %v1818
    %v1884 = vadd.f32 %v1243, %v1820
    %1885 = vset.pattern.permute.xlu0 3
    %1886 = vperm.xlu0 %1885, %v284
    %v1887 = vpop.permute.xlu0 %1886
    %1889 = vset.pattern.permute.xlu0 3
    %1890 = vperm.xlu0 %1889, %v285
    %v1891 = vpop.permute.xlu0 %1890
    %1893 = vset.pattern.permute.xlu0 3
    %1894 = vperm.xlu0 %1893, %v286
    %v1895 = vpop.permute.xlu0 %1894
    %1897 = vset.pattern.permute.xlu0 3
    %1898 = vperm.xlu0 %1897, %v287
    %v1899 = vpop.permute.xlu0 %1898
    %1901 = vset.pattern.permute.xlu0 3
    %1902 = vperm.xlu0 %1901, %v288
    %v1903 = vpop.permute.xlu0 %1902
    %1905 = vset.pattern.permute.xlu0 3
    %1906 = vperm.xlu0 %1905, %v289
    %v1907 = vpop.permute.xlu0 %1906
    %1909 = vset.pattern.permute.xlu0 3
    %1910 = vperm.xlu0 %1909, %v290
    %v1911 = vpop.permute.xlu0 %1910
    %1913 = vset.pattern.permute.xlu0 3
    %1914 = vperm.xlu0 %1913, %v291
    %v1915 = vpop.permute.xlu0 %1914
    %1917 = vset.pattern.permute.xlu0 3
    %1918 = vperm.xlu0 %1917, %v292
    %v1919 = vpop.permute.xlu0 %1918
    %1921 = vset.pattern.permute.xlu0 3
    %1922 = vperm.xlu0 %1921, %v293
    %v1923 = vpop.permute.xlu0 %1922
    %1925 = vset.pattern.permute.xlu0 3
    %1926 = vperm.xlu0 %1925, %v294
    %v1927 = vpop.permute.xlu0 %1926
    %1929 = vset.pattern.permute.xlu0 3
    %1930 = vperm.xlu0 %1929, %v295
    %v1931 = vpop.permute.xlu0 %1930
    %1933 = vset.pattern.permute.xlu0 3
    %1934 = vperm.xlu0 %1933, %v296
    %v1935 = vpop.permute.xlu0 %1934
    %1937 = vset.pattern.permute.xlu0 3
    %1938 = vperm.xlu0 %1937, %v297
    %v1939 = vpop.permute.xlu0 %1938
    %1941 = vset.pattern.permute.xlu0 3
    %1942 = vperm.xlu0 %1941, %v298
    %v1943 = vpop.permute.xlu0 %1942
    %1945 = vset.pattern.permute.xlu0 3
    %1946 = vperm.xlu0 %1945, %v299
    %v1947 = vpop.permute.xlu0 %1946
    %1949 = vset.pattern.permute.xlu0 3
    %1950 = vperm.xlu0 %1949, %v300
    %v1951 = vpop.permute.xlu0 %1950
    %1953 = vset.pattern.permute.xlu0 3
    %1954 = vperm.xlu0 %1953, %v301
    %v1955 = vpop.permute.xlu0 %1954
    %1957 = vset.pattern.permute.xlu0 3
    %1958 = vperm.xlu0 %1957, %v302
    %v1959 = vpop.permute.xlu0 %1958
    %1961 = vset.pattern.permute.xlu0 3
    %1962 = vperm.xlu0 %1961, %v303
    %v1963 = vpop.permute.xlu0 %1962
    %1965 = vset.pattern.permute.xlu0 3
    %1966 = vperm.xlu0 %1965, %v304
    %v1967 = vpop.permute.xlu0 %1966
    %1969 = vset.pattern.permute.xlu0 3
    %1970 = vperm.xlu0 %1969, %v305
    %v1971 = vpop.permute.xlu0 %1970
    %1973 = vset.pattern.permute.xlu0 3
    %1974 = vperm.xlu0 %1973, %v306
    %v1975 = vpop.permute.xlu0 %1974
    %1977 = vset.pattern.permute.xlu0 3
    %1978 = vperm.xlu0 %1977, %v307
    %v1979 = vpop.permute.xlu0 %1978
    %1981 = vset.pattern.permute.xlu0 3
    %1982 = vperm.xlu0 %1981, %v308
    %v1983 = vpop.permute.xlu0 %1982
    %1985 = vset.pattern.permute.xlu0 3
    %1986 = vperm.xlu0 %1985, %v309
    %v1987 = vpop.permute.xlu0 %1986
    %1989 = vset.pattern.permute.xlu0 3
    %1990 = vperm.xlu0 %1989, %v310
    %v1991 = vpop.permute.xlu0 %1990
    %1993 = vset.pattern.permute.xlu0 3
    %1994 = vperm.xlu0 %1993, %v311
    %v1995 = vpop.permute.xlu0 %1994
    %1997 = vset.pattern.permute.xlu0 3
    %1998 = vperm.xlu0 %1997, %v312
    %v1999 = vpop.permute.xlu0 %1998
    %2001 = vset.pattern.permute.xlu0 3
    %2002 = vperm.xlu0 %2001, %v313
    %v2003 = vpop.permute.xlu0 %2002
    %2005 = vset.pattern.permute.xlu0 3
    %2006 = vperm.xlu0 %2005, %v314
    %v2007 = vpop.permute.xlu0 %2006
    %2009 = vset.pattern.permute.xlu0 3
    %2010 = vperm.xlu0 %2009, %v315
    %v2011 = vpop.permute.xlu0 %2010
    %2013 = vset.pattern.permute.xlu0 3
    %2014 = vperm.xlu0 %2013, %v316
    %v2015 = vpop.permute.xlu0 %2014
    %2017 = vset.pattern.permute.xlu0 3
    %2018 = vperm.xlu0 %2017, %v317
    %v2019 = vpop.permute.xlu0 %2018
    %2021 = vset.pattern.permute.xlu0 3
    %2022 = vperm.xlu0 %2021, %v318
    %v2023 = vpop.permute.xlu0 %2022
    %2025 = vset.pattern.permute.xlu0 3
    %2026 = vperm.xlu0 %2025, %v319
    %v2027 = vpop.permute.xlu0 %2026
    %2029 = vset.pattern.permute.xlu0 3
    %2030 = vperm.xlu0 %2029, %v320
    %v2031 = vpop.permute.xlu0 %2030
    %2033 = vset.pattern.permute.xlu0 3
    %2034 = vperm.xlu0 %2033, %v321
    %v2035 = vpop.permute.xlu0 %2034
    %2037 = vset.pattern.permute.xlu0 3
    %2038 = vperm.xlu0 %2037, %v322
    %v2039 = vpop.permute.xlu0 %2038
    %2041 = vset.pattern.permute.xlu0 3
    %2042 = vperm.xlu0 %2041, %v323
    %v2043 = vpop.permute.xlu0 %2042
    %2045 = vset.pattern.permute.xlu0 3
    %2046 = vperm.xlu0 %2045, %v324
    %v2047 = vpop.permute.xlu0 %2046
    %2049 = vset.pattern.permute.xlu0 3
    %2050 = vperm.xlu0 %2049, %v325
    %v2051 = vpop.permute.xlu0 %2050
    %2053 = vset.pattern.permute.xlu0 3
    %2054 = vperm.xlu0 %2053, %v326
    %v2055 = vpop.permute.xlu0 %2054
    %2057 = vset.pattern.permute.xlu0 3
    %2058 = vperm.xlu0 %2057, %v327
    %v2059 = vpop.permute.xlu0 %2058
    %2061 = vset.pattern.permute.xlu0 3
    %2062 = vperm.xlu0 %2061, %v328
    %v2063 = vpop.permute.xlu0 %2062
    %2065 = vset.pattern.permute.xlu0 3
    %2066 = vperm.xlu0 %2065, %v329
    %v2067 = vpop.permute.xlu0 %2066
    %2069 = vset.pattern.permute.xlu0 3
    %2070 = vperm.xlu0 %2069, %v330
    %v2071 = vpop.permute.xlu0 %2070
    %2073 = vset.pattern.permute.xlu0 3
    %2074 = vperm.xlu0 %2073, %v331
    %v2075 = vpop.permute.xlu0 %2074
    %2077 = vset.pattern.permute.xlu0 3
    %2078 = vperm.xlu0 %2077, %v332
    %v2079 = vpop.permute.xlu0 %2078
    %2081 = vset.pattern.permute.xlu0 3
    %2082 = vperm.xlu0 %2081, %v333
    %v2083 = vpop.permute.xlu0 %2082
    %2085 = vset.pattern.permute.xlu0 3
    %2086 = vperm.xlu0 %2085, %v334
    %v2087 = vpop.permute.xlu0 %2086
    %2089 = vset.pattern.permute.xlu0 3
    %2090 = vperm.xlu0 %2089, %v335
    %v2091 = vpop.permute.xlu0 %2090
    %2093 = vset.pattern.permute.xlu0 3
    %2094 = vperm.xlu0 %2093, %v336
    %v2095 = vpop.permute.xlu0 %2094
    %2097 = vset.pattern.permute.xlu0 3
    %2098 = vperm.xlu0 %2097, %v337
    %v2099 = vpop.permute.xlu0 %2098
    %2101 = vset.pattern.permute.xlu0 3
    %2102 = vperm.xlu0 %2101, %v338
    %v2103 = vpop.permute.xlu0 %2102
    %2105 = vset.pattern.permute.xlu0 3
    %2106 = vperm.xlu0 %2105, %v339
    %v2107 = vpop.permute.xlu0 %2106
    %2109 = vset.pattern.permute.xlu0 3
    %2110 = vperm.xlu0 %2109, %v340
    %v2111 = vpop.permute.xlu0 %2110
    %2113 = vset.pattern.permute.xlu0 3
    %2114 = vperm.xlu0 %2113, %v341
    %v2115 = vpop.permute.xlu0 %2114
    %2117 = vset.pattern.permute.xlu0 3
    %2118 = vperm.xlu0 %2117, %v342
    %v2119 = vpop.permute.xlu0 %2118
    %2121 = vset.pattern.permute.xlu0 3
    %2122 = vperm.xlu0 %2121, %v343
    %v2123 = vpop.permute.xlu0 %2122
    %2125 = vset.pattern.permute.xlu0 3
    %2126 = vperm.xlu0 %2125, %v344
    %v2127 = vpop.permute.xlu0 %2126
    %2129 = vset.pattern.permute.xlu0 3
    %2130 = vperm.xlu0 %2129, %v345
    %v2131 = vpop.permute.xlu0 %2130
    %2133 = vset.pattern.permute.xlu0 3
    %2134 = vperm.xlu0 %2133, %v346
    %v2135 = vpop.permute.xlu0 %2134
    %2137 = vset.pattern.permute.xlu0 3
    %2138 = vperm.xlu0 %2137, %v347
    %v2139 = vpop.permute.xlu0 %2138
    %v2141 = vmul.f32 %v283, %v1887
    %v2142 = vmul.f32 %v282, %v1891
    %v2143 = vmul.f32 %v281, %v1895
    %v2144 = vmul.f32 %v280, %v1899
    %v2145 = vmul.f32 %v279, %v1903
    %v2146 = vmul.f32 %v278, %v1907
    %v2147 = vmul.f32 %v277, %v1911
    %v2148 = vmul.f32 %v276, %v1915
    %v2149 = vmul.f32 %v275, %v1919
    %v2150 = vmul.f32 %v274, %v1923
    %v2151 = vmul.f32 %v273, %v1927
    %v2152 = vmul.f32 %v272, %v1931
    %v2153 = vmul.f32 %v271, %v1935
    %v2154 = vmul.f32 %v270, %v1939
    %v2155 = vmul.f32 %v269, %v1943
    %v2156 = vmul.f32 %v268, %v1947
    %v2157 = vmul.f32 %v267, %v1951
    %v2158 = vmul.f32 %v266, %v1955
    %v2159 = vmul.f32 %v265, %v1959
    %v2160 = vmul.f32 %v264, %v1963
    %v2161 = vmul.f32 %v263, %v1967
    %v2162 = vmul.f32 %v262, %v1971
    %v2163 = vmul.f32 %v261, %v1975
    %v2164 = vmul.f32 %v260, %v1979
    %v2165 = vmul.f32 %v259, %v1983
    %v2166 = vmul.f32 %v258, %v1987
    %v2167 = vmul.f32 %v257, %v1991
    %v2168 = vmul.f32 %v256, %v1995
    %v2169 = vmul.f32 %v255, %v1999
    %v2170 = vmul.f32 %v254, %v2003
    %v2171 = vmul.f32 %v253, %v2007
    %v2172 = vmul.f32 %v252, %v2011
    %v2173 = vmul.f32 %v251, %v2015
    %v2174 = vmul.f32 %v250, %v2019
    %v2175 = vmul.f32 %v249, %v2023
    %v2176 = vmul.f32 %v248, %v2027
    %v2177 = vmul.f32 %v247, %v2031
    %v2178 = vmul.f32 %v246, %v2035
    %v2179 = vmul.f32 %v245, %v2039
    %v2180 = vmul.f32 %v244, %v2043
    %v2181 = vmul.f32 %v243, %v2047
    %v2182 = vmul.f32 %v242, %v2051
    %v2183 = vmul.f32 %v241, %v2055
    %v2184 = vmul.f32 %v240, %v2059
    %v2185 = vmul.f32 %v239, %v2063
    %v2186 = vmul.f32 %v238, %v2067
    %v2187 = vmul.f32 %v237, %v2071
    %v2188 = vmul.f32 %v236, %v2075
    %v2189 = vmul.f32 %v235, %v2079
    %v2190 = vmul.f32 %v234, %v2083
    %v2191 = vmul.f32 %v233, %v2087
    %v2192 = vmul.f32 %v232, %v2091
    %v2193 = vmul.f32 %v231, %v2095
    %v2194 = vmul.f32 %v230, %v2099
    %v2195 = vmul.f32 %v229, %v2103
    %v2196 = vmul.f32 %v228, %v2107
    %v2197 = vmul.f32 %v227, %v2111
    %v2198 = vmul.f32 %v226, %v2115
    %v2199 = vmul.f32 %v225, %v2119
    %v2200 = vmul.f32 %v224, %v2123
    %v2201 = vmul.f32 %v223, %v2127
    %v2202 = vmul.f32 %v222, %v2131
    %v2203 = vmul.f32 %v221, %v2135
    %v2204 = vmul.f32 %v220, %v2139
    %2205 = vrot.lane.b32.xlu0 %v2141, 24
    %v2206 = vpop.permute.xlu0 %2205
    %2207 = vrot.lane.b32.xlu0 %v2142, 24
    %v2208 = vpop.permute.xlu0 %2207
    %2209 = vrot.lane.b32.xlu0 %v2143, 24
    %v2210 = vpop.permute.xlu0 %2209
    %2211 = vrot.lane.b32.xlu0 %v2144, 24
    %v2212 = vpop.permute.xlu0 %2211
    %2213 = vrot.lane.b32.xlu0 %v2145, 24
    %v2214 = vpop.permute.xlu0 %2213
    %2215 = vrot.lane.b32.xlu0 %v2146, 24
    %v2216 = vpop.permute.xlu0 %2215
    %2217 = vrot.lane.b32.xlu0 %v2147, 24
    %v2218 = vpop.permute.xlu0 %2217
    %2219 = vrot.lane.b32.xlu0 %v2148, 24
    %v2220 = vpop.permute.xlu0 %2219
    %2221 = vrot.lane.b32.xlu0 %v2149, 24
    %v2222 = vpop.permute.xlu0 %2221
    %2223 = vrot.lane.b32.xlu0 %v2150, 24
    %v2224 = vpop.permute.xlu0 %2223
    %2225 = vrot.lane.b32.xlu0 %v2151, 24
    %v2226 = vpop.permute.xlu0 %2225
    %2227 = vrot.lane.b32.xlu0 %v2152, 24
    %v2228 = vpop.permute.xlu0 %2227
    %2229 = vrot.lane.b32.xlu0 %v2153, 24
    %v2230 = vpop.permute.xlu0 %2229
    %2231 = vrot.lane.b32.xlu0 %v2154, 24
    %v2232 = vpop.permute.xlu0 %2231
    %2233 = vrot.lane.b32.xlu0 %v2155, 24
    %v2234 = vpop.permute.xlu0 %2233
    %2235 = vrot.lane.b32.xlu0 %v2156, 24
    %v2236 = vpop.permute.xlu0 %2235
    %2237 = vrot.lane.b32.xlu0 %v2157, 24
    %v2238 = vpop.permute.xlu0 %2237
    %2239 = vrot.lane.b32.xlu0 %v2158, 24
    %v2240 = vpop.permute.xlu0 %2239
    %2241 = vrot.lane.b32.xlu0 %v2159, 24
    %v2242 = vpop.permute.xlu0 %2241
    %2243 = vrot.lane.b32.xlu0 %v2160, 24
    %v2244 = vpop.permute.xlu0 %2243
    %2245 = vrot.lane.b32.xlu0 %v2161, 24
    %v2246 = vpop.permute.xlu0 %2245
    %2247 = vrot.lane.b32.xlu0 %v2162, 24
    %v2248 = vpop.permute.xlu0 %2247
    %2249 = vrot.lane.b32.xlu0 %v2163, 24
    %v2250 = vpop.permute.xlu0 %2249
    %2251 = vrot.lane.b32.xlu0 %v2164, 24
    %v2252 = vpop.permute.xlu0 %2251
    %2253 = vrot.lane.b32.xlu0 %v2165, 24
    %v2254 = vpop.permute.xlu0 %2253
    %2255 = vrot.lane.b32.xlu0 %v2166, 24
    %v2256 = vpop.permute.xlu0 %2255
    %2257 = vrot.lane.b32.xlu0 %v2167, 24
    %v2258 = vpop.permute.xlu0 %2257
    %2259 = vrot.lane.b32.xlu0 %v2168, 24
    %v2260 = vpop.permute.xlu0 %2259
    %2261 = vrot.lane.b32.xlu0 %v2169, 24
    %v2262 = vpop.permute.xlu0 %2261
    %2263 = vrot.lane.b32.xlu0 %v2170, 24
    %v2264 = vpop.permute.xlu0 %2263
    %2265 = vrot.lane.b32.xlu0 %v2171, 24
    %v2266 = vpop.permute.xlu0 %2265
    %2267 = vrot.lane.b32.xlu0 %v2172, 24
    %v2268 = vpop.permute.xlu0 %2267
    %2269 = vrot.lane.b32.xlu0 %v2173, 24
    %v2270 = vpop.permute.xlu0 %2269
    %2271 = vrot.lane.b32.xlu0 %v2174, 24
    %v2272 = vpop.permute.xlu0 %2271
    %2273 = vrot.lane.b32.xlu0 %v2175, 24
    %v2274 = vpop.permute.xlu0 %2273
    %2275 = vrot.lane.b32.xlu0 %v2176, 24
    %v2276 = vpop.permute.xlu0 %2275
    %2277 = vrot.lane.b32.xlu0 %v2177, 24
    %v2278 = vpop.permute.xlu0 %2277
    %2279 = vrot.lane.b32.xlu0 %v2178, 24
    %v2280 = vpop.permute.xlu0 %2279
    %2281 = vrot.lane.b32.xlu0 %v2179, 24
    %v2282 = vpop.permute.xlu0 %2281
    %2283 = vrot.lane.b32.xlu0 %v2180, 24
    %v2284 = vpop.permute.xlu0 %2283
    %2285 = vrot.lane.b32.xlu0 %v2181, 24
    %v2286 = vpop.permute.xlu0 %2285
    %2287 = vrot.lane.b32.xlu0 %v2182, 24
    %v2288 = vpop.permute.xlu0 %2287
    %2289 = vrot.lane.b32.xlu0 %v2183, 24
    %v2290 = vpop.permute.xlu0 %2289
    %2291 = vrot.lane.b32.xlu0 %v2184, 24
    %v2292 = vpop.permute.xlu0 %2291
    %2293 = vrot.lane.b32.xlu0 %v2185, 24
    %v2294 = vpop.permute.xlu0 %2293
    %2295 = vrot.lane.b32.xlu0 %v2186, 24
    %v2296 = vpop.permute.xlu0 %2295
    %2297 = vrot.lane.b32.xlu0 %v2187, 24
    %v2298 = vpop.permute.xlu0 %2297
    %2299 = vrot.lane.b32.xlu0 %v2188, 24
    %v2300 = vpop.permute.xlu0 %2299
    %2301 = vrot.lane.b32.xlu0 %v2189, 24
    %v2302 = vpop.permute.xlu0 %2301
    %2303 = vrot.lane.b32.xlu0 %v2190, 24
    %v2304 = vpop.permute.xlu0 %2303
    %2305 = vrot.lane.b32.xlu0 %v2191, 24
    %v2306 = vpop.permute.xlu0 %2305
    %2307 = vrot.lane.b32.xlu0 %v2192, 24
    %v2308 = vpop.permute.xlu0 %2307
    %2309 = vrot.lane.b32.xlu0 %v2193, 24
    %v2310 = vpop.permute.xlu0 %2309
    %2311 = vrot.lane.b32.xlu0 %v2194, 24
    %v2312 = vpop.permute.xlu0 %2311
    %2313 = vrot.lane.b32.xlu0 %v2195, 24
    %v2314 = vpop.permute.xlu0 %2313
    %2315 = vrot.lane.b32.xlu0 %v2196, 24
    %v2316 = vpop.permute.xlu0 %2315
    %2317 = vrot.lane.b32.xlu0 %v2197, 24
    %v2318 = vpop.permute.xlu0 %2317
    %2319 = vrot.lane.b32.xlu0 %v2198, 24
    %v2320 = vpop.permute.xlu0 %2319
    %2321 = vrot.lane.b32.xlu0 %v2199, 24
    %v2322 = vpop.permute.xlu0 %2321
    %2323 = vrot.lane.b32.xlu0 %v2200, 24
    %v2324 = vpop.permute.xlu0 %2323
    %2325 = vrot.lane.b32.xlu0 %v2201, 24
    %v2326 = vpop.permute.xlu0 %2325
    %2327 = vrot.lane.b32.xlu0 %v2202, 24
    %v2328 = vpop.permute.xlu0 %2327
    %2329 = vrot.lane.b32.xlu0 %v2203, 24
    %v2330 = vpop.permute.xlu0 %2329
    %2331 = vrot.lane.b32.xlu0 %v2204, 24
    %v2332 = vpop.permute.xlu0 %2331
    %v2333 = vadd.f32 %v1821, %v2206
    %v2334 = vadd.f32 %v1822, %v2208
    %v2335 = vadd.f32 %v1823, %v2210
    %v2336 = vadd.f32 %v1824, %v2212
    %v2337 = vadd.f32 %v1825, %v2214
    %v2338 = vadd.f32 %v1826, %v2216
    %v2339 = vadd.f32 %v1827, %v2218
    %v2340 = vadd.f32 %v1828, %v2220
    %v2341 = vadd.f32 %v1829, %v2222
    %v2342 = vadd.f32 %v1830, %v2224
    %v2343 = vadd.f32 %v1831, %v2226
    %v2344 = vadd.f32 %v1832, %v2228
    %v2345 = vadd.f32 %v1833, %v2230
    %v2346 = vadd.f32 %v1834, %v2232
    %v2347 = vadd.f32 %v1835, %v2234
    %v2348 = vadd.f32 %v1836, %v2236
    %v2349 = vadd.f32 %v1837, %v2238
    %v2350 = vadd.f32 %v1838, %v2240
    %v2351 = vadd.f32 %v1839, %v2242
    %v2352 = vadd.f32 %v1840, %v2244
    %v2353 = vadd.f32 %v1841, %v2246
    %v2354 = vadd.f32 %v1842, %v2248
    %v2355 = vadd.f32 %v1843, %v2250
    %v2356 = vadd.f32 %v1844, %v2252
    %v2357 = vadd.f32 %v1845, %v2254
    %v2358 = vadd.f32 %v1846, %v2256
    %v2359 = vadd.f32 %v1847, %v2258
    %v2360 = vadd.f32 %v1848, %v2260
    %v2361 = vadd.f32 %v1849, %v2262
    %v2362 = vadd.f32 %v1850, %v2264
    %v2363 = vadd.f32 %v1851, %v2266
    %v2364 = vadd.f32 %v1852, %v2268
    %v2365 = vadd.f32 %v1853, %v2270
    %v2366 = vadd.f32 %v1854, %v2272
    %v2367 = vadd.f32 %v1855, %v2274
    %v2368 = vadd.f32 %v1856, %v2276
    %v2369 = vadd.f32 %v1857, %v2278
    %v2370 = vadd.f32 %v1858, %v2280
    %v2371 = vadd.f32 %v1859, %v2282
    %v2372 = vadd.f32 %v1860, %v2284
    %v2373 = vadd.f32 %v1861, %v2286
    %v2374 = vadd.f32 %v1862, %v2288
    %v2375 = vadd.f32 %v1863, %v2290
    %v2376 = vadd.f32 %v1864, %v2292
    %v2377 = vadd.f32 %v1865, %v2294
    %v2378 = vadd.f32 %v1866, %v2296
    %v2379 = vadd.f32 %v1867, %v2298
    %v2380 = vadd.f32 %v1868, %v2300
    %v2381 = vadd.f32 %v1869, %v2302
    %v2382 = vadd.f32 %v1870, %v2304
    %v2383 = vadd.f32 %v1871, %v2306
    %v2384 = vadd.f32 %v1872, %v2308
    %v2385 = vadd.f32 %v1873, %v2310
    %v2386 = vadd.f32 %v1874, %v2312
    %v2387 = vadd.f32 %v1875, %v2314
    %v2388 = vadd.f32 %v1876, %v2316
    %v2389 = vadd.f32 %v1877, %v2318
    %v2390 = vadd.f32 %v1878, %v2320
    %v2391 = vadd.f32 %v1879, %v2322
    %v2392 = vadd.f32 %v1880, %v2324
    %v2393 = vadd.f32 %v1881, %v2326
    %v2394 = vadd.f32 %v1882, %v2328
    %v2395 = vadd.f32 %v1883, %v2330
    %v2396 = vadd.f32 %v1884, %v2332
    %2397 = vrot.lane.b32.xlu0 %v89, 32
    %v2398 = vpop.permute.xlu0 %2397
    %2399 = vrot.lane.b32.xlu0 %v90, 32
    %v2400 = vpop.permute.xlu0 %2399
    %2401 = vrot.lane.b32.xlu0 %v91, 32
    %v2402 = vpop.permute.xlu0 %2401
    %2403 = vrot.lane.b32.xlu0 %v92, 32
    %v2404 = vpop.permute.xlu0 %2403
    %2405 = vrot.lane.b32.xlu0 %v93, 32
    %v2406 = vpop.permute.xlu0 %2405
    %2407 = vrot.lane.b32.xlu0 %v94, 32
    %v2408 = vpop.permute.xlu0 %2407
    %2409 = vrot.lane.b32.xlu0 %v95, 32
    %v2410 = vpop.permute.xlu0 %2409
    %2411 = vrot.lane.b32.xlu0 %v96, 32
    %v2412 = vpop.permute.xlu0 %2411
    %2413 = vrot.lane.b32.xlu0 %v97, 32
    %v2414 = vpop.permute.xlu0 %2413
    %2415 = vrot.lane.b32.xlu0 %v98, 32
    %v2416 = vpop.permute.xlu0 %2415
    %2417 = vrot.lane.b32.xlu0 %v99, 32
    %v2418 = vpop.permute.xlu0 %2417
    %2419 = vrot.lane.b32.xlu0 %v100, 32
    %v2420 = vpop.permute.xlu0 %2419
    %2421 = vrot.lane.b32.xlu0 %v101, 32
    %v2422 = vpop.permute.xlu0 %2421
    %2423 = vrot.lane.b32.xlu0 %v102, 32
    %v2424 = vpop.permute.xlu0 %2423
    %2425 = vrot.lane.b32.xlu0 %v103, 32
    %v2426 = vpop.permute.xlu0 %2425
    %2427 = vrot.lane.b32.xlu0 %v104, 32
    %v2428 = vpop.permute.xlu0 %2427
    %2429 = vrot.lane.b32.xlu0 %v105, 32
    %v2430 = vpop.permute.xlu0 %2429
    %2431 = vrot.lane.b32.xlu0 %v106, 32
    %v2432 = vpop.permute.xlu0 %2431
    %2433 = vrot.lane.b32.xlu0 %v107, 32
    %v2434 = vpop.permute.xlu0 %2433
    %2435 = vrot.lane.b32.xlu0 %v108, 32
    %v2436 = vpop.permute.xlu0 %2435
    %2437 = vrot.lane.b32.xlu0 %v109, 32
    %v2438 = vpop.permute.xlu0 %2437
    %2439 = vrot.lane.b32.xlu0 %v110, 32
    %v2440 = vpop.permute.xlu0 %2439
    %2441 = vrot.lane.b32.xlu0 %v111, 32
    %v2442 = vpop.permute.xlu0 %2441
    %2443 = vrot.lane.b32.xlu0 %v112, 32
    %v2444 = vpop.permute.xlu0 %2443
    %2445 = vrot.lane.b32.xlu0 %v113, 32
    %v2446 = vpop.permute.xlu0 %2445
    %2447 = vrot.lane.b32.xlu0 %v114, 32
    %v2448 = vpop.permute.xlu0 %2447
    %2449 = vrot.lane.b32.xlu0 %v115, 32
    %v2450 = vpop.permute.xlu0 %2449
    %2451 = vrot.lane.b32.xlu0 %v116, 32
    %v2452 = vpop.permute.xlu0 %2451
    %2453 = vrot.lane.b32.xlu0 %v117, 32
    %v2454 = vpop.permute.xlu0 %2453
    %2455 = vrot.lane.b32.xlu0 %v118, 32
    %v2456 = vpop.permute.xlu0 %2455
    %2457 = vrot.lane.b32.xlu0 %v119, 32
    %v2458 = vpop.permute.xlu0 %2457
    %2459 = vrot.lane.b32.xlu0 %v120, 32
    %v2460 = vpop.permute.xlu0 %2459
    %2461 = vrot.lane.b32.xlu0 %v121, 32
    %v2462 = vpop.permute.xlu0 %2461
    %2463 = vrot.lane.b32.xlu0 %v122, 32
    %v2464 = vpop.permute.xlu0 %2463
    %2465 = vrot.lane.b32.xlu0 %v123, 32
    %v2466 = vpop.permute.xlu0 %2465
    %2467 = vrot.lane.b32.xlu0 %v124, 32
    %v2468 = vpop.permute.xlu0 %2467
    %2469 = vrot.lane.b32.xlu0 %v125, 32
    %v2470 = vpop.permute.xlu0 %2469
    %2471 = vrot.lane.b32.xlu0 %v126, 32
    %v2472 = vpop.permute.xlu0 %2471
    %2473 = vrot.lane.b32.xlu0 %v127, 32
    %v2474 = vpop.permute.xlu0 %2473
    %2475 = vrot.lane.b32.xlu0 %v128, 32
    %v2476 = vpop.permute.xlu0 %2475
    %2477 = vrot.lane.b32.xlu0 %v129, 32
    %v2478 = vpop.permute.xlu0 %2477
    %2479 = vrot.lane.b32.xlu0 %v130, 32
    %v2480 = vpop.permute.xlu0 %2479
    %2481 = vrot.lane.b32.xlu0 %v131, 32
    %v2482 = vpop.permute.xlu0 %2481
    %2483 = vrot.lane.b32.xlu0 %v132, 32
    %v2484 = vpop.permute.xlu0 %2483
    %2485 = vrot.lane.b32.xlu0 %v133, 32
    %v2486 = vpop.permute.xlu0 %2485
    %2487 = vrot.lane.b32.xlu0 %v134, 32
    %v2488 = vpop.permute.xlu0 %2487
    %2489 = vrot.lane.b32.xlu0 %v135, 32
    %v2490 = vpop.permute.xlu0 %2489
    %2491 = vrot.lane.b32.xlu0 %v136, 32
    %v2492 = vpop.permute.xlu0 %2491
    %2493 = vrot.lane.b32.xlu0 %v137, 32
    %v2494 = vpop.permute.xlu0 %2493
    %2495 = vrot.lane.b32.xlu0 %v138, 32
    %v2496 = vpop.permute.xlu0 %2495
    %2497 = vrot.lane.b32.xlu0 %v139, 32
    %v2498 = vpop.permute.xlu0 %2497
    %2499 = vrot.lane.b32.xlu0 %v140, 32
    %v2500 = vpop.permute.xlu0 %2499
    %2501 = vrot.lane.b32.xlu0 %v141, 32
    %v2502 = vpop.permute.xlu0 %2501
    %2503 = vrot.lane.b32.xlu0 %v142, 32
    %v2504 = vpop.permute.xlu0 %2503
    %2505 = vrot.lane.b32.xlu0 %v143, 32
    %v2506 = vpop.permute.xlu0 %2505
    %2507 = vrot.lane.b32.xlu0 %v144, 32
    %v2508 = vpop.permute.xlu0 %2507
    %2509 = vrot.lane.b32.xlu0 %v145, 32
    %v2510 = vpop.permute.xlu0 %2509
    %2511 = vrot.lane.b32.xlu0 %v146, 32
    %v2512 = vpop.permute.xlu0 %2511
    %2513 = vrot.lane.b32.xlu0 %v147, 32
    %v2514 = vpop.permute.xlu0 %2513
    %2515 = vrot.lane.b32.xlu0 %v148, 32
    %v2516 = vpop.permute.xlu0 %2515
    %2517 = vrot.lane.b32.xlu0 %v149, 32
    %v2518 = vpop.permute.xlu0 %2517
    %2519 = vrot.lane.b32.xlu0 %v150, 32
    %v2520 = vpop.permute.xlu0 %2519
    %2521 = vrot.lane.b32.xlu0 %v151, 32
    %v2522 = vpop.permute.xlu0 %2521
    %2523 = vrot.lane.b32.xlu0 %v152, 32
    %v2524 = vpop.permute.xlu0 %2523
    %v2525 = vadd.f32 %v2333, %v2398
    %v2526 = vadd.f32 %v2334, %v2400
    %v2527 = vadd.f32 %v2335, %v2402
    %v2528 = vadd.f32 %v2336, %v2404
    %v2529 = vadd.f32 %v2337, %v2406
    %v2530 = vadd.f32 %v2338, %v2408
    %v2531 = vadd.f32 %v2339, %v2410
    %v2532 = vadd.f32 %v2340, %v2412
    %v2533 = vadd.f32 %v2341, %v2414
    %v2534 = vadd.f32 %v2342, %v2416
    %v2535 = vadd.f32 %v2343, %v2418
    %v2536 = vadd.f32 %v2344, %v2420
    %v2537 = vadd.f32 %v2345, %v2422
    %v2538 = vadd.f32 %v2346, %v2424
    %v2539 = vadd.f32 %v2347, %v2426
    %v2540 = vadd.f32 %v2348, %v2428
    %v2541 = vadd.f32 %v2349, %v2430
    %v2542 = vadd.f32 %v2350, %v2432
    %v2543 = vadd.f32 %v2351, %v2434
    %v2544 = vadd.f32 %v2352, %v2436
    %v2545 = vadd.f32 %v2353, %v2438
    %v2546 = vadd.f32 %v2354, %v2440
    %v2547 = vadd.f32 %v2355, %v2442
    %v2548 = vadd.f32 %v2356, %v2444
    %v2549 = vadd.f32 %v2357, %v2446
    %v2550 = vadd.f32 %v2358, %v2448
    %v2551 = vadd.f32 %v2359, %v2450
    %v2552 = vadd.f32 %v2360, %v2452
    %v2553 = vadd.f32 %v2361, %v2454
    %v2554 = vadd.f32 %v2362, %v2456
    %v2555 = vadd.f32 %v2363, %v2458
    %v2556 = vadd.f32 %v2364, %v2460
    %v2557 = vadd.f32 %v2365, %v2462
    %v2558 = vadd.f32 %v2366, %v2464
    %v2559 = vadd.f32 %v2367, %v2466
    %v2560 = vadd.f32 %v2368, %v2468
    %v2561 = vadd.f32 %v2369, %v2470
    %v2562 = vadd.f32 %v2370, %v2472
    %v2563 = vadd.f32 %v2371, %v2474
    %v2564 = vadd.f32 %v2372, %v2476
    %v2565 = vadd.f32 %v2373, %v2478
    %v2566 = vadd.f32 %v2374, %v2480
    %v2567 = vadd.f32 %v2375, %v2482
    %v2568 = vadd.f32 %v2376, %v2484
    %v2569 = vadd.f32 %v2377, %v2486
    %v2570 = vadd.f32 %v2378, %v2488
    %v2571 = vadd.f32 %v2379, %v2490
    %v2572 = vadd.f32 %v2380, %v2492
    %v2573 = vadd.f32 %v2381, %v2494
    %v2574 = vadd.f32 %v2382, %v2496
    %v2575 = vadd.f32 %v2383, %v2498
    %v2576 = vadd.f32 %v2384, %v2500
    %v2577 = vadd.f32 %v2385, %v2502
    %v2578 = vadd.f32 %v2386, %v2504
    %v2579 = vadd.f32 %v2387, %v2506
    %v2580 = vadd.f32 %v2388, %v2508
    %v2581 = vadd.f32 %v2389, %v2510
    %v2582 = vadd.f32 %v2390, %v2512
    %v2583 = vadd.f32 %v2391, %v2514
    %v2584 = vadd.f32 %v2392, %v2516
    %v2585 = vadd.f32 %v2393, %v2518
    %v2586 = vadd.f32 %v2394, %v2520
    %v2587 = vadd.f32 %v2395, %v2522
    %v2588 = vadd.f32 %v2396, %v2524
    %2589 = vset.pattern.permute.xlu0 5
    %2590 = vperm.xlu0 %2589, %v284
    %v2591 = vpop.permute.xlu0 %2590
    %2593 = vset.pattern.permute.xlu0 5
    %2594 = vperm.xlu0 %2593, %v285
    %v2595 = vpop.permute.xlu0 %2594
    %2597 = vset.pattern.permute.xlu0 5
    %2598 = vperm.xlu0 %2597, %v286
    %v2599 = vpop.permute.xlu0 %2598
    %2601 = vset.pattern.permute.xlu0 5
    %2602 = vperm.xlu0 %2601, %v287
    %v2603 = vpop.permute.xlu0 %2602
    %2605 = vset.pattern.permute.xlu0 5
    %2606 = vperm.xlu0 %2605, %v288
    %v2607 = vpop.permute.xlu0 %2606
    %2609 = vset.pattern.permute.xlu0 5
    %2610 = vperm.xlu0 %2609, %v289
    %v2611 = vpop.permute.xlu0 %2610
    %2613 = vset.pattern.permute.xlu0 5
    %2614 = vperm.xlu0 %2613, %v290
    %v2615 = vpop.permute.xlu0 %2614
    %2617 = vset.pattern.permute.xlu0 5
    %2618 = vperm.xlu0 %2617, %v291
    %v2619 = vpop.permute.xlu0 %2618
    %2621 = vset.pattern.permute.xlu0 5
    %2622 = vperm.xlu0 %2621, %v292
    %v2623 = vpop.permute.xlu0 %2622
    %2625 = vset.pattern.permute.xlu0 5
    %2626 = vperm.xlu0 %2625, %v293
    %v2627 = vpop.permute.xlu0 %2626
    %2629 = vset.pattern.permute.xlu0 5
    %2630 = vperm.xlu0 %2629, %v294
    %v2631 = vpop.permute.xlu0 %2630
    %2633 = vset.pattern.permute.xlu0 5
    %2634 = vperm.xlu0 %2633, %v295
    %v2635 = vpop.permute.xlu0 %2634
    %2637 = vset.pattern.permute.xlu0 5
    %2638 = vperm.xlu0 %2637, %v296
    %v2639 = vpop.permute.xlu0 %2638
    %2641 = vset.pattern.permute.xlu0 5
    %2642 = vperm.xlu0 %2641, %v297
    %v2643 = vpop.permute.xlu0 %2642
    %2645 = vset.pattern.permute.xlu0 5
    %2646 = vperm.xlu0 %2645, %v298
    %v2647 = vpop.permute.xlu0 %2646
    %2649 = vset.pattern.permute.xlu0 5
    %2650 = vperm.xlu0 %2649, %v299
    %v2651 = vpop.permute.xlu0 %2650
    %2653 = vset.pattern.permute.xlu0 5
    %2654 = vperm.xlu0 %2653, %v300
    %v2655 = vpop.permute.xlu0 %2654
    %2657 = vset.pattern.permute.xlu0 5
    %2658 = vperm.xlu0 %2657, %v301
    %v2659 = vpop.permute.xlu0 %2658
    %2661 = vset.pattern.permute.xlu0 5
    %2662 = vperm.xlu0 %2661, %v302
    %v2663 = vpop.permute.xlu0 %2662
    %2665 = vset.pattern.permute.xlu0 5
    %2666 = vperm.xlu0 %2665, %v303
    %v2667 = vpop.permute.xlu0 %2666
    %2669 = vset.pattern.permute.xlu0 5
    %2670 = vperm.xlu0 %2669, %v304
    %v2671 = vpop.permute.xlu0 %2670
    %2673 = vset.pattern.permute.xlu0 5
    %2674 = vperm.xlu0 %2673, %v305
    %v2675 = vpop.permute.xlu0 %2674
    %2677 = vset.pattern.permute.xlu0 5
    %2678 = vperm.xlu0 %2677, %v306
    %v2679 = vpop.permute.xlu0 %2678
    %2681 = vset.pattern.permute.xlu0 5
    %2682 = vperm.xlu0 %2681, %v307
    %v2683 = vpop.permute.xlu0 %2682
    %2685 = vset.pattern.permute.xlu0 5
    %2686 = vperm.xlu0 %2685, %v308
    %v2687 = vpop.permute.xlu0 %2686
    %2689 = vset.pattern.permute.xlu0 5
    %2690 = vperm.xlu0 %2689, %v309
    %v2691 = vpop.permute.xlu0 %2690
    %2693 = vset.pattern.permute.xlu0 5
    %2694 = vperm.xlu0 %2693, %v310
    %v2695 = vpop.permute.xlu0 %2694
    %2697 = vset.pattern.permute.xlu0 5
    %2698 = vperm.xlu0 %2697, %v311
    %v2699 = vpop.permute.xlu0 %2698
    %2701 = vset.pattern.permute.xlu0 5
    %2702 = vperm.xlu0 %2701, %v312
    %v2703 = vpop.permute.xlu0 %2702
    %2705 = vset.pattern.permute.xlu0 5
    %2706 = vperm.xlu0 %2705, %v313
    %v2707 = vpop.permute.xlu0 %2706
    %2709 = vset.pattern.permute.xlu0 5
    %2710 = vperm.xlu0 %2709, %v314
    %v2711 = vpop.permute.xlu0 %2710
    %2713 = vset.pattern.permute.xlu0 5
    %2714 = vperm.xlu0 %2713, %v315
    %v2715 = vpop.permute.xlu0 %2714
    %2717 = vset.pattern.permute.xlu0 5
    %2718 = vperm.xlu0 %2717, %v316
    %v2719 = vpop.permute.xlu0 %2718
    %2721 = vset.pattern.permute.xlu0 5
    %2722 = vperm.xlu0 %2721, %v317
    %v2723 = vpop.permute.xlu0 %2722
    %2725 = vset.pattern.permute.xlu0 5
    %2726 = vperm.xlu0 %2725, %v318
    %v2727 = vpop.permute.xlu0 %2726
    %2729 = vset.pattern.permute.xlu0 5
    %2730 = vperm.xlu0 %2729, %v319
    %v2731 = vpop.permute.xlu0 %2730
    %2733 = vset.pattern.permute.xlu0 5
    %2734 = vperm.xlu0 %2733, %v320
    %v2735 = vpop.permute.xlu0 %2734
    %2737 = vset.pattern.permute.xlu0 5
    %2738 = vperm.xlu0 %2737, %v321
    %v2739 = vpop.permute.xlu0 %2738
    %2741 = vset.pattern.permute.xlu0 5
    %2742 = vperm.xlu0 %2741, %v322
    %v2743 = vpop.permute.xlu0 %2742
    %2745 = vset.pattern.permute.xlu0 5
    %2746 = vperm.xlu0 %2745, %v323
    %v2747 = vpop.permute.xlu0 %2746
    %2749 = vset.pattern.permute.xlu0 5
    %2750 = vperm.xlu0 %2749, %v324
    %v2751 = vpop.permute.xlu0 %2750
    %2753 = vset.pattern.permute.xlu0 5
    %2754 = vperm.xlu0 %2753, %v325
    %v2755 = vpop.permute.xlu0 %2754
    %2757 = vset.pattern.permute.xlu0 5
    %2758 = vperm.xlu0 %2757, %v326
    %v2759 = vpop.permute.xlu0 %2758
    %2761 = vset.pattern.permute.xlu0 5
    %2762 = vperm.xlu0 %2761, %v327
    %v2763 = vpop.permute.xlu0 %2762
    %2765 = vset.pattern.permute.xlu0 5
    %2766 = vperm.xlu0 %2765, %v328
    %v2767 = vpop.permute.xlu0 %2766
    %2769 = vset.pattern.permute.xlu0 5
    %2770 = vperm.xlu0 %2769, %v329
    %v2771 = vpop.permute.xlu0 %2770
    %2773 = vset.pattern.permute.xlu0 5
    %2774 = vperm.xlu0 %2773, %v330
    %v2775 = vpop.permute.xlu0 %2774
    %2777 = vset.pattern.permute.xlu0 5
    %2778 = vperm.xlu0 %2777, %v331
    %v2779 = vpop.permute.xlu0 %2778
    %2781 = vset.pattern.permute.xlu0 5
    %2782 = vperm.xlu0 %2781, %v332
    %v2783 = vpop.permute.xlu0 %2782
    %2785 = vset.pattern.permute.xlu0 5
    %2786 = vperm.xlu0 %2785, %v333
    %v2787 = vpop.permute.xlu0 %2786
    %2789 = vset.pattern.permute.xlu0 5
    %2790 = vperm.xlu0 %2789, %v334
    %v2791 = vpop.permute.xlu0 %2790
    %2793 = vset.pattern.permute.xlu0 5
    %2794 = vperm.xlu0 %2793, %v335
    %v2795 = vpop.permute.xlu0 %2794
    %2797 = vset.pattern.permute.xlu0 5
    %2798 = vperm.xlu0 %2797, %v336
    %v2799 = vpop.permute.xlu0 %2798
    %2801 = vset.pattern.permute.xlu0 5
    %2802 = vperm.xlu0 %2801, %v337
    %v2803 = vpop.permute.xlu0 %2802
    %2805 = vset.pattern.permute.xlu0 5
    %2806 = vperm.xlu0 %2805, %v338
    %v2807 = vpop.permute.xlu0 %2806
    %2809 = vset.pattern.permute.xlu0 5
    %2810 = vperm.xlu0 %2809, %v339
    %v2811 = vpop.permute.xlu0 %2810
    %2813 = vset.pattern.permute.xlu0 5
    %2814 = vperm.xlu0 %2813, %v340
    %v2815 = vpop.permute.xlu0 %2814
    %2817 = vset.pattern.permute.xlu0 5
    %2818 = vperm.xlu0 %2817, %v341
    %v2819 = vpop.permute.xlu0 %2818
    %2821 = vset.pattern.permute.xlu0 5
    %2822 = vperm.xlu0 %2821, %v342
    %v2823 = vpop.permute.xlu0 %2822
    %2825 = vset.pattern.permute.xlu0 5
    %2826 = vperm.xlu0 %2825, %v343
    %v2827 = vpop.permute.xlu0 %2826
    %2829 = vset.pattern.permute.xlu0 5
    %2830 = vperm.xlu0 %2829, %v344
    %v2831 = vpop.permute.xlu0 %2830
    %2833 = vset.pattern.permute.xlu0 5
    %2834 = vperm.xlu0 %2833, %v345
    %v2835 = vpop.permute.xlu0 %2834
    %2837 = vset.pattern.permute.xlu0 5
    %2838 = vperm.xlu0 %2837, %v346
    %v2839 = vpop.permute.xlu0 %2838
    %2841 = vset.pattern.permute.xlu0 5
    %2842 = vperm.xlu0 %2841, %v347
    %v2843 = vpop.permute.xlu0 %2842
    %v2845 = vmul.f32 %v1371, %v2591
    %v2846 = vmul.f32 %v1370, %v2595
    %v2847 = vmul.f32 %v1369, %v2599
    %v2848 = vmul.f32 %v1368, %v2603
    %v2849 = vmul.f32 %v1367, %v2607
    %v2850 = vmul.f32 %v1366, %v2611
    %v2851 = vmul.f32 %v1365, %v2615
    %v2852 = vmul.f32 %v1364, %v2619
    %v2853 = vmul.f32 %v1363, %v2623
    %v2854 = vmul.f32 %v1362, %v2627
    %v2855 = vmul.f32 %v1361, %v2631
    %v2856 = vmul.f32 %v1360, %v2635
    %v2857 = vmul.f32 %v1359, %v2639
    %v2858 = vmul.f32 %v1358, %v2643
    %v2859 = vmul.f32 %v1357, %v2647
    %v2860 = vmul.f32 %v1356, %v2651
    %v2861 = vmul.f32 %v1355, %v2655
    %v2862 = vmul.f32 %v1354, %v2659
    %v2863 = vmul.f32 %v1353, %v2663
    %v2864 = vmul.f32 %v1352, %v2667
    %v2865 = vmul.f32 %v1351, %v2671
    %v2866 = vmul.f32 %v1350, %v2675
    %v2867 = vmul.f32 %v1349, %v2679
    %v2868 = vmul.f32 %v1348, %v2683
    %v2869 = vmul.f32 %v1347, %v2687
    %v2870 = vmul.f32 %v1346, %v2691
    %v2871 = vmul.f32 %v1345, %v2695
    %v2872 = vmul.f32 %v1344, %v2699
    %v2873 = vmul.f32 %v1343, %v2703
    %v2874 = vmul.f32 %v1342, %v2707
    %v2875 = vmul.f32 %v1341, %v2711
    %v2876 = vmul.f32 %v1340, %v2715
    %v2877 = vmul.f32 %v1339, %v2719
    %v2878 = vmul.f32 %v1338, %v2723
    %v2879 = vmul.f32 %v1337, %v2727
    %v2880 = vmul.f32 %v1336, %v2731
    %v2881 = vmul.f32 %v1335, %v2735
    %v2882 = vmul.f32 %v1334, %v2739
    %v2883 = vmul.f32 %v1333, %v2743
    %v2884 = vmul.f32 %v1332, %v2747
    %v2885 = vmul.f32 %v1331, %v2751
    %v2886 = vmul.f32 %v1330, %v2755
    %v2887 = vmul.f32 %v1329, %v2759
    %v2888 = vmul.f32 %v1328, %v2763
    %v2889 = vmul.f32 %v1327, %v2767
    %v2890 = vmul.f32 %v1326, %v2771
    %v2891 = vmul.f32 %v1325, %v2775
    %v2892 = vmul.f32 %v1324, %v2779
    %v2893 = vmul.f32 %v1323, %v2783
    %v2894 = vmul.f32 %v1322, %v2787
    %v2895 = vmul.f32 %v1321, %v2791
    %v2896 = vmul.f32 %v1320, %v2795
    %v2897 = vmul.f32 %v1319, %v2799
    %v2898 = vmul.f32 %v1318, %v2803
    %v2899 = vmul.f32 %v1317, %v2807
    %v2900 = vmul.f32 %v1316, %v2811
    %v2901 = vmul.f32 %v1315, %v2815
    %v2902 = vmul.f32 %v1314, %v2819
    %v2903 = vmul.f32 %v1313, %v2823
    %v2904 = vmul.f32 %v1312, %v2827
    %v2905 = vmul.f32 %v1311, %v2831
    %v2906 = vmul.f32 %v1310, %v2835
    %v2907 = vmul.f32 %v1309, %v2839
    %v2908 = vmul.f32 %v1372, %v2843
    %2909 = vrot.lane.b32.xlu0 %v2845, 40
    %v2910 = vpop.permute.xlu0 %2909
    %2911 = vrot.lane.b32.xlu0 %v2846, 40
    %v2912 = vpop.permute.xlu0 %2911
    %2913 = vrot.lane.b32.xlu0 %v2847, 40
    %v2914 = vpop.permute.xlu0 %2913
    %2915 = vrot.lane.b32.xlu0 %v2848, 40
    %v2916 = vpop.permute.xlu0 %2915
    %2917 = vrot.lane.b32.xlu0 %v2849, 40
    %v2918 = vpop.permute.xlu0 %2917
    %2919 = vrot.lane.b32.xlu0 %v2850, 40
    %v2920 = vpop.permute.xlu0 %2919
    %2921 = vrot.lane.b32.xlu0 %v2851, 40
    %v2922 = vpop.permute.xlu0 %2921
    %2923 = vrot.lane.b32.xlu0 %v2852, 40
    %v2924 = vpop.permute.xlu0 %2923
    %2925 = vrot.lane.b32.xlu0 %v2853, 40
    %v2926 = vpop.permute.xlu0 %2925
    %2927 = vrot.lane.b32.xlu0 %v2854, 40
    %v2928 = vpop.permute.xlu0 %2927
    %2929 = vrot.lane.b32.xlu0 %v2855, 40
    %v2930 = vpop.permute.xlu0 %2929
    %2931 = vrot.lane.b32.xlu0 %v2856, 40
    %v2932 = vpop.permute.xlu0 %2931
    %2933 = vrot.lane.b32.xlu0 %v2857, 40
    %v2934 = vpop.permute.xlu0 %2933
    %2935 = vrot.lane.b32.xlu0 %v2858, 40
    %v2936 = vpop.permute.xlu0 %2935
    %2937 = vrot.lane.b32.xlu0 %v2859, 40
    %v2938 = vpop.permute.xlu0 %2937
    %2939 = vrot.lane.b32.xlu0 %v2860, 40
    %v2940 = vpop.permute.xlu0 %2939
    %2941 = vrot.lane.b32.xlu0 %v2861, 40
    %v2942 = vpop.permute.xlu0 %2941
    %2943 = vrot.lane.b32.xlu0 %v2862, 40
    %v2944 = vpop.permute.xlu0 %2943
    %2945 = vrot.lane.b32.xlu0 %v2863, 40
    %v2946 = vpop.permute.xlu0 %2945
    %2947 = vrot.lane.b32.xlu0 %v2864, 40
    %v2948 = vpop.permute.xlu0 %2947
    %2949 = vrot.lane.b32.xlu0 %v2865, 40
    %v2950 = vpop.permute.xlu0 %2949
    %2951 = vrot.lane.b32.xlu0 %v2866, 40
    %v2952 = vpop.permute.xlu0 %2951
    %2953 = vrot.lane.b32.xlu0 %v2867, 40
    %v2954 = vpop.permute.xlu0 %2953
    %2955 = vrot.lane.b32.xlu0 %v2868, 40
    %v2956 = vpop.permute.xlu0 %2955
    %2957 = vrot.lane.b32.xlu0 %v2869, 40
    %v2958 = vpop.permute.xlu0 %2957
    %2959 = vrot.lane.b32.xlu0 %v2870, 40
    %v2960 = vpop.permute.xlu0 %2959
    %2961 = vrot.lane.b32.xlu0 %v2871, 40
    %v2962 = vpop.permute.xlu0 %2961
    %2963 = vrot.lane.b32.xlu0 %v2872, 40
    %v2964 = vpop.permute.xlu0 %2963
    %2965 = vrot.lane.b32.xlu0 %v2873, 40
    %v2966 = vpop.permute.xlu0 %2965
    %2967 = vrot.lane.b32.xlu0 %v2874, 40
    %v2968 = vpop.permute.xlu0 %2967
    %2969 = vrot.lane.b32.xlu0 %v2875, 40
    %v2970 = vpop.permute.xlu0 %2969
    %2971 = vrot.lane.b32.xlu0 %v2876, 40
    %v2972 = vpop.permute.xlu0 %2971
    %2973 = vrot.lane.b32.xlu0 %v2877, 40
    %v2974 = vpop.permute.xlu0 %2973
    %2975 = vrot.lane.b32.xlu0 %v2878, 40
    %v2976 = vpop.permute.xlu0 %2975
    %2977 = vrot.lane.b32.xlu0 %v2879, 40
    %v2978 = vpop.permute.xlu0 %2977
    %2979 = vrot.lane.b32.xlu0 %v2880, 40
    %v2980 = vpop.permute.xlu0 %2979
    %2981 = vrot.lane.b32.xlu0 %v2881, 40
    %v2982 = vpop.permute.xlu0 %2981
    %2983 = vrot.lane.b32.xlu0 %v2882, 40
    %v2984 = vpop.permute.xlu0 %2983
    %2985 = vrot.lane.b32.xlu0 %v2883, 40
    %v2986 = vpop.permute.xlu0 %2985
    %2987 = vrot.lane.b32.xlu0 %v2884, 40
    %v2988 = vpop.permute.xlu0 %2987
    %2989 = vrot.lane.b32.xlu0 %v2885, 40
    %v2990 = vpop.permute.xlu0 %2989
    %2991 = vrot.lane.b32.xlu0 %v2886, 40
    %v2992 = vpop.permute.xlu0 %2991
    %2993 = vrot.lane.b32.xlu0 %v2887, 40
    %v2994 = vpop.permute.xlu0 %2993
    %2995 = vrot.lane.b32.xlu0 %v2888, 40
    %v2996 = vpop.permute.xlu0 %2995
    %2997 = vrot.lane.b32.xlu0 %v2889, 40
    %v2998 = vpop.permute.xlu0 %2997
    %2999 = vrot.lane.b32.xlu0 %v2890, 40
    %v3000 = vpop.permute.xlu0 %2999
    %3001 = vrot.lane.b32.xlu0 %v2891, 40
    %v3002 = vpop.permute.xlu0 %3001
    %3003 = vrot.lane.b32.xlu0 %v2892, 40
    %v3004 = vpop.permute.xlu0 %3003
    %3005 = vrot.lane.b32.xlu0 %v2893, 40
    %v3006 = vpop.permute.xlu0 %3005
    %3007 = vrot.lane.b32.xlu0 %v2894, 40
    %v3008 = vpop.permute.xlu0 %3007
    %3009 = vrot.lane.b32.xlu0 %v2895, 40
    %v3010 = vpop.permute.xlu0 %3009
    %3011 = vrot.lane.b32.xlu0 %v2896, 40
    %v3012 = vpop.permute.xlu0 %3011
    %3013 = vrot.lane.b32.xlu0 %v2897, 40
    %v3014 = vpop.permute.xlu0 %3013
    %3015 = vrot.lane.b32.xlu0 %v2898, 40
    %v3016 = vpop.permute.xlu0 %3015
    %3017 = vrot.lane.b32.xlu0 %v2899, 40
    %v3018 = vpop.permute.xlu0 %3017
    %3019 = vrot.lane.b32.xlu0 %v2900, 40
    %v3020 = vpop.permute.xlu0 %3019
    %3021 = vrot.lane.b32.xlu0 %v2901, 40
    %v3022 = vpop.permute.xlu0 %3021
    %3023 = vrot.lane.b32.xlu0 %v2902, 40
    %v3024 = vpop.permute.xlu0 %3023
    %3025 = vrot.lane.b32.xlu0 %v2903, 40
    %v3026 = vpop.permute.xlu0 %3025
    %3027 = vrot.lane.b32.xlu0 %v2904, 40
    %v3028 = vpop.permute.xlu0 %3027
    %3029 = vrot.lane.b32.xlu0 %v2905, 40
    %v3030 = vpop.permute.xlu0 %3029
    %3031 = vrot.lane.b32.xlu0 %v2906, 40
    %v3032 = vpop.permute.xlu0 %3031
    %3033 = vrot.lane.b32.xlu0 %v2907, 40
    %v3034 = vpop.permute.xlu0 %3033
    %3035 = vrot.lane.b32.xlu0 %v2908, 40
    %v3036 = vpop.permute.xlu0 %3035
    %v3037 = vadd.f32 %v2525, %v2910
    %v3038 = vadd.f32 %v2526, %v2912
    %v3039 = vadd.f32 %v2527, %v2914
    %v3040 = vadd.f32 %v2528, %v2916
    %v3041 = vadd.f32 %v2529, %v2918
    %v3042 = vadd.f32 %v2530, %v2920
    %v3043 = vadd.f32 %v2531, %v2922
    %v3044 = vadd.f32 %v2532, %v2924
    %v3045 = vadd.f32 %v2533, %v2926
    %v3046 = vadd.f32 %v2534, %v2928
    %v3047 = vadd.f32 %v2535, %v2930
    %v3048 = vadd.f32 %v2536, %v2932
    %v3049 = vadd.f32 %v2537, %v2934
    %v3050 = vadd.f32 %v2538, %v2936
    %v3051 = vadd.f32 %v2539, %v2938
    %v3052 = vadd.f32 %v2540, %v2940
    %v3053 = vadd.f32 %v2541, %v2942
    %v3054 = vadd.f32 %v2542, %v2944
    %v3055 = vadd.f32 %v2543, %v2946
    %v3056 = vadd.f32 %v2544, %v2948
    %v3057 = vadd.f32 %v2545, %v2950
    %v3058 = vadd.f32 %v2546, %v2952
    %v3059 = vadd.f32 %v2547, %v2954
    %v3060 = vadd.f32 %v2548, %v2956
    %v3061 = vadd.f32 %v2549, %v2958
    %v3062 = vadd.f32 %v2550, %v2960
    %v3063 = vadd.f32 %v2551, %v2962
    %v3064 = vadd.f32 %v2552, %v2964
    %v3065 = vadd.f32 %v2553, %v2966
    %v3066 = vadd.f32 %v2554, %v2968
    %v3067 = vadd.f32 %v2555, %v2970
    %v3068 = vadd.f32 %v2556, %v2972
    %v3069 = vadd.f32 %v2557, %v2974
    %v3070 = vadd.f32 %v2558, %v2976
    %v3071 = vadd.f32 %v2559, %v2978
    %v3072 = vadd.f32 %v2560, %v2980
    %v3073 = vadd.f32 %v2561, %v2982
    %v3074 = vadd.f32 %v2562, %v2984
    %v3075 = vadd.f32 %v2563, %v2986
    %v3076 = vadd.f32 %v2564, %v2988
    %v3077 = vadd.f32 %v2565, %v2990
    %v3078 = vadd.f32 %v2566, %v2992
    %v3079 = vadd.f32 %v2567, %v2994
    %v3080 = vadd.f32 %v2568, %v2996
    %v3081 = vadd.f32 %v2569, %v2998
    %v3082 = vadd.f32 %v2570, %v3000
    %v3083 = vadd.f32 %v2571, %v3002
    %v3084 = vadd.f32 %v2572, %v3004
    %v3085 = vadd.f32 %v2573, %v3006
    %v3086 = vadd.f32 %v2574, %v3008
    %v3087 = vadd.f32 %v2575, %v3010
    %v3088 = vadd.f32 %v2576, %v3012
    %v3089 = vadd.f32 %v2577, %v3014
    %v3090 = vadd.f32 %v2578, %v3016
    %v3091 = vadd.f32 %v2579, %v3018
    %v3092 = vadd.f32 %v2580, %v3020
    %v3093 = vadd.f32 %v2581, %v3022
    %v3094 = vadd.f32 %v2582, %v3024
    %v3095 = vadd.f32 %v2583, %v3026
    %v3096 = vadd.f32 %v2584, %v3028
    %v3097 = vadd.f32 %v2585, %v3030
    %v3098 = vadd.f32 %v2586, %v3032
    %v3099 = vadd.f32 %v2587, %v3034
    %v3100 = vadd.f32 %v2588, %v3036
    %3101 = vset.pattern.permute.xlu0 6
    %3102 = vperm.xlu0 %3101, %v284
    %v3103 = vpop.permute.xlu0 %3102
    %3105 = vset.pattern.permute.xlu0 6
    %3106 = vperm.xlu0 %3105, %v285
    %v3107 = vpop.permute.xlu0 %3106
    %3109 = vset.pattern.permute.xlu0 6
    %3110 = vperm.xlu0 %3109, %v286
    %v3111 = vpop.permute.xlu0 %3110
    %3113 = vset.pattern.permute.xlu0 6
    %3114 = vperm.xlu0 %3113, %v287
    %v3115 = vpop.permute.xlu0 %3114
    %3117 = vset.pattern.permute.xlu0 6
    %3118 = vperm.xlu0 %3117, %v288
    %v3119 = vpop.permute.xlu0 %3118
    %3121 = vset.pattern.permute.xlu0 6
    %3122 = vperm.xlu0 %3121, %v289
    %v3123 = vpop.permute.xlu0 %3122
    %3125 = vset.pattern.permute.xlu0 6
    %3126 = vperm.xlu0 %3125, %v290
    %v3127 = vpop.permute.xlu0 %3126
    %3129 = vset.pattern.permute.xlu0 6
    %3130 = vperm.xlu0 %3129, %v291
    %v3131 = vpop.permute.xlu0 %3130
    %3133 = vset.pattern.permute.xlu0 6
    %3134 = vperm.xlu0 %3133, %v292
    %v3135 = vpop.permute.xlu0 %3134
    %3137 = vset.pattern.permute.xlu0 6
    %3138 = vperm.xlu0 %3137, %v293
    %v3139 = vpop.permute.xlu0 %3138
    %3141 = vset.pattern.permute.xlu0 6
    %3142 = vperm.xlu0 %3141, %v294
    %v3143 = vpop.permute.xlu0 %3142
    %3145 = vset.pattern.permute.xlu0 6
    %3146 = vperm.xlu0 %3145, %v295
    %v3147 = vpop.permute.xlu0 %3146
    %3149 = vset.pattern.permute.xlu0 6
    %3150 = vperm.xlu0 %3149, %v296
    %v3151 = vpop.permute.xlu0 %3150
    %3153 = vset.pattern.permute.xlu0 6
    %3154 = vperm.xlu0 %3153, %v297
    %v3155 = vpop.permute.xlu0 %3154
    %3157 = vset.pattern.permute.xlu0 6
    %3158 = vperm.xlu0 %3157, %v298
    %v3159 = vpop.permute.xlu0 %3158
    %3161 = vset.pattern.permute.xlu0 6
    %3162 = vperm.xlu0 %3161, %v299
    %v3163 = vpop.permute.xlu0 %3162
    %3165 = vset.pattern.permute.xlu0 6
    %3166 = vperm.xlu0 %3165, %v300
    %v3167 = vpop.permute.xlu0 %3166
    %3169 = vset.pattern.permute.xlu0 6
    %3170 = vperm.xlu0 %3169, %v301
    %v3171 = vpop.permute.xlu0 %3170
    %3173 = vset.pattern.permute.xlu0 6
    %3174 = vperm.xlu0 %3173, %v302
    %v3175 = vpop.permute.xlu0 %3174
    %3177 = vset.pattern.permute.xlu0 6
    %3178 = vperm.xlu0 %3177, %v303
    %v3179 = vpop.permute.xlu0 %3178
    %3181 = vset.pattern.permute.xlu0 6
    %3182 = vperm.xlu0 %3181, %v304
    %v3183 = vpop.permute.xlu0 %3182
    %3185 = vset.pattern.permute.xlu0 6
    %3186 = vperm.xlu0 %3185, %v305
    %v3187 = vpop.permute.xlu0 %3186
    %3189 = vset.pattern.permute.xlu0 6
    %3190 = vperm.xlu0 %3189, %v306
    %v3191 = vpop.permute.xlu0 %3190
    %3193 = vset.pattern.permute.xlu0 6
    %3194 = vperm.xlu0 %3193, %v307
    %v3195 = vpop.permute.xlu0 %3194
    %3197 = vset.pattern.permute.xlu0 6
    %3198 = vperm.xlu0 %3197, %v308
    %v3199 = vpop.permute.xlu0 %3198
    %3201 = vset.pattern.permute.xlu0 6
    %3202 = vperm.xlu0 %3201, %v309
    %v3203 = vpop.permute.xlu0 %3202
    %3205 = vset.pattern.permute.xlu0 6
    %3206 = vperm.xlu0 %3205, %v310
    %v3207 = vpop.permute.xlu0 %3206
    %3209 = vset.pattern.permute.xlu0 6
    %3210 = vperm.xlu0 %3209, %v311
    %v3211 = vpop.permute.xlu0 %3210
    %3213 = vset.pattern.permute.xlu0 6
    %3214 = vperm.xlu0 %3213, %v312
    %v3215 = vpop.permute.xlu0 %3214
    %3217 = vset.pattern.permute.xlu0 6
    %3218 = vperm.xlu0 %3217, %v313
    %v3219 = vpop.permute.xlu0 %3218
    %3221 = vset.pattern.permute.xlu0 6
    %3222 = vperm.xlu0 %3221, %v314
    %v3223 = vpop.permute.xlu0 %3222
    %3225 = vset.pattern.permute.xlu0 6
    %3226 = vperm.xlu0 %3225, %v315
    %v3227 = vpop.permute.xlu0 %3226
    %3229 = vset.pattern.permute.xlu0 6
    %3230 = vperm.xlu0 %3229, %v316
    %v3231 = vpop.permute.xlu0 %3230
    %3233 = vset.pattern.permute.xlu0 6
    %3234 = vperm.xlu0 %3233, %v317
    %v3235 = vpop.permute.xlu0 %3234
    %3237 = vset.pattern.permute.xlu0 6
    %3238 = vperm.xlu0 %3237, %v318
    %v3239 = vpop.permute.xlu0 %3238
    %3241 = vset.pattern.permute.xlu0 6
    %3242 = vperm.xlu0 %3241, %v319
    %v3243 = vpop.permute.xlu0 %3242
    %3245 = vset.pattern.permute.xlu0 6
    %3246 = vperm.xlu0 %3245, %v320
    %v3247 = vpop.permute.xlu0 %3246
    %3249 = vset.pattern.permute.xlu0 6
    %3250 = vperm.xlu0 %3249, %v321
    %v3251 = vpop.permute.xlu0 %3250
    %3253 = vset.pattern.permute.xlu0 6
    %3254 = vperm.xlu0 %3253, %v322
    %v3255 = vpop.permute.xlu0 %3254
    %3257 = vset.pattern.permute.xlu0 6
    %3258 = vperm.xlu0 %3257, %v323
    %v3259 = vpop.permute.xlu0 %3258
    %3261 = vset.pattern.permute.xlu0 6
    %3262 = vperm.xlu0 %3261, %v324
    %v3263 = vpop.permute.xlu0 %3262
    %3265 = vset.pattern.permute.xlu0 6
    %3266 = vperm.xlu0 %3265, %v325
    %v3267 = vpop.permute.xlu0 %3266
    %3269 = vset.pattern.permute.xlu0 6
    %3270 = vperm.xlu0 %3269, %v326
    %v3271 = vpop.permute.xlu0 %3270
    %3273 = vset.pattern.permute.xlu0 6
    %3274 = vperm.xlu0 %3273, %v327
    %v3275 = vpop.permute.xlu0 %3274
    %3277 = vset.pattern.permute.xlu0 6
    %3278 = vperm.xlu0 %3277, %v328
    %v3279 = vpop.permute.xlu0 %3278
    %3281 = vset.pattern.permute.xlu0 6
    %3282 = vperm.xlu0 %3281, %v329
    %v3283 = vpop.permute.xlu0 %3282
    %3285 = vset.pattern.permute.xlu0 6
    %3286 = vperm.xlu0 %3285, %v330
    %v3287 = vpop.permute.xlu0 %3286
    %3289 = vset.pattern.permute.xlu0 6
    %3290 = vperm.xlu0 %3289, %v331
    %v3291 = vpop.permute.xlu0 %3290
    %3293 = vset.pattern.permute.xlu0 6
    %3294 = vperm.xlu0 %3293, %v332
    %v3295 = vpop.permute.xlu0 %3294
    %3297 = vset.pattern.permute.xlu0 6
    %3298 = vperm.xlu0 %3297, %v333
    %v3299 = vpop.permute.xlu0 %3298
    %3301 = vset.pattern.permute.xlu0 6
    %3302 = vperm.xlu0 %3301, %v334
    %v3303 = vpop.permute.xlu0 %3302
    %3305 = vset.pattern.permute.xlu0 6
    %3306 = vperm.xlu0 %3305, %v335
    %v3307 = vpop.permute.xlu0 %3306
    %3309 = vset.pattern.permute.xlu0 6
    %3310 = vperm.xlu0 %3309, %v336
    %v3311 = vpop.permute.xlu0 %3310
    %3313 = vset.pattern.permute.xlu0 6
    %3314 = vperm.xlu0 %3313, %v337
    %v3315 = vpop.permute.xlu0 %3314
    %3317 = vset.pattern.permute.xlu0 6
    %3318 = vperm.xlu0 %3317, %v338
    %v3319 = vpop.permute.xlu0 %3318
    %3321 = vset.pattern.permute.xlu0 6
    %3322 = vperm.xlu0 %3321, %v339
    %v3323 = vpop.permute.xlu0 %3322
    %3325 = vset.pattern.permute.xlu0 6
    %3326 = vperm.xlu0 %3325, %v340
    %v3327 = vpop.permute.xlu0 %3326
    %3329 = vset.pattern.permute.xlu0 6
    %3330 = vperm.xlu0 %3329, %v341
    %v3331 = vpop.permute.xlu0 %3330
    %3333 = vset.pattern.permute.xlu0 6
    %3334 = vperm.xlu0 %3333, %v342
    %v3335 = vpop.permute.xlu0 %3334
    %3337 = vset.pattern.permute.xlu0 6
    %3338 = vperm.xlu0 %3337, %v343
    %v3339 = vpop.permute.xlu0 %3338
    %3341 = vset.pattern.permute.xlu0 6
    %3342 = vperm.xlu0 %3341, %v344
    %v3343 = vpop.permute.xlu0 %3342
    %3345 = vset.pattern.permute.xlu0 6
    %3346 = vperm.xlu0 %3345, %v345
    %v3347 = vpop.permute.xlu0 %3346
    %3349 = vset.pattern.permute.xlu0 6
    %3350 = vperm.xlu0 %3349, %v346
    %v3351 = vpop.permute.xlu0 %3350
    %3353 = vset.pattern.permute.xlu0 6
    %3354 = vperm.xlu0 %3353, %v347
    %v3355 = vpop.permute.xlu0 %3354
    %v3357 = vmul.f32 %v281, %v3103
    %v3358 = vmul.f32 %v280, %v3107
    %v3359 = vmul.f32 %v279, %v3111
    %v3360 = vmul.f32 %v278, %v3115
    %v3361 = vmul.f32 %v277, %v3119
    %v3362 = vmul.f32 %v276, %v3123
    %v3363 = vmul.f32 %v275, %v3127
    %v3364 = vmul.f32 %v274, %v3131
    %v3365 = vmul.f32 %v273, %v3135
    %v3366 = vmul.f32 %v272, %v3139
    %v3367 = vmul.f32 %v271, %v3143
    %v3368 = vmul.f32 %v270, %v3147
    %v3369 = vmul.f32 %v269, %v3151
    %v3370 = vmul.f32 %v268, %v3155
    %v3371 = vmul.f32 %v267, %v3159
    %v3372 = vmul.f32 %v266, %v3163
    %v3373 = vmul.f32 %v265, %v3167
    %v3374 = vmul.f32 %v264, %v3171
    %v3375 = vmul.f32 %v263, %v3175
    %v3376 = vmul.f32 %v262, %v3179
    %v3377 = vmul.f32 %v261, %v3183
    %v3378 = vmul.f32 %v260, %v3187
    %v3379 = vmul.f32 %v259, %v3191
    %v3380 = vmul.f32 %v258, %v3195
    %v3381 = vmul.f32 %v257, %v3199
    %v3382 = vmul.f32 %v256, %v3203
    %v3383 = vmul.f32 %v255, %v3207
    %v3384 = vmul.f32 %v254, %v3211
    %v3385 = vmul.f32 %v253, %v3215
    %v3386 = vmul.f32 %v252, %v3219
    %v3387 = vmul.f32 %v251, %v3223
    %v3388 = vmul.f32 %v250, %v3227
    %v3389 = vmul.f32 %v249, %v3231
    %v3390 = vmul.f32 %v248, %v3235
    %v3391 = vmul.f32 %v247, %v3239
    %v3392 = vmul.f32 %v246, %v3243
    %v3393 = vmul.f32 %v245, %v3247
    %v3394 = vmul.f32 %v244, %v3251
    %v3395 = vmul.f32 %v243, %v3255
    %v3396 = vmul.f32 %v242, %v3259
    %v3397 = vmul.f32 %v241, %v3263
    %v3398 = vmul.f32 %v240, %v3267
    %v3399 = vmul.f32 %v239, %v3271
    %v3400 = vmul.f32 %v238, %v3275
    %v3401 = vmul.f32 %v237, %v3279
    %v3402 = vmul.f32 %v236, %v3283
    %v3403 = vmul.f32 %v235, %v3287
    %v3404 = vmul.f32 %v234, %v3291
    %v3405 = vmul.f32 %v233, %v3295
    %v3406 = vmul.f32 %v232, %v3299
    %v3407 = vmul.f32 %v231, %v3303
    %v3408 = vmul.f32 %v230, %v3307
    %v3409 = vmul.f32 %v229, %v3311
    %v3410 = vmul.f32 %v228, %v3315
    %v3411 = vmul.f32 %v227, %v3319
    %v3412 = vmul.f32 %v226, %v3323
    %v3413 = vmul.f32 %v225, %v3327
    %v3414 = vmul.f32 %v224, %v3331
    %v3415 = vmul.f32 %v223, %v3335
    %v3416 = vmul.f32 %v222, %v3339
    %v3417 = vmul.f32 %v221, %v3343
    %v3418 = vmul.f32 %v220, %v3347
    %v3419 = vmul.f32 %v283, %v3351
    %v3420 = vmul.f32 %v282, %v3355
    %3421 = vrot.lane.b32.xlu0 %v3357, 48
    %v3422 = vpop.permute.xlu0 %3421
    %3423 = vrot.lane.b32.xlu0 %v3358, 48
    %v3424 = vpop.permute.xlu0 %3423
    %3425 = vrot.lane.b32.xlu0 %v3359, 48
    %v3426 = vpop.permute.xlu0 %3425
    %3427 = vrot.lane.b32.xlu0 %v3360, 48
    %v3428 = vpop.permute.xlu0 %3427
    %3429 = vrot.lane.b32.xlu0 %v3361, 48
    %v3430 = vpop.permute.xlu0 %3429
    %3431 = vrot.lane.b32.xlu0 %v3362, 48
    %v3432 = vpop.permute.xlu0 %3431
    %3433 = vrot.lane.b32.xlu0 %v3363, 48
    %v3434 = vpop.permute.xlu0 %3433
    %3435 = vrot.lane.b32.xlu0 %v3364, 48
    %v3436 = vpop.permute.xlu0 %3435
    %3437 = vrot.lane.b32.xlu0 %v3365, 48
    %v3438 = vpop.permute.xlu0 %3437
    %3439 = vrot.lane.b32.xlu0 %v3366, 48
    %v3440 = vpop.permute.xlu0 %3439
    %3441 = vrot.lane.b32.xlu0 %v3367, 48
    %v3442 = vpop.permute.xlu0 %3441
    %3443 = vrot.lane.b32.xlu0 %v3368, 48
    %v3444 = vpop.permute.xlu0 %3443
    %3445 = vrot.lane.b32.xlu0 %v3369, 48
    %v3446 = vpop.permute.xlu0 %3445
    %3447 = vrot.lane.b32.xlu0 %v3370, 48
    %v3448 = vpop.permute.xlu0 %3447
    %3449 = vrot.lane.b32.xlu0 %v3371, 48
    %v3450 = vpop.permute.xlu0 %3449
    %3451 = vrot.lane.b32.xlu0 %v3372, 48
    %v3452 = vpop.permute.xlu0 %3451
    %3453 = vrot.lane.b32.xlu0 %v3373, 48
    %v3454 = vpop.permute.xlu0 %3453
    %3455 = vrot.lane.b32.xlu0 %v3374, 48
    %v3456 = vpop.permute.xlu0 %3455
    %3457 = vrot.lane.b32.xlu0 %v3375, 48
    %v3458 = vpop.permute.xlu0 %3457
    %3459 = vrot.lane.b32.xlu0 %v3376, 48
    %v3460 = vpop.permute.xlu0 %3459
    %3461 = vrot.lane.b32.xlu0 %v3377, 48
    %v3462 = vpop.permute.xlu0 %3461
    %3463 = vrot.lane.b32.xlu0 %v3378, 48
    %v3464 = vpop.permute.xlu0 %3463
    %3465 = vrot.lane.b32.xlu0 %v3379, 48
    %v3466 = vpop.permute.xlu0 %3465
    %3467 = vrot.lane.b32.xlu0 %v3380, 48
    %v3468 = vpop.permute.xlu0 %3467
    %3469 = vrot.lane.b32.xlu0 %v3381, 48
    %v3470 = vpop.permute.xlu0 %3469
    %3471 = vrot.lane.b32.xlu0 %v3382, 48
    %v3472 = vpop.permute.xlu0 %3471
    %3473 = vrot.lane.b32.xlu0 %v3383, 48
    %v3474 = vpop.permute.xlu0 %3473
    %3475 = vrot.lane.b32.xlu0 %v3384, 48
    %v3476 = vpop.permute.xlu0 %3475
    %3477 = vrot.lane.b32.xlu0 %v3385, 48
    %v3478 = vpop.permute.xlu0 %3477
    %3479 = vrot.lane.b32.xlu0 %v3386, 48
    %v3480 = vpop.permute.xlu0 %3479
    %3481 = vrot.lane.b32.xlu0 %v3387, 48
    %v3482 = vpop.permute.xlu0 %3481
    %3483 = vrot.lane.b32.xlu0 %v3388, 48
    %v3484 = vpop.permute.xlu0 %3483
    %3485 = vrot.lane.b32.xlu0 %v3389, 48
    %v3486 = vpop.permute.xlu0 %3485
    %3487 = vrot.lane.b32.xlu0 %v3390, 48
    %v3488 = vpop.permute.xlu0 %3487
    %3489 = vrot.lane.b32.xlu0 %v3391, 48
    %v3490 = vpop.permute.xlu0 %3489
    %3491 = vrot.lane.b32.xlu0 %v3392, 48
    %v3492 = vpop.permute.xlu0 %3491
    %3493 = vrot.lane.b32.xlu0 %v3393, 48
    %v3494 = vpop.permute.xlu0 %3493
    %3495 = vrot.lane.b32.xlu0 %v3394, 48
    %v3496 = vpop.permute.xlu0 %3495
    %3497 = vrot.lane.b32.xlu0 %v3395, 48
    %v3498 = vpop.permute.xlu0 %3497
    %3499 = vrot.lane.b32.xlu0 %v3396, 48
    %v3500 = vpop.permute.xlu0 %3499
    %3501 = vrot.lane.b32.xlu0 %v3397, 48
    %v3502 = vpop.permute.xlu0 %3501
    %3503 = vrot.lane.b32.xlu0 %v3398, 48
    %v3504 = vpop.permute.xlu0 %3503
    %3505 = vrot.lane.b32.xlu0 %v3399, 48
    %v3506 = vpop.permute.xlu0 %3505
    %3507 = vrot.lane.b32.xlu0 %v3400, 48
    %v3508 = vpop.permute.xlu0 %3507
    %3509 = vrot.lane.b32.xlu0 %v3401, 48
    %v3510 = vpop.permute.xlu0 %3509
    %3511 = vrot.lane.b32.xlu0 %v3402, 48
    %v3512 = vpop.permute.xlu0 %3511
    %3513 = vrot.lane.b32.xlu0 %v3403, 48
    %v3514 = vpop.permute.xlu0 %3513
    %3515 = vrot.lane.b32.xlu0 %v3404, 48
    %v3516 = vpop.permute.xlu0 %3515
    %3517 = vrot.lane.b32.xlu0 %v3405, 48
    %v3518 = vpop.permute.xlu0 %3517
    %3519 = vrot.lane.b32.xlu0 %v3406, 48
    %v3520 = vpop.permute.xlu0 %3519
    %3521 = vrot.lane.b32.xlu0 %v3407, 48
    %v3522 = vpop.permute.xlu0 %3521
    %3523 = vrot.lane.b32.xlu0 %v3408, 48
    %v3524 = vpop.permute.xlu0 %3523
    %3525 = vrot.lane.b32.xlu0 %v3409, 48
    %v3526 = vpop.permute.xlu0 %3525
    %3527 = vrot.lane.b32.xlu0 %v3410, 48
    %v3528 = vpop.permute.xlu0 %3527
    %3529 = vrot.lane.b32.xlu0 %v3411, 48
    %v3530 = vpop.permute.xlu0 %3529
    %3531 = vrot.lane.b32.xlu0 %v3412, 48
    %v3532 = vpop.permute.xlu0 %3531
    %3533 = vrot.lane.b32.xlu0 %v3413, 48
    %v3534 = vpop.permute.xlu0 %3533
    %3535 = vrot.lane.b32.xlu0 %v3414, 48
    %v3536 = vpop.permute.xlu0 %3535
    %3537 = vrot.lane.b32.xlu0 %v3415, 48
    %v3538 = vpop.permute.xlu0 %3537
    %3539 = vrot.lane.b32.xlu0 %v3416, 48
    %v3540 = vpop.permute.xlu0 %3539
    %3541 = vrot.lane.b32.xlu0 %v3417, 48
    %v3542 = vpop.permute.xlu0 %3541
    %3543 = vrot.lane.b32.xlu0 %v3418, 48
    %v3544 = vpop.permute.xlu0 %3543
    %3545 = vrot.lane.b32.xlu0 %v3419, 48
    %v3546 = vpop.permute.xlu0 %3545
    %3547 = vrot.lane.b32.xlu0 %v3420, 48
    %v3548 = vpop.permute.xlu0 %3547
    %v3549 = vadd.f32 %v3037, %v3422
    %v3550 = vadd.f32 %v3038, %v3424
    %v3551 = vadd.f32 %v3039, %v3426
    %v3552 = vadd.f32 %v3040, %v3428
    %v3553 = vadd.f32 %v3041, %v3430
    %v3554 = vadd.f32 %v3042, %v3432
    %v3555 = vadd.f32 %v3043, %v3434
    %v3556 = vadd.f32 %v3044, %v3436
    %v3557 = vadd.f32 %v3045, %v3438
    %v3558 = vadd.f32 %v3046, %v3440
    %v3559 = vadd.f32 %v3047, %v3442
    %v3560 = vadd.f32 %v3048, %v3444
    %v3561 = vadd.f32 %v3049, %v3446
    %v3562 = vadd.f32 %v3050, %v3448
    %v3563 = vadd.f32 %v3051, %v3450
    %v3564 = vadd.f32 %v3052, %v3452
    %v3565 = vadd.f32 %v3053, %v3454
    %v3566 = vadd.f32 %v3054, %v3456
    %v3567 = vadd.f32 %v3055, %v3458
    %v3568 = vadd.f32 %v3056, %v3460
    %v3569 = vadd.f32 %v3057, %v3462
    %v3570 = vadd.f32 %v3058, %v3464
    %v3571 = vadd.f32 %v3059, %v3466
    %v3572 = vadd.f32 %v3060, %v3468
    %v3573 = vadd.f32 %v3061, %v3470
    %v3574 = vadd.f32 %v3062, %v3472
    %v3575 = vadd.f32 %v3063, %v3474
    %v3576 = vadd.f32 %v3064, %v3476
    %v3577 = vadd.f32 %v3065, %v3478
    %v3578 = vadd.f32 %v3066, %v3480
    %v3579 = vadd.f32 %v3067, %v3482
    %v3580 = vadd.f32 %v3068, %v3484
    %v3581 = vadd.f32 %v3069, %v3486
    %v3582 = vadd.f32 %v3070, %v3488
    %v3583 = vadd.f32 %v3071, %v3490
    %v3584 = vadd.f32 %v3072, %v3492
    %v3585 = vadd.f32 %v3073, %v3494
    %v3586 = vadd.f32 %v3074, %v3496
    %v3587 = vadd.f32 %v3075, %v3498
    %v3588 = vadd.f32 %v3076, %v3500
    %v3589 = vadd.f32 %v3077, %v3502
    %v3590 = vadd.f32 %v3078, %v3504
    %v3591 = vadd.f32 %v3079, %v3506
    %v3592 = vadd.f32 %v3080, %v3508
    %v3593 = vadd.f32 %v3081, %v3510
    %v3594 = vadd.f32 %v3082, %v3512
    %v3595 = vadd.f32 %v3083, %v3514
    %v3596 = vadd.f32 %v3084, %v3516
    %v3597 = vadd.f32 %v3085, %v3518
    %v3598 = vadd.f32 %v3086, %v3520
    %v3599 = vadd.f32 %v3087, %v3522
    %v3600 = vadd.f32 %v3088, %v3524
    %v3601 = vadd.f32 %v3089, %v3526
    %v3602 = vadd.f32 %v3090, %v3528
    %v3603 = vadd.f32 %v3091, %v3530
    %v3604 = vadd.f32 %v3092, %v3532
    %v3605 = vadd.f32 %v3093, %v3534
    %v3606 = vadd.f32 %v3094, %v3536
    %v3607 = vadd.f32 %v3095, %v3538
    %v3608 = vadd.f32 %v3096, %v3540
    %v3609 = vadd.f32 %v3097, %v3542
    %v3610 = vadd.f32 %v3098, %v3544
    %v3611 = vadd.f32 %v3099, %v3546
    %v3612 = vadd.f32 %v3100, %v3548
    %3613 = vset.pattern.permute.xlu0 7
    %3614 = vperm.xlu0 %3613, %v284
    %v3615 = vpop.permute.xlu0 %3614
    %3617 = vset.pattern.permute.xlu0 7
    %3618 = vperm.xlu0 %3617, %v285
    %v3619 = vpop.permute.xlu0 %3618
    %3621 = vset.pattern.permute.xlu0 7
    %3622 = vperm.xlu0 %3621, %v286
    %v3623 = vpop.permute.xlu0 %3622
    %3625 = vset.pattern.permute.xlu0 7
    %3626 = vperm.xlu0 %3625, %v287
    %v3627 = vpop.permute.xlu0 %3626
    %3629 = vset.pattern.permute.xlu0 7
    %3630 = vperm.xlu0 %3629, %v288
    %v3631 = vpop.permute.xlu0 %3630
    %3633 = vset.pattern.permute.xlu0 7
    %3634 = vperm.xlu0 %3633, %v289
    %v3635 = vpop.permute.xlu0 %3634
    %3637 = vset.pattern.permute.xlu0 7
    %3638 = vperm.xlu0 %3637, %v290
    %v3639 = vpop.permute.xlu0 %3638
    %3641 = vset.pattern.permute.xlu0 7
    %3642 = vperm.xlu0 %3641, %v291
    %v3643 = vpop.permute.xlu0 %3642
    %3645 = vset.pattern.permute.xlu0 7
    %3646 = vperm.xlu0 %3645, %v292
    %v3647 = vpop.permute.xlu0 %3646
    %3649 = vset.pattern.permute.xlu0 7
    %3650 = vperm.xlu0 %3649, %v293
    %v3651 = vpop.permute.xlu0 %3650
    %3653 = vset.pattern.permute.xlu0 7
    %3654 = vperm.xlu0 %3653, %v294
    %v3655 = vpop.permute.xlu0 %3654
    %3657 = vset.pattern.permute.xlu0 7
    %3658 = vperm.xlu0 %3657, %v295
    %v3659 = vpop.permute.xlu0 %3658
    %3661 = vset.pattern.permute.xlu0 7
    %3662 = vperm.xlu0 %3661, %v296
    %v3663 = vpop.permute.xlu0 %3662
    %3665 = vset.pattern.permute.xlu0 7
    %3666 = vperm.xlu0 %3665, %v297
    %v3667 = vpop.permute.xlu0 %3666
    %3669 = vset.pattern.permute.xlu0 7
    %3670 = vperm.xlu0 %3669, %v298
    %v3671 = vpop.permute.xlu0 %3670
    %3673 = vset.pattern.permute.xlu0 7
    %3674 = vperm.xlu0 %3673, %v299
    %v3675 = vpop.permute.xlu0 %3674
    %3677 = vset.pattern.permute.xlu0 7
    %3678 = vperm.xlu0 %3677, %v300
    %v3679 = vpop.permute.xlu0 %3678
    %3681 = vset.pattern.permute.xlu0 7
    %3682 = vperm.xlu0 %3681, %v301
    %v3683 = vpop.permute.xlu0 %3682
    %3685 = vset.pattern.permute.xlu0 7
    %3686 = vperm.xlu0 %3685, %v302
    %v3687 = vpop.permute.xlu0 %3686
    %3689 = vset.pattern.permute.xlu0 7
    %3690 = vperm.xlu0 %3689, %v303
    %v3691 = vpop.permute.xlu0 %3690
    %3693 = vset.pattern.permute.xlu0 7
    %3694 = vperm.xlu0 %3693, %v304
    %v3695 = vpop.permute.xlu0 %3694
    %3697 = vset.pattern.permute.xlu0 7
    %3698 = vperm.xlu0 %3697, %v305
    %v3699 = vpop.permute.xlu0 %3698
    %3701 = vset.pattern.permute.xlu0 7
    %3702 = vperm.xlu0 %3701, %v306
    %v3703 = vpop.permute.xlu0 %3702
    %3705 = vset.pattern.permute.xlu0 7
    %3706 = vperm.xlu0 %3705, %v307
    %v3707 = vpop.permute.xlu0 %3706
    %3709 = vset.pattern.permute.xlu0 7
    %3710 = vperm.xlu0 %3709, %v308
    %v3711 = vpop.permute.xlu0 %3710
    %3713 = vset.pattern.permute.xlu0 7
    %3714 = vperm.xlu0 %3713, %v309
    %v3715 = vpop.permute.xlu0 %3714
    %3717 = vset.pattern.permute.xlu0 7
    %3718 = vperm.xlu0 %3717, %v310
    %v3719 = vpop.permute.xlu0 %3718
    %3721 = vset.pattern.permute.xlu0 7
    %3722 = vperm.xlu0 %3721, %v311
    %v3723 = vpop.permute.xlu0 %3722
    %3725 = vset.pattern.permute.xlu0 7
    %3726 = vperm.xlu0 %3725, %v312
    %v3727 = vpop.permute.xlu0 %3726
    %3729 = vset.pattern.permute.xlu0 7
    %3730 = vperm.xlu0 %3729, %v313
    %v3731 = vpop.permute.xlu0 %3730
    %3733 = vset.pattern.permute.xlu0 7
    %3734 = vperm.xlu0 %3733, %v314
    %v3735 = vpop.permute.xlu0 %3734
    %3737 = vset.pattern.permute.xlu0 7
    %3738 = vperm.xlu0 %3737, %v315
    %v3739 = vpop.permute.xlu0 %3738
    %3741 = vset.pattern.permute.xlu0 7
    %3742 = vperm.xlu0 %3741, %v316
    %v3743 = vpop.permute.xlu0 %3742
    %3745 = vset.pattern.permute.xlu0 7
    %3746 = vperm.xlu0 %3745, %v317
    %v3747 = vpop.permute.xlu0 %3746
    %3749 = vset.pattern.permute.xlu0 7
    %3750 = vperm.xlu0 %3749, %v318
    %v3751 = vpop.permute.xlu0 %3750
    %3753 = vset.pattern.permute.xlu0 7
    %3754 = vperm.xlu0 %3753, %v319
    %v3755 = vpop.permute.xlu0 %3754
    %3757 = vset.pattern.permute.xlu0 7
    %3758 = vperm.xlu0 %3757, %v320
    %v3759 = vpop.permute.xlu0 %3758
    %3761 = vset.pattern.permute.xlu0 7
    %3762 = vperm.xlu0 %3761, %v321
    %v3763 = vpop.permute.xlu0 %3762
    %3765 = vset.pattern.permute.xlu0 7
    %3766 = vperm.xlu0 %3765, %v322
    %v3767 = vpop.permute.xlu0 %3766
    %3769 = vset.pattern.permute.xlu0 7
    %3770 = vperm.xlu0 %3769, %v323
    %v3771 = vpop.permute.xlu0 %3770
    %3773 = vset.pattern.permute.xlu0 7
    %3774 = vperm.xlu0 %3773, %v324
    %v3775 = vpop.permute.xlu0 %3774
    %3777 = vset.pattern.permute.xlu0 7
    %3778 = vperm.xlu0 %3777, %v325
    %v3779 = vpop.permute.xlu0 %3778
    %3781 = vset.pattern.permute.xlu0 7
    %3782 = vperm.xlu0 %3781, %v326
    %v3783 = vpop.permute.xlu0 %3782
    %3785 = vset.pattern.permute.xlu0 7
    %3786 = vperm.xlu0 %3785, %v327
    %v3787 = vpop.permute.xlu0 %3786
    %3789 = vset.pattern.permute.xlu0 7
    %3790 = vperm.xlu0 %3789, %v328
    %v3791 = vpop.permute.xlu0 %3790
    %3793 = vset.pattern.permute.xlu0 7
    %3794 = vperm.xlu0 %3793, %v329
    %v3795 = vpop.permute.xlu0 %3794
    %3797 = vset.pattern.permute.xlu0 7
    %3798 = vperm.xlu0 %3797, %v330
    %v3799 = vpop.permute.xlu0 %3798
    %3801 = vset.pattern.permute.xlu0 7
    %3802 = vperm.xlu0 %3801, %v331
    %v3803 = vpop.permute.xlu0 %3802
    %3805 = vset.pattern.permute.xlu0 7
    %3806 = vperm.xlu0 %3805, %v332
    %v3807 = vpop.permute.xlu0 %3806
    %3809 = vset.pattern.permute.xlu0 7
    %3810 = vperm.xlu0 %3809, %v333
    %v3811 = vpop.permute.xlu0 %3810
    %3813 = vset.pattern.permute.xlu0 7
    %3814 = vperm.xlu0 %3813, %v334
    %v3815 = vpop.permute.xlu0 %3814
    %3817 = vset.pattern.permute.xlu0 7
    %3818 = vperm.xlu0 %3817, %v335
    %v3819 = vpop.permute.xlu0 %3818
    %3821 = vset.pattern.permute.xlu0 7
    %3822 = vperm.xlu0 %3821, %v336
    %v3823 = vpop.permute.xlu0 %3822
    %3825 = vset.pattern.permute.xlu0 7
    %3826 = vperm.xlu0 %3825, %v337
    %v3827 = vpop.permute.xlu0 %3826
    %3829 = vset.pattern.permute.xlu0 7
    %3830 = vperm.xlu0 %3829, %v338
    %v3831 = vpop.permute.xlu0 %3830
    %3833 = vset.pattern.permute.xlu0 7
    %3834 = vperm.xlu0 %3833, %v339
    %v3835 = vpop.permute.xlu0 %3834
    %3837 = vset.pattern.permute.xlu0 7
    %3838 = vperm.xlu0 %3837, %v340
    %v3839 = vpop.permute.xlu0 %3838
    %3841 = vset.pattern.permute.xlu0 7
    %3842 = vperm.xlu0 %3841, %v341
    %v3843 = vpop.permute.xlu0 %3842
    %3845 = vset.pattern.permute.xlu0 7
    %3846 = vperm.xlu0 %3845, %v342
    %v3847 = vpop.permute.xlu0 %3846
    %3849 = vset.pattern.permute.xlu0 7
    %3850 = vperm.xlu0 %3849, %v343
    %v3851 = vpop.permute.xlu0 %3850
    %3853 = vset.pattern.permute.xlu0 7
    %3854 = vperm.xlu0 %3853, %v344
    %v3855 = vpop.permute.xlu0 %3854
    %3857 = vset.pattern.permute.xlu0 7
    %3858 = vperm.xlu0 %3857, %v345
    %v3859 = vpop.permute.xlu0 %3858
    %3861 = vset.pattern.permute.xlu0 7
    %3862 = vperm.xlu0 %3861, %v346
    %v3863 = vpop.permute.xlu0 %3862
    %3865 = vset.pattern.permute.xlu0 7
    %3866 = vperm.xlu0 %3865, %v347
    %v3867 = vpop.permute.xlu0 %3866
    %v3869 = vmul.f32 %v91, %v3615
    %v3870 = vmul.f32 %v92, %v3619
    %v3871 = vmul.f32 %v93, %v3623
    %v3872 = vmul.f32 %v94, %v3627
    %v3873 = vmul.f32 %v95, %v3631
    %v3874 = vmul.f32 %v96, %v3635
    %v3875 = vmul.f32 %v97, %v3639
    %v3876 = vmul.f32 %v98, %v3643
    %v3877 = vmul.f32 %v99, %v3647
    %v3878 = vmul.f32 %v100, %v3651
    %v3879 = vmul.f32 %v101, %v3655
    %v3880 = vmul.f32 %v102, %v3659
    %v3881 = vmul.f32 %v103, %v3663
    %v3882 = vmul.f32 %v104, %v3667
    %v3883 = vmul.f32 %v105, %v3671
    %v3884 = vmul.f32 %v106, %v3675
    %v3885 = vmul.f32 %v107, %v3679
    %v3886 = vmul.f32 %v108, %v3683
    %v3887 = vmul.f32 %v109, %v3687
    %v3888 = vmul.f32 %v110, %v3691
    %v3889 = vmul.f32 %v111, %v3695
    %v3890 = vmul.f32 %v112, %v3699
    %v3891 = vmul.f32 %v113, %v3703
    %v3892 = vmul.f32 %v114, %v3707
    %v3893 = vmul.f32 %v115, %v3711
    %v3894 = vmul.f32 %v116, %v3715
    %v3895 = vmul.f32 %v117, %v3719
    %v3896 = vmul.f32 %v118, %v3723
    %v3897 = vmul.f32 %v119, %v3727
    %v3898 = vmul.f32 %v120, %v3731
    %v3899 = vmul.f32 %v121, %v3735
    %v3900 = vmul.f32 %v122, %v3739
    %v3901 = vmul.f32 %v123, %v3743
    %v3902 = vmul.f32 %v124, %v3747
    %v3903 = vmul.f32 %v125, %v3751
    %v3904 = vmul.f32 %v126, %v3755
    %v3905 = vmul.f32 %v127, %v3759
    %v3906 = vmul.f32 %v128, %v3763
    %v3907 = vmul.f32 %v129, %v3767
    %v3908 = vmul.f32 %v130, %v3771
    %v3909 = vmul.f32 %v131, %v3775
    %v3910 = vmul.f32 %v132, %v3779
    %v3911 = vmul.f32 %v133, %v3783
    %v3912 = vmul.f32 %v134, %v3787
    %v3913 = vmul.f32 %v135, %v3791
    %v3914 = vmul.f32 %v136, %v3795
    %v3915 = vmul.f32 %v137, %v3799
    %v3916 = vmul.f32 %v138, %v3803
    %v3917 = vmul.f32 %v139, %v3807
    %v3918 = vmul.f32 %v140, %v3811
    %v3919 = vmul.f32 %v141, %v3815
    %v3920 = vmul.f32 %v142, %v3819
    %v3921 = vmul.f32 %v143, %v3823
    %v3922 = vmul.f32 %v144, %v3827
    %v3923 = vmul.f32 %v145, %v3831
    %v3924 = vmul.f32 %v146, %v3835
    %v3925 = vmul.f32 %v147, %v3839
    %v3926 = vmul.f32 %v148, %v3843
    %v3927 = vmul.f32 %v149, %v3847
    %v3928 = vmul.f32 %v150, %v3851
    %v3929 = vmul.f32 %v151, %v3855
    %v3930 = vmul.f32 %v152, %v3859
    %v3931 = vmul.f32 %v89, %v3863
    %v3932 = vmul.f32 %v90, %v3867
    %3933 = vrot.lane.b32.xlu0 %v3869, 56
    %v3934 = vpop.permute.xlu0 %3933
    %3935 = vrot.lane.b32.xlu0 %v3870, 56
    %v3936 = vpop.permute.xlu0 %3935
    %3937 = vrot.lane.b32.xlu0 %v3871, 56
    %v3938 = vpop.permute.xlu0 %3937
    %3939 = vrot.lane.b32.xlu0 %v3872, 56
    %v3940 = vpop.permute.xlu0 %3939
    %3941 = vrot.lane.b32.xlu0 %v3873, 56
    %v3942 = vpop.permute.xlu0 %3941
    %3943 = vrot.lane.b32.xlu0 %v3874, 56
    %v3944 = vpop.permute.xlu0 %3943
    %3945 = vrot.lane.b32.xlu0 %v3875, 56
    %v3946 = vpop.permute.xlu0 %3945
    %3947 = vrot.lane.b32.xlu0 %v3876, 56
    %v3948 = vpop.permute.xlu0 %3947
    %3949 = vrot.lane.b32.xlu0 %v3877, 56
    %v3950 = vpop.permute.xlu0 %3949
    %3951 = vrot.lane.b32.xlu0 %v3878, 56
    %v3952 = vpop.permute.xlu0 %3951
    %3953 = vrot.lane.b32.xlu0 %v3879, 56
    %v3954 = vpop.permute.xlu0 %3953
    %3955 = vrot.lane.b32.xlu0 %v3880, 56
    %v3956 = vpop.permute.xlu0 %3955
    %3957 = vrot.lane.b32.xlu0 %v3881, 56
    %v3958 = vpop.permute.xlu0 %3957
    %3959 = vrot.lane.b32.xlu0 %v3882, 56
    %v3960 = vpop.permute.xlu0 %3959
    %3961 = vrot.lane.b32.xlu0 %v3883, 56
    %v3962 = vpop.permute.xlu0 %3961
    %3963 = vrot.lane.b32.xlu0 %v3884, 56
    %v3964 = vpop.permute.xlu0 %3963
    %3965 = vrot.lane.b32.xlu0 %v3885, 56
    %v3966 = vpop.permute.xlu0 %3965
    %3967 = vrot.lane.b32.xlu0 %v3886, 56
    %v3968 = vpop.permute.xlu0 %3967
    %3969 = vrot.lane.b32.xlu0 %v3887, 56
    %v3970 = vpop.permute.xlu0 %3969
    %3971 = vrot.lane.b32.xlu0 %v3888, 56
    %v3972 = vpop.permute.xlu0 %3971
    %3973 = vrot.lane.b32.xlu0 %v3889, 56
    %v3974 = vpop.permute.xlu0 %3973
    %3975 = vrot.lane.b32.xlu0 %v3890, 56
    %v3976 = vpop.permute.xlu0 %3975
    %3977 = vrot.lane.b32.xlu0 %v3891, 56
    %v3978 = vpop.permute.xlu0 %3977
    %3979 = vrot.lane.b32.xlu0 %v3892, 56
    %v3980 = vpop.permute.xlu0 %3979
    %3981 = vrot.lane.b32.xlu0 %v3893, 56
    %v3982 = vpop.permute.xlu0 %3981
    %3983 = vrot.lane.b32.xlu0 %v3894, 56
    %v3984 = vpop.permute.xlu0 %3983
    %3985 = vrot.lane.b32.xlu0 %v3895, 56
    %v3986 = vpop.permute.xlu0 %3985
    %3987 = vrot.lane.b32.xlu0 %v3896, 56
    %v3988 = vpop.permute.xlu0 %3987
    %3989 = vrot.lane.b32.xlu0 %v3897, 56
    %v3990 = vpop.permute.xlu0 %3989
    %3991 = vrot.lane.b32.xlu0 %v3898, 56
    %v3992 = vpop.permute.xlu0 %3991
    %3993 = vrot.lane.b32.xlu0 %v3899, 56
    %v3994 = vpop.permute.xlu0 %3993
    %3995 = vrot.lane.b32.xlu0 %v3900, 56
    %v3996 = vpop.permute.xlu0 %3995
    %3997 = vrot.lane.b32.xlu0 %v3901, 56
    %v3998 = vpop.permute.xlu0 %3997
    %3999 = vrot.lane.b32.xlu0 %v3902, 56
    %v4000 = vpop.permute.xlu0 %3999
    %4001 = vrot.lane.b32.xlu0 %v3903, 56
    %v4002 = vpop.permute.xlu0 %4001
    %4003 = vrot.lane.b32.xlu0 %v3904, 56
    %v4004 = vpop.permute.xlu0 %4003
    %4005 = vrot.lane.b32.xlu0 %v3905, 56
    %v4006 = vpop.permute.xlu0 %4005
    %4007 = vrot.lane.b32.xlu0 %v3906, 56
    %v4008 = vpop.permute.xlu0 %4007
    %4009 = vrot.lane.b32.xlu0 %v3907, 56
    %v4010 = vpop.permute.xlu0 %4009
    %4011 = vrot.lane.b32.xlu0 %v3908, 56
    %v4012 = vpop.permute.xlu0 %4011
    %4013 = vrot.lane.b32.xlu0 %v3909, 56
    %v4014 = vpop.permute.xlu0 %4013
    %4015 = vrot.lane.b32.xlu0 %v3910, 56
    %v4016 = vpop.permute.xlu0 %4015
    %4017 = vrot.lane.b32.xlu0 %v3911, 56
    %v4018 = vpop.permute.xlu0 %4017
    %4019 = vrot.lane.b32.xlu0 %v3912, 56
    %v4020 = vpop.permute.xlu0 %4019
    %4021 = vrot.lane.b32.xlu0 %v3913, 56
    %v4022 = vpop.permute.xlu0 %4021
    %4023 = vrot.lane.b32.xlu0 %v3914, 56
    %v4024 = vpop.permute.xlu0 %4023
    %4025 = vrot.lane.b32.xlu0 %v3915, 56
    %v4026 = vpop.permute.xlu0 %4025
    %4027 = vrot.lane.b32.xlu0 %v3916, 56
    %v4028 = vpop.permute.xlu0 %4027
    %4029 = vrot.lane.b32.xlu0 %v3917, 56
    %v4030 = vpop.permute.xlu0 %4029
    %4031 = vrot.lane.b32.xlu0 %v3918, 56
    %v4032 = vpop.permute.xlu0 %4031
    %4033 = vrot.lane.b32.xlu0 %v3919, 56
    %v4034 = vpop.permute.xlu0 %4033
    %4035 = vrot.lane.b32.xlu0 %v3920, 56
    %v4036 = vpop.permute.xlu0 %4035
    %4037 = vrot.lane.b32.xlu0 %v3921, 56
    %v4038 = vpop.permute.xlu0 %4037
    %4039 = vrot.lane.b32.xlu0 %v3922, 56
    %v4040 = vpop.permute.xlu0 %4039
    %4041 = vrot.lane.b32.xlu0 %v3923, 56
    %v4042 = vpop.permute.xlu0 %4041
    %4043 = vrot.lane.b32.xlu0 %v3924, 56
    %v4044 = vpop.permute.xlu0 %4043
    %4045 = vrot.lane.b32.xlu0 %v3925, 56
    %v4046 = vpop.permute.xlu0 %4045
    %4047 = vrot.lane.b32.xlu0 %v3926, 56
    %v4048 = vpop.permute.xlu0 %4047
    %4049 = vrot.lane.b32.xlu0 %v3927, 56
    %v4050 = vpop.permute.xlu0 %4049
    %4051 = vrot.lane.b32.xlu0 %v3928, 56
    %v4052 = vpop.permute.xlu0 %4051
    %4053 = vrot.lane.b32.xlu0 %v3929, 56
    %v4054 = vpop.permute.xlu0 %4053
    %4055 = vrot.lane.b32.xlu0 %v3930, 56
    %v4056 = vpop.permute.xlu0 %4055
    %4057 = vrot.lane.b32.xlu0 %v3931, 56
    %v4058 = vpop.permute.xlu0 %4057
    %4059 = vrot.lane.b32.xlu0 %v3932, 56
    %v4060 = vpop.permute.xlu0 %4059
    %v4061 = vadd.f32 %v3549, %v3934
    %v4062 = vadd.f32 %v3550, %v3936
    %v4063 = vadd.f32 %v3551, %v3938
    %v4064 = vadd.f32 %v3552, %v3940
    %v4065 = vadd.f32 %v3553, %v3942
    %v4066 = vadd.f32 %v3554, %v3944
    %v4067 = vadd.f32 %v3555, %v3946
    %v4068 = vadd.f32 %v3556, %v3948
    %v4069 = vadd.f32 %v3557, %v3950
    %v4070 = vadd.f32 %v3558, %v3952
    %v4071 = vadd.f32 %v3559, %v3954
    %v4072 = vadd.f32 %v3560, %v3956
    %v4073 = vadd.f32 %v3561, %v3958
    %v4074 = vadd.f32 %v3562, %v3960
    %v4075 = vadd.f32 %v3563, %v3962
    %v4076 = vadd.f32 %v3564, %v3964
    %v4077 = vadd.f32 %v3565, %v3966
    %v4078 = vadd.f32 %v3566, %v3968
    %v4079 = vadd.f32 %v3567, %v3970
    %v4080 = vadd.f32 %v3568, %v3972
    %v4081 = vadd.f32 %v3569, %v3974
    %v4082 = vadd.f32 %v3570, %v3976
    %v4083 = vadd.f32 %v3571, %v3978
    %v4084 = vadd.f32 %v3572, %v3980
    %v4085 = vadd.f32 %v3573, %v3982
    %v4086 = vadd.f32 %v3574, %v3984
    %v4087 = vadd.f32 %v3575, %v3986
    %v4088 = vadd.f32 %v3576, %v3988
    %v4089 = vadd.f32 %v3577, %v3990
    %v4090 = vadd.f32 %v3578, %v3992
    %v4091 = vadd.f32 %v3579, %v3994
    %v4092 = vadd.f32 %v3580, %v3996
    %v4093 = vadd.f32 %v3581, %v3998
    %v4094 = vadd.f32 %v3582, %v4000
    %v4095 = vadd.f32 %v3583, %v4002
    %v4096 = vadd.f32 %v3584, %v4004
    %v4097 = vadd.f32 %v3585, %v4006
    %v4098 = vadd.f32 %v3586, %v4008
    %v4099 = vadd.f32 %v3587, %v4010
    %v4100 = vadd.f32 %v3588, %v4012
    %v4101 = vadd.f32 %v3589, %v4014
    %v4102 = vadd.f32 %v3590, %v4016
    %v4103 = vadd.f32 %v3591, %v4018
    %v4104 = vadd.f32 %v3592, %v4020
    %v4105 = vadd.f32 %v3593, %v4022
    %v4106 = vadd.f32 %v3594, %v4024
    %v4107 = vadd.f32 %v3595, %v4026
    %v4108 = vadd.f32 %v3596, %v4028
    %v4109 = vadd.f32 %v3597, %v4030
    %v4110 = vadd.f32 %v3598, %v4032
    %v4111 = vadd.f32 %v3599, %v4034
    %v4112 = vadd.f32 %v3600, %v4036
    %v4113 = vadd.f32 %v3601, %v4038
    %v4114 = vadd.f32 %v3602, %v4040
    %v4115 = vadd.f32 %v3603, %v4042
    %v4116 = vadd.f32 %v3604, %v4044
    %v4117 = vadd.f32 %v3605, %v4046
    %v4118 = vadd.f32 %v3606, %v4048
    %v4119 = vadd.f32 %v3607, %v4050
    %v4120 = vadd.f32 %v3608, %v4052
    %v4121 = vadd.f32 %v3609, %v4054
    %v4122 = vadd.f32 %v3610, %v4056
    %v4123 = vadd.f32 %v3611, %v4058
    %v4124 = vadd.f32 %v3612, %v4060
    %4125 = vset.pattern.permute.xlu0 8
    %4126 = vperm.xlu0 %4125, %v284
    %v4127 = vpop.permute.xlu0 %4126
    %4129 = vset.pattern.permute.xlu0 8
    %4130 = vperm.xlu0 %4129, %v285
    %v4131 = vpop.permute.xlu0 %4130
    %4133 = vset.pattern.permute.xlu0 8
    %4134 = vperm.xlu0 %4133, %v286
    %v4135 = vpop.permute.xlu0 %4134
    %4137 = vset.pattern.permute.xlu0 8
    %4138 = vperm.xlu0 %4137, %v287
    %v4139 = vpop.permute.xlu0 %4138
    %4141 = vset.pattern.permute.xlu0 8
    %4142 = vperm.xlu0 %4141, %v288
    %v4143 = vpop.permute.xlu0 %4142
    %4145 = vset.pattern.permute.xlu0 8
    %4146 = vperm.xlu0 %4145, %v289
    %v4147 = vpop.permute.xlu0 %4146
    %4149 = vset.pattern.permute.xlu0 8
    %4150 = vperm.xlu0 %4149, %v290
    %v4151 = vpop.permute.xlu0 %4150
    %4153 = vset.pattern.permute.xlu0 8
    %4154 = vperm.xlu0 %4153, %v291
    %v4155 = vpop.permute.xlu0 %4154
    %4157 = vset.pattern.permute.xlu0 8
    %4158 = vperm.xlu0 %4157, %v292
    %v4159 = vpop.permute.xlu0 %4158
    %4161 = vset.pattern.permute.xlu0 8
    %4162 = vperm.xlu0 %4161, %v293
    %v4163 = vpop.permute.xlu0 %4162
    %4165 = vset.pattern.permute.xlu0 8
    %4166 = vperm.xlu0 %4165, %v294
    %v4167 = vpop.permute.xlu0 %4166
    %4169 = vset.pattern.permute.xlu0 8
    %4170 = vperm.xlu0 %4169, %v295
    %v4171 = vpop.permute.xlu0 %4170
    %4173 = vset.pattern.permute.xlu0 8
    %4174 = vperm.xlu0 %4173, %v296
    %v4175 = vpop.permute.xlu0 %4174
    %4177 = vset.pattern.permute.xlu0 8
    %4178 = vperm.xlu0 %4177, %v297
    %v4179 = vpop.permute.xlu0 %4178
    %4181 = vset.pattern.permute.xlu0 8
    %4182 = vperm.xlu0 %4181, %v298
    %v4183 = vpop.permute.xlu0 %4182
    %4185 = vset.pattern.permute.xlu0 8
    %4186 = vperm.xlu0 %4185, %v299
    %v4187 = vpop.permute.xlu0 %4186
    %4189 = vset.pattern.permute.xlu0 8
    %4190 = vperm.xlu0 %4189, %v300
    %v4191 = vpop.permute.xlu0 %4190
    %4193 = vset.pattern.permute.xlu0 8
    %4194 = vperm.xlu0 %4193, %v301
    %v4195 = vpop.permute.xlu0 %4194
    %4197 = vset.pattern.permute.xlu0 8
    %4198 = vperm.xlu0 %4197, %v302
    %v4199 = vpop.permute.xlu0 %4198
    %4201 = vset.pattern.permute.xlu0 8
    %4202 = vperm.xlu0 %4201, %v303
    %v4203 = vpop.permute.xlu0 %4202
    %4205 = vset.pattern.permute.xlu0 8
    %4206 = vperm.xlu0 %4205, %v304
    %v4207 = vpop.permute.xlu0 %4206
    %4209 = vset.pattern.permute.xlu0 8
    %4210 = vperm.xlu0 %4209, %v305
    %v4211 = vpop.permute.xlu0 %4210
    %4213 = vset.pattern.permute.xlu0 8
    %4214 = vperm.xlu0 %4213, %v306
    %v4215 = vpop.permute.xlu0 %4214
    %4217 = vset.pattern.permute.xlu0 8
    %4218 = vperm.xlu0 %4217, %v307
    %v4219 = vpop.permute.xlu0 %4218
    %4221 = vset.pattern.permute.xlu0 8
    %4222 = vperm.xlu0 %4221, %v308
    %v4223 = vpop.permute.xlu0 %4222
    %4225 = vset.pattern.permute.xlu0 8
    %4226 = vperm.xlu0 %4225, %v309
    %v4227 = vpop.permute.xlu0 %4226
    %4229 = vset.pattern.permute.xlu0 8
    %4230 = vperm.xlu0 %4229, %v310
    %v4231 = vpop.permute.xlu0 %4230
    %4233 = vset.pattern.permute.xlu0 8
    %4234 = vperm.xlu0 %4233, %v311
    %v4235 = vpop.permute.xlu0 %4234
    %4237 = vset.pattern.permute.xlu0 8
    %4238 = vperm.xlu0 %4237, %v312
    %v4239 = vpop.permute.xlu0 %4238
    %4241 = vset.pattern.permute.xlu0 8
    %4242 = vperm.xlu0 %4241, %v313
    %v4243 = vpop.permute.xlu0 %4242
    %4245 = vset.pattern.permute.xlu0 8
    %4246 = vperm.xlu0 %4245, %v314
    %v4247 = vpop.permute.xlu0 %4246
    %4249 = vset.pattern.permute.xlu0 8
    %4250 = vperm.xlu0 %4249, %v315
    %v4251 = vpop.permute.xlu0 %4250
    %4253 = vset.pattern.permute.xlu0 8
    %4254 = vperm.xlu0 %4253, %v316
    %v4255 = vpop.permute.xlu0 %4254
    %4257 = vset.pattern.permute.xlu0 8
    %4258 = vperm.xlu0 %4257, %v317
    %v4259 = vpop.permute.xlu0 %4258
    %4261 = vset.pattern.permute.xlu0 8
    %4262 = vperm.xlu0 %4261, %v318
    %v4263 = vpop.permute.xlu0 %4262
    %4265 = vset.pattern.permute.xlu0 8
    %4266 = vperm.xlu0 %4265, %v319
    %v4267 = vpop.permute.xlu0 %4266
    %4269 = vset.pattern.permute.xlu0 8
    %4270 = vperm.xlu0 %4269, %v320
    %v4271 = vpop.permute.xlu0 %4270
    %4273 = vset.pattern.permute.xlu0 8
    %4274 = vperm.xlu0 %4273, %v321
    %v4275 = vpop.permute.xlu0 %4274
    %4277 = vset.pattern.permute.xlu0 8
    %4278 = vperm.xlu0 %4277, %v322
    %v4279 = vpop.permute.xlu0 %4278
    %4281 = vset.pattern.permute.xlu0 8
    %4282 = vperm.xlu0 %4281, %v323
    %v4283 = vpop.permute.xlu0 %4282
    %4285 = vset.pattern.permute.xlu0 8
    %4286 = vperm.xlu0 %4285, %v324
    %v4287 = vpop.permute.xlu0 %4286
    %4289 = vset.pattern.permute.xlu0 8
    %4290 = vperm.xlu0 %4289, %v325
    %v4291 = vpop.permute.xlu0 %4290
    %4293 = vset.pattern.permute.xlu0 8
    %4294 = vperm.xlu0 %4293, %v326
    %v4295 = vpop.permute.xlu0 %4294
    %4297 = vset.pattern.permute.xlu0 8
    %4298 = vperm.xlu0 %4297, %v327
    %v4299 = vpop.permute.xlu0 %4298
    %4301 = vset.pattern.permute.xlu0 8
    %4302 = vperm.xlu0 %4301, %v328
    %v4303 = vpop.permute.xlu0 %4302
    %4305 = vset.pattern.permute.xlu0 8
    %4306 = vperm.xlu0 %4305, %v329
    %v4307 = vpop.permute.xlu0 %4306
    %4309 = vset.pattern.permute.xlu0 8
    %4310 = vperm.xlu0 %4309, %v330
    %v4311 = vpop.permute.xlu0 %4310
    %4313 = vset.pattern.permute.xlu0 8
    %4314 = vperm.xlu0 %4313, %v331
    %v4315 = vpop.permute.xlu0 %4314
    %4317 = vset.pattern.permute.xlu0 8
    %4318 = vperm.xlu0 %4317, %v332
    %v4319 = vpop.permute.xlu0 %4318
    %4321 = vset.pattern.permute.xlu0 8
    %4322 = vperm.xlu0 %4321, %v333
    %v4323 = vpop.permute.xlu0 %4322
    %4325 = vset.pattern.permute.xlu0 8
    %4326 = vperm.xlu0 %4325, %v334
    %v4327 = vpop.permute.xlu0 %4326
    %4329 = vset.pattern.permute.xlu0 8
    %4330 = vperm.xlu0 %4329, %v335
    %v4331 = vpop.permute.xlu0 %4330
    %4333 = vset.pattern.permute.xlu0 8
    %4334 = vperm.xlu0 %4333, %v336
    %v4335 = vpop.permute.xlu0 %4334
    %4337 = vset.pattern.permute.xlu0 8
    %4338 = vperm.xlu0 %4337, %v337
    %v4339 = vpop.permute.xlu0 %4338
    %4341 = vset.pattern.permute.xlu0 8
    %4342 = vperm.xlu0 %4341, %v338
    %v4343 = vpop.permute.xlu0 %4342
    %4345 = vset.pattern.permute.xlu0 8
    %4346 = vperm.xlu0 %4345, %v339
    %v4347 = vpop.permute.xlu0 %4346
    %4349 = vset.pattern.permute.xlu0 8
    %4350 = vperm.xlu0 %4349, %v340
    %v4351 = vpop.permute.xlu0 %4350
    %4353 = vset.pattern.permute.xlu0 8
    %4354 = vperm.xlu0 %4353, %v341
    %v4355 = vpop.permute.xlu0 %4354
    %4357 = vset.pattern.permute.xlu0 8
    %4358 = vperm.xlu0 %4357, %v342
    %v4359 = vpop.permute.xlu0 %4358
    %4361 = vset.pattern.permute.xlu0 8
    %4362 = vperm.xlu0 %4361, %v343
    %v4363 = vpop.permute.xlu0 %4362
    %4365 = vset.pattern.permute.xlu0 8
    %4366 = vperm.xlu0 %4365, %v344
    %v4367 = vpop.permute.xlu0 %4366
    %4369 = vset.pattern.permute.xlu0 8
    %4370 = vperm.xlu0 %4369, %v345
    %v4371 = vpop.permute.xlu0 %4370
    %4373 = vset.pattern.permute.xlu0 8
    %4374 = vperm.xlu0 %4373, %v346
    %v4375 = vpop.permute.xlu0 %4374
    %4377 = vset.pattern.permute.xlu0 8
    %4378 = vperm.xlu0 %4377, %v347
    %v4379 = vpop.permute.xlu0 %4378
    %v4381 = vmul.f32 %v1369, %v4127
    %v4382 = vmul.f32 %v1368, %v4131
    %v4383 = vmul.f32 %v1367, %v4135
    %v4384 = vmul.f32 %v1366, %v4139
    %v4385 = vmul.f32 %v1365, %v4143
    %v4386 = vmul.f32 %v1364, %v4147
    %v4387 = vmul.f32 %v1363, %v4151
    %v4388 = vmul.f32 %v1362, %v4155
    %v4389 = vmul.f32 %v1361, %v4159
    %v4390 = vmul.f32 %v1360, %v4163
    %v4391 = vmul.f32 %v1359, %v4167
    %v4392 = vmul.f32 %v1358, %v4171
    %v4393 = vmul.f32 %v1357, %v4175
    %v4394 = vmul.f32 %v1356, %v4179
    %v4395 = vmul.f32 %v1355, %v4183
    %v4396 = vmul.f32 %v1354, %v4187
    %v4397 = vmul.f32 %v1353, %v4191
    %v4398 = vmul.f32 %v1352, %v4195
    %v4399 = vmul.f32 %v1351, %v4199
    %v4400 = vmul.f32 %v1350, %v4203
    %v4401 = vmul.f32 %v1349, %v4207
    %v4402 = vmul.f32 %v1348, %v4211
    %v4403 = vmul.f32 %v1347, %v4215
    %v4404 = vmul.f32 %v1346, %v4219
    %v4405 = vmul.f32 %v1345, %v4223
    %v4406 = vmul.f32 %v1344, %v4227
    %v4407 = vmul.f32 %v1343, %v4231
    %v4408 = vmul.f32 %v1342, %v4235
    %v4409 = vmul.f32 %v1341, %v4239
    %v4410 = vmul.f32 %v1340, %v4243
    %v4411 = vmul.f32 %v1339, %v4247
    %v4412 = vmul.f32 %v1338, %v4251
    %v4413 = vmul.f32 %v1337, %v4255
    %v4414 = vmul.f32 %v1336, %v4259
    %v4415 = vmul.f32 %v1335, %v4263
    %v4416 = vmul.f32 %v1334, %v4267
    %v4417 = vmul.f32 %v1333, %v4271
    %v4418 = vmul.f32 %v1332, %v4275
    %v4419 = vmul.f32 %v1331, %v4279
    %v4420 = vmul.f32 %v1330, %v4283
    %v4421 = vmul.f32 %v1329, %v4287
    %v4422 = vmul.f32 %v1328, %v4291
    %v4423 = vmul.f32 %v1327, %v4295
    %v4424 = vmul.f32 %v1326, %v4299
    %v4425 = vmul.f32 %v1325, %v4303
    %v4426 = vmul.f32 %v1324, %v4307
    %v4427 = vmul.f32 %v1323, %v4311
    %v4428 = vmul.f32 %v1322, %v4315
    %v4429 = vmul.f32 %v1321, %v4319
    %v4430 = vmul.f32 %v1320, %v4323
    %v4431 = vmul.f32 %v1319, %v4327
    %v4432 = vmul.f32 %v1318, %v4331
    %v4433 = vmul.f32 %v1317, %v4335
    %v4434 = vmul.f32 %v1316, %v4339
    %v4435 = vmul.f32 %v1315, %v4343
    %v4436 = vmul.f32 %v1314, %v4347
    %v4437 = vmul.f32 %v1313, %v4351
    %v4438 = vmul.f32 %v1312, %v4355
    %v4439 = vmul.f32 %v1311, %v4359
    %v4440 = vmul.f32 %v1310, %v4363
    %v4441 = vmul.f32 %v1309, %v4367
    %v4442 = vmul.f32 %v1372, %v4371
    %v4443 = vmul.f32 %v1371, %v4375
    %v4444 = vmul.f32 %v1370, %v4379
    %4445 = vrot.lane.b32.xlu0 %v4381, 64
    %v4446 = vpop.permute.xlu0 %4445
    %4447 = vrot.lane.b32.xlu0 %v4382, 64
    %v4448 = vpop.permute.xlu0 %4447
    %4449 = vrot.lane.b32.xlu0 %v4383, 64
    %v4450 = vpop.permute.xlu0 %4449
    %4451 = vrot.lane.b32.xlu0 %v4384, 64
    %v4452 = vpop.permute.xlu0 %4451
    %4453 = vrot.lane.b32.xlu0 %v4385, 64
    %v4454 = vpop.permute.xlu0 %4453
    %4455 = vrot.lane.b32.xlu0 %v4386, 64
    %v4456 = vpop.permute.xlu0 %4455
    %4457 = vrot.lane.b32.xlu0 %v4387, 64
    %v4458 = vpop.permute.xlu0 %4457
    %4459 = vrot.lane.b32.xlu0 %v4388, 64
    %v4460 = vpop.permute.xlu0 %4459
    %4461 = vrot.lane.b32.xlu0 %v4389, 64
    %v4462 = vpop.permute.xlu0 %4461
    %4463 = vrot.lane.b32.xlu0 %v4390, 64
    %v4464 = vpop.permute.xlu0 %4463
    %4465 = vrot.lane.b32.xlu0 %v4391, 64
    %v4466 = vpop.permute.xlu0 %4465
    %4467 = vrot.lane.b32.xlu0 %v4392, 64
    %v4468 = vpop.permute.xlu0 %4467
    %4469 = vrot.lane.b32.xlu0 %v4393, 64
    %v4470 = vpop.permute.xlu0 %4469
    %4471 = vrot.lane.b32.xlu0 %v4394, 64
    %v4472 = vpop.permute.xlu0 %4471
    %4473 = vrot.lane.b32.xlu0 %v4395, 64
    %v4474 = vpop.permute.xlu0 %4473
    %4475 = vrot.lane.b32.xlu0 %v4396, 64
    %v4476 = vpop.permute.xlu0 %4475
    %4477 = vrot.lane.b32.xlu0 %v4397, 64
    %v4478 = vpop.permute.xlu0 %4477
    %4479 = vrot.lane.b32.xlu0 %v4398, 64
    %v4480 = vpop.permute.xlu0 %4479
    %4481 = vrot.lane.b32.xlu0 %v4399, 64
    %v4482 = vpop.permute.xlu0 %4481
    %4483 = vrot.lane.b32.xlu0 %v4400, 64
    %v4484 = vpop.permute.xlu0 %4483
    %4485 = vrot.lane.b32.xlu0 %v4401, 64
    %v4486 = vpop.permute.xlu0 %4485
    %4487 = vrot.lane.b32.xlu0 %v4402, 64
    %v4488 = vpop.permute.xlu0 %4487
    %4489 = vrot.lane.b32.xlu0 %v4403, 64
    %v4490 = vpop.permute.xlu0 %4489
    %4491 = vrot.lane.b32.xlu0 %v4404, 64
    %v4492 = vpop.permute.xlu0 %4491
    %4493 = vrot.lane.b32.xlu0 %v4405, 64
    %v4494 = vpop.permute.xlu0 %4493
    %4495 = vrot.lane.b32.xlu0 %v4406, 64
    %v4496 = vpop.permute.xlu0 %4495
    %4497 = vrot.lane.b32.xlu0 %v4407, 64
    %v4498 = vpop.permute.xlu0 %4497
    %4499 = vrot.lane.b32.xlu0 %v4408, 64
    %v4500 = vpop.permute.xlu0 %4499
    %4501 = vrot.lane.b32.xlu0 %v4409, 64
    %v4502 = vpop.permute.xlu0 %4501
    %4503 = vrot.lane.b32.xlu0 %v4410, 64
    %v4504 = vpop.permute.xlu0 %4503
    %4505 = vrot.lane.b32.xlu0 %v4411, 64
    %v4506 = vpop.permute.xlu0 %4505
    %4507 = vrot.lane.b32.xlu0 %v4412, 64
    %v4508 = vpop.permute.xlu0 %4507
    %4509 = vrot.lane.b32.xlu0 %v4413, 64
    %v4510 = vpop.permute.xlu0 %4509
    %4511 = vrot.lane.b32.xlu0 %v4414, 64
    %v4512 = vpop.permute.xlu0 %4511
    %4513 = vrot.lane.b32.xlu0 %v4415, 64
    %v4514 = vpop.permute.xlu0 %4513
    %4515 = vrot.lane.b32.xlu0 %v4416, 64
    %v4516 = vpop.permute.xlu0 %4515
    %4517 = vrot.lane.b32.xlu0 %v4417, 64
    %v4518 = vpop.permute.xlu0 %4517
    %4519 = vrot.lane.b32.xlu0 %v4418, 64
    %v4520 = vpop.permute.xlu0 %4519
    %4521 = vrot.lane.b32.xlu0 %v4419, 64
    %v4522 = vpop.permute.xlu0 %4521
    %4523 = vrot.lane.b32.xlu0 %v4420, 64
    %v4524 = vpop.permute.xlu0 %4523
    %4525 = vrot.lane.b32.xlu0 %v4421, 64
    %v4526 = vpop.permute.xlu0 %4525
    %4527 = vrot.lane.b32.xlu0 %v4422, 64
    %v4528 = vpop.permute.xlu0 %4527
    %4529 = vrot.lane.b32.xlu0 %v4423, 64
    %v4530 = vpop.permute.xlu0 %4529
    %4531 = vrot.lane.b32.xlu0 %v4424, 64
    %v4532 = vpop.permute.xlu0 %4531
    %4533 = vrot.lane.b32.xlu0 %v4425, 64
    %v4534 = vpop.permute.xlu0 %4533
    %4535 = vrot.lane.b32.xlu0 %v4426, 64
    %v4536 = vpop.permute.xlu0 %4535
    %4537 = vrot.lane.b32.xlu0 %v4427, 64
    %v4538 = vpop.permute.xlu0 %4537
    %4539 = vrot.lane.b32.xlu0 %v4428, 64
    %v4540 = vpop.permute.xlu0 %4539
    %4541 = vrot.lane.b32.xlu0 %v4429, 64
    %v4542 = vpop.permute.xlu0 %4541
    %4543 = vrot.lane.b32.xlu0 %v4430, 64
    %v4544 = vpop.permute.xlu0 %4543
    %4545 = vrot.lane.b32.xlu0 %v4431, 64
    %v4546 = vpop.permute.xlu0 %4545
    %4547 = vrot.lane.b32.xlu0 %v4432, 64
    %v4548 = vpop.permute.xlu0 %4547
    %4549 = vrot.lane.b32.xlu0 %v4433, 64
    %v4550 = vpop.permute.xlu0 %4549
    %4551 = vrot.lane.b32.xlu0 %v4434, 64
    %v4552 = vpop.permute.xlu0 %4551
    %4553 = vrot.lane.b32.xlu0 %v4435, 64
    %v4554 = vpop.permute.xlu0 %4553
    %4555 = vrot.lane.b32.xlu0 %v4436, 64
    %v4556 = vpop.permute.xlu0 %4555
    %4557 = vrot.lane.b32.xlu0 %v4437, 64
    %v4558 = vpop.permute.xlu0 %4557
    %4559 = vrot.lane.b32.xlu0 %v4438, 64
    %v4560 = vpop.permute.xlu0 %4559
    %4561 = vrot.lane.b32.xlu0 %v4439, 64
    %v4562 = vpop.permute.xlu0 %4561
    %4563 = vrot.lane.b32.xlu0 %v4440, 64
    %v4564 = vpop.permute.xlu0 %4563
    %4565 = vrot.lane.b32.xlu0 %v4441, 64
    %v4566 = vpop.permute.xlu0 %4565
    %4567 = vrot.lane.b32.xlu0 %v4442, 64
    %v4568 = vpop.permute.xlu0 %4567
    %4569 = vrot.lane.b32.xlu0 %v4443, 64
    %v4570 = vpop.permute.xlu0 %4569
    %4571 = vrot.lane.b32.xlu0 %v4444, 64
    %v4572 = vpop.permute.xlu0 %4571
    %v4573 = vadd.f32 %v4061, %v4446
    %v4574 = vadd.f32 %v4062, %v4448
    %v4575 = vadd.f32 %v4063, %v4450
    %v4576 = vadd.f32 %v4064, %v4452
    %v4577 = vadd.f32 %v4065, %v4454
    %v4578 = vadd.f32 %v4066, %v4456
    %v4579 = vadd.f32 %v4067, %v4458
    %v4580 = vadd.f32 %v4068, %v4460
    %v4581 = vadd.f32 %v4069, %v4462
    %v4582 = vadd.f32 %v4070, %v4464
    %v4583 = vadd.f32 %v4071, %v4466
    %v4584 = vadd.f32 %v4072, %v4468
    %v4585 = vadd.f32 %v4073, %v4470
    %v4586 = vadd.f32 %v4074, %v4472
    %v4587 = vadd.f32 %v4075, %v4474
    %v4588 = vadd.f32 %v4076, %v4476
    %v4589 = vadd.f32 %v4077, %v4478
    %v4590 = vadd.f32 %v4078, %v4480
    %v4591 = vadd.f32 %v4079, %v4482
    %v4592 = vadd.f32 %v4080, %v4484
    %v4593 = vadd.f32 %v4081, %v4486
    %v4594 = vadd.f32 %v4082, %v4488
    %v4595 = vadd.f32 %v4083, %v4490
    %v4596 = vadd.f32 %v4084, %v4492
    %v4597 = vadd.f32 %v4085, %v4494
    %v4598 = vadd.f32 %v4086, %v4496
    %v4599 = vadd.f32 %v4087, %v4498
    %v4600 = vadd.f32 %v4088, %v4500
    %v4601 = vadd.f32 %v4089, %v4502
    %v4602 = vadd.f32 %v4090, %v4504
    %v4603 = vadd.f32 %v4091, %v4506
    %v4604 = vadd.f32 %v4092, %v4508
    %v4605 = vadd.f32 %v4093, %v4510
    %v4606 = vadd.f32 %v4094, %v4512
    %v4607 = vadd.f32 %v4095, %v4514
    %v4608 = vadd.f32 %v4096, %v4516
    %v4609 = vadd.f32 %v4097, %v4518
    %v4610 = vadd.f32 %v4098, %v4520
    %v4611 = vadd.f32 %v4099, %v4522
    %v4612 = vadd.f32 %v4100, %v4524
    %v4613 = vadd.f32 %v4101, %v4526
    %v4614 = vadd.f32 %v4102, %v4528
    %v4615 = vadd.f32 %v4103, %v4530
    %v4616 = vadd.f32 %v4104, %v4532
    %v4617 = vadd.f32 %v4105, %v4534
    %v4618 = vadd.f32 %v4106, %v4536
    %v4619 = vadd.f32 %v4107, %v4538
    %v4620 = vadd.f32 %v4108, %v4540
    %v4621 = vadd.f32 %v4109, %v4542
    %v4622 = vadd.f32 %v4110, %v4544
    %v4623 = vadd.f32 %v4111, %v4546
    %v4624 = vadd.f32 %v4112, %v4548
    %v4625 = vadd.f32 %v4113, %v4550
    %v4626 = vadd.f32 %v4114, %v4552
    %v4627 = vadd.f32 %v4115, %v4554
    %v4628 = vadd.f32 %v4116, %v4556
    %v4629 = vadd.f32 %v4117, %v4558
    %v4630 = vadd.f32 %v4118, %v4560
    %v4631 = vadd.f32 %v4119, %v4562
    %v4632 = vadd.f32 %v4120, %v4564
    %v4633 = vadd.f32 %v4121, %v4566
    %v4634 = vadd.f32 %v4122, %v4568
    %v4635 = vadd.f32 %v4123, %v4570
    %v4636 = vadd.f32 %v4124, %v4572
    %v4637 = vpack.c.bf16 %v4574, %v4573
    %v4638 = vpack.c.bf16 %v4576, %v4575
    %v4639 = vpack.c.bf16 %v4578, %v4577
    %v4640 = vpack.c.bf16 %v4580, %v4579
    %v4641 = vpack.c.bf16 %v4582, %v4581
    %v4642 = vpack.c.bf16 %v4584, %v4583
    %v4643 = vpack.c.bf16 %v4586, %v4585
    %v4644 = vpack.c.bf16 %v4588, %v4587
    %v4645 = vpack.c.bf16 %v4590, %v4589
    %v4646 = vpack.c.bf16 %v4592, %v4591
    %v4647 = vpack.c.bf16 %v4594, %v4593
    %v4648 = vpack.c.bf16 %v4596, %v4595
    %v4649 = vpack.c.bf16 %v4598, %v4597
    %v4650 = vpack.c.bf16 %v4600, %v4599
    %v4651 = vpack.c.bf16 %v4602, %v4601
    %v4652 = vpack.c.bf16 %v4604, %v4603
    %v4653 = vpack.c.bf16 %v4606, %v4605
    %v4654 = vpack.c.bf16 %v4608, %v4607
    %v4655 = vpack.c.bf16 %v4610, %v4609
    %v4656 = vpack.c.bf16 %v4612, %v4611
    %v4657 = vpack.c.bf16 %v4614, %v4613
    %v4658 = vpack.c.bf16 %v4616, %v4615
    %v4659 = vpack.c.bf16 %v4618, %v4617
    %v4660 = vpack.c.bf16 %v4620, %v4619
    %v4661 = vpack.c.bf16 %v4622, %v4621
    %v4662 = vpack.c.bf16 %v4624, %v4623
    %v4663 = vpack.c.bf16 %v4626, %v4625
    %v4664 = vpack.c.bf16 %v4628, %v4627
    %v4665 = vpack.c.bf16 %v4630, %v4629
    %v4666 = vpack.c.bf16 %v4632, %v4631
    %v4667 = vpack.c.bf16 %v4634, %v4633
    %v4668 = vpack.c.bf16 %v4636, %v4635
    %v4669 = vld [vmem:[%s1] sm:$0xf]
    %v4670 = vld [vmem:[%s1 + $0x4] sm:$0xf]
    %v4671 = vld [vmem:[%s1 + $0x8] sm:$0xf]
    %v4672 = vld [vmem:[%s1 + $0xc] sm:$0xf]
    %v4673 = vld [vmem:[%s1 + $0x10] sm:$0xf]
    %v4674 = vld [vmem:[%s1 + $0x14] sm:$0xf]
    %v4675 = vld [vmem:[%s1 + $0x18] sm:$0xf]
    %v4676 = vld [vmem:[%s1 + $0x1c] sm:$0xf]
    %v4677 = vld [vmem:[%s1 + $0x20] sm:$0xf]
    %v4678 = vld [vmem:[%s1 + $0x24] sm:$0xf]
    %v4679 = vld [vmem:[%s1 + $0x28] sm:$0xf]
    %v4680 = vld [vmem:[%s1 + $0x2c] sm:$0xf]
    %v4681 = vld [vmem:[%s1 + $0x30] sm:$0xf]
    %v4682 = vld [vmem:[%s1 + $0x34] sm:$0xf]
    %v4683 = vld [vmem:[%s1 + $0x38] sm:$0xf]
    %v4684 = vld [vmem:[%s1 + $0x3c] sm:$0xf]
    %v4701 = vunpack.c.l.b16 %v4669
    %v4702 = vunpack.c.l.b16 %v4670
    %v4703 = vunpack.c.l.b16 %v4671
    %v4704 = vunpack.c.l.b16 %v4672
    %v4705 = vunpack.c.l.b16 %v4673
    %v4706 = vunpack.c.l.b16 %v4674
    %v4707 = vunpack.c.l.b16 %v4675
    %v4708 = vunpack.c.l.b16 %v4676
    %v4709 = vunpack.c.l.b16 %v4677
    %v4710 = vunpack.c.l.b16 %v4678
    %v4711 = vunpack.c.l.b16 %v4679
    %v4712 = vunpack.c.l.b16 %v4680
    %v4713 = vunpack.c.l.b16 %v4681
    %v4714 = vunpack.c.l.b16 %v4682
    %v4715 = vunpack.c.l.b16 %v4683
    %v4716 = vunpack.c.l.b16 %v4684
    %v4717 = vpack.c.b16 %v4702, %v4701
    %v4718 = vpack.c.b16 %v4704, %v4703
    %v4719 = vpack.c.b16 %v4706, %v4705
    %v4720 = vpack.c.b16 %v4708, %v4707
    %v4721 = vpack.c.b16 %v4710, %v4709
    %v4722 = vpack.c.b16 %v4712, %v4711
    %v4723 = vpack.c.b16 %v4714, %v4713
    %v4724 = vpack.c.b16 %v4716, %v4715
    %4733 = vmatprep.subr.bf16.mxu0 0
    %4734 = vmatpush1.bf16.msra.mxu0 %v4717
    %4735 = vmatprep.subr.bf16.mxu0 0
    %4736 = vmatpush1.bf16.msra.mxu0 %v4718
    %4737 = vmatprep.subr.bf16.mxu0 0
    %4738 = vmatpush1.bf16.msra.mxu0 %v4719
    %4739 = vmatprep.subr.bf16.mxu0 0
    %4740 = vmatpush1.bf16.msra.mxu0 %v4720
    %4741 = vmatprep.subr.bf16.mxu0 0
    %4742 = vmatpush1.bf16.msra.mxu0 %v4721
    %4743 = vmatprep.subr.bf16.mxu0 0
    %4744 = vmatpush1.bf16.msra.mxu0 %v4722
    %4745 = vmatprep.subr.bf16.mxu0 0
    %4746 = vmatpush1.bf16.msra.mxu0 %v4723
    %4747 = vmatprep.subr.bf16.mxu0 0
    %4748 = vmatpush1.bf16.msra.mxu0 %v4724
    %4749 = vmatprep.subr.bf16.mxu0 0
    %4750 = vmatpush1.bf16.msra.mxu0 0
    %4751 = vmatprep.subr.bf16.mxu0 0
    %4752 = vmatpush1.bf16.msra.mxu0 0
    %4753 = vmatprep.subr.bf16.mxu0 0
    %4754 = vmatpush1.bf16.msra.mxu0 0
    %4755 = vmatprep.subr.bf16.mxu0 0
    %4756 = vmatpush1.bf16.msra.mxu0 0
    %4757 = vmatprep.subr.bf16.mxu0 0
    %4758 = vmatpush1.bf16.msra.mxu0 0
    %4759 = vmatprep.subr.bf16.mxu0 0
    %4760 = vmatpush1.bf16.msra.mxu0 0
    %4761 = vmatprep.subr.bf16.mxu0 0
    %4762 = vmatpush1.bf16.msra.mxu0 0
    %4763 = vmatprep.subr.bf16.mxu0 0
    %4764 = vmatpush1.bf16.msra.mxu0 0
    %4765 = vmatprep.mubr.bf16.mxu0 0
    %4766 = vmatmul.mubr.bf16.gmra.mrb[0].mxu0 %v4637
    %v4767 = vpop.f32.mrb[0].mxu0
    %v4768 = vadd.f32 0.0, %v4767
    %v4769 = vpop.f32.mrb[0].mxu0
    %v4770 = vpop.f32.mrb[0].mxu0
    %v4771 = vadd.f32 0.0, %v4770
    %v4772 = vpop.f32.mrb[0].mxu0
    %4773 = vmatprep.mubr.bf16.mxu0 0
    %4774 = vmatmul.mubr.bf16.gmra.mrb[0].mxu0 %v4638
    %v4775 = vpop.f32.mrb[0].mxu0
    %v4776 = vadd.f32 0.0, %v4775
    %v4777 = vpop.f32.mrb[0].mxu0
    %v4778 = vpop.f32.mrb[0].mxu0
    %v4779 = vadd.f32 0.0, %v4778
    %v4780 = vpop.f32.mrb[0].mxu0
    %4781 = vmatprep.mubr.bf16.mxu0 0
    %4782 = vmatmul.mubr.bf16.gmra.mrb[0].mxu0 %v4639
    %v4783 = vpop.f32.mrb[0].mxu0
    %v4784 = vadd.f32 0.0, %v4783
    %v4785 = vpop.f32.mrb[0].mxu0
    %v4786 = vpop.f32.mrb[0].mxu0
    %v4787 = vadd.f32 0.0, %v4786
    %v4788 = vpop.f32.mrb[0].mxu0
    %4789 = vmatprep.mubr.bf16.mxu0 0
    %4790 = vmatmul.mubr.bf16.gmra.mrb[0].mxu0 %v4640
    %v4791 = vpop.f32.mrb[0].mxu0
    %v4792 = vadd.f32 0.0, %v4791
    %v4793 = vpop.f32.mrb[0].mxu0
    %v4794 = vpop.f32.mrb[0].mxu0
    %v4795 = vadd.f32 0.0, %v4794
    %v4796 = vpop.f32.mrb[0].mxu0
    %4797 = vmatprep.mubr.bf16.mxu0 0
    %4798 = vmatmul.mubr.bf16.gmra.mrb[0].mxu0 %v4641
    %v4799 = vpop.f32.mrb[0].mxu0
    %v4800 = vadd.f32 0.0, %v4799
    %v4801 = vpop.f32.mrb[0].mxu0
    %v4802 = vpop.f32.mrb[0].mxu0
    %v4803 = vadd.f32 0.0, %v4802
    %v4804 = vpop.f32.mrb[0].mxu0
    %4805 = vmatprep.mubr.bf16.mxu0 0
    %4806 = vmatmul.mubr.bf16.gmra.mrb[0].mxu0 %v4642
    %v4807 = vpop.f32.mrb[0].mxu0
    %v4808 = vadd.f32 0.0, %v4807
    %v4809 = vpop.f32.mrb[0].mxu0
    %v4810 = vpop.f32.mrb[0].mxu0
    %v4811 = vadd.f32 0.0, %v4810
    %v4812 = vpop.f32.mrb[0].mxu0
    %4813 = vmatprep.mubr.bf16.mxu0 0
    %4814 = vmatmul.mubr.bf16.gmra.mrb[0].mxu0 %v4643
    %v4815 = vpop.f32.mrb[0].mxu0
    %v4816 = vadd.f32 0.0, %v4815
    %v4817 = vpop.f32.mrb[0].mxu0
    %v4818 = vpop.f32.mrb[0].mxu0
    %v4819 = vadd.f32 0.0, %v4818
    %v4820 = vpop.f32.mrb[0].mxu0
    %4821 = vmatprep.mubr.bf16.mxu0 0
    %4822 = vmatmul.mubr.bf16.gmra.mrb[0].mxu0 %v4644
    %v4823 = vpop.f32.mrb[0].mxu0
    %v4824 = vadd.f32 0.0, %v4823
    %v4825 = vpop.f32.mrb[0].mxu0
    %v4826 = vpop.f32.mrb[0].mxu0
    %v4827 = vadd.f32 0.0, %v4826
    %v4828 = vpop.f32.mrb[0].mxu0
    %4829 = vmatprep.mubr.bf16.mxu0 0
    %4830 = vmatmul.mubr.bf16.gmra.mrb[0].mxu0 %v4645
    %v4831 = vpop.f32.mrb[0].mxu0
    %v4832 = vadd.f32 0.0, %v4831
    %v4833 = vpop.f32.mrb[0].mxu0
    %v4834 = vpop.f32.mrb[0].mxu0
    %v4835 = vadd.f32 0.0, %v4834
    %v4836 = vpop.f32.mrb[0].mxu0
    %4837 = vmatprep.mubr.bf16.mxu0 0
    %4838 = vmatmul.mubr.bf16.gmra.mrb[0].mxu0 %v4646
    %v4839 = vpop.f32.mrb[0].mxu0
    %v4840 = vadd.f32 0.0, %v4839
    %v4841 = vpop.f32.mrb[0].mxu0
    %v4842 = vpop.f32.mrb[0].mxu0
    %v4843 = vadd.f32 0.0, %v4842
    %v4844 = vpop.f32.mrb[0].mxu0
    %4845 = vmatprep.mubr.bf16.mxu0 0
    %4846 = vmatmul.mubr.bf16.gmra.mrb[0].mxu0 %v4647
    %v4847 = vpop.f32.mrb[0].mxu0
    %v4848 = vadd.f32 0.0, %v4847
    %v4849 = vpop.f32.mrb[0].mxu0
    %v4850 = vpop.f32.mrb[0].mxu0
    %v4851 = vadd.f32 0.0, %v4850
    %v4852 = vpop.f32.mrb[0].mxu0
    %4853 = vmatprep.mubr.bf16.mxu0 0
    %4854 = vmatmul.mubr.bf16.gmra.mrb[0].mxu0 %v4648
    %v4855 = vpop.f32.mrb[0].mxu0
    %v4856 = vadd.f32 0.0, %v4855
    %v4857 = vpop.f32.mrb[0].mxu0
    %v4858 = vpop.f32.mrb[0].mxu0
    %v4859 = vadd.f32 0.0, %v4858
    %v4860 = vpop.f32.mrb[0].mxu0
    %4861 = vmatprep.mubr.bf16.mxu0 0
    %4862 = vmatmul.mubr.bf16.gmra.mrb[0].mxu0 %v4649
    %v4863 = vpop.f32.mrb[0].mxu0
    %v4864 = vadd.f32 0.0, %v4863
    %v4865 = vpop.f32.mrb[0].mxu0
    %v4866 = vpop.f32.mrb[0].mxu0
    %v4867 = vadd.f32 0.0, %v4866
    %v4868 = vpop.f32.mrb[0].mxu0
    %4869 = vmatprep.mubr.bf16.mxu0 0
    %4870 = vmatmul.mubr.bf16.gmra.mrb[0].mxu0 %v4650
    %v4871 = vpop.f32.mrb[0].mxu0
    %v4872 = vadd.f32 0.0, %v4871
    %v4873 = vpop.f32.mrb[0].mxu0
    %v4874 = vpop.f32.mrb[0].mxu0
    %v4875 = vadd.f32 0.0, %v4874
    %v4876 = vpop.f32.mrb[0].mxu0
    %4877 = vmatprep.mubr.bf16.mxu0 0
    %4878 = vmatmul.mubr.bf16.gmra.mrb[0].mxu0 %v4651
    %v4879 = vpop.f32.mrb[0].mxu0
    %v4880 = vadd.f32 0.0, %v4879
    %v4881 = vpop.f32.mrb[0].mxu0
    %v4882 = vpop.f32.mrb[0].mxu0
    %v4883 = vadd.f32 0.0, %v4882
    %v4884 = vpop.f32.mrb[0].mxu0
    %4885 = vmatprep.mubr.bf16.mxu0 0
    %4886 = vmatmul.mubr.bf16.gmra.mrb[0].mxu0 %v4652
    %v4887 = vpop.f32.mrb[0].mxu0
    %v4888 = vadd.f32 0.0, %v4887
    %v4889 = vpop.f32.mrb[0].mxu0
    %v4890 = vpop.f32.mrb[0].mxu0
    %v4891 = vadd.f32 0.0, %v4890
    %v4892 = vpop.f32.mrb[0].mxu0
    %4893 = vmatprep.mubr.bf16.mxu0 0
    %4894 = vmatmul.mubr.bf16.gmra.mrb[0].mxu0 %v4653
    %v4895 = vpop.f32.mrb[0].mxu0
    %v4896 = vadd.f32 0.0, %v4895
    %v4897 = vpop.f32.mrb[0].mxu0
    %v4898 = vpop.f32.mrb[0].mxu0
    %v4899 = vadd.f32 0.0, %v4898
    %v4900 = vpop.f32.mrb[0].mxu0
    %4901 = vmatprep.mubr.bf16.mxu0 0
    %4902 = vmatmul.mubr.bf16.gmra.mrb[0].mxu0 %v4654
    %v4903 = vpop.f32.mrb[0].mxu0
    %v4904 = vadd.f32 0.0, %v4903
    %v4905 = vpop.f32.mrb[0].mxu0
    %v4906 = vpop.f32.mrb[0].mxu0
    %v4907 = vadd.f32 0.0, %v4906
    %v4908 = vpop.f32.mrb[0].mxu0
    %4909 = vmatprep.mubr.bf16.mxu0 0
    %4910 = vmatmul.mubr.bf16.gmra.mrb[0].mxu0 %v4655
    %v4911 = vpop.f32.mrb[0].mxu0
    %v4912 = vadd.f32 0.0, %v4911
    %v4913 = vpop.f32.mrb[0].mxu0
    %v4914 = vpop.f32.mrb[0].mxu0
    %v4915 = vadd.f32 0.0, %v4914
    %v4916 = vpop.f32.mrb[0].mxu0
    %4917 = vmatprep.mubr.bf16.mxu0 0
    %4918 = vmatmul.mubr.bf16.gmra.mrb[0].mxu0 %v4656
    %v4919 = vpop.f32.mrb[0].mxu0
    %v4920 = vadd.f32 0.0, %v4919
    %v4921 = vpop.f32.mrb[0].mxu0
    %v4922 = vpop.f32.mrb[0].mxu0
    %v4923 = vadd.f32 0.0, %v4922
    %v4924 = vpop.f32.mrb[0].mxu0
    %4925 = vmatprep.mubr.bf16.mxu0 0
    %4926 = vmatmul.mubr.bf16.gmra.mrb[0].mxu0 %v4657
    %v4927 = vpop.f32.mrb[0].mxu0
    %v4928 = vadd.f32 0.0, %v4927
    %v4929 = vpop.f32.mrb[0].mxu0
    %v4930 = vpop.f32.mrb[0].mxu0
    %v4931 = vadd.f32 0.0, %v4930
    %v4932 = vpop.f32.mrb[0].mxu0
    %4933 = vmatprep.mubr.bf16.mxu0 0
    %4934 = vmatmul.mubr.bf16.gmra.mrb[0].mxu0 %v4658
    %v4935 = vpop.f32.mrb[0].mxu0
    %v4936 = vadd.f32 0.0, %v4935
    %v4937 = vpop.f32.mrb[0].mxu0
    %v4938 = vpop.f32.mrb[0].mxu0
    %v4939 = vadd.f32 0.0, %v4938
    %v4940 = vpop.f32.mrb[0].mxu0
    %4941 = vmatprep.mubr.bf16.mxu0 0
    %4942 = vmatmul.mubr.bf16.gmra.mrb[0].mxu0 %v4659
    %v4943 = vpop.f32.mrb[0].mxu0
    %v4944 = vadd.f32 0.0, %v4943
    %v4945 = vpop.f32.mrb[0].mxu0
    %v4946 = vpop.f32.mrb[0].mxu0
    %v4947 = vadd.f32 0.0, %v4946
    %v4948 = vpop.f32.mrb[0].mxu0
    %4949 = vmatprep.mubr.bf16.mxu0 0
    %4950 = vmatmul.mubr.bf16.gmra.mrb[0].mxu0 %v4660
    %v4951 = vpop.f32.mrb[0].mxu0
    %v4952 = vadd.f32 0.0, %v4951
    %v4953 = vpop.f32.mrb[0].mxu0
    %v4954 = vpop.f32.mrb[0].mxu0
    %v4955 = vadd.f32 0.0, %v4954
    %v4956 = vpop.f32.mrb[0].mxu0
    %4957 = vmatprep.mubr.bf16.mxu0 0
    %4958 = vmatmul.mubr.bf16.gmra.mrb[0].mxu0 %v4661
    %v4959 = vpop.f32.mrb[0].mxu0
    %v4960 = vadd.f32 0.0, %v4959
    %v4961 = vpop.f32.mrb[0].mxu0
    %v4962 = vpop.f32.mrb[0].mxu0
    %v4963 = vadd.f32 0.0, %v4962
    %v4964 = vpop.f32.mrb[0].mxu0
    %4965 = vmatprep.mubr.bf16.mxu0 0
    %4966 = vmatmul.mubr.bf16.gmra.mrb[0].mxu0 %v4662
    %v4967 = vpop.f32.mrb[0].mxu0
    %v4968 = vadd.f32 0.0, %v4967
    %v4969 = vpop.f32.mrb[0].mxu0
    %v4970 = vpop.f32.mrb[0].mxu0
    %v4971 = vadd.f32 0.0, %v4970
    %v4972 = vpop.f32.mrb[0].mxu0
    %4973 = vmatprep.mubr.bf16.mxu0 0
    %4974 = vmatmul.mubr.bf16.gmra.mrb[0].mxu0 %v4663
    %v4975 = vpop.f32.mrb[0].mxu0
    %v4976 = vadd.f32 0.0, %v4975
    %v4977 = vpop.f32.mrb[0].mxu0
    %v4978 = vpop.f32.mrb[0].mxu0
    %v4979 = vadd.f32 0.0, %v4978
    %v4980 = vpop.f32.mrb[0].mxu0
    %4981 = vmatprep.mubr.bf16.mxu0 0
    %4982 = vmatmul.mubr.bf16.gmra.mrb[0].mxu0 %v4664
    %v4983 = vpop.f32.mrb[0].mxu0
    %v4984 = vadd.f32 0.0, %v4983
    %v4985 = vpop.f32.mrb[0].mxu0
    %v4986 = vpop.f32.mrb[0].mxu0
    %v4987 = vadd.f32 0.0, %v4986
    %v4988 = vpop.f32.mrb[0].mxu0
    %4989 = vmatprep.mubr.bf16.mxu0 0
    %4990 = vmatmul.mubr.bf16.gmra.mrb[0].mxu0 %v4665
    %v4991 = vpop.f32.mrb[0].mxu0
    %v4992 = vadd.f32 0.0, %v4991
    %v4993 = vpop.f32.mrb[0].mxu0
    %v4994 = vpop.f32.mrb[0].mxu0
    %v4995 = vadd.f32 0.0, %v4994
    %v4996 = vpop.f32.mrb[0].mxu0
    %4997 = vmatprep.mubr.bf16.mxu0 0
    %4998 = vmatmul.mubr.bf16.gmra.mrb[0].mxu0 %v4666
    %v4999 = vpop.f32.mrb[0].mxu0
    %v5000 = vadd.f32 0.0, %v4999
    %v5001 = vpop.f32.mrb[0].mxu0
    %v5002 = vpop.f32.mrb[0].mxu0
    %v5003 = vadd.f32 0.0, %v5002
    %v5004 = vpop.f32.mrb[0].mxu0
    %5005 = vmatprep.mubr.bf16.mxu0 0
    %5006 = vmatmul.mubr.bf16.gmra.mrb[0].mxu0 %v4667
    %v5007 = vpop.f32.mrb[0].mxu0
    %v5008 = vadd.f32 0.0, %v5007
    %v5009 = vpop.f32.mrb[0].mxu0
    %v5010 = vpop.f32.mrb[0].mxu0
    %v5011 = vadd.f32 0.0, %v5010
    %v5012 = vpop.f32.mrb[0].mxu0
    %5013 = vmatprep.mubr.bf16.mxu0 0
    %5014 = vmatmul.mubr.bf16.gmra.mrb[0].mxu0 %v4668
    %v5015 = vpop.f32.mrb[0].mxu0
    %v5016 = vadd.f32 0.0, %v5015
    %v5017 = vpop.f32.mrb[0].mxu0
    %v5018 = vpop.f32.mrb[0].mxu0
    %v5019 = vadd.f32 0.0, %v5018
    %v5020 = vpop.f32.mrb[0].mxu0
    %5021 = vdwg.mxu0
    %v5022 = vadd.f32 %v4768, %v4771
    %v5023 = vadd.f32 %v5022, %v4776
    %v5024 = vadd.f32 %v5023, %v4779
    %v5025 = vadd.f32 %v5024, %v4784
    %v5026 = vadd.f32 %v5025, %v4787
    %v5027 = vadd.f32 %v5026, %v4792
    %v5028 = vadd.f32 %v5027, %v4795
    %v5029 = vadd.f32 %v5028, %v4800
    %v5030 = vadd.f32 %v5029, %v4803
    %v5031 = vadd.f32 %v5030, %v4808
    %v5032 = vadd.f32 %v5031, %v4811
    %v5033 = vadd.f32 %v5032, %v4816
    %v5034 = vadd.f32 %v5033, %v4819
    %v5035 = vadd.f32 %v5034, %v4824
    %v5036 = vadd.f32 %v5035, %v4827
    %v5037 = vadd.f32 %v5036, %v4832
    %v5038 = vadd.f32 %v5037, %v4835
    %v5039 = vadd.f32 %v5038, %v4840
    %v5040 = vadd.f32 %v5039, %v4843
    %v5041 = vadd.f32 %v5040, %v4848
    %v5042 = vadd.f32 %v5041, %v4851
    %v5043 = vadd.f32 %v5042, %v4856
    %v5044 = vadd.f32 %v5043, %v4859
    %v5045 = vadd.f32 %v5044, %v4864
    %v5046 = vadd.f32 %v5045, %v4867
    %v5047 = vadd.f32 %v5046, %v4872
    %v5048 = vadd.f32 %v5047, %v4875
    %v5049 = vadd.f32 %v5048, %v4880
    %v5050 = vadd.f32 %v5049, %v4883
    %v5051 = vadd.f32 %v5050, %v4888
    %v5052 = vadd.f32 %v5051, %v4891
    %v5053 = vadd.f32 %v5052, %v4896
    %v5054 = vadd.f32 %v5053, %v4899
    %v5055 = vadd.f32 %v5054, %v4904
    %v5056 = vadd.f32 %v5055, %v4907
    %v5057 = vadd.f32 %v5056, %v4912
    %v5058 = vadd.f32 %v5057, %v4915
    %v5059 = vadd.f32 %v5058, %v4920
    %v5060 = vadd.f32 %v5059, %v4923
    %v5061 = vadd.f32 %v5060, %v4928
    %v5062 = vadd.f32 %v5061, %v4931
    %v5063 = vadd.f32 %v5062, %v4936
    %v5064 = vadd.f32 %v5063, %v4939
    %v5065 = vadd.f32 %v5064, %v4944
    %v5066 = vadd.f32 %v5065, %v4947
    %v5067 = vadd.f32 %v5066, %v4952
    %v5068 = vadd.f32 %v5067, %v4955
    %v5069 = vadd.f32 %v5068, %v4960
    %v5070 = vadd.f32 %v5069, %v4963
    %v5071 = vadd.f32 %v5070, %v4968
    %v5072 = vadd.f32 %v5071, %v4971
    %v5073 = vadd.f32 %v5072, %v4976
    %v5074 = vadd.f32 %v5073, %v4979
    %v5075 = vadd.f32 %v5074, %v4984
    %v5076 = vadd.f32 %v5075, %v4987
    %v5077 = vadd.f32 %v5076, %v4992
    %v5078 = vadd.f32 %v5077, %v4995
    %v5079 = vadd.f32 %v5078, %v5000
    %v5080 = vadd.f32 %v5079, %v5003
    %v5081 = vadd.f32 %v5080, %v5008
    %v5082 = vadd.f32 %v5081, %v5011
    %v5083 = vadd.f32 %v5082, %v5016
    %v5084 = vadd.f32 %v5083, %v5019
    %v5085 = vrot.slane %v5084, 4
    %v5086 = vadd.f32 %v5084, %v5085
    %v5087 = vrot.slane %v5086, 2
    %v5088 = vadd.f32 %v5086, %v5087
    %v5089 = vrot.slane %v5088, 1
    %v5090 = vadd.f32 %v5088, %v5089
    %v5091 = vmul.f32 %v4768, %v4768
    %v5092 = vmul.f32 %v4771, %v4771
    %v5093 = vmul.f32 %v4776, %v4776
    %v5094 = vmul.f32 %v4779, %v4779
    %v5095 = vmul.f32 %v4784, %v4784
    %v5096 = vmul.f32 %v4787, %v4787
    %v5097 = vmul.f32 %v4792, %v4792
    %v5098 = vmul.f32 %v4795, %v4795
    %v5099 = vmul.f32 %v4800, %v4800
    %v5100 = vmul.f32 %v4803, %v4803
    %v5101 = vmul.f32 %v4808, %v4808
    %v5102 = vmul.f32 %v4811, %v4811
    %v5103 = vmul.f32 %v4816, %v4816
    %v5104 = vmul.f32 %v4819, %v4819
    %v5105 = vmul.f32 %v4824, %v4824
    %v5106 = vmul.f32 %v4827, %v4827
    %v5107 = vmul.f32 %v4832, %v4832
    %v5108 = vmul.f32 %v4835, %v4835
    %v5109 = vmul.f32 %v4840, %v4840
    %v5110 = vmul.f32 %v4843, %v4843
    %v5111 = vmul.f32 %v4848, %v4848
    %v5112 = vmul.f32 %v4851, %v4851
    %v5113 = vmul.f32 %v4856, %v4856
    %v5114 = vmul.f32 %v4859, %v4859
    %v5115 = vmul.f32 %v4864, %v4864
    %v5116 = vmul.f32 %v4867, %v4867
    %v5117 = vmul.f32 %v4872, %v4872
    %v5118 = vmul.f32 %v4875, %v4875
    %v5119 = vmul.f32 %v4880, %v4880
    %v5120 = vmul.f32 %v4883, %v4883
    %v5121 = vmul.f32 %v4888, %v4888
    %v5122 = vmul.f32 %v4891, %v4891
    %v5123 = vmul.f32 %v4896, %v4896
    %v5124 = vmul.f32 %v4899, %v4899
    %v5125 = vmul.f32 %v4904, %v4904
    %v5126 = vmul.f32 %v4907, %v4907
    %v5127 = vmul.f32 %v4912, %v4912
    %v5128 = vmul.f32 %v4915, %v4915
    %v5129 = vmul.f32 %v4920, %v4920
    %v5130 = vmul.f32 %v4923, %v4923
    %v5131 = vmul.f32 %v4928, %v4928
    %v5132 = vmul.f32 %v4931, %v4931
    %v5133 = vmul.f32 %v4936, %v4936
    %v5134 = vmul.f32 %v4939, %v4939
    %v5135 = vmul.f32 %v4944, %v4944
    %v5136 = vmul.f32 %v4947, %v4947
    %v5137 = vmul.f32 %v4952, %v4952
    %v5138 = vmul.f32 %v4955, %v4955
    %v5139 = vmul.f32 %v4960, %v4960
    %v5140 = vmul.f32 %v4963, %v4963
    %v5141 = vmul.f32 %v4968, %v4968
    %v5142 = vmul.f32 %v4971, %v4971
    %v5143 = vmul.f32 %v4976, %v4976
    %v5144 = vmul.f32 %v4979, %v4979
    %v5145 = vmul.f32 %v4984, %v4984
    %v5146 = vmul.f32 %v4987, %v4987
    %v5147 = vmul.f32 %v4992, %v4992
    %v5148 = vmul.f32 %v4995, %v4995
    %v5149 = vmul.f32 %v5000, %v5000
    %v5150 = vmul.f32 %v5003, %v5003
    %v5151 = vmul.f32 %v5008, %v5008
    %v5152 = vmul.f32 %v5011, %v5011
    %v5153 = vmul.f32 %v5016, %v5016
    %v5154 = vmul.f32 %v5019, %v5019
    %v5155 = vadd.f32 %v5091, %v5092
    %v5156 = vadd.f32 %v5155, %v5093
    %v5157 = vadd.f32 %v5156, %v5094
    %v5158 = vadd.f32 %v5157, %v5095
    %v5159 = vadd.f32 %v5158, %v5096
    %v5160 = vadd.f32 %v5159, %v5097
    %v5161 = vadd.f32 %v5160, %v5098
    %v5162 = vadd.f32 %v5161, %v5099
    %v5163 = vadd.f32 %v5162, %v5100
    %v5164 = vadd.f32 %v5163, %v5101
    %v5165 = vadd.f32 %v5164, %v5102
    %v5166 = vadd.f32 %v5165, %v5103
    %v5167 = vadd.f32 %v5166, %v5104
    %v5168 = vadd.f32 %v5167, %v5105
    %v5169 = vadd.f32 %v5168, %v5106
    %v5170 = vadd.f32 %v5169, %v5107
    %v5171 = vadd.f32 %v5170, %v5108
    %v5172 = vadd.f32 %v5171, %v5109
    %v5173 = vadd.f32 %v5172, %v5110
    %v5174 = vadd.f32 %v5173, %v5111
    %v5175 = vadd.f32 %v5174, %v5112
    %v5176 = vadd.f32 %v5175, %v5113
    %v5177 = vadd.f32 %v5176, %v5114
    %v5178 = vadd.f32 %v5177, %v5115
    %v5179 = vadd.f32 %v5178, %v5116
    %v5180 = vadd.f32 %v5179, %v5117
    %v5181 = vadd.f32 %v5180, %v5118
    %v5182 = vadd.f32 %v5181, %v5119
    %v5183 = vadd.f32 %v5182, %v5120
    %v5184 = vadd.f32 %v5183, %v5121
    %v5185 = vadd.f32 %v5184, %v5122
    %v5186 = vadd.f32 %v5185, %v5123
    %v5187 = vadd.f32 %v5186, %v5124
    %v5188 = vadd.f32 %v5187, %v5125
    %v5189 = vadd.f32 %v5188, %v5126
    %v5190 = vadd.f32 %v5189, %v5127
    %v5191 = vadd.f32 %v5190, %v5128
    %v5192 = vadd.f32 %v5191, %v5129
    %v5193 = vadd.f32 %v5192, %v5130
    %v5194 = vadd.f32 %v5193, %v5131
    %v5195 = vadd.f32 %v5194, %v5132
    %v5196 = vadd.f32 %v5195, %v5133
    %v5197 = vadd.f32 %v5196, %v5134
    %v5198 = vadd.f32 %v5197, %v5135
    %v5199 = vadd.f32 %v5198, %v5136
    %v5200 = vadd.f32 %v5199, %v5137
    %v5201 = vadd.f32 %v5200, %v5138
    %v5202 = vadd.f32 %v5201, %v5139
    %v5203 = vadd.f32 %v5202, %v5140
    %v5204 = vadd.f32 %v5203, %v5141
    %v5205 = vadd.f32 %v5204, %v5142
    %v5206 = vadd.f32 %v5205, %v5143
    %v5207 = vadd.f32 %v5206, %v5144
    %v5208 = vadd.f32 %v5207, %v5145
    %v5209 = vadd.f32 %v5208, %v5146
    %v5210 = vadd.f32 %v5209, %v5147
    %v5211 = vadd.f32 %v5210, %v5148
    %v5212 = vadd.f32 %v5211, %v5149
    %v5213 = vadd.f32 %v5212, %v5150
    %v5214 = vadd.f32 %v5213, %v5151
    %v5215 = vadd.f32 %v5214, %v5152
    %v5216 = vadd.f32 %v5215, %v5153
    %v5217 = vadd.f32 %v5216, %v5154
    %v5218 = vrot.slane %v5217, 4
    %v5219 = vadd.f32 %v5217, %v5218
    %v5220 = vrot.slane %v5219, 2
    %v5221 = vadd.f32 %v5219, %v5220
    %v5222 = vrot.slane %v5221, 1
    %v5223 = vadd.f32 %v5221, %v5222
    %v5224 = vmul.f32 %v5090, 0.001953125
    %v5225 = vmul.f32 %v5223, 0.001953125
    %v5226 = vmul.f32 %v5224, %v5224
    %v5227 = vsub.f32 %v5225, %v5226
    %v5228 = vmax.f32 %v5227, 0.0
    %v5229 = vld [vmem:[%s2] sm:$0x1]
    %v5230 = vld [vmem:[%s2 + $0x1] sm:$0x1]
    %v5231 = vadd.f32 %v5228, 1e-05
    %v5232 = vrsqrt.pop %v5231
    %v5233 = vmul.f32 %v5229, %v5232
    %v5234 = vmul.f32 %v5224, %v5233
    %v5235 = vsub.f32 %v5230, %v5234
    %v5236 = vlaneseq
    %v5237 = vshrl.u32 %v5236, 7
    %v5238 = vsub.s32 0, %v5237
    %v5239 = vrot.slane %v5233, %v5238
    %v5240 = vmul.f32 %v4768, %v5239
    %v5241 = vmul.f32 %v4771, %v5239
    %v5242 = vmul.f32 %v4776, %v5239
    %v5243 = vmul.f32 %v4779, %v5239
    %v5244 = vmul.f32 %v4784, %v5239
    %v5245 = vmul.f32 %v4787, %v5239
    %v5246 = vmul.f32 %v4792, %v5239
    %v5247 = vmul.f32 %v4795, %v5239
    %v5248 = vmul.f32 %v4800, %v5239
    %v5249 = vmul.f32 %v4803, %v5239
    %v5250 = vmul.f32 %v4808, %v5239
    %v5251 = vmul.f32 %v4811, %v5239
    %v5252 = vmul.f32 %v4816, %v5239
    %v5253 = vmul.f32 %v4819, %v5239
    %v5254 = vmul.f32 %v4824, %v5239
    %v5255 = vmul.f32 %v4827, %v5239
    %v5256 = vmul.f32 %v4832, %v5239
    %v5257 = vmul.f32 %v4835, %v5239
    %v5258 = vmul.f32 %v4840, %v5239
    %v5259 = vmul.f32 %v4843, %v5239
    %v5260 = vmul.f32 %v4848, %v5239
    %v5261 = vmul.f32 %v4851, %v5239
    %v5262 = vmul.f32 %v4856, %v5239
    %v5263 = vmul.f32 %v4859, %v5239
    %v5264 = vmul.f32 %v4864, %v5239
    %v5265 = vmul.f32 %v4867, %v5239
    %v5266 = vmul.f32 %v4872, %v5239
    %v5267 = vmul.f32 %v4875, %v5239
    %v5268 = vmul.f32 %v4880, %v5239
    %v5269 = vmul.f32 %v4883, %v5239
    %v5270 = vmul.f32 %v4888, %v5239
    %v5271 = vmul.f32 %v4891, %v5239
    %v5272 = vmul.f32 %v4896, %v5239
    %v5273 = vmul.f32 %v4899, %v5239
    %v5274 = vmul.f32 %v4904, %v5239
    %v5275 = vmul.f32 %v4907, %v5239
    %v5276 = vmul.f32 %v4912, %v5239
    %v5277 = vmul.f32 %v4915, %v5239
    %v5278 = vmul.f32 %v4920, %v5239
    %v5279 = vmul.f32 %v4923, %v5239
    %v5280 = vmul.f32 %v4928, %v5239
    %v5281 = vmul.f32 %v4931, %v5239
    %v5282 = vmul.f32 %v4936, %v5239
    %v5283 = vmul.f32 %v4939, %v5239
    %v5284 = vmul.f32 %v4944, %v5239
    %v5285 = vmul.f32 %v4947, %v5239
    %v5286 = vmul.f32 %v4952, %v5239
    %v5287 = vmul.f32 %v4955, %v5239
    %v5288 = vmul.f32 %v4960, %v5239
    %v5289 = vmul.f32 %v4963, %v5239
    %v5290 = vmul.f32 %v4968, %v5239
    %v5291 = vmul.f32 %v4971, %v5239
    %v5292 = vmul.f32 %v4976, %v5239
    %v5293 = vmul.f32 %v4979, %v5239
    %v5294 = vmul.f32 %v4984, %v5239
    %v5295 = vmul.f32 %v4987, %v5239
    %v5296 = vmul.f32 %v4992, %v5239
    %v5297 = vmul.f32 %v4995, %v5239
    %v5298 = vmul.f32 %v5000, %v5239
    %v5299 = vmul.f32 %v5003, %v5239
    %v5300 = vmul.f32 %v5008, %v5239
    %v5301 = vmul.f32 %v5011, %v5239
    %v5302 = vmul.f32 %v5016, %v5239
    %v5303 = vmul.f32 %v5019, %v5239
    %v5304 = vlaneseq
    %v5305 = vshrl.u32 %v5304, 7
    %v5306 = vsub.s32 0, %v5305
    %v5307 = vrot.slane %v5235, %v5306
    %v5308 = vadd.f32 %v5240, %v5307
    %v5309 = vadd.f32 %v5241, %v5307
    %v5310 = vadd.f32 %v5242, %v5307
    %v5311 = vadd.f32 %v5243, %v5307
    %v5312 = vadd.f32 %v5244, %v5307
    %v5313 = vadd.f32 %v5245, %v5307
    %v5314 = vadd.f32 %v5246, %v5307
    %v5315 = vadd.f32 %v5247, %v5307
    %v5316 = vadd.f32 %v5248, %v5307
    %v5317 = vadd.f32 %v5249, %v5307
    %v5318 = vadd.f32 %v5250, %v5307
    %v5319 = vadd.f32 %v5251, %v5307
    %v5320 = vadd.f32 %v5252, %v5307
    %v5321 = vadd.f32 %v5253, %v5307
    %v5322 = vadd.f32 %v5254, %v5307
    %v5323 = vadd.f32 %v5255, %v5307
    %v5324 = vadd.f32 %v5256, %v5307
    %v5325 = vadd.f32 %v5257, %v5307
    %v5326 = vadd.f32 %v5258, %v5307
    %v5327 = vadd.f32 %v5259, %v5307
    %v5328 = vadd.f32 %v5260, %v5307
    %v5329 = vadd.f32 %v5261, %v5307
    %v5330 = vadd.f32 %v5262, %v5307
    %v5331 = vadd.f32 %v5263, %v5307
    %v5332 = vadd.f32 %v5264, %v5307
    %v5333 = vadd.f32 %v5265, %v5307
    %v5334 = vadd.f32 %v5266, %v5307
    %v5335 = vadd.f32 %v5267, %v5307
    %v5336 = vadd.f32 %v5268, %v5307
    %v5337 = vadd.f32 %v5269, %v5307
    %v5338 = vadd.f32 %v5270, %v5307
    %v5339 = vadd.f32 %v5271, %v5307
    %v5340 = vadd.f32 %v5272, %v5307
    %v5341 = vadd.f32 %v5273, %v5307
    %v5342 = vadd.f32 %v5274, %v5307
    %v5343 = vadd.f32 %v5275, %v5307
    %v5344 = vadd.f32 %v5276, %v5307
    %v5345 = vadd.f32 %v5277, %v5307
    %v5346 = vadd.f32 %v5278, %v5307
    %v5347 = vadd.f32 %v5279, %v5307
    %v5348 = vadd.f32 %v5280, %v5307
    %v5349 = vadd.f32 %v5281, %v5307
    %v5350 = vadd.f32 %v5282, %v5307
    %v5351 = vadd.f32 %v5283, %v5307
    %v5352 = vadd.f32 %v5284, %v5307
    %v5353 = vadd.f32 %v5285, %v5307
    %v5354 = vadd.f32 %v5286, %v5307
    %v5355 = vadd.f32 %v5287, %v5307
    %v5356 = vadd.f32 %v5288, %v5307
    %v5357 = vadd.f32 %v5289, %v5307
    %v5358 = vadd.f32 %v5290, %v5307
    %v5359 = vadd.f32 %v5291, %v5307
    %v5360 = vadd.f32 %v5292, %v5307
    %v5361 = vadd.f32 %v5293, %v5307
    %v5362 = vadd.f32 %v5294, %v5307
    %v5363 = vadd.f32 %v5295, %v5307
    %v5364 = vadd.f32 %v5296, %v5307
    %v5365 = vadd.f32 %v5297, %v5307
    %v5366 = vadd.f32 %v5298, %v5307
    %v5367 = vadd.f32 %v5299, %v5307
    %v5368 = vadd.f32 %v5300, %v5307
    %v5369 = vadd.f32 %v5301, %v5307
    %v5370 = vadd.f32 %v5302, %v5307
    %v5371 = vadd.f32 %v5303, %v5307
    %v5372 = vmax.f32 %v5308, 0.0
    %v5373 = vmax.f32 %v5309, 0.0
    %v5374 = vmax.f32 %v5310, 0.0
    %v5375 = vmax.f32 %v5311, 0.0
    %v5376 = vmax.f32 %v5312, 0.0
    %v5377 = vmax.f32 %v5313, 0.0
    %v5378 = vmax.f32 %v5314, 0.0
    %v5379 = vmax.f32 %v5315, 0.0
    %v5380 = vmax.f32 %v5316, 0.0
    %v5381 = vmax.f32 %v5317, 0.0
    %v5382 = vmax.f32 %v5318, 0.0
    %v5383 = vmax.f32 %v5319, 0.0
    %v5384 = vmax.f32 %v5320, 0.0
    %v5385 = vmax.f32 %v5321, 0.0
    %v5386 = vmax.f32 %v5322, 0.0
    %v5387 = vmax.f32 %v5323, 0.0
    %v5388 = vmax.f32 %v5324, 0.0
    %v5389 = vmax.f32 %v5325, 0.0
    %v5390 = vmax.f32 %v5326, 0.0
    %v5391 = vmax.f32 %v5327, 0.0
    %v5392 = vmax.f32 %v5328, 0.0
    %v5393 = vmax.f32 %v5329, 0.0
    %v5394 = vmax.f32 %v5330, 0.0
    %v5395 = vmax.f32 %v5331, 0.0
    %v5396 = vmax.f32 %v5332, 0.0
    %v5397 = vmax.f32 %v5333, 0.0
    %v5398 = vmax.f32 %v5334, 0.0
    %v5399 = vmax.f32 %v5335, 0.0
    %v5400 = vmax.f32 %v5336, 0.0
    %v5401 = vmax.f32 %v5337, 0.0
    %v5402 = vmax.f32 %v5338, 0.0
    %v5403 = vmax.f32 %v5339, 0.0
    %v5404 = vmax.f32 %v5340, 0.0
    %v5405 = vmax.f32 %v5341, 0.0
    %v5406 = vmax.f32 %v5342, 0.0
    %v5407 = vmax.f32 %v5343, 0.0
    %v5408 = vmax.f32 %v5344, 0.0
    %v5409 = vmax.f32 %v5345, 0.0
    %v5410 = vmax.f32 %v5346, 0.0
    %v5411 = vmax.f32 %v5347, 0.0
    %v5412 = vmax.f32 %v5348, 0.0
    %v5413 = vmax.f32 %v5349, 0.0
    %v5414 = vmax.f32 %v5350, 0.0
    %v5415 = vmax.f32 %v5351, 0.0
    %v5416 = vmax.f32 %v5352, 0.0
    %v5417 = vmax.f32 %v5353, 0.0
    %v5418 = vmax.f32 %v5354, 0.0
    %v5419 = vmax.f32 %v5355, 0.0
    %v5420 = vmax.f32 %v5356, 0.0
    %v5421 = vmax.f32 %v5357, 0.0
    %v5422 = vmax.f32 %v5358, 0.0
    %v5423 = vmax.f32 %v5359, 0.0
    %v5424 = vmax.f32 %v5360, 0.0
    %v5425 = vmax.f32 %v5361, 0.0
    %v5426 = vmax.f32 %v5362, 0.0
    %v5427 = vmax.f32 %v5363, 0.0
    %v5428 = vmax.f32 %v5364, 0.0
    %v5429 = vmax.f32 %v5365, 0.0
    %v5430 = vmax.f32 %v5366, 0.0
    %v5431 = vmax.f32 %v5367, 0.0
    %v5432 = vmax.f32 %v5368, 0.0
    %v5433 = vmax.f32 %v5369, 0.0
    %v5434 = vmax.f32 %v5370, 0.0
    %v5435 = vmax.f32 %v5371, 0.0
    %v5436 = vrot.slane %v5372, 7
    %v5437 = vrot.slane %v5373, 7
    %v5438 = vrot.slane %v5374, 7
    %v5439 = vrot.slane %v5375, 7
    %v5440 = vrot.slane %v5376, 7
    %v5441 = vrot.slane %v5377, 7
    %v5442 = vrot.slane %v5378, 7
    %v5443 = vrot.slane %v5379, 7
    %v5444 = vrot.slane %v5380, 7
    %v5445 = vrot.slane %v5381, 7
    %v5446 = vrot.slane %v5382, 7
    %v5447 = vrot.slane %v5383, 7
    %v5448 = vrot.slane %v5384, 7
    %v5449 = vrot.slane %v5385, 7
    %v5450 = vrot.slane %v5386, 7
    %v5451 = vrot.slane %v5387, 7
    %v5452 = vrot.slane %v5388, 7
    %v5453 = vrot.slane %v5389, 7
    %v5454 = vrot.slane %v5390, 7
    %v5455 = vrot.slane %v5391, 7
    %v5456 = vrot.slane %v5392, 7
    %v5457 = vrot.slane %v5393, 7
    %v5458 = vrot.slane %v5394, 7
    %v5459 = vrot.slane %v5395, 7
    %v5460 = vrot.slane %v5396, 7
    %v5461 = vrot.slane %v5397, 7
    %v5462 = vrot.slane %v5398, 7
    %v5463 = vrot.slane %v5399, 7
    %v5464 = vrot.slane %v5400, 7
    %v5465 = vrot.slane %v5401, 7
    %v5466 = vrot.slane %v5402, 7
    %v5467 = vrot.slane %v5403, 7
    %v5468 = vrot.slane %v5404, 7
    %v5469 = vrot.slane %v5405, 7
    %v5470 = vrot.slane %v5406, 7
    %v5471 = vrot.slane %v5407, 7
    %v5472 = vrot.slane %v5408, 7
    %v5473 = vrot.slane %v5409, 7
    %v5474 = vrot.slane %v5410, 7
    %v5475 = vrot.slane %v5411, 7
    %v5476 = vrot.slane %v5412, 7
    %v5477 = vrot.slane %v5413, 7
    %v5478 = vrot.slane %v5414, 7
    %v5479 = vrot.slane %v5415, 7
    %v5480 = vrot.slane %v5416, 7
    %v5481 = vrot.slane %v5417, 7
    %v5482 = vrot.slane %v5418, 7
    %v5483 = vrot.slane %v5419, 7
    %v5484 = vrot.slane %v5420, 7
    %v5485 = vrot.slane %v5421, 7
    %v5486 = vrot.slane %v5422, 7
    %v5487 = vrot.slane %v5423, 7
    %v5488 = vrot.slane %v5424, 7
    %v5489 = vrot.slane %v5425, 7
    %v5490 = vrot.slane %v5426, 7
    %v5491 = vrot.slane %v5427, 7
    %v5492 = vrot.slane %v5428, 7
    %v5493 = vrot.slane %v5429, 7
    %v5494 = vrot.slane %v5430, 7
    %v5495 = vrot.slane %v5431, 7
    %v5496 = vrot.slane %v5432, 7
    %v5497 = vrot.slane %v5433, 7
    %v5498 = vrot.slane %v5434, 7
    %v5499 = vrot.slane %v5435, 7
    %v5500 = vsel %vm219, %v5498, %v5499
    %v5501 = vsel %vm219, %v5497, %v5498
    %v5502 = vsel %vm219, %v5496, %v5497
    %v5503 = vsel %vm219, %v5495, %v5496
    %v5504 = vsel %vm219, %v5494, %v5495
    %v5505 = vsel %vm219, %v5493, %v5494
    %v5506 = vsel %vm219, %v5492, %v5493
    %v5507 = vsel %vm219, %v5491, %v5492
    %v5508 = vsel %vm219, %v5490, %v5491
    %v5509 = vsel %vm219, %v5489, %v5490
    %v5510 = vsel %vm219, %v5488, %v5489
    %v5511 = vsel %vm219, %v5487, %v5488
    %v5512 = vsel %vm219, %v5486, %v5487
    %v5513 = vsel %vm219, %v5485, %v5486
    %v5514 = vsel %vm219, %v5484, %v5485
    %v5515 = vsel %vm219, %v5483, %v5484
    %v5516 = vsel %vm219, %v5482, %v5483
    %v5517 = vsel %vm219, %v5481, %v5482
    %v5518 = vsel %vm219, %v5480, %v5481
    %v5519 = vsel %vm219, %v5479, %v5480
    %v5520 = vsel %vm219, %v5478, %v5479
    %v5521 = vsel %vm219, %v5477, %v5478
    %v5522 = vsel %vm219, %v5476, %v5477
    %v5523 = vsel %vm219, %v5475, %v5476
    %v5524 = vsel %vm219, %v5474, %v5475
    %v5525 = vsel %vm219, %v5473, %v5474
    %v5526 = vsel %vm219, %v5472, %v5473
    %v5527 = vsel %vm219, %v5471, %v5472
    %v5528 = vsel %vm219, %v5470, %v5471
    %v5529 = vsel %vm219, %v5469, %v5470
    %v5530 = vsel %vm219, %v5468, %v5469
    %v5531 = vsel %vm219, %v5467, %v5468
    %v5532 = vsel %vm219, %v5466, %v5467
    %v5533 = vsel %vm219, %v5465, %v5466
    %v5534 = vsel %vm219, %v5464, %v5465
    %v5535 = vsel %vm219, %v5463, %v5464
    %v5536 = vsel %vm219, %v5462, %v5463
    %v5537 = vsel %vm219, %v5461, %v5462
    %v5538 = vsel %vm219, %v5460, %v5461
    %v5539 = vsel %vm219, %v5459, %v5460
    %v5540 = vsel %vm219, %v5458, %v5459
    %v5541 = vsel %vm219, %v5457, %v5458
    %v5542 = vsel %vm219, %v5456, %v5457
    %v5543 = vsel %vm219, %v5455, %v5456
    %v5544 = vsel %vm219, %v5454, %v5455
    %v5545 = vsel %vm219, %v5453, %v5454
    %v5546 = vsel %vm219, %v5452, %v5453
    %v5547 = vsel %vm219, %v5451, %v5452
    %v5548 = vsel %vm219, %v5450, %v5451
    %v5549 = vsel %vm219, %v5449, %v5450
    %v5550 = vsel %vm219, %v5448, %v5449
    %v5551 = vsel %vm219, %v5447, %v5448
    %v5552 = vsel %vm219, %v5446, %v5447
    %v5553 = vsel %vm219, %v5445, %v5446
    %v5554 = vsel %vm219, %v5444, %v5445
    %v5555 = vsel %vm219, %v5443, %v5444
    %v5556 = vsel %vm219, %v5442, %v5443
    %v5557 = vsel %vm219, %v5441, %v5442
    %v5558 = vsel %vm219, %v5440, %v5441
    %v5559 = vsel %vm219, %v5439, %v5440
    %v5560 = vsel %vm219, %v5438, %v5439
    %v5561 = vsel %vm219, %v5437, %v5438
    %v5562 = vsel %vm219, %v5436, %v5437
    %v5563 = vsel %vm219, %v5499, %v5436
    %v5564 = vmul.f32 %v5501, %v351
    %v5565 = vmul.f32 %v5500, %v356
    %v5566 = vmul.f32 %v5563, %v361
    %v5567 = vmul.f32 %v5562, %v366
    %v5568 = vmul.f32 %v5561, %v371
    %v5569 = vmul.f32 %v5560, %v376
    %v5570 = vmul.f32 %v5559, %v381
    %v5571 = vmul.f32 %v5558, %v386
    %v5572 = vmul.f32 %v5557, %v391
    %v5573 = vmul.f32 %v5556, %v396
    %v5574 = vmul.f32 %v5555, %v401
    %v5575 = vmul.f32 %v5554, %v406
    %v5576 = vmul.f32 %v5553, %v411
    %v5577 = vmul.f32 %v5552, %v416
    %v5578 = vmul.f32 %v5551, %v421
    %v5579 = vmul.f32 %v5550, %v426
    %v5580 = vmul.f32 %v5549, %v431
    %v5581 = vmul.f32 %v5548, %v436
    %v5582 = vmul.f32 %v5547, %v441
    %v5583 = vmul.f32 %v5546, %v446
    %v5584 = vmul.f32 %v5545, %v451
    %v5585 = vmul.f32 %v5544, %v456
    %v5586 = vmul.f32 %v5543, %v461
    %v5587 = vmul.f32 %v5542, %v466
    %v5588 = vmul.f32 %v5541, %v471
    %v5589 = vmul.f32 %v5540, %v476
    %v5590 = vmul.f32 %v5539, %v481
    %v5591 = vmul.f32 %v5538, %v486
    %v5592 = vmul.f32 %v5537, %v491
    %v5593 = vmul.f32 %v5536, %v496
    %v5594 = vmul.f32 %v5535, %v501
    %v5595 = vmul.f32 %v5534, %v506
    %v5596 = vmul.f32 %v5533, %v511
    %v5597 = vmul.f32 %v5532, %v516
    %v5598 = vmul.f32 %v5531, %v521
    %v5599 = vmul.f32 %v5530, %v526
    %v5600 = vmul.f32 %v5529, %v531
    %v5601 = vmul.f32 %v5528, %v536
    %v5602 = vmul.f32 %v5527, %v541
    %v5603 = vmul.f32 %v5526, %v546
    %v5604 = vmul.f32 %v5525, %v551
    %v5605 = vmul.f32 %v5524, %v556
    %v5606 = vmul.f32 %v5523, %v561
    %v5607 = vmul.f32 %v5522, %v566
    %v5608 = vmul.f32 %v5521, %v571
    %v5609 = vmul.f32 %v5520, %v576
    %v5610 = vmul.f32 %v5519, %v581
    %v5611 = vmul.f32 %v5518, %v586
    %v5612 = vmul.f32 %v5517, %v591
    %v5613 = vmul.f32 %v5516, %v596
    %v5614 = vmul.f32 %v5515, %v601
    %v5615 = vmul.f32 %v5514, %v606
    %v5616 = vmul.f32 %v5513, %v611
    %v5617 = vmul.f32 %v5512, %v616
    %v5618 = vmul.f32 %v5511, %v621
    %v5619 = vmul.f32 %v5510, %v626
    %v5620 = vmul.f32 %v5509, %v631
    %v5621 = vmul.f32 %v5508, %v636
    %v5622 = vmul.f32 %v5507, %v641
    %v5623 = vmul.f32 %v5506, %v646
    %v5624 = vmul.f32 %v5505, %v651
    %v5625 = vmul.f32 %v5504, %v656
    %v5626 = vmul.f32 %v5503, %v661
    %v5627 = vmul.f32 %v5502, %v666
    %v5628 = vmul.f32 %v5434, %v734
    %v5629 = vmul.f32 %v5435, %v738
    %v5630 = vmul.f32 %v5372, %v742
    %v5631 = vmul.f32 %v5373, %v746
    %v5632 = vmul.f32 %v5374, %v750
    %v5633 = vmul.f32 %v5375, %v754
    %v5634 = vmul.f32 %v5376, %v758
    %v5635 = vmul.f32 %v5377, %v762
    %v5636 = vmul.f32 %v5378, %v766
    %v5637 = vmul.f32 %v5379, %v770
    %v5638 = vmul.f32 %v5380, %v774
    %v5639 = vmul.f32 %v5381, %v778
    %v5640 = vmul.f32 %v5382, %v782
    %v5641 = vmul.f32 %v5383, %v786
    %v5642 = vmul.f32 %v5384, %v790
    %v5643 = vmul.f32 %v5385, %v794
    %v5644 = vmul.f32 %v5386, %v798
    %v5645 = vmul.f32 %v5387, %v802
    %v5646 = vmul.f32 %v5388, %v806
    %v5647 = vmul.f32 %v5389, %v810
    %v5648 = vmul.f32 %v5390, %v814
    %v5649 = vmul.f32 %v5391, %v818
    %v5650 = vmul.f32 %v5392, %v822
    %v5651 = vmul.f32 %v5393, %v826
    %v5652 = vmul.f32 %v5394, %v830
    %v5653 = vmul.f32 %v5395, %v834
    %v5654 = vmul.f32 %v5396, %v838
    %v5655 = vmul.f32 %v5397, %v842
    %v5656 = vmul.f32 %v5398, %v846
    %v5657 = vmul.f32 %v5399, %v850
    %v5658 = vmul.f32 %v5400, %v854
    %v5659 = vmul.f32 %v5401, %v858
    %v5660 = vmul.f32 %v5402, %v862
    %v5661 = vmul.f32 %v5403, %v866
    %v5662 = vmul.f32 %v5404, %v870
    %v5663 = vmul.f32 %v5405, %v874
    %v5664 = vmul.f32 %v5406, %v878
    %v5665 = vmul.f32 %v5407, %v882
    %v5666 = vmul.f32 %v5408, %v886
    %v5667 = vmul.f32 %v5409, %v890
    %v5668 = vmul.f32 %v5410, %v894
    %v5669 = vmul.f32 %v5411, %v898
    %v5670 = vmul.f32 %v5412, %v902
    %v5671 = vmul.f32 %v5413, %v906
    %v5672 = vmul.f32 %v5414, %v910
    %v5673 = vmul.f32 %v5415, %v914
    %v5674 = vmul.f32 %v5416, %v918
    %v5675 = vmul.f32 %v5417, %v922
    %v5676 = vmul.f32 %v5418, %v926
    %v5677 = vmul.f32 %v5419, %v930
    %v5678 = vmul.f32 %v5420, %v934
    %v5679 = vmul.f32 %v5421, %v938
    %v5680 = vmul.f32 %v5422, %v942
    %v5681 = vmul.f32 %v5423, %v946
    %v5682 = vmul.f32 %v5424, %v950
    %v5683 = vmul.f32 %v5425, %v954
    %v5684 = vmul.f32 %v5426, %v958
    %v5685 = vmul.f32 %v5427, %v962
    %v5686 = vmul.f32 %v5428, %v966
    %v5687 = vmul.f32 %v5429, %v970
    %v5688 = vmul.f32 %v5430, %v974
    %v5689 = vmul.f32 %v5431, %v978
    %v5690 = vmul.f32 %v5432, %v982
    %v5691 = vmul.f32 %v5433, %v986
    %5692 = vrot.lane.b32.xlu0 %v5628, 8
    %v5693 = vpop.permute.xlu0 %5692
    %5694 = vrot.lane.b32.xlu0 %v5629, 8
    %v5695 = vpop.permute.xlu0 %5694
    %5696 = vrot.lane.b32.xlu0 %v5630, 8
    %v5697 = vpop.permute.xlu0 %5696
    %5698 = vrot.lane.b32.xlu0 %v5631, 8
    %v5699 = vpop.permute.xlu0 %5698
    %5700 = vrot.lane.b32.xlu0 %v5632, 8
    %v5701 = vpop.permute.xlu0 %5700
    %5702 = vrot.lane.b32.xlu0 %v5633, 8
    %v5703 = vpop.permute.xlu0 %5702
    %5704 = vrot.lane.b32.xlu0 %v5634, 8
    %v5705 = vpop.permute.xlu0 %5704
    %5706 = vrot.lane.b32.xlu0 %v5635, 8
    %v5707 = vpop.permute.xlu0 %5706
    %5708 = vrot.lane.b32.xlu0 %v5636, 8
    %v5709 = vpop.permute.xlu0 %5708
    %5710 = vrot.lane.b32.xlu0 %v5637, 8
    %v5711 = vpop.permute.xlu0 %5710
    %5712 = vrot.lane.b32.xlu0 %v5638, 8
    %v5713 = vpop.permute.xlu0 %5712
    %5714 = vrot.lane.b32.xlu0 %v5639, 8
    %v5715 = vpop.permute.xlu0 %5714
    %5716 = vrot.lane.b32.xlu0 %v5640, 8
    %v5717 = vpop.permute.xlu0 %5716
    %5718 = vrot.lane.b32.xlu0 %v5641, 8
    %v5719 = vpop.permute.xlu0 %5718
    %5720 = vrot.lane.b32.xlu0 %v5642, 8
    %v5721 = vpop.permute.xlu0 %5720
    %5722 = vrot.lane.b32.xlu0 %v5643, 8
    %v5723 = vpop.permute.xlu0 %5722
    %5724 = vrot.lane.b32.xlu0 %v5644, 8
    %v5725 = vpop.permute.xlu0 %5724
    %5726 = vrot.lane.b32.xlu0 %v5645, 8
    %v5727 = vpop.permute.xlu0 %5726
    %5728 = vrot.lane.b32.xlu0 %v5646, 8
    %v5729 = vpop.permute.xlu0 %5728
    %5730 = vrot.lane.b32.xlu0 %v5647, 8
    %v5731 = vpop.permute.xlu0 %5730
    %5732 = vrot.lane.b32.xlu0 %v5648, 8
    %v5733 = vpop.permute.xlu0 %5732
    %5734 = vrot.lane.b32.xlu0 %v5649, 8
    %v5735 = vpop.permute.xlu0 %5734
    %5736 = vrot.lane.b32.xlu0 %v5650, 8
    %v5737 = vpop.permute.xlu0 %5736
    %5738 = vrot.lane.b32.xlu0 %v5651, 8
    %v5739 = vpop.permute.xlu0 %5738
    %5740 = vrot.lane.b32.xlu0 %v5652, 8
    %v5741 = vpop.permute.xlu0 %5740
    %5742 = vrot.lane.b32.xlu0 %v5653, 8
    %v5743 = vpop.permute.xlu0 %5742
    %5744 = vrot.lane.b32.xlu0 %v5654, 8
    %v5745 = vpop.permute.xlu0 %5744
    %5746 = vrot.lane.b32.xlu0 %v5655, 8
    %v5747 = vpop.permute.xlu0 %5746
    %5748 = vrot.lane.b32.xlu0 %v5656, 8
    %v5749 = vpop.permute.xlu0 %5748
    %5750 = vrot.lane.b32.xlu0 %v5657, 8
    %v5751 = vpop.permute.xlu0 %5750
    %5752 = vrot.lane.b32.xlu0 %v5658, 8
    %v5753 = vpop.permute.xlu0 %5752
    %5754 = vrot.lane.b32.xlu0 %v5659, 8
    %v5755 = vpop.permute.xlu0 %5754
    %5756 = vrot.lane.b32.xlu0 %v5660, 8
    %v5757 = vpop.permute.xlu0 %5756
    %5758 = vrot.lane.b32.xlu0 %v5661, 8
    %v5759 = vpop.permute.xlu0 %5758
    %5760 = vrot.lane.b32.xlu0 %v5662, 8
    %v5761 = vpop.permute.xlu0 %5760
    %5762 = vrot.lane.b32.xlu0 %v5663, 8
    %v5763 = vpop.permute.xlu0 %5762
    %5764 = vrot.lane.b32.xlu0 %v5664, 8
    %v5765 = vpop.permute.xlu0 %5764
    %5766 = vrot.lane.b32.xlu0 %v5665, 8
    %v5767 = vpop.permute.xlu0 %5766
    %5768 = vrot.lane.b32.xlu0 %v5666, 8
    %v5769 = vpop.permute.xlu0 %5768
    %5770 = vrot.lane.b32.xlu0 %v5667, 8
    %v5771 = vpop.permute.xlu0 %5770
    %5772 = vrot.lane.b32.xlu0 %v5668, 8
    %v5773 = vpop.permute.xlu0 %5772
    %5774 = vrot.lane.b32.xlu0 %v5669, 8
    %v5775 = vpop.permute.xlu0 %5774
    %5776 = vrot.lane.b32.xlu0 %v5670, 8
    %v5777 = vpop.permute.xlu0 %5776
    %5778 = vrot.lane.b32.xlu0 %v5671, 8
    %v5779 = vpop.permute.xlu0 %5778
    %5780 = vrot.lane.b32.xlu0 %v5672, 8
    %v5781 = vpop.permute.xlu0 %5780
    %5782 = vrot.lane.b32.xlu0 %v5673, 8
    %v5783 = vpop.permute.xlu0 %5782
    %5784 = vrot.lane.b32.xlu0 %v5674, 8
    %v5785 = vpop.permute.xlu0 %5784
    %5786 = vrot.lane.b32.xlu0 %v5675, 8
    %v5787 = vpop.permute.xlu0 %5786
    %5788 = vrot.lane.b32.xlu0 %v5676, 8
    %v5789 = vpop.permute.xlu0 %5788
    %5790 = vrot.lane.b32.xlu0 %v5677, 8
    %v5791 = vpop.permute.xlu0 %5790
    %5792 = vrot.lane.b32.xlu0 %v5678, 8
    %v5793 = vpop.permute.xlu0 %5792
    %5794 = vrot.lane.b32.xlu0 %v5679, 8
    %v5795 = vpop.permute.xlu0 %5794
    %5796 = vrot.lane.b32.xlu0 %v5680, 8
    %v5797 = vpop.permute.xlu0 %5796
    %5798 = vrot.lane.b32.xlu0 %v5681, 8
    %v5799 = vpop.permute.xlu0 %5798
    %5800 = vrot.lane.b32.xlu0 %v5682, 8
    %v5801 = vpop.permute.xlu0 %5800
    %5802 = vrot.lane.b32.xlu0 %v5683, 8
    %v5803 = vpop.permute.xlu0 %5802
    %5804 = vrot.lane.b32.xlu0 %v5684, 8
    %v5805 = vpop.permute.xlu0 %5804
    %5806 = vrot.lane.b32.xlu0 %v5685, 8
    %v5807 = vpop.permute.xlu0 %5806
    %5808 = vrot.lane.b32.xlu0 %v5686, 8
    %v5809 = vpop.permute.xlu0 %5808
    %5810 = vrot.lane.b32.xlu0 %v5687, 8
    %v5811 = vpop.permute.xlu0 %5810
    %5812 = vrot.lane.b32.xlu0 %v5688, 8
    %v5813 = vpop.permute.xlu0 %5812
    %5814 = vrot.lane.b32.xlu0 %v5689, 8
    %v5815 = vpop.permute.xlu0 %5814
    %5816 = vrot.lane.b32.xlu0 %v5690, 8
    %v5817 = vpop.permute.xlu0 %5816
    %5818 = vrot.lane.b32.xlu0 %v5691, 8
    %v5819 = vpop.permute.xlu0 %5818
    %v5820 = vadd.f32 %v5564, %v5693
    %v5821 = vadd.f32 %v5565, %v5695
    %v5822 = vadd.f32 %v5566, %v5697
    %v5823 = vadd.f32 %v5567, %v5699
    %v5824 = vadd.f32 %v5568, %v5701
    %v5825 = vadd.f32 %v5569, %v5703
    %v5826 = vadd.f32 %v5570, %v5705
    %v5827 = vadd.f32 %v5571, %v5707
    %v5828 = vadd.f32 %v5572, %v5709
    %v5829 = vadd.f32 %v5573, %v5711
    %v5830 = vadd.f32 %v5574, %v5713
    %v5831 = vadd.f32 %v5575, %v5715
    %v5832 = vadd.f32 %v5576, %v5717
    %v5833 = vadd.f32 %v5577, %v5719
    %v5834 = vadd.f32 %v5578, %v5721
    %v5835 = vadd.f32 %v5579, %v5723
    %v5836 = vadd.f32 %v5580, %v5725
    %v5837 = vadd.f32 %v5581, %v5727
    %v5838 = vadd.f32 %v5582, %v5729
    %v5839 = vadd.f32 %v5583, %v5731
    %v5840 = vadd.f32 %v5584, %v5733
    %v5841 = vadd.f32 %v5585, %v5735
    %v5842 = vadd.f32 %v5586, %v5737
    %v5843 = vadd.f32 %v5587, %v5739
    %v5844 = vadd.f32 %v5588, %v5741
    %v5845 = vadd.f32 %v5589, %v5743
    %v5846 = vadd.f32 %v5590, %v5745
    %v5847 = vadd.f32 %v5591, %v5747
    %v5848 = vadd.f32 %v5592, %v5749
    %v5849 = vadd.f32 %v5593, %v5751
    %v5850 = vadd.f32 %v5594, %v5753
    %v5851 = vadd.f32 %v5595, %v5755
    %v5852 = vadd.f32 %v5596, %v5757
    %v5853 = vadd.f32 %v5597, %v5759
    %v5854 = vadd.f32 %v5598, %v5761
    %v5855 = vadd.f32 %v5599, %v5763
    %v5856 = vadd.f32 %v5600, %v5765
    %v5857 = vadd.f32 %v5601, %v5767
    %v5858 = vadd.f32 %v5602, %v5769
    %v5859 = vadd.f32 %v5603, %v5771
    %v5860 = vadd.f32 %v5604, %v5773
    %v5861 = vadd.f32 %v5605, %v5775
    %v5862 = vadd.f32 %v5606, %v5777
    %v5863 = vadd.f32 %v5607, %v5779
    %v5864 = vadd.f32 %v5608, %v5781
    %v5865 = vadd.f32 %v5609, %v5783
    %v5866 = vadd.f32 %v5610, %v5785
    %v5867 = vadd.f32 %v5611, %v5787
    %v5868 = vadd.f32 %v5612, %v5789
    %v5869 = vadd.f32 %v5613, %v5791
    %v5870 = vadd.f32 %v5614, %v5793
    %v5871 = vadd.f32 %v5615, %v5795
    %v5872 = vadd.f32 %v5616, %v5797
    %v5873 = vadd.f32 %v5617, %v5799
    %v5874 = vadd.f32 %v5618, %v5801
    %v5875 = vadd.f32 %v5619, %v5803
    %v5876 = vadd.f32 %v5620, %v5805
    %v5877 = vadd.f32 %v5621, %v5807
    %v5878 = vadd.f32 %v5622, %v5809
    %v5879 = vadd.f32 %v5623, %v5811
    %v5880 = vadd.f32 %v5624, %v5813
    %v5881 = vadd.f32 %v5625, %v5815
    %v5882 = vadd.f32 %v5626, %v5817
    %v5883 = vadd.f32 %v5627, %v5819
    %v5884 = vrot.slane %v5372, 1
    %v5885 = vrot.slane %v5373, 1
    %v5886 = vrot.slane %v5374, 1
    %v5887 = vrot.slane %v5375, 1
    %v5888 = vrot.slane %v5376, 1
    %v5889 = vrot.slane %v5377, 1
    %v5890 = vrot.slane %v5378, 1
    %v5891 = vrot.slane %v5379, 1
    %v5892 = vrot.slane %v5380, 1
    %v5893 = vrot.slane %v5381, 1
    %v5894 = vrot.slane %v5382, 1
    %v5895 = vrot.slane %v5383, 1
    %v5896 = vrot.slane %v5384, 1
    %v5897 = vrot.slane %v5385, 1
    %v5898 = vrot.slane %v5386, 1
    %v5899 = vrot.slane %v5387, 1
    %v5900 = vrot.slane %v5388, 1
    %v5901 = vrot.slane %v5389, 1
    %v5902 = vrot.slane %v5390, 1
    %v5903 = vrot.slane %v5391, 1
    %v5904 = vrot.slane %v5392, 1
    %v5905 = vrot.slane %v5393, 1
    %v5906 = vrot.slane %v5394, 1
    %v5907 = vrot.slane %v5395, 1
    %v5908 = vrot.slane %v5396, 1
    %v5909 = vrot.slane %v5397, 1
    %v5910 = vrot.slane %v5398, 1
    %v5911 = vrot.slane %v5399, 1
    %v5912 = vrot.slane %v5400, 1
    %v5913 = vrot.slane %v5401, 1
    %v5914 = vrot.slane %v5402, 1
    %v5915 = vrot.slane %v5403, 1
    %v5916 = vrot.slane %v5404, 1
    %v5917 = vrot.slane %v5405, 1
    %v5918 = vrot.slane %v5406, 1
    %v5919 = vrot.slane %v5407, 1
    %v5920 = vrot.slane %v5408, 1
    %v5921 = vrot.slane %v5409, 1
    %v5922 = vrot.slane %v5410, 1
    %v5923 = vrot.slane %v5411, 1
    %v5924 = vrot.slane %v5412, 1
    %v5925 = vrot.slane %v5413, 1
    %v5926 = vrot.slane %v5414, 1
    %v5927 = vrot.slane %v5415, 1
    %v5928 = vrot.slane %v5416, 1
    %v5929 = vrot.slane %v5417, 1
    %v5930 = vrot.slane %v5418, 1
    %v5931 = vrot.slane %v5419, 1
    %v5932 = vrot.slane %v5420, 1
    %v5933 = vrot.slane %v5421, 1
    %v5934 = vrot.slane %v5422, 1
    %v5935 = vrot.slane %v5423, 1
    %v5936 = vrot.slane %v5424, 1
    %v5937 = vrot.slane %v5425, 1
    %v5938 = vrot.slane %v5426, 1
    %v5939 = vrot.slane %v5427, 1
    %v5940 = vrot.slane %v5428, 1
    %v5941 = vrot.slane %v5429, 1
    %v5942 = vrot.slane %v5430, 1
    %v5943 = vrot.slane %v5431, 1
    %v5944 = vrot.slane %v5432, 1
    %v5945 = vrot.slane %v5433, 1
    %v5946 = vrot.slane %v5434, 1
    %v5947 = vrot.slane %v5435, 1
    %v5948 = vsel %vm1308, %v5946, %v5947
    %v5949 = vsel %vm1308, %v5945, %v5946
    %v5950 = vsel %vm1308, %v5944, %v5945
    %v5951 = vsel %vm1308, %v5943, %v5944
    %v5952 = vsel %vm1308, %v5942, %v5943
    %v5953 = vsel %vm1308, %v5941, %v5942
    %v5954 = vsel %vm1308, %v5940, %v5941
    %v5955 = vsel %vm1308, %v5939, %v5940
    %v5956 = vsel %vm1308, %v5938, %v5939
    %v5957 = vsel %vm1308, %v5937, %v5938
    %v5958 = vsel %vm1308, %v5936, %v5937
    %v5959 = vsel %vm1308, %v5935, %v5936
    %v5960 = vsel %vm1308, %v5934, %v5935
    %v5961 = vsel %vm1308, %v5933, %v5934
    %v5962 = vsel %vm1308, %v5932, %v5933
    %v5963 = vsel %vm1308, %v5931, %v5932
    %v5964 = vsel %vm1308, %v5930, %v5931
    %v5965 = vsel %vm1308, %v5929, %v5930
    %v5966 = vsel %vm1308, %v5928, %v5929
    %v5967 = vsel %vm1308, %v5927, %v5928
    %v5968 = vsel %vm1308, %v5926, %v5927
    %v5969 = vsel %vm1308, %v5925, %v5926
    %v5970 = vsel %vm1308, %v5924, %v5925
    %v5971 = vsel %vm1308, %v5923, %v5924
    %v5972 = vsel %vm1308, %v5922, %v5923
    %v5973 = vsel %vm1308, %v5921, %v5922
    %v5974 = vsel %vm1308, %v5920, %v5921
    %v5975 = vsel %vm1308, %v5919, %v5920
    %v5976 = vsel %vm1308, %v5918, %v5919
    %v5977 = vsel %vm1308, %v5917, %v5918
    %v5978 = vsel %vm1308, %v5916, %v5917
    %v5979 = vsel %vm1308, %v5915, %v5916
    %v5980 = vsel %vm1308, %v5914, %v5915
    %v5981 = vsel %vm1308, %v5913, %v5914
    %v5982 = vsel %vm1308, %v5912, %v5913
    %v5983 = vsel %vm1308, %v5911, %v5912
    %v5984 = vsel %vm1308, %v5910, %v5911
    %v5985 = vsel %vm1308, %v5909, %v5910
    %v5986 = vsel %vm1308, %v5908, %v5909
    %v5987 = vsel %vm1308, %v5907, %v5908
    %v5988 = vsel %vm1308, %v5906, %v5907
    %v5989 = vsel %vm1308, %v5905, %v5906
    %v5990 = vsel %vm1308, %v5904, %v5905
    %v5991 = vsel %vm1308, %v5903, %v5904
    %v5992 = vsel %vm1308, %v5902, %v5903
    %v5993 = vsel %vm1308, %v5901, %v5902
    %v5994 = vsel %vm1308, %v5900, %v5901
    %v5995 = vsel %vm1308, %v5899, %v5900
    %v5996 = vsel %vm1308, %v5898, %v5899
    %v5997 = vsel %vm1308, %v5897, %v5898
    %v5998 = vsel %vm1308, %v5896, %v5897
    %v5999 = vsel %vm1308, %v5895, %v5896
    %v6000 = vsel %vm1308, %v5894, %v5895
    %v6001 = vsel %vm1308, %v5893, %v5894
    %v6002 = vsel %vm1308, %v5892, %v5893
    %v6003 = vsel %vm1308, %v5891, %v5892
    %v6004 = vsel %vm1308, %v5890, %v5891
    %v6005 = vsel %vm1308, %v5889, %v5890
    %v6006 = vsel %vm1308, %v5888, %v5889
    %v6007 = vsel %vm1308, %v5887, %v5888
    %v6008 = vsel %vm1308, %v5886, %v5887
    %v6009 = vsel %vm1308, %v5885, %v5886
    %v6010 = vsel %vm1308, %v5884, %v5885
    %v6011 = vsel %vm1308, %v5947, %v5884
    %v6012 = vmul.f32 %v5948, %v1375
    %v6013 = vmul.f32 %v6011, %v1379
    %v6014 = vmul.f32 %v6010, %v1383
    %v6015 = vmul.f32 %v6009, %v1387
    %v6016 = vmul.f32 %v6008, %v1391
    %v6017 = vmul.f32 %v6007, %v1395
    %v6018 = vmul.f32 %v6006, %v1399
    %v6019 = vmul.f32 %v6005, %v1403
    %v6020 = vmul.f32 %v6004, %v1407
    %v6021 = vmul.f32 %v6003, %v1411
    %v6022 = vmul.f32 %v6002, %v1415
    %v6023 = vmul.f32 %v6001, %v1419
    %v6024 = vmul.f32 %v6000, %v1423
    %v6025 = vmul.f32 %v5999, %v1427
    %v6026 = vmul.f32 %v5998, %v1431
    %v6027 = vmul.f32 %v5997, %v1435
    %v6028 = vmul.f32 %v5996, %v1439
    %v6029 = vmul.f32 %v5995, %v1443
    %v6030 = vmul.f32 %v5994, %v1447
    %v6031 = vmul.f32 %v5993, %v1451
    %v6032 = vmul.f32 %v5992, %v1455
    %v6033 = vmul.f32 %v5991, %v1459
    %v6034 = vmul.f32 %v5990, %v1463
    %v6035 = vmul.f32 %v5989, %v1467
    %v6036 = vmul.f32 %v5988, %v1471
    %v6037 = vmul.f32 %v5987, %v1475
    %v6038 = vmul.f32 %v5986, %v1479
    %v6039 = vmul.f32 %v5985, %v1483
    %v6040 = vmul.f32 %v5984, %v1487
    %v6041 = vmul.f32 %v5983, %v1491
    %v6042 = vmul.f32 %v5982, %v1495
    %v6043 = vmul.f32 %v5981, %v1499
    %v6044 = vmul.f32 %v5980, %v1503
    %v6045 = vmul.f32 %v5979, %v1507
    %v6046 = vmul.f32 %v5978, %v1511
    %v6047 = vmul.f32 %v5977, %v1515
    %v6048 = vmul.f32 %v5976, %v1519
    %v6049 = vmul.f32 %v5975, %v1523
    %v6050 = vmul.f32 %v5974, %v1527
    %v6051 = vmul.f32 %v5973, %v1531
    %v6052 = vmul.f32 %v5972, %v1535
    %v6053 = vmul.f32 %v5971, %v1539
    %v6054 = vmul.f32 %v5970, %v1543
    %v6055 = vmul.f32 %v5969, %v1547
    %v6056 = vmul.f32 %v5968, %v1551
    %v6057 = vmul.f32 %v5967, %v1555
    %v6058 = vmul.f32 %v5966, %v1559
    %v6059 = vmul.f32 %v5965, %v1563
    %v6060 = vmul.f32 %v5964, %v1567
    %v6061 = vmul.f32 %v5963, %v1571
    %v6062 = vmul.f32 %v5962, %v1575
    %v6063 = vmul.f32 %v5961, %v1579
    %v6064 = vmul.f32 %v5960, %v1583
    %v6065 = vmul.f32 %v5959, %v1587
    %v6066 = vmul.f32 %v5958, %v1591
    %v6067 = vmul.f32 %v5957, %v1595
    %v6068 = vmul.f32 %v5956, %v1599
    %v6069 = vmul.f32 %v5955, %v1603
    %v6070 = vmul.f32 %v5954, %v1607
    %v6071 = vmul.f32 %v5953, %v1611
    %v6072 = vmul.f32 %v5952, %v1615
    %v6073 = vmul.f32 %v5951, %v1619
    %v6074 = vmul.f32 %v5950, %v1623
    %v6075 = vmul.f32 %v5949, %v1627
    %6076 = vrot.lane.b32.xlu0 %v6012, 16
    %v6077 = vpop.permute.xlu0 %6076
    %6078 = vrot.lane.b32.xlu0 %v6013, 16
    %v6079 = vpop.permute.xlu0 %6078
    %6080 = vrot.lane.b32.xlu0 %v6014, 16
    %v6081 = vpop.permute.xlu0 %6080
    %6082 = vrot.lane.b32.xlu0 %v6015, 16
    %v6083 = vpop.permute.xlu0 %6082
    %6084 = vrot.lane.b32.xlu0 %v6016, 16
    %v6085 = vpop.permute.xlu0 %6084
    %6086 = vrot.lane.b32.xlu0 %v6017, 16
    %v6087 = vpop.permute.xlu0 %6086
    %6088 = vrot.lane.b32.xlu0 %v6018, 16
    %v6089 = vpop.permute.xlu0 %6088
    %6090 = vrot.lane.b32.xlu0 %v6019, 16
    %v6091 = vpop.permute.xlu0 %6090
    %6092 = vrot.lane.b32.xlu0 %v6020, 16
    %v6093 = vpop.permute.xlu0 %6092
    %6094 = vrot.lane.b32.xlu0 %v6021, 16
    %v6095 = vpop.permute.xlu0 %6094
    %6096 = vrot.lane.b32.xlu0 %v6022, 16
    %v6097 = vpop.permute.xlu0 %6096
    %6098 = vrot.lane.b32.xlu0 %v6023, 16
    %v6099 = vpop.permute.xlu0 %6098
    %6100 = vrot.lane.b32.xlu0 %v6024, 16
    %v6101 = vpop.permute.xlu0 %6100
    %6102 = vrot.lane.b32.xlu0 %v6025, 16
    %v6103 = vpop.permute.xlu0 %6102
    %6104 = vrot.lane.b32.xlu0 %v6026, 16
    %v6105 = vpop.permute.xlu0 %6104
    %6106 = vrot.lane.b32.xlu0 %v6027, 16
    %v6107 = vpop.permute.xlu0 %6106
    %6108 = vrot.lane.b32.xlu0 %v6028, 16
    %v6109 = vpop.permute.xlu0 %6108
    %6110 = vrot.lane.b32.xlu0 %v6029, 16
    %v6111 = vpop.permute.xlu0 %6110
    %6112 = vrot.lane.b32.xlu0 %v6030, 16
    %v6113 = vpop.permute.xlu0 %6112
    %6114 = vrot.lane.b32.xlu0 %v6031, 16
    %v6115 = vpop.permute.xlu0 %6114
    %6116 = vrot.lane.b32.xlu0 %v6032, 16
    %v6117 = vpop.permute.xlu0 %6116
    %6118 = vrot.lane.b32.xlu0 %v6033, 16
    %v6119 = vpop.permute.xlu0 %6118
    %6120 = vrot.lane.b32.xlu0 %v6034, 16
    %v6121 = vpop.permute.xlu0 %6120
    %6122 = vrot.lane.b32.xlu0 %v6035, 16
    %v6123 = vpop.permute.xlu0 %6122
    %6124 = vrot.lane.b32.xlu0 %v6036, 16
    %v6125 = vpop.permute.xlu0 %6124
    %6126 = vrot.lane.b32.xlu0 %v6037, 16
    %v6127 = vpop.permute.xlu0 %6126
    %6128 = vrot.lane.b32.xlu0 %v6038, 16
    %v6129 = vpop.permute.xlu0 %6128
    %6130 = vrot.lane.b32.xlu0 %v6039, 16
    %v6131 = vpop.permute.xlu0 %6130
    %6132 = vrot.lane.b32.xlu0 %v6040, 16
    %v6133 = vpop.permute.xlu0 %6132
    %6134 = vrot.lane.b32.xlu0 %v6041, 16
    %v6135 = vpop.permute.xlu0 %6134
    %6136 = vrot.lane.b32.xlu0 %v6042, 16
    %v6137 = vpop.permute.xlu0 %6136
    %6138 = vrot.lane.b32.xlu0 %v6043, 16
    %v6139 = vpop.permute.xlu0 %6138
    %6140 = vrot.lane.b32.xlu0 %v6044, 16
    %v6141 = vpop.permute.xlu0 %6140
    %6142 = vrot.lane.b32.xlu0 %v6045, 16
    %v6143 = vpop.permute.xlu0 %6142
    %6144 = vrot.lane.b32.xlu0 %v6046, 16
    %v6145 = vpop.permute.xlu0 %6144
    %6146 = vrot.lane.b32.xlu0 %v6047, 16
    %v6147 = vpop.permute.xlu0 %6146
    %6148 = vrot.lane.b32.xlu0 %v6048, 16
    %v6149 = vpop.permute.xlu0 %6148
    %6150 = vrot.lane.b32.xlu0 %v6049, 16
    %v6151 = vpop.permute.xlu0 %6150
    %6152 = vrot.lane.b32.xlu0 %v6050, 16
    %v6153 = vpop.permute.xlu0 %6152
    %6154 = vrot.lane.b32.xlu0 %v6051, 16
    %v6155 = vpop.permute.xlu0 %6154
    %6156 = vrot.lane.b32.xlu0 %v6052, 16
    %v6157 = vpop.permute.xlu0 %6156
    %6158 = vrot.lane.b32.xlu0 %v6053, 16
    %v6159 = vpop.permute.xlu0 %6158
    %6160 = vrot.lane.b32.xlu0 %v6054, 16
    %v6161 = vpop.permute.xlu0 %6160
    %6162 = vrot.lane.b32.xlu0 %v6055, 16
    %v6163 = vpop.permute.xlu0 %6162
    %6164 = vrot.lane.b32.xlu0 %v6056, 16
    %v6165 = vpop.permute.xlu0 %6164
    %6166 = vrot.lane.b32.xlu0 %v6057, 16
    %v6167 = vpop.permute.xlu0 %6166
    %6168 = vrot.lane.b32.xlu0 %v6058, 16
    %v6169 = vpop.permute.xlu0 %6168
    %6170 = vrot.lane.b32.xlu0 %v6059, 16
    %v6171 = vpop.permute.xlu0 %6170
    %6172 = vrot.lane.b32.xlu0 %v6060, 16
    %v6173 = vpop.permute.xlu0 %6172
    %6174 = vrot.lane.b32.xlu0 %v6061, 16
    %v6175 = vpop.permute.xlu0 %6174
    %6176 = vrot.lane.b32.xlu0 %v6062, 16
    %v6177 = vpop.permute.xlu0 %6176
    %6178 = vrot.lane.b32.xlu0 %v6063, 16
    %v6179 = vpop.permute.xlu0 %6178
    %6180 = vrot.lane.b32.xlu0 %v6064, 16
    %v6181 = vpop.permute.xlu0 %6180
    %6182 = vrot.lane.b32.xlu0 %v6065, 16
    %v6183 = vpop.permute.xlu0 %6182
    %6184 = vrot.lane.b32.xlu0 %v6066, 16
    %v6185 = vpop.permute.xlu0 %6184
    %6186 = vrot.lane.b32.xlu0 %v6067, 16
    %v6187 = vpop.permute.xlu0 %6186
    %6188 = vrot.lane.b32.xlu0 %v6068, 16
    %v6189 = vpop.permute.xlu0 %6188
    %6190 = vrot.lane.b32.xlu0 %v6069, 16
    %v6191 = vpop.permute.xlu0 %6190
    %6192 = vrot.lane.b32.xlu0 %v6070, 16
    %v6193 = vpop.permute.xlu0 %6192
    %6194 = vrot.lane.b32.xlu0 %v6071, 16
    %v6195 = vpop.permute.xlu0 %6194
    %6196 = vrot.lane.b32.xlu0 %v6072, 16
    %v6197 = vpop.permute.xlu0 %6196
    %6198 = vrot.lane.b32.xlu0 %v6073, 16
    %v6199 = vpop.permute.xlu0 %6198
    %6200 = vrot.lane.b32.xlu0 %v6074, 16
    %v6201 = vpop.permute.xlu0 %6200
    %6202 = vrot.lane.b32.xlu0 %v6075, 16
    %v6203 = vpop.permute.xlu0 %6202
    %v6204 = vadd.f32 %v5820, %v6077
    %v6205 = vadd.f32 %v5821, %v6079
    %v6206 = vadd.f32 %v5822, %v6081
    %v6207 = vadd.f32 %v5823, %v6083
    %v6208 = vadd.f32 %v5824, %v6085
    %v6209 = vadd.f32 %v5825, %v6087
    %v6210 = vadd.f32 %v5826, %v6089
    %v6211 = vadd.f32 %v5827, %v6091
    %v6212 = vadd.f32 %v5828, %v6093
    %v6213 = vadd.f32 %v5829, %v6095
    %v6214 = vadd.f32 %v5830, %v6097
    %v6215 = vadd.f32 %v5831, %v6099
    %v6216 = vadd.f32 %v5832, %v6101
    %v6217 = vadd.f32 %v5833, %v6103
    %v6218 = vadd.f32 %v5834, %v6105
    %v6219 = vadd.f32 %v5835, %v6107
    %v6220 = vadd.f32 %v5836, %v6109
    %v6221 = vadd.f32 %v5837, %v6111
    %v6222 = vadd.f32 %v5838, %v6113
    %v6223 = vadd.f32 %v5839, %v6115
    %v6224 = vadd.f32 %v5840, %v6117
    %v6225 = vadd.f32 %v5841, %v6119
    %v6226 = vadd.f32 %v5842, %v6121
    %v6227 = vadd.f32 %v5843, %v6123
    %v6228 = vadd.f32 %v5844, %v6125
    %v6229 = vadd.f32 %v5845, %v6127
    %v6230 = vadd.f32 %v5846, %v6129
    %v6231 = vadd.f32 %v5847, %v6131
    %v6232 = vadd.f32 %v5848, %v6133
    %v6233 = vadd.f32 %v5849, %v6135
    %v6234 = vadd.f32 %v5850, %v6137
    %v6235 = vadd.f32 %v5851, %v6139
    %v6236 = vadd.f32 %v5852, %v6141
    %v6237 = vadd.f32 %v5853, %v6143
    %v6238 = vadd.f32 %v5854, %v6145
    %v6239 = vadd.f32 %v5855, %v6147
    %v6240 = vadd.f32 %v5856, %v6149
    %v6241 = vadd.f32 %v5857, %v6151
    %v6242 = vadd.f32 %v5858, %v6153
    %v6243 = vadd.f32 %v5859, %v6155
    %v6244 = vadd.f32 %v5860, %v6157
    %v6245 = vadd.f32 %v5861, %v6159
    %v6246 = vadd.f32 %v5862, %v6161
    %v6247 = vadd.f32 %v5863, %v6163
    %v6248 = vadd.f32 %v5864, %v6165
    %v6249 = vadd.f32 %v5865, %v6167
    %v6250 = vadd.f32 %v5866, %v6169
    %v6251 = vadd.f32 %v5867, %v6171
    %v6252 = vadd.f32 %v5868, %v6173
    %v6253 = vadd.f32 %v5869, %v6175
    %v6254 = vadd.f32 %v5870, %v6177
    %v6255 = vadd.f32 %v5871, %v6179
    %v6256 = vadd.f32 %v5872, %v6181
    %v6257 = vadd.f32 %v5873, %v6183
    %v6258 = vadd.f32 %v5874, %v6185
    %v6259 = vadd.f32 %v5875, %v6187
    %v6260 = vadd.f32 %v5876, %v6189
    %v6261 = vadd.f32 %v5877, %v6191
    %v6262 = vadd.f32 %v5878, %v6193
    %v6263 = vadd.f32 %v5879, %v6195
    %v6264 = vadd.f32 %v5880, %v6197
    %v6265 = vadd.f32 %v5881, %v6199
    %v6266 = vadd.f32 %v5882, %v6201
    %v6267 = vadd.f32 %v5883, %v6203
    %v6268 = vmul.f32 %v5563, %v1887
    %v6269 = vmul.f32 %v5562, %v1891
    %v6270 = vmul.f32 %v5561, %v1895
    %v6271 = vmul.f32 %v5560, %v1899
    %v6272 = vmul.f32 %v5559, %v1903
    %v6273 = vmul.f32 %v5558, %v1907
    %v6274 = vmul.f32 %v5557, %v1911
    %v6275 = vmul.f32 %v5556, %v1915
    %v6276 = vmul.f32 %v5555, %v1919
    %v6277 = vmul.f32 %v5554, %v1923
    %v6278 = vmul.f32 %v5553, %v1927
    %v6279 = vmul.f32 %v5552, %v1931
    %v6280 = vmul.f32 %v5551, %v1935
    %v6281 = vmul.f32 %v5550, %v1939
    %v6282 = vmul.f32 %v5549, %v1943
    %v6283 = vmul.f32 %v5548, %v1947
    %v6284 = vmul.f32 %v5547, %v1951
    %v6285 = vmul.f32 %v5546, %v1955
    %v6286 = vmul.f32 %v5545, %v1959
    %v6287 = vmul.f32 %v5544, %v1963
    %v6288 = vmul.f32 %v5543, %v1967
    %v6289 = vmul.f32 %v5542, %v1971
    %v6290 = vmul.f32 %v5541, %v1975
    %v6291 = vmul.f32 %v5540, %v1979
    %v6292 = vmul.f32 %v5539, %v1983
    %v6293 = vmul.f32 %v5538, %v1987
    %v6294 = vmul.f32 %v5537, %v1991
    %v6295 = vmul.f32 %v5536, %v1995
    %v6296 = vmul.f32 %v5535, %v1999
    %v6297 = vmul.f32 %v5534, %v2003
    %v6298 = vmul.f32 %v5533, %v2007
    %v6299 = vmul.f32 %v5532, %v2011
    %v6300 = vmul.f32 %v5531, %v2015
    %v6301 = vmul.f32 %v5530, %v2019
    %v6302 = vmul.f32 %v5529, %v2023
    %v6303 = vmul.f32 %v5528, %v2027
    %v6304 = vmul.f32 %v5527, %v2031
    %v6305 = vmul.f32 %v5526, %v2035
    %v6306 = vmul.f32 %v5525, %v2039
    %v6307 = vmul.f32 %v5524, %v2043
    %v6308 = vmul.f32 %v5523, %v2047
    %v6309 = vmul.f32 %v5522, %v2051
    %v6310 = vmul.f32 %v5521, %v2055
    %v6311 = vmul.f32 %v5520, %v2059
    %v6312 = vmul.f32 %v5519, %v2063
    %v6313 = vmul.f32 %v5518, %v2067
    %v6314 = vmul.f32 %v5517, %v2071
    %v6315 = vmul.f32 %v5516, %v2075
    %v6316 = vmul.f32 %v5515, %v2079
    %v6317 = vmul.f32 %v5514, %v2083
    %v6318 = vmul.f32 %v5513, %v2087
    %v6319 = vmul.f32 %v5512, %v2091
    %v6320 = vmul.f32 %v5511, %v2095
    %v6321 = vmul.f32 %v5510, %v2099
    %v6322 = vmul.f32 %v5509, %v2103
    %v6323 = vmul.f32 %v5508, %v2107
    %v6324 = vmul.f32 %v5507, %v2111
    %v6325 = vmul.f32 %v5506, %v2115
    %v6326 = vmul.f32 %v5505, %v2119
    %v6327 = vmul.f32 %v5504, %v2123
    %v6328 = vmul.f32 %v5503, %v2127
    %v6329 = vmul.f32 %v5502, %v2131
    %v6330 = vmul.f32 %v5501, %v2135
    %v6331 = vmul.f32 %v5500, %v2139
    %6332 = vrot.lane.b32.xlu0 %v6268, 24
    %v6333 = vpop.permute.xlu0 %6332
    %6334 = vrot.lane.b32.xlu0 %v6269, 24
    %v6335 = vpop.permute.xlu0 %6334
    %6336 = vrot.lane.b32.xlu0 %v6270, 24
    %v6337 = vpop.permute.xlu0 %6336
    %6338 = vrot.lane.b32.xlu0 %v6271, 24
    %v6339 = vpop.permute.xlu0 %6338
    %6340 = vrot.lane.b32.xlu0 %v6272, 24
    %v6341 = vpop.permute.xlu0 %6340
    %6342 = vrot.lane.b32.xlu0 %v6273, 24
    %v6343 = vpop.permute.xlu0 %6342
    %6344 = vrot.lane.b32.xlu0 %v6274, 24
    %v6345 = vpop.permute.xlu0 %6344
    %6346 = vrot.lane.b32.xlu0 %v6275, 24
    %v6347 = vpop.permute.xlu0 %6346
    %6348 = vrot.lane.b32.xlu0 %v6276, 24
    %v6349 = vpop.permute.xlu0 %6348
    %6350 = vrot.lane.b32.xlu0 %v6277, 24
    %v6351 = vpop.permute.xlu0 %6350
    %6352 = vrot.lane.b32.xlu0 %v6278, 24
    %v6353 = vpop.permute.xlu0 %6352
    %6354 = vrot.lane.b32.xlu0 %v6279, 24
    %v6355 = vpop.permute.xlu0 %6354
    %6356 = vrot.lane.b32.xlu0 %v6280, 24
    %v6357 = vpop.permute.xlu0 %6356
    %6358 = vrot.lane.b32.xlu0 %v6281, 24
    %v6359 = vpop.permute.xlu0 %6358
    %6360 = vrot.lane.b32.xlu0 %v6282, 24
    %v6361 = vpop.permute.xlu0 %6360
    %6362 = vrot.lane.b32.xlu0 %v6283, 24
    %v6363 = vpop.permute.xlu0 %6362
    %6364 = vrot.lane.b32.xlu0 %v6284, 24
    %v6365 = vpop.permute.xlu0 %6364
    %6366 = vrot.lane.b32.xlu0 %v6285, 24
    %v6367 = vpop.permute.xlu0 %6366
    %6368 = vrot.lane.b32.xlu0 %v6286, 24
    %v6369 = vpop.permute.xlu0 %6368
    %6370 = vrot.lane.b32.xlu0 %v6287, 24
    %v6371 = vpop.permute.xlu0 %6370
    %6372 = vrot.lane.b32.xlu0 %v6288, 24
    %v6373 = vpop.permute.xlu0 %6372
    %6374 = vrot.lane.b32.xlu0 %v6289, 24
    %v6375 = vpop.permute.xlu0 %6374
    %6376 = vrot.lane.b32.xlu0 %v6290, 24
    %v6377 = vpop.permute.xlu0 %6376
    %6378 = vrot.lane.b32.xlu0 %v6291, 24
    %v6379 = vpop.permute.xlu0 %6378
    %6380 = vrot.lane.b32.xlu0 %v6292, 24
    %v6381 = vpop.permute.xlu0 %6380
    %6382 = vrot.lane.b32.xlu0 %v6293, 24
    %v6383 = vpop.permute.xlu0 %6382
    %6384 = vrot.lane.b32.xlu0 %v6294, 24
    %v6385 = vpop.permute.xlu0 %6384
    %6386 = vrot.lane.b32.xlu0 %v6295, 24
    %v6387 = vpop.permute.xlu0 %6386
    %6388 = vrot.lane.b32.xlu0 %v6296, 24
    %v6389 = vpop.permute.xlu0 %6388
    %6390 = vrot.lane.b32.xlu0 %v6297, 24
    %v6391 = vpop.permute.xlu0 %6390
    %6392 = vrot.lane.b32.xlu0 %v6298, 24
    %v6393 = vpop.permute.xlu0 %6392
    %6394 = vrot.lane.b32.xlu0 %v6299, 24
    %v6395 = vpop.permute.xlu0 %6394
    %6396 = vrot.lane.b32.xlu0 %v6300, 24
    %v6397 = vpop.permute.xlu0 %6396
    %6398 = vrot.lane.b32.xlu0 %v6301, 24
    %v6399 = vpop.permute.xlu0 %6398
    %6400 = vrot.lane.b32.xlu0 %v6302, 24
    %v6401 = vpop.permute.xlu0 %6400
    %6402 = vrot.lane.b32.xlu0 %v6303, 24
    %v6403 = vpop.permute.xlu0 %6402
    %6404 = vrot.lane.b32.xlu0 %v6304, 24
    %v6405 = vpop.permute.xlu0 %6404
    %6406 = vrot.lane.b32.xlu0 %v6305, 24
    %v6407 = vpop.permute.xlu0 %6406
    %6408 = vrot.lane.b32.xlu0 %v6306, 24
    %v6409 = vpop.permute.xlu0 %6408
    %6410 = vrot.lane.b32.xlu0 %v6307, 24
    %v6411 = vpop.permute.xlu0 %6410
    %6412 = vrot.lane.b32.xlu0 %v6308, 24
    %v6413 = vpop.permute.xlu0 %6412
    %6414 = vrot.lane.b32.xlu0 %v6309, 24
    %v6415 = vpop.permute.xlu0 %6414
    %6416 = vrot.lane.b32.xlu0 %v6310, 24
    %v6417 = vpop.permute.xlu0 %6416
    %6418 = vrot.lane.b32.xlu0 %v6311, 24
    %v6419 = vpop.permute.xlu0 %6418
    %6420 = vrot.lane.b32.xlu0 %v6312, 24
    %v6421 = vpop.permute.xlu0 %6420
    %6422 = vrot.lane.b32.xlu0 %v6313, 24
    %v6423 = vpop.permute.xlu0 %6422
    %6424 = vrot.lane.b32.xlu0 %v6314, 24
    %v6425 = vpop.permute.xlu0 %6424
    %6426 = vrot.lane.b32.xlu0 %v6315, 24
    %v6427 = vpop.permute.xlu0 %6426
    %6428 = vrot.lane.b32.xlu0 %v6316, 24
    %v6429 = vpop.permute.xlu0 %6428
    %6430 = vrot.lane.b32.xlu0 %v6317, 24
    %v6431 = vpop.permute.xlu0 %6430
    %6432 = vrot.lane.b32.xlu0 %v6318, 24
    %v6433 = vpop.permute.xlu0 %6432
    %6434 = vrot.lane.b32.xlu0 %v6319, 24
    %v6435 = vpop.permute.xlu0 %6434
    %6436 = vrot.lane.b32.xlu0 %v6320, 24
    %v6437 = vpop.permute.xlu0 %6436
    %6438 = vrot.lane.b32.xlu0 %v6321, 24
    %v6439 = vpop.permute.xlu0 %6438
    %6440 = vrot.lane.b32.xlu0 %v6322, 24
    %v6441 = vpop.permute.xlu0 %6440
    %6442 = vrot.lane.b32.xlu0 %v6323, 24
    %v6443 = vpop.permute.xlu0 %6442
    %6444 = vrot.lane.b32.xlu0 %v6324, 24
    %v6445 = vpop.permute.xlu0 %6444
    %6446 = vrot.lane.b32.xlu0 %v6325, 24
    %v6447 = vpop.permute.xlu0 %6446
    %6448 = vrot.lane.b32.xlu0 %v6326, 24
    %v6449 = vpop.permute.xlu0 %6448
    %6450 = vrot.lane.b32.xlu0 %v6327, 24
    %v6451 = vpop.permute.xlu0 %6450
    %6452 = vrot.lane.b32.xlu0 %v6328, 24
    %v6453 = vpop.permute.xlu0 %6452
    %6454 = vrot.lane.b32.xlu0 %v6329, 24
    %v6455 = vpop.permute.xlu0 %6454
    %6456 = vrot.lane.b32.xlu0 %v6330, 24
    %v6457 = vpop.permute.xlu0 %6456
    %6458 = vrot.lane.b32.xlu0 %v6331, 24
    %v6459 = vpop.permute.xlu0 %6458
    %v6460 = vadd.f32 %v6204, %v6333
    %v6461 = vadd.f32 %v6205, %v6335
    %v6462 = vadd.f32 %v6206, %v6337
    %v6463 = vadd.f32 %v6207, %v6339
    %v6464 = vadd.f32 %v6208, %v6341
    %v6465 = vadd.f32 %v6209, %v6343
    %v6466 = vadd.f32 %v6210, %v6345
    %v6467 = vadd.f32 %v6211, %v6347
    %v6468 = vadd.f32 %v6212, %v6349
    %v6469 = vadd.f32 %v6213, %v6351
    %v6470 = vadd.f32 %v6214, %v6353
    %v6471 = vadd.f32 %v6215, %v6355
    %v6472 = vadd.f32 %v6216, %v6357
    %v6473 = vadd.f32 %v6217, %v6359
    %v6474 = vadd.f32 %v6218, %v6361
    %v6475 = vadd.f32 %v6219, %v6363
    %v6476 = vadd.f32 %v6220, %v6365
    %v6477 = vadd.f32 %v6221, %v6367
    %v6478 = vadd.f32 %v6222, %v6369
    %v6479 = vadd.f32 %v6223, %v6371
    %v6480 = vadd.f32 %v6224, %v6373
    %v6481 = vadd.f32 %v6225, %v6375
    %v6482 = vadd.f32 %v6226, %v6377
    %v6483 = vadd.f32 %v6227, %v6379
    %v6484 = vadd.f32 %v6228, %v6381
    %v6485 = vadd.f32 %v6229, %v6383
    %v6486 = vadd.f32 %v6230, %v6385
    %v6487 = vadd.f32 %v6231, %v6387
    %v6488 = vadd.f32 %v6232, %v6389
    %v6489 = vadd.f32 %v6233, %v6391
    %v6490 = vadd.f32 %v6234, %v6393
    %v6491 = vadd.f32 %v6235, %v6395
    %v6492 = vadd.f32 %v6236, %v6397
    %v6493 = vadd.f32 %v6237, %v6399
    %v6494 = vadd.f32 %v6238, %v6401
    %v6495 = vadd.f32 %v6239, %v6403
    %v6496 = vadd.f32 %v6240, %v6405
    %v6497 = vadd.f32 %v6241, %v6407
    %v6498 = vadd.f32 %v6242, %v6409
    %v6499 = vadd.f32 %v6243, %v6411
    %v6500 = vadd.f32 %v6244, %v6413
    %v6501 = vadd.f32 %v6245, %v6415
    %v6502 = vadd.f32 %v6246, %v6417
    %v6503 = vadd.f32 %v6247, %v6419
    %v6504 = vadd.f32 %v6248, %v6421
    %v6505 = vadd.f32 %v6249, %v6423
    %v6506 = vadd.f32 %v6250, %v6425
    %v6507 = vadd.f32 %v6251, %v6427
    %v6508 = vadd.f32 %v6252, %v6429
    %v6509 = vadd.f32 %v6253, %v6431
    %v6510 = vadd.f32 %v6254, %v6433
    %v6511 = vadd.f32 %v6255, %v6435
    %v6512 = vadd.f32 %v6256, %v6437
    %v6513 = vadd.f32 %v6257, %v6439
    %v6514 = vadd.f32 %v6258, %v6441
    %v6515 = vadd.f32 %v6259, %v6443
    %v6516 = vadd.f32 %v6260, %v6445
    %v6517 = vadd.f32 %v6261, %v6447
    %v6518 = vadd.f32 %v6262, %v6449
    %v6519 = vadd.f32 %v6263, %v6451
    %v6520 = vadd.f32 %v6264, %v6453
    %v6521 = vadd.f32 %v6265, %v6455
    %v6522 = vadd.f32 %v6266, %v6457
    %v6523 = vadd.f32 %v6267, %v6459
    %6524 = vrot.lane.b32.xlu0 %v5372, 32
    %v6525 = vpop.permute.xlu0 %6524
    %6526 = vrot.lane.b32.xlu0 %v5373, 32
    %v6527 = vpop.permute.xlu0 %6526
    %6528 = vrot.lane.b32.xlu0 %v5374, 32
    %v6529 = vpop.permute.xlu0 %6528
    %6530 = vrot.lane.b32.xlu0 %v5375, 32
    %v6531 = vpop.permute.xlu0 %6530
    %6532 = vrot.lane.b32.xlu0 %v5376, 32
    %v6533 = vpop.permute.xlu0 %6532
    %6534 = vrot.lane.b32.xlu0 %v5377, 32
    %v6535 = vpop.permute.xlu0 %6534
    %6536 = vrot.lane.b32.xlu0 %v5378, 32
    %v6537 = vpop.permute.xlu0 %6536
    %6538 = vrot.lane.b32.xlu0 %v5379, 32
    %v6539 = vpop.permute.xlu0 %6538
    %6540 = vrot.lane.b32.xlu0 %v5380, 32
    %v6541 = vpop.permute.xlu0 %6540
    %6542 = vrot.lane.b32.xlu0 %v5381, 32
    %v6543 = vpop.permute.xlu0 %6542
    %6544 = vrot.lane.b32.xlu0 %v5382, 32
    %v6545 = vpop.permute.xlu0 %6544
    %6546 = vrot.lane.b32.xlu0 %v5383, 32
    %v6547 = vpop.permute.xlu0 %6546
    %6548 = vrot.lane.b32.xlu0 %v5384, 32
    %v6549 = vpop.permute.xlu0 %6548
    %6550 = vrot.lane.b32.xlu0 %v5385, 32
    %v6551 = vpop.permute.xlu0 %6550
    %6552 = vrot.lane.b32.xlu0 %v5386, 32
    %v6553 = vpop.permute.xlu0 %6552
    %6554 = vrot.lane.b32.xlu0 %v5387, 32
    %v6555 = vpop.permute.xlu0 %6554
    %6556 = vrot.lane.b32.xlu0 %v5388, 32
    %v6557 = vpop.permute.xlu0 %6556
    %6558 = vrot.lane.b32.xlu0 %v5389, 32
    %v6559 = vpop.permute.xlu0 %6558
    %6560 = vrot.lane.b32.xlu0 %v5390, 32
    %v6561 = vpop.permute.xlu0 %6560
    %6562 = vrot.lane.b32.xlu0 %v5391, 32
    %v6563 = vpop.permute.xlu0 %6562
    %6564 = vrot.lane.b32.xlu0 %v5392, 32
    %v6565 = vpop.permute.xlu0 %6564
    %6566 = vrot.lane.b32.xlu0 %v5393, 32
    %v6567 = vpop.permute.xlu0 %6566
    %6568 = vrot.lane.b32.xlu0 %v5394, 32
    %v6569 = vpop.permute.xlu0 %6568
    %6570 = vrot.lane.b32.xlu0 %v5395, 32
    %v6571 = vpop.permute.xlu0 %6570
    %6572 = vrot.lane.b32.xlu0 %v5396, 32
    %v6573 = vpop.permute.xlu0 %6572
    %6574 = vrot.lane.b32.xlu0 %v5397, 32
    %v6575 = vpop.permute.xlu0 %6574
    %6576 = vrot.lane.b32.xlu0 %v5398, 32
    %v6577 = vpop.permute.xlu0 %6576
    %6578 = vrot.lane.b32.xlu0 %v5399, 32
    %v6579 = vpop.permute.xlu0 %6578
    %6580 = vrot.lane.b32.xlu0 %v5400, 32
    %v6581 = vpop.permute.xlu0 %6580
    %6582 = vrot.lane.b32.xlu0 %v5401, 32
    %v6583 = vpop.permute.xlu0 %6582
    %6584 = vrot.lane.b32.xlu0 %v5402, 32
    %v6585 = vpop.permute.xlu0 %6584
    %6586 = vrot.lane.b32.xlu0 %v5403, 32
    %v6587 = vpop.permute.xlu0 %6586
    %6588 = vrot.lane.b32.xlu0 %v5404, 32
    %v6589 = vpop.permute.xlu0 %6588
    %6590 = vrot.lane.b32.xlu0 %v5405, 32
    %v6591 = vpop.permute.xlu0 %6590
    %6592 = vrot.lane.b32.xlu0 %v5406, 32
    %v6593 = vpop.permute.xlu0 %6592
    %6594 = vrot.lane.b32.xlu0 %v5407, 32
    %v6595 = vpop.permute.xlu0 %6594
    %6596 = vrot.lane.b32.xlu0 %v5408, 32
    %v6597 = vpop.permute.xlu0 %6596
    %6598 = vrot.lane.b32.xlu0 %v5409, 32
    %v6599 = vpop.permute.xlu0 %6598
    %6600 = vrot.lane.b32.xlu0 %v5410, 32
    %v6601 = vpop.permute.xlu0 %6600
    %6602 = vrot.lane.b32.xlu0 %v5411, 32
    %v6603 = vpop.permute.xlu0 %6602
    %6604 = vrot.lane.b32.xlu0 %v5412, 32
    %v6605 = vpop.permute.xlu0 %6604
    %6606 = vrot.lane.b32.xlu0 %v5413, 32
    %v6607 = vpop.permute.xlu0 %6606
    %6608 = vrot.lane.b32.xlu0 %v5414, 32
    %v6609 = vpop.permute.xlu0 %6608
    %6610 = vrot.lane.b32.xlu0 %v5415, 32
    %v6611 = vpop.permute.xlu0 %6610
    %6612 = vrot.lane.b32.xlu0 %v5416, 32
    %v6613 = vpop.permute.xlu0 %6612
    %6614 = vrot.lane.b32.xlu0 %v5417, 32
    %v6615 = vpop.permute.xlu0 %6614
    %6616 = vrot.lane.b32.xlu0 %v5418, 32
    %v6617 = vpop.permute.xlu0 %6616
    %6618 = vrot.lane.b32.xlu0 %v5419, 32
    %v6619 = vpop.permute.xlu0 %6618
    %6620 = vrot.lane.b32.xlu0 %v5420, 32
    %v6621 = vpop.permute.xlu0 %6620
    %6622 = vrot.lane.b32.xlu0 %v5421, 32
    %v6623 = vpop.permute.xlu0 %6622
    %6624 = vrot.lane.b32.xlu0 %v5422, 32
    %v6625 = vpop.permute.xlu0 %6624
    %6626 = vrot.lane.b32.xlu0 %v5423, 32
    %v6627 = vpop.permute.xlu0 %6626
    %6628 = vrot.lane.b32.xlu0 %v5424, 32
    %v6629 = vpop.permute.xlu0 %6628
    %6630 = vrot.lane.b32.xlu0 %v5425, 32
    %v6631 = vpop.permute.xlu0 %6630
    %6632 = vrot.lane.b32.xlu0 %v5426, 32
    %v6633 = vpop.permute.xlu0 %6632
    %6634 = vrot.lane.b32.xlu0 %v5427, 32
    %v6635 = vpop.permute.xlu0 %6634
    %6636 = vrot.lane.b32.xlu0 %v5428, 32
    %v6637 = vpop.permute.xlu0 %6636
    %6638 = vrot.lane.b32.xlu0 %v5429, 32
    %v6639 = vpop.permute.xlu0 %6638
    %6640 = vrot.lane.b32.xlu0 %v5430, 32
    %v6641 = vpop.permute.xlu0 %6640
    %6642 = vrot.lane.b32.xlu0 %v5431, 32
    %v6643 = vpop.permute.xlu0 %6642
    %6644 = vrot.lane.b32.xlu0 %v5432, 32
    %v6645 = vpop.permute.xlu0 %6644
    %6646 = vrot.lane.b32.xlu0 %v5433, 32
    %v6647 = vpop.permute.xlu0 %6646
    %6648 = vrot.lane.b32.xlu0 %v5434, 32
    %v6649 = vpop.permute.xlu0 %6648
    %6650 = vrot.lane.b32.xlu0 %v5435, 32
    %v6651 = vpop.permute.xlu0 %6650
    %v6652 = vadd.f32 %v6460, %v6525
    %v6653 = vadd.f32 %v6461, %v6527
    %v6654 = vadd.f32 %v6462, %v6529
    %v6655 = vadd.f32 %v6463, %v6531
    %v6656 = vadd.f32 %v6464, %v6533
    %v6657 = vadd.f32 %v6465, %v6535
    %v6658 = vadd.f32 %v6466, %v6537
    %v6659 = vadd.f32 %v6467, %v6539
    %v6660 = vadd.f32 %v6468, %v6541
    %v6661 = vadd.f32 %v6469, %v6543
    %v6662 = vadd.f32 %v6470, %v6545
    %v6663 = vadd.f32 %v6471, %v6547
    %v6664 = vadd.f32 %v6472, %v6549
    %v6665 = vadd.f32 %v6473, %v6551
    %v6666 = vadd.f32 %v6474, %v6553
    %v6667 = vadd.f32 %v6475, %v6555
    %v6668 = vadd.f32 %v6476, %v6557
    %v6669 = vadd.f32 %v6477, %v6559
    %v6670 = vadd.f32 %v6478, %v6561
    %v6671 = vadd.f32 %v6479, %v6563
    %v6672 = vadd.f32 %v6480, %v6565
    %v6673 = vadd.f32 %v6481, %v6567
    %v6674 = vadd.f32 %v6482, %v6569
    %v6675 = vadd.f32 %v6483, %v6571
    %v6676 = vadd.f32 %v6484, %v6573
    %v6677 = vadd.f32 %v6485, %v6575
    %v6678 = vadd.f32 %v6486, %v6577
    %v6679 = vadd.f32 %v6487, %v6579
    %v6680 = vadd.f32 %v6488, %v6581
    %v6681 = vadd.f32 %v6489, %v6583
    %v6682 = vadd.f32 %v6490, %v6585
    %v6683 = vadd.f32 %v6491, %v6587
    %v6684 = vadd.f32 %v6492, %v6589
    %v6685 = vadd.f32 %v6493, %v6591
    %v6686 = vadd.f32 %v6494, %v6593
    %v6687 = vadd.f32 %v6495, %v6595
    %v6688 = vadd.f32 %v6496, %v6597
    %v6689 = vadd.f32 %v6497, %v6599
    %v6690 = vadd.f32 %v6498, %v6601
    %v6691 = vadd.f32 %v6499, %v6603
    %v6692 = vadd.f32 %v6500, %v6605
    %v6693 = vadd.f32 %v6501, %v6607
    %v6694 = vadd.f32 %v6502, %v6609
    %v6695 = vadd.f32 %v6503, %v6611
    %v6696 = vadd.f32 %v6504, %v6613
    %v6697 = vadd.f32 %v6505, %v6615
    %v6698 = vadd.f32 %v6506, %v6617
    %v6699 = vadd.f32 %v6507, %v6619
    %v6700 = vadd.f32 %v6508, %v6621
    %v6701 = vadd.f32 %v6509, %v6623
    %v6702 = vadd.f32 %v6510, %v6625
    %v6703 = vadd.f32 %v6511, %v6627
    %v6704 = vadd.f32 %v6512, %v6629
    %v6705 = vadd.f32 %v6513, %v6631
    %v6706 = vadd.f32 %v6514, %v6633
    %v6707 = vadd.f32 %v6515, %v6635
    %v6708 = vadd.f32 %v6516, %v6637
    %v6709 = vadd.f32 %v6517, %v6639
    %v6710 = vadd.f32 %v6518, %v6641
    %v6711 = vadd.f32 %v6519, %v6643
    %v6712 = vadd.f32 %v6520, %v6645
    %v6713 = vadd.f32 %v6521, %v6647
    %v6714 = vadd.f32 %v6522, %v6649
    %v6715 = vadd.f32 %v6523, %v6651
    %v6716 = vmul.f32 %v6010, %v2591
    %v6717 = vmul.f32 %v6009, %v2595
    %v6718 = vmul.f32 %v6008, %v2599
    %v6719 = vmul.f32 %v6007, %v2603
    %v6720 = vmul.f32 %v6006, %v2607
    %v6721 = vmul.f32 %v6005, %v2611
    %v6722 = vmul.f32 %v6004, %v2615
    %v6723 = vmul.f32 %v6003, %v2619
    %v6724 = vmul.f32 %v6002, %v2623
    %v6725 = vmul.f32 %v6001, %v2627
    %v6726 = vmul.f32 %v6000, %v2631
    %v6727 = vmul.f32 %v5999, %v2635
    %v6728 = vmul.f32 %v5998, %v2639
    %v6729 = vmul.f32 %v5997, %v2643
    %v6730 = vmul.f32 %v5996, %v2647
    %v6731 = vmul.f32 %v5995, %v2651
    %v6732 = vmul.f32 %v5994, %v2655
    %v6733 = vmul.f32 %v5993, %v2659
    %v6734 = vmul.f32 %v5992, %v2663
    %v6735 = vmul.f32 %v5991, %v2667
    %v6736 = vmul.f32 %v5990, %v2671
    %v6737 = vmul.f32 %v5989, %v2675
    %v6738 = vmul.f32 %v5988, %v2679
    %v6739 = vmul.f32 %v5987, %v2683
    %v6740 = vmul.f32 %v5986, %v2687
    %v6741 = vmul.f32 %v5985, %v2691
    %v6742 = vmul.f32 %v5984, %v2695
    %v6743 = vmul.f32 %v5983, %v2699
    %v6744 = vmul.f32 %v5982, %v2703
    %v6745 = vmul.f32 %v5981, %v2707
    %v6746 = vmul.f32 %v5980, %v2711
    %v6747 = vmul.f32 %v5979, %v2715
    %v6748 = vmul.f32 %v5978, %v2719
    %v6749 = vmul.f32 %v5977, %v2723
    %v6750 = vmul.f32 %v5976, %v2727
    %v6751 = vmul.f32 %v5975, %v2731
    %v6752 = vmul.f32 %v5974, %v2735
    %v6753 = vmul.f32 %v5973, %v2739
    %v6754 = vmul.f32 %v5972, %v2743
    %v6755 = vmul.f32 %v5971, %v2747
    %v6756 = vmul.f32 %v5970, %v2751
    %v6757 = vmul.f32 %v5969, %v2755
    %v6758 = vmul.f32 %v5968, %v2759
    %v6759 = vmul.f32 %v5967, %v2763
    %v6760 = vmul.f32 %v5966, %v2767
    %v6761 = vmul.f32 %v5965, %v2771
    %v6762 = vmul.f32 %v5964, %v2775
    %v6763 = vmul.f32 %v5963, %v2779
    %v6764 = vmul.f32 %v5962, %v2783
    %v6765 = vmul.f32 %v5961, %v2787
    %v6766 = vmul.f32 %v5960, %v2791
    %v6767 = vmul.f32 %v5959, %v2795
    %v6768 = vmul.f32 %v5958, %v2799
    %v6769 = vmul.f32 %v5957, %v2803
    %v6770 = vmul.f32 %v5956, %v2807
    %v6771 = vmul.f32 %v5955, %v2811
    %v6772 = vmul.f32 %v5954, %v2815
    %v6773 = vmul.f32 %v5953, %v2819
    %v6774 = vmul.f32 %v5952, %v2823
    %v6775 = vmul.f32 %v5951, %v2827
    %v6776 = vmul.f32 %v5950, %v2831
    %v6777 = vmul.f32 %v5949, %v2835
    %v6778 = vmul.f32 %v5948, %v2839
    %v6779 = vmul.f32 %v6011, %v2843
    %6780 = vrot.lane.b32.xlu0 %v6716, 40
    %v6781 = vpop.permute.xlu0 %6780
    %6782 = vrot.lane.b32.xlu0 %v6717, 40
    %v6783 = vpop.permute.xlu0 %6782
    %6784 = vrot.lane.b32.xlu0 %v6718, 40
    %v6785 = vpop.permute.xlu0 %6784
    %6786 = vrot.lane.b32.xlu0 %v6719, 40
    %v6787 = vpop.permute.xlu0 %6786
    %6788 = vrot.lane.b32.xlu0 %v6720, 40
    %v6789 = vpop.permute.xlu0 %6788
    %6790 = vrot.lane.b32.xlu0 %v6721, 40
    %v6791 = vpop.permute.xlu0 %6790
    %6792 = vrot.lane.b32.xlu0 %v6722, 40
    %v6793 = vpop.permute.xlu0 %6792
    %6794 = vrot.lane.b32.xlu0 %v6723, 40
    %v6795 = vpop.permute.xlu0 %6794
    %6796 = vrot.lane.b32.xlu0 %v6724, 40
    %v6797 = vpop.permute.xlu0 %6796
    %6798 = vrot.lane.b32.xlu0 %v6725, 40
    %v6799 = vpop.permute.xlu0 %6798
    %6800 = vrot.lane.b32.xlu0 %v6726, 40
    %v6801 = vpop.permute.xlu0 %6800
    %6802 = vrot.lane.b32.xlu0 %v6727, 40
    %v6803 = vpop.permute.xlu0 %6802
    %6804 = vrot.lane.b32.xlu0 %v6728, 40
    %v6805 = vpop.permute.xlu0 %6804
    %6806 = vrot.lane.b32.xlu0 %v6729, 40
    %v6807 = vpop.permute.xlu0 %6806
    %6808 = vrot.lane.b32.xlu0 %v6730, 40
    %v6809 = vpop.permute.xlu0 %6808
    %6810 = vrot.lane.b32.xlu0 %v6731, 40
    %v6811 = vpop.permute.xlu0 %6810
    %6812 = vrot.lane.b32.xlu0 %v6732, 40
    %v6813 = vpop.permute.xlu0 %6812
    %6814 = vrot.lane.b32.xlu0 %v6733, 40
    %v6815 = vpop.permute.xlu0 %6814
    %6816 = vrot.lane.b32.xlu0 %v6734, 40
    %v6817 = vpop.permute.xlu0 %6816
    %6818 = vrot.lane.b32.xlu0 %v6735, 40
    %v6819 = vpop.permute.xlu0 %6818
    %6820 = vrot.lane.b32.xlu0 %v6736, 40
    %v6821 = vpop.permute.xlu0 %6820
    %6822 = vrot.lane.b32.xlu0 %v6737, 40
    %v6823 = vpop.permute.xlu0 %6822
    %6824 = vrot.lane.b32.xlu0 %v6738, 40
    %v6825 = vpop.permute.xlu0 %6824
    %6826 = vrot.lane.b32.xlu0 %v6739, 40
    %v6827 = vpop.permute.xlu0 %6826
    %6828 = vrot.lane.b32.xlu0 %v6740, 40
    %v6829 = vpop.permute.xlu0 %6828
    %6830 = vrot.lane.b32.xlu0 %v6741, 40
    %v6831 = vpop.permute.xlu0 %6830
    %6832 = vrot.lane.b32.xlu0 %v6742, 40
    %v6833 = vpop.permute.xlu0 %6832
    %6834 = vrot.lane.b32.xlu0 %v6743, 40
    %v6835 = vpop.permute.xlu0 %6834
    %6836 = vrot.lane.b32.xlu0 %v6744, 40
    %v6837 = vpop.permute.xlu0 %6836
    %6838 = vrot.lane.b32.xlu0 %v6745, 40
    %v6839 = vpop.permute.xlu0 %6838
    %6840 = vrot.lane.b32.xlu0 %v6746, 40
    %v6841 = vpop.permute.xlu0 %6840
    %6842 = vrot.lane.b32.xlu0 %v6747, 40
    %v6843 = vpop.permute.xlu0 %6842
    %6844 = vrot.lane.b32.xlu0 %v6748, 40
    %v6845 = vpop.permute.xlu0 %6844
    %6846 = vrot.lane.b32.xlu0 %v6749, 40
    %v6847 = vpop.permute.xlu0 %6846
    %6848 = vrot.lane.b32.xlu0 %v6750, 40
    %v6849 = vpop.permute.xlu0 %6848
    %6850 = vrot.lane.b32.xlu0 %v6751, 40
    %v6851 = vpop.permute.xlu0 %6850
    %6852 = vrot.lane.b32.xlu0 %v6752, 40
    %v6853 = vpop.permute.xlu0 %6852
    %6854 = vrot.lane.b32.xlu0 %v6753, 40
    %v6855 = vpop.permute.xlu0 %6854
    %6856 = vrot.lane.b32.xlu0 %v6754, 40
    %v6857 = vpop.permute.xlu0 %6856
    %6858 = vrot.lane.b32.xlu0 %v6755, 40
    %v6859 = vpop.permute.xlu0 %6858
    %6860 = vrot.lane.b32.xlu0 %v6756, 40
    %v6861 = vpop.permute.xlu0 %6860
    %6862 = vrot.lane.b32.xlu0 %v6757, 40
    %v6863 = vpop.permute.xlu0 %6862
    %6864 = vrot.lane.b32.xlu0 %v6758, 40
    %v6865 = vpop.permute.xlu0 %6864
    %6866 = vrot.lane.b32.xlu0 %v6759, 40
    %v6867 = vpop.permute.xlu0 %6866
    %6868 = vrot.lane.b32.xlu0 %v6760, 40
    %v6869 = vpop.permute.xlu0 %6868
    %6870 = vrot.lane.b32.xlu0 %v6761, 40
    %v6871 = vpop.permute.xlu0 %6870
    %6872 = vrot.lane.b32.xlu0 %v6762, 40
    %v6873 = vpop.permute.xlu0 %6872
    %6874 = vrot.lane.b32.xlu0 %v6763, 40
    %v6875 = vpop.permute.xlu0 %6874
    %6876 = vrot.lane.b32.xlu0 %v6764, 40
    %v6877 = vpop.permute.xlu0 %6876
    %6878 = vrot.lane.b32.xlu0 %v6765, 40
    %v6879 = vpop.permute.xlu0 %6878
    %6880 = vrot.lane.b32.xlu0 %v6766, 40
    %v6881 = vpop.permute.xlu0 %6880
    %6882 = vrot.lane.b32.xlu0 %v6767, 40
    %v6883 = vpop.permute.xlu0 %6882
    %6884 = vrot.lane.b32.xlu0 %v6768, 40
    %v6885 = vpop.permute.xlu0 %6884
    %6886 = vrot.lane.b32.xlu0 %v6769, 40
    %v6887 = vpop.permute.xlu0 %6886
    %6888 = vrot.lane.b32.xlu0 %v6770, 40
    %v6889 = vpop.permute.xlu0 %6888
    %6890 = vrot.lane.b32.xlu0 %v6771, 40
    %v6891 = vpop.permute.xlu0 %6890
    %6892 = vrot.lane.b32.xlu0 %v6772, 40
    %v6893 = vpop.permute.xlu0 %6892
    %6894 = vrot.lane.b32.xlu0 %v6773, 40
    %v6895 = vpop.permute.xlu0 %6894
    %6896 = vrot.lane.b32.xlu0 %v6774, 40
    %v6897 = vpop.permute.xlu0 %6896
    %6898 = vrot.lane.b32.xlu0 %v6775, 40
    %v6899 = vpop.permute.xlu0 %6898
    %6900 = vrot.lane.b32.xlu0 %v6776, 40
    %v6901 = vpop.permute.xlu0 %6900
    %6902 = vrot.lane.b32.xlu0 %v6777, 40
    %v6903 = vpop.permute.xlu0 %6902
    %6904 = vrot.lane.b32.xlu0 %v6778, 40
    %v6905 = vpop.permute.xlu0 %6904
    %6906 = vrot.lane.b32.xlu0 %v6779, 40
    %v6907 = vpop.permute.xlu0 %6906
    %v6908 = vadd.f32 %v6652, %v6781
    %v6909 = vadd.f32 %v6653, %v6783
    %v6910 = vadd.f32 %v6654, %v6785
    %v6911 = vadd.f32 %v6655, %v6787
    %v6912 = vadd.f32 %v6656, %v6789
    %v6913 = vadd.f32 %v6657, %v6791
    %v6914 = vadd.f32 %v6658, %v6793
    %v6915 = vadd.f32 %v6659, %v6795
    %v6916 = vadd.f32 %v6660, %v6797
    %v6917 = vadd.f32 %v6661, %v6799
    %v6918 = vadd.f32 %v6662, %v6801
    %v6919 = vadd.f32 %v6663, %v6803
    %v6920 = vadd.f32 %v6664, %v6805
    %v6921 = vadd.f32 %v6665, %v6807
    %v6922 = vadd.f32 %v6666, %v6809
    %v6923 = vadd.f32 %v6667, %v6811
    %v6924 = vadd.f32 %v6668, %v6813
    %v6925 = vadd.f32 %v6669, %v6815
    %v6926 = vadd.f32 %v6670, %v6817
    %v6927 = vadd.f32 %v6671, %v6819
    %v6928 = vadd.f32 %v6672, %v6821
    %v6929 = vadd.f32 %v6673, %v6823
    %v6930 = vadd.f32 %v6674, %v6825
    %v6931 = vadd.f32 %v6675, %v6827
    %v6932 = vadd.f32 %v6676, %v6829
    %v6933 = vadd.f32 %v6677, %v6831
    %v6934 = vadd.f32 %v6678, %v6833
    %v6935 = vadd.f32 %v6679, %v6835
    %v6936 = vadd.f32 %v6680, %v6837
    %v6937 = vadd.f32 %v6681, %v6839
    %v6938 = vadd.f32 %v6682, %v6841
    %v6939 = vadd.f32 %v6683, %v6843
    %v6940 = vadd.f32 %v6684, %v6845
    %v6941 = vadd.f32 %v6685, %v6847
    %v6942 = vadd.f32 %v6686, %v6849
    %v6943 = vadd.f32 %v6687, %v6851
    %v6944 = vadd.f32 %v6688, %v6853
    %v6945 = vadd.f32 %v6689, %v6855
    %v6946 = vadd.f32 %v6690, %v6857
    %v6947 = vadd.f32 %v6691, %v6859
    %v6948 = vadd.f32 %v6692, %v6861
    %v6949 = vadd.f32 %v6693, %v6863
    %v6950 = vadd.f32 %v6694, %v6865
    %v6951 = vadd.f32 %v6695, %v6867
    %v6952 = vadd.f32 %v6696, %v6869
    %v6953 = vadd.f32 %v6697, %v6871
    %v6954 = vadd.f32 %v6698, %v6873
    %v6955 = vadd.f32 %v6699, %v6875
    %v6956 = vadd.f32 %v6700, %v6877
    %v6957 = vadd.f32 %v6701, %v6879
    %v6958 = vadd.f32 %v6702, %v6881
    %v6959 = vadd.f32 %v6703, %v6883
    %v6960 = vadd.f32 %v6704, %v6885
    %v6961 = vadd.f32 %v6705, %v6887
    %v6962 = vadd.f32 %v6706, %v6889
    %v6963 = vadd.f32 %v6707, %v6891
    %v6964 = vadd.f32 %v6708, %v6893
    %v6965 = vadd.f32 %v6709, %v6895
    %v6966 = vadd.f32 %v6710, %v6897
    %v6967 = vadd.f32 %v6711, %v6899
    %v6968 = vadd.f32 %v6712, %v6901
    %v6969 = vadd.f32 %v6713, %v6903
    %v6970 = vadd.f32 %v6714, %v6905
    %v6971 = vadd.f32 %v6715, %v6907
    %v6972 = vmul.f32 %v5561, %v3103
    %v6973 = vmul.f32 %v5560, %v3107
    %v6974 = vmul.f32 %v5559, %v3111
    %v6975 = vmul.f32 %v5558, %v3115
    %v6976 = vmul.f32 %v5557, %v3119
    %v6977 = vmul.f32 %v5556, %v3123
    %v6978 = vmul.f32 %v5555, %v3127
    %v6979 = vmul.f32 %v5554, %v3131
    %v6980 = vmul.f32 %v5553, %v3135
    %v6981 = vmul.f32 %v5552, %v3139
    %v6982 = vmul.f32 %v5551, %v3143
    %v6983 = vmul.f32 %v5550, %v3147
    %v6984 = vmul.f32 %v5549, %v3151
    %v6985 = vmul.f32 %v5548, %v3155
    %v6986 = vmul.f32 %v5547, %v3159
    %v6987 = vmul.f32 %v5546, %v3163
    %v6988 = vmul.f32 %v5545, %v3167
    %v6989 = vmul.f32 %v5544, %v3171
    %v6990 = vmul.f32 %v5543, %v3175
    %v6991 = vmul.f32 %v5542, %v3179
    %v6992 = vmul.f32 %v5541, %v3183
    %v6993 = vmul.f32 %v5540, %v3187
    %v6994 = vmul.f32 %v5539, %v3191
    %v6995 = vmul.f32 %v5538, %v3195
    %v6996 = vmul.f32 %v5537, %v3199
    %v6997 = vmul.f32 %v5536, %v3203
    %v6998 = vmul.f32 %v5535, %v3207
    %v6999 = vmul.f32 %v5534, %v3211
    %v7000 = vmul.f32 %v5533, %v3215
    %v7001 = vmul.f32 %v5532, %v3219
    %v7002 = vmul.f32 %v5531, %v3223
    %v7003 = vmul.f32 %v5530, %v3227
    %v7004 = vmul.f32 %v5529, %v3231
    %v7005 = vmul.f32 %v5528, %v3235
    %v7006 = vmul.f32 %v5527, %v3239
    %v7007 = vmul.f32 %v5526, %v3243
    %v7008 = vmul.f32 %v5525, %v3247
    %v7009 = vmul.f32 %v5524, %v3251
    %v7010 = vmul.f32 %v5523, %v3255
    %v7011 = vmul.f32 %v5522, %v3259
    %v7012 = vmul.f32 %v5521, %v3263
    %v7013 = vmul.f32 %v5520, %v3267
    %v7014 = vmul.f32 %v5519, %v3271
    %v7015 = vmul.f32 %v5518, %v3275
    %v7016 = vmul.f32 %v5517, %v3279
    %v7017 = vmul.f32 %v5516, %v3283
    %v7018 = vmul.f32 %v5515, %v3287
    %v7019 = vmul.f32 %v5514, %v3291
    %v7020 = vmul.f32 %v5513, %v3295
    %v7021 = vmul.f32 %v5512, %v3299
    %v7022 = vmul.f32 %v5511, %v3303
    %v7023 = vmul.f32 %v5510, %v3307
    %v7024 = vmul.f32 %v5509, %v3311
    %v7025 = vmul.f32 %v5508, %v3315
    %v7026 = vmul.f32 %v5507, %v3319
    %v7027 = vmul.f32 %v5506, %v3323
    %v7028 = vmul.f32 %v5505, %v3327
    %v7029 = vmul.f32 %v5504, %v3331
    %v7030 = vmul.f32 %v5503, %v3335
    %v7031 = vmul.f32 %v5502, %v3339
    %v7032 = vmul.f32 %v5501, %v3343
    %v7033 = vmul.f32 %v5500, %v3347
    %v7034 = vmul.f32 %v5563, %v3351
    %v7035 = vmul.f32 %v5562, %v3355
    %7036 = vrot.lane.b32.xlu0 %v6972, 48
    %v7037 = vpop.permute.xlu0 %7036
    %7038 = vrot.lane.b32.xlu0 %v6973, 48
    %v7039 = vpop.permute.xlu0 %7038
    %7040 = vrot.lane.b32.xlu0 %v6974, 48
    %v7041 = vpop.permute.xlu0 %7040
    %7042 = vrot.lane.b32.xlu0 %v6975, 48
    %v7043 = vpop.permute.xlu0 %7042
    %7044 = vrot.lane.b32.xlu0 %v6976, 48
    %v7045 = vpop.permute.xlu0 %7044
    %7046 = vrot.lane.b32.xlu0 %v6977, 48
    %v7047 = vpop.permute.xlu0 %7046
    %7048 = vrot.lane.b32.xlu0 %v6978, 48
    %v7049 = vpop.permute.xlu0 %7048
    %7050 = vrot.lane.b32.xlu0 %v6979, 48
    %v7051 = vpop.permute.xlu0 %7050
    %7052 = vrot.lane.b32.xlu0 %v6980, 48
    %v7053 = vpop.permute.xlu0 %7052
    %7054 = vrot.lane.b32.xlu0 %v6981, 48
    %v7055 = vpop.permute.xlu0 %7054
    %7056 = vrot.lane.b32.xlu0 %v6982, 48
    %v7057 = vpop.permute.xlu0 %7056
    %7058 = vrot.lane.b32.xlu0 %v6983, 48
    %v7059 = vpop.permute.xlu0 %7058
    %7060 = vrot.lane.b32.xlu0 %v6984, 48
    %v7061 = vpop.permute.xlu0 %7060
    %7062 = vrot.lane.b32.xlu0 %v6985, 48
    %v7063 = vpop.permute.xlu0 %7062
    %7064 = vrot.lane.b32.xlu0 %v6986, 48
    %v7065 = vpop.permute.xlu0 %7064
    %7066 = vrot.lane.b32.xlu0 %v6987, 48
    %v7067 = vpop.permute.xlu0 %7066
    %7068 = vrot.lane.b32.xlu0 %v6988, 48
    %v7069 = vpop.permute.xlu0 %7068
    %7070 = vrot.lane.b32.xlu0 %v6989, 48
    %v7071 = vpop.permute.xlu0 %7070
    %7072 = vrot.lane.b32.xlu0 %v6990, 48
    %v7073 = vpop.permute.xlu0 %7072
    %7074 = vrot.lane.b32.xlu0 %v6991, 48
    %v7075 = vpop.permute.xlu0 %7074
    %7076 = vrot.lane.b32.xlu0 %v6992, 48
    %v7077 = vpop.permute.xlu0 %7076
    %7078 = vrot.lane.b32.xlu0 %v6993, 48
    %v7079 = vpop.permute.xlu0 %7078
    %7080 = vrot.lane.b32.xlu0 %v6994, 48
    %v7081 = vpop.permute.xlu0 %7080
    %7082 = vrot.lane.b32.xlu0 %v6995, 48
    %v7083 = vpop.permute.xlu0 %7082
    %7084 = vrot.lane.b32.xlu0 %v6996, 48
    %v7085 = vpop.permute.xlu0 %7084
    %7086 = vrot.lane.b32.xlu0 %v6997, 48
    %v7087 = vpop.permute.xlu0 %7086
    %7088 = vrot.lane.b32.xlu0 %v6998, 48
    %v7089 = vpop.permute.xlu0 %7088
    %7090 = vrot.lane.b32.xlu0 %v6999, 48
    %v7091 = vpop.permute.xlu0 %7090
    %7092 = vrot.lane.b32.xlu0 %v7000, 48
    %v7093 = vpop.permute.xlu0 %7092
    %7094 = vrot.lane.b32.xlu0 %v7001, 48
    %v7095 = vpop.permute.xlu0 %7094
    %7096 = vrot.lane.b32.xlu0 %v7002, 48
    %v7097 = vpop.permute.xlu0 %7096
    %7098 = vrot.lane.b32.xlu0 %v7003, 48
    %v7099 = vpop.permute.xlu0 %7098
    %7100 = vrot.lane.b32.xlu0 %v7004, 48
    %v7101 = vpop.permute.xlu0 %7100
    %7102 = vrot.lane.b32.xlu0 %v7005, 48
    %v7103 = vpop.permute.xlu0 %7102
    %7104 = vrot.lane.b32.xlu0 %v7006, 48
    %v7105 = vpop.permute.xlu0 %7104
    %7106 = vrot.lane.b32.xlu0 %v7007, 48
    %v7107 = vpop.permute.xlu0 %7106
    %7108 = vrot.lane.b32.xlu0 %v7008, 48
    %v7109 = vpop.permute.xlu0 %7108
    %7110 = vrot.lane.b32.xlu0 %v7009, 48
    %v7111 = vpop.permute.xlu0 %7110
    %7112 = vrot.lane.b32.xlu0 %v7010, 48
    %v7113 = vpop.permute.xlu0 %7112
    %7114 = vrot.lane.b32.xlu0 %v7011, 48
    %v7115 = vpop.permute.xlu0 %7114
    %7116 = vrot.lane.b32.xlu0 %v7012, 48
    %v7117 = vpop.permute.xlu0 %7116
    %7118 = vrot.lane.b32.xlu0 %v7013, 48
    %v7119 = vpop.permute.xlu0 %7118
    %7120 = vrot.lane.b32.xlu0 %v7014, 48
    %v7121 = vpop.permute.xlu0 %7120
    %7122 = vrot.lane.b32.xlu0 %v7015, 48
    %v7123 = vpop.permute.xlu0 %7122
    %7124 = vrot.lane.b32.xlu0 %v7016, 48
    %v7125 = vpop.permute.xlu0 %7124
    %7126 = vrot.lane.b32.xlu0 %v7017, 48
    %v7127 = vpop.permute.xlu0 %7126
    %7128 = vrot.lane.b32.xlu0 %v7018, 48
    %v7129 = vpop.permute.xlu0 %7128
    %7130 = vrot.lane.b32.xlu0 %v7019, 48
    %v7131 = vpop.permute.xlu0 %7130
    %7132 = vrot.lane.b32.xlu0 %v7020, 48
    %v7133 = vpop.permute.xlu0 %7132
    %7134 = vrot.lane.b32.xlu0 %v7021, 48
    %v7135 = vpop.permute.xlu0 %7134
    %7136 = vrot.lane.b32.xlu0 %v7022, 48
    %v7137 = vpop.permute.xlu0 %7136
    %7138 = vrot.lane.b32.xlu0 %v7023, 48
    %v7139 = vpop.permute.xlu0 %7138
    %7140 = vrot.lane.b32.xlu0 %v7024, 48
    %v7141 = vpop.permute.xlu0 %7140
    %7142 = vrot.lane.b32.xlu0 %v7025, 48
    %v7143 = vpop.permute.xlu0 %7142
    %7144 = vrot.lane.b32.xlu0 %v7026, 48
    %v7145 = vpop.permute.xlu0 %7144
    %7146 = vrot.lane.b32.xlu0 %v7027, 48
    %v7147 = vpop.permute.xlu0 %7146
    %7148 = vrot.lane.b32.xlu0 %v7028, 48
    %v7149 = vpop.permute.xlu0 %7148
    %7150 = vrot.lane.b32.xlu0 %v7029, 48
    %v7151 = vpop.permute.xlu0 %7150
    %7152 = vrot.lane.b32.xlu0 %v7030, 48
    %v7153 = vpop.permute.xlu0 %7152
    %7154 = vrot.lane.b32.xlu0 %v7031, 48
    %v7155 = vpop.permute.xlu0 %7154
    %7156 = vrot.lane.b32.xlu0 %v7032, 48
    %v7157 = vpop.permute.xlu0 %7156
    %7158 = vrot.lane.b32.xlu0 %v7033, 48
    %v7159 = vpop.permute.xlu0 %7158
    %7160 = vrot.lane.b32.xlu0 %v7034, 48
    %v7161 = vpop.permute.xlu0 %7160
    %7162 = vrot.lane.b32.xlu0 %v7035, 48
    %v7163 = vpop.permute.xlu0 %7162
    %v7164 = vadd.f32 %v6908, %v7037
    %v7165 = vadd.f32 %v6909, %v7039
    %v7166 = vadd.f32 %v6910, %v7041
    %v7167 = vadd.f32 %v6911, %v7043
    %v7168 = vadd.f32 %v6912, %v7045
    %v7169 = vadd.f32 %v6913, %v7047
    %v7170 = vadd.f32 %v6914, %v7049
    %v7171 = vadd.f32 %v6915, %v7051
    %v7172 = vadd.f32 %v6916, %v7053
    %v7173 = vadd.f32 %v6917, %v7055
    %v7174 = vadd.f32 %v6918, %v7057
    %v7175 = vadd.f32 %v6919, %v7059
    %v7176 = vadd.f32 %v6920, %v7061
    %v7177 = vadd.f32 %v6921, %v7063
    %v7178 = vadd.f32 %v6922, %v7065
    %v7179 = vadd.f32 %v6923, %v7067
    %v7180 = vadd.f32 %v6924, %v7069
    %v7181 = vadd.f32 %v6925, %v7071
    %v7182 = vadd.f32 %v6926, %v7073
    %v7183 = vadd.f32 %v6927, %v7075
    %v7184 = vadd.f32 %v6928, %v7077
    %v7185 = vadd.f32 %v6929, %v7079
    %v7186 = vadd.f32 %v6930, %v7081
    %v7187 = vadd.f32 %v6931, %v7083
    %v7188 = vadd.f32 %v6932, %v7085
    %v7189 = vadd.f32 %v6933, %v7087
    %v7190 = vadd.f32 %v6934, %v7089
    %v7191 = vadd.f32 %v6935, %v7091
    %v7192 = vadd.f32 %v6936, %v7093
    %v7193 = vadd.f32 %v6937, %v7095
    %v7194 = vadd.f32 %v6938, %v7097
    %v7195 = vadd.f32 %v6939, %v7099
    %v7196 = vadd.f32 %v6940, %v7101
    %v7197 = vadd.f32 %v6941, %v7103
    %v7198 = vadd.f32 %v6942, %v7105
    %v7199 = vadd.f32 %v6943, %v7107
    %v7200 = vadd.f32 %v6944, %v7109
    %v7201 = vadd.f32 %v6945, %v7111
    %v7202 = vadd.f32 %v6946, %v7113
    %v7203 = vadd.f32 %v6947, %v7115
    %v7204 = vadd.f32 %v6948, %v7117
    %v7205 = vadd.f32 %v6949, %v7119
    %v7206 = vadd.f32 %v6950, %v7121
    %v7207 = vadd.f32 %v6951, %v7123
    %v7208 = vadd.f32 %v6952, %v7125
    %v7209 = vadd.f32 %v6953, %v7127
    %v7210 = vadd.f32 %v6954, %v7129
    %v7211 = vadd.f32 %v6955, %v7131
    %v7212 = vadd.f32 %v6956, %v7133
    %v7213 = vadd.f32 %v6957, %v7135
    %v7214 = vadd.f32 %v6958, %v7137
    %v7215 = vadd.f32 %v6959, %v7139
    %v7216 = vadd.f32 %v6960, %v7141
    %v7217 = vadd.f32 %v6961, %v7143
    %v7218 = vadd.f32 %v6962, %v7145
    %v7219 = vadd.f32 %v6963, %v7147
    %v7220 = vadd.f32 %v6964, %v7149
    %v7221 = vadd.f32 %v6965, %v7151
    %v7222 = vadd.f32 %v6966, %v7153
    %v7223 = vadd.f32 %v6967, %v7155
    %v7224 = vadd.f32 %v6968, %v7157
    %v7225 = vadd.f32 %v6969, %v7159
    %v7226 = vadd.f32 %v6970, %v7161
    %v7227 = vadd.f32 %v6971, %v7163
    %v7228 = vmul.f32 %v5374, %v3615
    %v7229 = vmul.f32 %v5375, %v3619
    %v7230 = vmul.f32 %v5376, %v3623
    %v7231 = vmul.f32 %v5377, %v3627
    %v7232 = vmul.f32 %v5378, %v3631
    %v7233 = vmul.f32 %v5379, %v3635
    %v7234 = vmul.f32 %v5380, %v3639
    %v7235 = vmul.f32 %v5381, %v3643
    %v7236 = vmul.f32 %v5382, %v3647
    %v7237 = vmul.f32 %v5383, %v3651
    %v7238 = vmul.f32 %v5384, %v3655
    %v7239 = vmul.f32 %v5385, %v3659
    %v7240 = vmul.f32 %v5386, %v3663
    %v7241 = vmul.f32 %v5387, %v3667
    %v7242 = vmul.f32 %v5388, %v3671
    %v7243 = vmul.f32 %v5389, %v3675
    %v7244 = vmul.f32 %v5390, %v3679
    %v7245 = vmul.f32 %v5391, %v3683
    %v7246 = vmul.f32 %v5392, %v3687
    %v7247 = vmul.f32 %v5393, %v3691
    %v7248 = vmul.f32 %v5394, %v3695
    %v7249 = vmul.f32 %v5395, %v3699
    %v7250 = vmul.f32 %v5396, %v3703
    %v7251 = vmul.f32 %v5397, %v3707
    %v7252 = vmul.f32 %v5398, %v3711
    %v7253 = vmul.f32 %v5399, %v3715
    %v7254 = vmul.f32 %v5400, %v3719
    %v7255 = vmul.f32 %v5401, %v3723
    %v7256 = vmul.f32 %v5402, %v3727
    %v7257 = vmul.f32 %v5403, %v3731
    %v7258 = vmul.f32 %v5404, %v3735
    %v7259 = vmul.f32 %v5405, %v3739
    %v7260 = vmul.f32 %v5406, %v3743
    %v7261 = vmul.f32 %v5407, %v3747
    %v7262 = vmul.f32 %v5408, %v3751
    %v7263 = vmul.f32 %v5409, %v3755
    %v7264 = vmul.f32 %v5410, %v3759
    %v7265 = vmul.f32 %v5411, %v3763
    %v7266 = vmul.f32 %v5412, %v3767
    %v7267 = vmul.f32 %v5413, %v3771
    %v7268 = vmul.f32 %v5414, %v3775
    %v7269 = vmul.f32 %v5415, %v3779
    %v7270 = vmul.f32 %v5416, %v3783
    %v7271 = vmul.f32 %v5417, %v3787
    %v7272 = vmul.f32 %v5418, %v3791
    %v7273 = vmul.f32 %v5419, %v3795
    %v7274 = vmul.f32 %v5420, %v3799
    %v7275 = vmul.f32 %v5421, %v3803
    %v7276 = vmul.f32 %v5422, %v3807
    %v7277 = vmul.f32 %v5423, %v3811
    %v7278 = vmul.f32 %v5424, %v3815
    %v7279 = vmul.f32 %v5425, %v3819
    %v7280 = vmul.f32 %v5426, %v3823
    %v7281 = vmul.f32 %v5427, %v3827
    %v7282 = vmul.f32 %v5428, %v3831
    %v7283 = vmul.f32 %v5429, %v3835
    %v7284 = vmul.f32 %v5430, %v3839
    %v7285 = vmul.f32 %v5431, %v3843
    %v7286 = vmul.f32 %v5432, %v3847
    %v7287 = vmul.f32 %v5433, %v3851
    %v7288 = vmul.f32 %v5434, %v3855
    %v7289 = vmul.f32 %v5435, %v3859
    %v7290 = vmul.f32 %v5372, %v3863
    %v7291 = vmul.f32 %v5373, %v3867
    %7292 = vrot.lane.b32.xlu0 %v7228, 56
    %v7293 = vpop.permute.xlu0 %7292
    %7294 = vrot.lane.b32.xlu0 %v7229, 56
    %v7295 = vpop.permute.xlu0 %7294
    %7296 = vrot.lane.b32.xlu0 %v7230, 56
    %v7297 = vpop.permute.xlu0 %7296
    %7298 = vrot.lane.b32.xlu0 %v7231, 56
    %v7299 = vpop.permute.xlu0 %7298
    %7300 = vrot.lane.b32.xlu0 %v7232, 56
    %v7301 = vpop.permute.xlu0 %7300
    %7302 = vrot.lane.b32.xlu0 %v7233, 56
    %v7303 = vpop.permute.xlu0 %7302
    %7304 = vrot.lane.b32.xlu0 %v7234, 56
    %v7305 = vpop.permute.xlu0 %7304
    %7306 = vrot.lane.b32.xlu0 %v7235, 56
    %v7307 = vpop.permute.xlu0 %7306
    %7308 = vrot.lane.b32.xlu0 %v7236, 56
    %v7309 = vpop.permute.xlu0 %7308
    %7310 = vrot.lane.b32.xlu0 %v7237, 56
    %v7311 = vpop.permute.xlu0 %7310
    %7312 = vrot.lane.b32.xlu0 %v7238, 56
    %v7313 = vpop.permute.xlu0 %7312
    %7314 = vrot.lane.b32.xlu0 %v7239, 56
    %v7315 = vpop.permute.xlu0 %7314
    %7316 = vrot.lane.b32.xlu0 %v7240, 56
    %v7317 = vpop.permute.xlu0 %7316
    %7318 = vrot.lane.b32.xlu0 %v7241, 56
    %v7319 = vpop.permute.xlu0 %7318
    %7320 = vrot.lane.b32.xlu0 %v7242, 56
    %v7321 = vpop.permute.xlu0 %7320
    %7322 = vrot.lane.b32.xlu0 %v7243, 56
    %v7323 = vpop.permute.xlu0 %7322
    %7324 = vrot.lane.b32.xlu0 %v7244, 56
    %v7325 = vpop.permute.xlu0 %7324
    %7326 = vrot.lane.b32.xlu0 %v7245, 56
    %v7327 = vpop.permute.xlu0 %7326
    %7328 = vrot.lane.b32.xlu0 %v7246, 56
    %v7329 = vpop.permute.xlu0 %7328
    %7330 = vrot.lane.b32.xlu0 %v7247, 56
    %v7331 = vpop.permute.xlu0 %7330
    %7332 = vrot.lane.b32.xlu0 %v7248, 56
    %v7333 = vpop.permute.xlu0 %7332
    %7334 = vrot.lane.b32.xlu0 %v7249, 56
    %v7335 = vpop.permute.xlu0 %7334
    %7336 = vrot.lane.b32.xlu0 %v7250, 56
    %v7337 = vpop.permute.xlu0 %7336
    %7338 = vrot.lane.b32.xlu0 %v7251, 56
    %v7339 = vpop.permute.xlu0 %7338
    %7340 = vrot.lane.b32.xlu0 %v7252, 56
    %v7341 = vpop.permute.xlu0 %7340
    %7342 = vrot.lane.b32.xlu0 %v7253, 56
    %v7343 = vpop.permute.xlu0 %7342
    %7344 = vrot.lane.b32.xlu0 %v7254, 56
    %v7345 = vpop.permute.xlu0 %7344
    %7346 = vrot.lane.b32.xlu0 %v7255, 56
    %v7347 = vpop.permute.xlu0 %7346
    %7348 = vrot.lane.b32.xlu0 %v7256, 56
    %v7349 = vpop.permute.xlu0 %7348
    %7350 = vrot.lane.b32.xlu0 %v7257, 56
    %v7351 = vpop.permute.xlu0 %7350
    %7352 = vrot.lane.b32.xlu0 %v7258, 56
    %v7353 = vpop.permute.xlu0 %7352
    %7354 = vrot.lane.b32.xlu0 %v7259, 56
    %v7355 = vpop.permute.xlu0 %7354
    %7356 = vrot.lane.b32.xlu0 %v7260, 56
    %v7357 = vpop.permute.xlu0 %7356
    %7358 = vrot.lane.b32.xlu0 %v7261, 56
    %v7359 = vpop.permute.xlu0 %7358
    %7360 = vrot.lane.b32.xlu0 %v7262, 56
    %v7361 = vpop.permute.xlu0 %7360
    %7362 = vrot.lane.b32.xlu0 %v7263, 56
    %v7363 = vpop.permute.xlu0 %7362
    %7364 = vrot.lane.b32.xlu0 %v7264, 56
    %v7365 = vpop.permute.xlu0 %7364
    %7366 = vrot.lane.b32.xlu0 %v7265, 56
    %v7367 = vpop.permute.xlu0 %7366
    %7368 = vrot.lane.b32.xlu0 %v7266, 56
    %v7369 = vpop.permute.xlu0 %7368
    %7370 = vrot.lane.b32.xlu0 %v7267, 56
    %v7371 = vpop.permute.xlu0 %7370
    %7372 = vrot.lane.b32.xlu0 %v7268, 56
    %v7373 = vpop.permute.xlu0 %7372
    %7374 = vrot.lane.b32.xlu0 %v7269, 56
    %v7375 = vpop.permute.xlu0 %7374
    %7376 = vrot.lane.b32.xlu0 %v7270, 56
    %v7377 = vpop.permute.xlu0 %7376
    %7378 = vrot.lane.b32.xlu0 %v7271, 56
    %v7379 = vpop.permute.xlu0 %7378
    %7380 = vrot.lane.b32.xlu0 %v7272, 56
    %v7381 = vpop.permute.xlu0 %7380
    %7382 = vrot.lane.b32.xlu0 %v7273, 56
    %v7383 = vpop.permute.xlu0 %7382
    %7384 = vrot.lane.b32.xlu0 %v7274, 56
    %v7385 = vpop.permute.xlu0 %7384
    %7386 = vrot.lane.b32.xlu0 %v7275, 56
    %v7387 = vpop.permute.xlu0 %7386
    %7388 = vrot.lane.b32.xlu0 %v7276, 56
    %v7389 = vpop.permute.xlu0 %7388
    %7390 = vrot.lane.b32.xlu0 %v7277, 56
    %v7391 = vpop.permute.xlu0 %7390
    %7392 = vrot.lane.b32.xlu0 %v7278, 56
    %v7393 = vpop.permute.xlu0 %7392
    %7394 = vrot.lane.b32.xlu0 %v7279, 56
    %v7395 = vpop.permute.xlu0 %7394
    %7396 = vrot.lane.b32.xlu0 %v7280, 56
    %v7397 = vpop.permute.xlu0 %7396
    %7398 = vrot.lane.b32.xlu0 %v7281, 56
    %v7399 = vpop.permute.xlu0 %7398
    %7400 = vrot.lane.b32.xlu0 %v7282, 56
    %v7401 = vpop.permute.xlu0 %7400
    %7402 = vrot.lane.b32.xlu0 %v7283, 56
    %v7403 = vpop.permute.xlu0 %7402
    %7404 = vrot.lane.b32.xlu0 %v7284, 56
    %v7405 = vpop.permute.xlu0 %7404
    %7406 = vrot.lane.b32.xlu0 %v7285, 56
    %v7407 = vpop.permute.xlu0 %7406
    %7408 = vrot.lane.b32.xlu0 %v7286, 56
    %v7409 = vpop.permute.xlu0 %7408
    %7410 = vrot.lane.b32.xlu0 %v7287, 56
    %v7411 = vpop.permute.xlu0 %7410
    %7412 = vrot.lane.b32.xlu0 %v7288, 56
    %v7413 = vpop.permute.xlu0 %7412
    %7414 = vrot.lane.b32.xlu0 %v7289, 56
    %v7415 = vpop.permute.xlu0 %7414
    %7416 = vrot.lane.b32.xlu0 %v7290, 56
    %v7417 = vpop.permute.xlu0 %7416
    %7418 = vrot.lane.b32.xlu0 %v7291, 56
    %v7419 = vpop.permute.xlu0 %7418
    %v7420 = vadd.f32 %v7164, %v7293
    %v7421 = vadd.f32 %v7165, %v7295
    %v7422 = vadd.f32 %v7166, %v7297
    %v7423 = vadd.f32 %v7167, %v7299
    %v7424 = vadd.f32 %v7168, %v7301
    %v7425 = vadd.f32 %v7169, %v7303
    %v7426 = vadd.f32 %v7170, %v7305
    %v7427 = vadd.f32 %v7171, %v7307
    %v7428 = vadd.f32 %v7172, %v7309
    %v7429 = vadd.f32 %v7173, %v7311
    %v7430 = vadd.f32 %v7174, %v7313
    %v7431 = vadd.f32 %v7175, %v7315
    %v7432 = vadd.f32 %v7176, %v7317
    %v7433 = vadd.f32 %v7177, %v7319
    %v7434 = vadd.f32 %v7178, %v7321
    %v7435 = vadd.f32 %v7179, %v7323
    %v7436 = vadd.f32 %v7180, %v7325
    %v7437 = vadd.f32 %v7181, %v7327
    %v7438 = vadd.f32 %v7182, %v7329
    %v7439 = vadd.f32 %v7183, %v7331
    %v7440 = vadd.f32 %v7184, %v7333
    %v7441 = vadd.f32 %v7185, %v7335
    %v7442 = vadd.f32 %v7186, %v7337
    %v7443 = vadd.f32 %v7187, %v7339
    %v7444 = vadd.f32 %v7188, %v7341
    %v7445 = vadd.f32 %v7189, %v7343
    %v7446 = vadd.f32 %v7190, %v7345
    %v7447 = vadd.f32 %v7191, %v7347
    %v7448 = vadd.f32 %v7192, %v7349
    %v7449 = vadd.f32 %v7193, %v7351
    %v7450 = vadd.f32 %v7194, %v7353
    %v7451 = vadd.f32 %v7195, %v7355
    %v7452 = vadd.f32 %v7196, %v7357
    %v7453 = vadd.f32 %v7197, %v7359
    %v7454 = vadd.f32 %v7198, %v7361
    %v7455 = vadd.f32 %v7199, %v7363
    %v7456 = vadd.f32 %v7200, %v7365
    %v7457 = vadd.f32 %v7201, %v7367
    %v7458 = vadd.f32 %v7202, %v7369
    %v7459 = vadd.f32 %v7203, %v7371
    %v7460 = vadd.f32 %v7204, %v7373
    %v7461 = vadd.f32 %v7205, %v7375
    %v7462 = vadd.f32 %v7206, %v7377
    %v7463 = vadd.f32 %v7207, %v7379
    %v7464 = vadd.f32 %v7208, %v7381
    %v7465 = vadd.f32 %v7209, %v7383
    %v7466 = vadd.f32 %v7210, %v7385
    %v7467 = vadd.f32 %v7211, %v7387
    %v7468 = vadd.f32 %v7212, %v7389
    %v7469 = vadd.f32 %v7213, %v7391
    %v7470 = vadd.f32 %v7214, %v7393
    %v7471 = vadd.f32 %v7215, %v7395
    %v7472 = vadd.f32 %v7216, %v7397
    %v7473 = vadd.f32 %v7217, %v7399
    %v7474 = vadd.f32 %v7218, %v7401
    %v7475 = vadd.f32 %v7219, %v7403
    %v7476 = vadd.f32 %v7220, %v7405
    %v7477 = vadd.f32 %v7221, %v7407
    %v7478 = vadd.f32 %v7222, %v7409
    %v7479 = vadd.f32 %v7223, %v7411
    %v7480 = vadd.f32 %v7224, %v7413
    %v7481 = vadd.f32 %v7225, %v7415
    %v7482 = vadd.f32 %v7226, %v7417
    %v7483 = vadd.f32 %v7227, %v7419
    %v7484 = vmul.f32 %v6008, %v4127
    %v7485 = vmul.f32 %v6007, %v4131
    %v7486 = vmul.f32 %v6006, %v4135
    %v7487 = vmul.f32 %v6005, %v4139
    %v7488 = vmul.f32 %v6004, %v4143
    %v7489 = vmul.f32 %v6003, %v4147
    %v7490 = vmul.f32 %v6002, %v4151
    %v7491 = vmul.f32 %v6001, %v4155
    %v7492 = vmul.f32 %v6000, %v4159
    %v7493 = vmul.f32 %v5999, %v4163
    %v7494 = vmul.f32 %v5998, %v4167
    %v7495 = vmul.f32 %v5997, %v4171
    %v7496 = vmul.f32 %v5996, %v4175
    %v7497 = vmul.f32 %v5995, %v4179
    %v7498 = vmul.f32 %v5994, %v4183
    %v7499 = vmul.f32 %v5993, %v4187
    %v7500 = vmul.f32 %v5992, %v4191
    %v7501 = vmul.f32 %v5991, %v4195
    %v7502 = vmul.f32 %v5990, %v4199
    %v7503 = vmul.f32 %v5989, %v4203
    %v7504 = vmul.f32 %v5988, %v4207
    %v7505 = vmul.f32 %v5987, %v4211
    %v7506 = vmul.f32 %v5986, %v4215
    %v7507 = vmul.f32 %v5985, %v4219
    %v7508 = vmul.f32 %v5984, %v4223
    %v7509 = vmul.f32 %v5983, %v4227
    %v7510 = vmul.f32 %v5982, %v4231
    %v7511 = vmul.f32 %v5981, %v4235
    %v7512 = vmul.f32 %v5980, %v4239
    %v7513 = vmul.f32 %v5979, %v4243
    %v7514 = vmul.f32 %v5978, %v4247
    %v7515 = vmul.f32 %v5977, %v4251
    %v7516 = vmul.f32 %v5976, %v4255
    %v7517 = vmul.f32 %v5975, %v4259
    %v7518 = vmul.f32 %v5974, %v4263
    %v7519 = vmul.f32 %v5973, %v4267
    %v7520 = vmul.f32 %v5972, %v4271
    %v7521 = vmul.f32 %v5971, %v4275
    %v7522 = vmul.f32 %v5970, %v4279
    %v7523 = vmul.f32 %v5969, %v4283
    %v7524 = vmul.f32 %v5968, %v4287
    %v7525 = vmul.f32 %v5967, %v4291
    %v7526 = vmul.f32 %v5966, %v4295
    %v7527 = vmul.f32 %v5965, %v4299
    %v7528 = vmul.f32 %v5964, %v4303
    %v7529 = vmul.f32 %v5963, %v4307
    %v7530 = vmul.f32 %v5962, %v4311
    %v7531 = vmul.f32 %v5961, %v4315
    %v7532 = vmul.f32 %v5960, %v4319
    %v7533 = vmul.f32 %v5959, %v4323
    %v7534 = vmul.f32 %v5958, %v4327
    %v7535 = vmul.f32 %v5957, %v4331
    %v7536 = vmul.f32 %v5956, %v4335
    %v7537 = vmul.f32 %v5955, %v4339
    %v7538 = vmul.f32 %v5954, %v4343
    %v7539 = vmul.f32 %v5953, %v4347
    %v7540 = vmul.f32 %v5952, %v4351
    %v7541 = vmul.f32 %v5951, %v4355
    %v7542 = vmul.f32 %v5950, %v4359
    %v7543 = vmul.f32 %v5949, %v4363
    %v7544 = vmul.f32 %v5948, %v4367
    %v7545 = vmul.f32 %v6011, %v4371
    %v7546 = vmul.f32 %v6010, %v4375
    %v7547 = vmul.f32 %v6009, %v4379
    %7548 = vrot.lane.b32.xlu0 %v7484, 64
    %v7549 = vpop.permute.xlu0 %7548
    %7550 = vrot.lane.b32.xlu0 %v7485, 64
    %v7551 = vpop.permute.xlu0 %7550
    %7552 = vrot.lane.b32.xlu0 %v7486, 64
    %v7553 = vpop.permute.xlu0 %7552
    %7554 = vrot.lane.b32.xlu0 %v7487, 64
    %v7555 = vpop.permute.xlu0 %7554
    %7556 = vrot.lane.b32.xlu0 %v7488, 64
    %v7557 = vpop.permute.xlu0 %7556
    %7558 = vrot.lane.b32.xlu0 %v7489, 64
    %v7559 = vpop.permute.xlu0 %7558
    %7560 = vrot.lane.b32.xlu0 %v7490, 64
    %v7561 = vpop.permute.xlu0 %7560
    %7562 = vrot.lane.b32.xlu0 %v7491, 64
    %v7563 = vpop.permute.xlu0 %7562
    %7564 = vrot.lane.b32.xlu0 %v7492, 64
    %v7565 = vpop.permute.xlu0 %7564
    %7566 = vrot.lane.b32.xlu0 %v7493, 64
    %v7567 = vpop.permute.xlu0 %7566
    %7568 = vrot.lane.b32.xlu0 %v7494, 64
    %v7569 = vpop.permute.xlu0 %7568
    %7570 = vrot.lane.b32.xlu0 %v7495, 64
    %v7571 = vpop.permute.xlu0 %7570
    %7572 = vrot.lane.b32.xlu0 %v7496, 64
    %v7573 = vpop.permute.xlu0 %7572
    %7574 = vrot.lane.b32.xlu0 %v7497, 64
    %v7575 = vpop.permute.xlu0 %7574
    %7576 = vrot.lane.b32.xlu0 %v7498, 64
    %v7577 = vpop.permute.xlu0 %7576
    %7578 = vrot.lane.b32.xlu0 %v7499, 64
    %v7579 = vpop.permute.xlu0 %7578
    %7580 = vrot.lane.b32.xlu0 %v7500, 64
    %v7581 = vpop.permute.xlu0 %7580
    %7582 = vrot.lane.b32.xlu0 %v7501, 64
    %v7583 = vpop.permute.xlu0 %7582
    %7584 = vrot.lane.b32.xlu0 %v7502, 64
    %v7585 = vpop.permute.xlu0 %7584
    %7586 = vrot.lane.b32.xlu0 %v7503, 64
    %v7587 = vpop.permute.xlu0 %7586
    %7588 = vrot.lane.b32.xlu0 %v7504, 64
    %v7589 = vpop.permute.xlu0 %7588
    %7590 = vrot.lane.b32.xlu0 %v7505, 64
    %v7591 = vpop.permute.xlu0 %7590
    %7592 = vrot.lane.b32.xlu0 %v7506, 64
    %v7593 = vpop.permute.xlu0 %7592
    %7594 = vrot.lane.b32.xlu0 %v7507, 64
    %v7595 = vpop.permute.xlu0 %7594
    %7596 = vrot.lane.b32.xlu0 %v7508, 64
    %v7597 = vpop.permute.xlu0 %7596
    %7598 = vrot.lane.b32.xlu0 %v7509, 64
    %v7599 = vpop.permute.xlu0 %7598
    %7600 = vrot.lane.b32.xlu0 %v7510, 64
    %v7601 = vpop.permute.xlu0 %7600
    %7602 = vrot.lane.b32.xlu0 %v7511, 64
    %v7603 = vpop.permute.xlu0 %7602
    %7604 = vrot.lane.b32.xlu0 %v7512, 64
    %v7605 = vpop.permute.xlu0 %7604
    %7606 = vrot.lane.b32.xlu0 %v7513, 64
    %v7607 = vpop.permute.xlu0 %7606
    %7608 = vrot.lane.b32.xlu0 %v7514, 64
    %v7609 = vpop.permute.xlu0 %7608
    %7610 = vrot.lane.b32.xlu0 %v7515, 64
    %v7611 = vpop.permute.xlu0 %7610
    %7612 = vrot.lane.b32.xlu0 %v7516, 64
    %v7613 = vpop.permute.xlu0 %7612
    %7614 = vrot.lane.b32.xlu0 %v7517, 64
    %v7615 = vpop.permute.xlu0 %7614
    %7616 = vrot.lane.b32.xlu0 %v7518, 64
    %v7617 = vpop.permute.xlu0 %7616
    %7618 = vrot.lane.b32.xlu0 %v7519, 64
    %v7619 = vpop.permute.xlu0 %7618
    %7620 = vrot.lane.b32.xlu0 %v7520, 64
    %v7621 = vpop.permute.xlu0 %7620
    %7622 = vrot.lane.b32.xlu0 %v7521, 64
    %v7623 = vpop.permute.xlu0 %7622
    %7624 = vrot.lane.b32.xlu0 %v7522, 64
    %v7625 = vpop.permute.xlu0 %7624
    %7626 = vrot.lane.b32.xlu0 %v7523, 64
    %v7627 = vpop.permute.xlu0 %7626
    %7628 = vrot.lane.b32.xlu0 %v7524, 64
    %v7629 = vpop.permute.xlu0 %7628
    %7630 = vrot.lane.b32.xlu0 %v7525, 64
    %v7631 = vpop.permute.xlu0 %7630
    %7632 = vrot.lane.b32.xlu0 %v7526, 64
    %v7633 = vpop.permute.xlu0 %7632
    %7634 = vrot.lane.b32.xlu0 %v7527, 64
    %v7635 = vpop.permute.xlu0 %7634
    %7636 = vrot.lane.b32.xlu0 %v7528, 64
    %v7637 = vpop.permute.xlu0 %7636
    %7638 = vrot.lane.b32.xlu0 %v7529, 64
    %v7639 = vpop.permute.xlu0 %7638
    %7640 = vrot.lane.b32.xlu0 %v7530, 64
    %v7641 = vpop.permute.xlu0 %7640
    %7642 = vrot.lane.b32.xlu0 %v7531, 64
    %v7643 = vpop.permute.xlu0 %7642
    %7644 = vrot.lane.b32.xlu0 %v7532, 64
    %v7645 = vpop.permute.xlu0 %7644
    %7646 = vrot.lane.b32.xlu0 %v7533, 64
    %v7647 = vpop.permute.xlu0 %7646
    %7648 = vrot.lane.b32.xlu0 %v7534, 64
    %v7649 = vpop.permute.xlu0 %7648
    %7650 = vrot.lane.b32.xlu0 %v7535, 64
    %v7651 = vpop.permute.xlu0 %7650
    %7652 = vrot.lane.b32.xlu0 %v7536, 64
    %v7653 = vpop.permute.xlu0 %7652
    %7654 = vrot.lane.b32.xlu0 %v7537, 64
    %v7655 = vpop.permute.xlu0 %7654
    %7656 = vrot.lane.b32.xlu0 %v7538, 64
    %v7657 = vpop.permute.xlu0 %7656
    %7658 = vrot.lane.b32.xlu0 %v7539, 64
    %v7659 = vpop.permute.xlu0 %7658
    %7660 = vrot.lane.b32.xlu0 %v7540, 64
    %v7661 = vpop.permute.xlu0 %7660
    %7662 = vrot.lane.b32.xlu0 %v7541, 64
    %v7663 = vpop.permute.xlu0 %7662
    %7664 = vrot.lane.b32.xlu0 %v7542, 64
    %v7665 = vpop.permute.xlu0 %7664
    %7666 = vrot.lane.b32.xlu0 %v7543, 64
    %v7667 = vpop.permute.xlu0 %7666
    %7668 = vrot.lane.b32.xlu0 %v7544, 64
    %v7669 = vpop.permute.xlu0 %7668
    %7670 = vrot.lane.b32.xlu0 %v7545, 64
    %v7671 = vpop.permute.xlu0 %7670
    %7672 = vrot.lane.b32.xlu0 %v7546, 64
    %v7673 = vpop.permute.xlu0 %7672
    %7674 = vrot.lane.b32.xlu0 %v7547, 64
    %v7675 = vpop.permute.xlu0 %7674
    %v7676 = vadd.f32 %v7420, %v7549
    %v7677 = vadd.f32 %v7421, %v7551
    %v7678 = vadd.f32 %v7422, %v7553
    %v7679 = vadd.f32 %v7423, %v7555
    %v7680 = vadd.f32 %v7424, %v7557
    %v7681 = vadd.f32 %v7425, %v7559
    %v7682 = vadd.f32 %v7426, %v7561
    %v7683 = vadd.f32 %v7427, %v7563
    %v7684 = vadd.f32 %v7428, %v7565
    %v7685 = vadd.f32 %v7429, %v7567
    %v7686 = vadd.f32 %v7430, %v7569
    %v7687 = vadd.f32 %v7431, %v7571
    %v7688 = vadd.f32 %v7432, %v7573
    %v7689 = vadd.f32 %v7433, %v7575
    %v7690 = vadd.f32 %v7434, %v7577
    %v7691 = vadd.f32 %v7435, %v7579
    %v7692 = vadd.f32 %v7436, %v7581
    %v7693 = vadd.f32 %v7437, %v7583
    %v7694 = vadd.f32 %v7438, %v7585
    %v7695 = vadd.f32 %v7439, %v7587
    %v7696 = vadd.f32 %v7440, %v7589
    %v7697 = vadd.f32 %v7441, %v7591
    %v7698 = vadd.f32 %v7442, %v7593
    %v7699 = vadd.f32 %v7443, %v7595
    %v7700 = vadd.f32 %v7444, %v7597
    %v7701 = vadd.f32 %v7445, %v7599
    %v7702 = vadd.f32 %v7446, %v7601
    %v7703 = vadd.f32 %v7447, %v7603
    %v7704 = vadd.f32 %v7448, %v7605
    %v7705 = vadd.f32 %v7449, %v7607
    %v7706 = vadd.f32 %v7450, %v7609
    %v7707 = vadd.f32 %v7451, %v7611
    %v7708 = vadd.f32 %v7452, %v7613
    %v7709 = vadd.f32 %v7453, %v7615
    %v7710 = vadd.f32 %v7454, %v7617
    %v7711 = vadd.f32 %v7455, %v7619
    %v7712 = vadd.f32 %v7456, %v7621
    %v7713 = vadd.f32 %v7457, %v7623
    %v7714 = vadd.f32 %v7458, %v7625
    %v7715 = vadd.f32 %v7459, %v7627
    %v7716 = vadd.f32 %v7460, %v7629
    %v7717 = vadd.f32 %v7461, %v7631
    %v7718 = vadd.f32 %v7462, %v7633
    %v7719 = vadd.f32 %v7463, %v7635
    %v7720 = vadd.f32 %v7464, %v7637
    %v7721 = vadd.f32 %v7465, %v7639
    %v7722 = vadd.f32 %v7466, %v7641
    %v7723 = vadd.f32 %v7467, %v7643
    %v7724 = vadd.f32 %v7468, %v7645
    %v7725 = vadd.f32 %v7469, %v7647
    %v7726 = vadd.f32 %v7470, %v7649
    %v7727 = vadd.f32 %v7471, %v7651
    %v7728 = vadd.f32 %v7472, %v7653
    %v7729 = vadd.f32 %v7473, %v7655
    %v7730 = vadd.f32 %v7474, %v7657
    %v7731 = vadd.f32 %v7475, %v7659
    %v7732 = vadd.f32 %v7476, %v7661
    %v7733 = vadd.f32 %v7477, %v7663
    %v7734 = vadd.f32 %v7478, %v7665
    %v7735 = vadd.f32 %v7479, %v7667
    %v7736 = vadd.f32 %v7480, %v7669
    %v7737 = vadd.f32 %v7481, %v7671
    %v7738 = vadd.f32 %v7482, %v7673
    %v7739 = vadd.f32 %v7483, %v7675
    %v7740 = vpack.c.bf16 %v7677, %v7676
    %v7741 = vpack.c.bf16 %v7679, %v7678
    %v7742 = vpack.c.bf16 %v7681, %v7680
    %v7743 = vpack.c.bf16 %v7683, %v7682
    %v7744 = vpack.c.bf16 %v7685, %v7684
    %v7745 = vpack.c.bf16 %v7687, %v7686
    %v7746 = vpack.c.bf16 %v7689, %v7688
    %v7747 = vpack.c.bf16 %v7691, %v7690
    %v7748 = vpack.c.bf16 %v7693, %v7692
    %v7749 = vpack.c.bf16 %v7695, %v7694
    %v7750 = vpack.c.bf16 %v7697, %v7696
    %v7751 = vpack.c.bf16 %v7699, %v7698
    %v7752 = vpack.c.bf16 %v7701, %v7700
    %v7753 = vpack.c.bf16 %v7703, %v7702
    %v7754 = vpack.c.bf16 %v7705, %v7704
    %v7755 = vpack.c.bf16 %v7707, %v7706
    %v7756 = vpack.c.bf16 %v7709, %v7708
    %v7757 = vpack.c.bf16 %v7711, %v7710
    %v7758 = vpack.c.bf16 %v7713, %v7712
    %v7759 = vpack.c.bf16 %v7715, %v7714
    %v7760 = vpack.c.bf16 %v7717, %v7716
    %v7761 = vpack.c.bf16 %v7719, %v7718
    %v7762 = vpack.c.bf16 %v7721, %v7720
    %v7763 = vpack.c.bf16 %v7723, %v7722
    %v7764 = vpack.c.bf16 %v7725, %v7724
    %v7765 = vpack.c.bf16 %v7727, %v7726
    %v7766 = vpack.c.bf16 %v7729, %v7728
    %v7767 = vpack.c.bf16 %v7731, %v7730
    %v7768 = vpack.c.bf16 %v7733, %v7732
    %v7769 = vpack.c.bf16 %v7735, %v7734
    %v7770 = vpack.c.bf16 %v7737, %v7736
    %v7771 = vpack.c.bf16 %v7739, %v7738
    %s7772 = scalar_lea.vmem %s1, 64
    %v7773 = vld [vmem:[%s7772] sm:$0xf]
    %v7774 = vld [vmem:[%s7772 + $0x4] sm:$0xf]
    %v7775 = vld [vmem:[%s7772 + $0x8] sm:$0xf]
    %v7776 = vld [vmem:[%s7772 + $0xc] sm:$0xf]
    %v7777 = vld [vmem:[%s7772 + $0x10] sm:$0xf]
    %v7778 = vld [vmem:[%s7772 + $0x14] sm:$0xf]
    %v7779 = vld [vmem:[%s7772 + $0x18] sm:$0xf]
    %v7780 = vld [vmem:[%s7772 + $0x1c] sm:$0xf]
    %v7781 = vld [vmem:[%s7772 + $0x20] sm:$0xf]
    %v7782 = vld [vmem:[%s7772 + $0x24] sm:$0xf]
    %v7783 = vld [vmem:[%s7772 + $0x28] sm:$0xf]
    %v7784 = vld [vmem:[%s7772 + $0x2c] sm:$0xf]
    %v7785 = vld [vmem:[%s7772 + $0x30] sm:$0xf]
    %v7786 = vld [vmem:[%s7772 + $0x34] sm:$0xf]
    %v7787 = vld [vmem:[%s7772 + $0x38] sm:$0xf]
    %v7788 = vld [vmem:[%s7772 + $0x3c] sm:$0xf]
    %v7805 = vunpack.c.l.b16 %v7773
    %v7806 = vunpack.c.l.b16 %v7774
    %v7807 = vunpack.c.l.b16 %v7775
    %v7808 = vunpack.c.l.b16 %v7776
    %v7809 = vunpack.c.l.b16 %v7777
    %v7810 = vunpack.c.l.b16 %v7778
    %v7811 = vunpack.c.l.b16 %v7779
    %v7812 = vunpack.c.l.b16 %v7780
    %v7813 = vunpack.c.l.b16 %v7781
    %v7814 = vunpack.c.l.b16 %v7782
    %v7815 = vunpack.c.l.b16 %v7783
    %v7816 = vunpack.c.l.b16 %v7784
    %v7817 = vunpack.c.l.b16 %v7785
    %v7818 = vunpack.c.l.b16 %v7786
    %v7819 = vunpack.c.l.b16 %v7787
    %v7820 = vunpack.c.l.b16 %v7788
    %v7821 = vpack.c.b16 %v7806, %v7805
    %v7822 = vpack.c.b16 %v7808, %v7807
    %v7823 = vpack.c.b16 %v7810, %v7809
    %v7824 = vpack.c.b16 %v7812, %v7811
    %v7825 = vpack.c.b16 %v7814, %v7813
    %v7826 = vpack.c.b16 %v7816, %v7815
    %v7827 = vpack.c.b16 %v7818, %v7817
    %v7828 = vpack.c.b16 %v7820, %v7819
    %7837 = vmatprep.subr.bf16.mxu0 0
    %7838 = vmatpush1.bf16.msra.mxu0 %v7821
    %7839 = vmatprep.subr.bf16.mxu0 0
    %7840 = vmatpush1.bf16.msra.mxu0 %v7822
    %7841 = vmatprep.subr.bf16.mxu0 0
    %7842 = vmatpush1.bf16.msra.mxu0 %v7823
    %7843 = vmatprep.subr.bf16.mxu0 0
    %7844 = vmatpush1.bf16.msra.mxu0 %v7824
    %7845 = vmatprep.subr.bf16.mxu0 0
    %7846 = vmatpush1.bf16.msra.mxu0 %v7825
    %7847 = vmatprep.subr.bf16.mxu0 0
    %7848 = vmatpush1.bf16.msra.mxu0 %v7826
    %7849 = vmatprep.subr.bf16.mxu0 0
    %7850 = vmatpush1.bf16.msra.mxu0 %v7827
    %7851 = vmatprep.subr.bf16.mxu0 0
    %7852 = vmatpush1.bf16.msra.mxu0 %v7828
    %7853 = vmatprep.subr.bf16.mxu0 0
    %7854 = vmatpush1.bf16.msra.mxu0 0
    %7855 = vmatprep.subr.bf16.mxu0 0
    %7856 = vmatpush1.bf16.msra.mxu0 0
    %7857 = vmatprep.subr.bf16.mxu0 0
    %7858 = vmatpush1.bf16.msra.mxu0 0
    %7859 = vmatprep.subr.bf16.mxu0 0
    %7860 = vmatpush1.bf16.msra.mxu0 0
    %7861 = vmatprep.subr.bf16.mxu0 0
    %7862 = vmatpush1.bf16.msra.mxu0 0
    %7863 = vmatprep.subr.bf16.mxu0 0
    %7864 = vmatpush1.bf16.msra.mxu0 0
    %7865 = vmatprep.subr.bf16.mxu0 0
    %7866 = vmatpush1.bf16.msra.mxu0 0
    %7867 = vmatprep.subr.bf16.mxu0 0
    %7868 = vmatpush1.bf16.msra.mxu0 0
    %7869 = vmatprep.mubr.bf16.mxu0 0
    %7870 = vmatmul.mubr.bf16.gmra.mrb[0].mxu0 %v7740
    %v7871 = vpop.f32.mrb[0].mxu0
    %v7872 = vadd.f32 0.0, %v7871
    %v7873 = vpop.f32.mrb[0].mxu0
    %v7874 = vpop.f32.mrb[0].mxu0
    %v7875 = vadd.f32 0.0, %v7874
    %v7876 = vpop.f32.mrb[0].mxu0
    %7877 = vmatprep.mubr.bf16.mxu0 0
    %7878 = vmatmul.mubr.bf16.gmra.mrb[0].mxu0 %v7741
    %v7879 = vpop.f32.mrb[0].mxu0
    %v7880 = vadd.f32 0.0, %v7879
    %v7881 = vpop.f32.mrb[0].mxu0
    %v7882 = vpop.f32.mrb[0].mxu0
    %v7883 = vadd.f32 0.0, %v7882
    %v7884 = vpop.f32.mrb[0].mxu0
    %7885 = vmatprep.mubr.bf16.mxu0 0
    %7886 = vmatmul.mubr.bf16.gmra.mrb[0].mxu0 %v7742
    %v7887 = vpop.f32.mrb[0].mxu0
    %v7888 = vadd.f32 0.0, %v7887
    %v7889 = vpop.f32.mrb[0].mxu0
    %v7890 = vpop.f32.mrb[0].mxu0
    %v7891 = vadd.f32 0.0, %v7890
    %v7892 = vpop.f32.mrb[0].mxu0
    %7893 = vmatprep.mubr.bf16.mxu0 0
    %7894 = vmatmul.mubr.bf16.gmra.mrb[0].mxu0 %v7743
    %v7895 = vpop.f32.mrb[0].mxu0
    %v7896 = vadd.f32 0.0, %v7895
    %v7897 = vpop.f32.mrb[0].mxu0
    %v7898 = vpop.f32.mrb[0].mxu0
    %v7899 = vadd.f32 0.0, %v7898
    %v7900 = vpop.f32.mrb[0].mxu0
    %7901 = vmatprep.mubr.bf16.mxu0 0
    %7902 = vmatmul.mubr.bf16.gmra.mrb[0].mxu0 %v7744
    %v7903 = vpop.f32.mrb[0].mxu0
    %v7904 = vadd.f32 0.0, %v7903
    %v7905 = vpop.f32.mrb[0].mxu0
    %v7906 = vpop.f32.mrb[0].mxu0
    %v7907 = vadd.f32 0.0, %v7906
    %v7908 = vpop.f32.mrb[0].mxu0
    %7909 = vmatprep.mubr.bf16.mxu0 0
    %7910 = vmatmul.mubr.bf16.gmra.mrb[0].mxu0 %v7745
    %v7911 = vpop.f32.mrb[0].mxu0
    %v7912 = vadd.f32 0.0, %v7911
    %v7913 = vpop.f32.mrb[0].mxu0
    %v7914 = vpop.f32.mrb[0].mxu0
    %v7915 = vadd.f32 0.0, %v7914
    %v7916 = vpop.f32.mrb[0].mxu0
    %7917 = vmatprep.mubr.bf16.mxu0 0
    %7918 = vmatmul.mubr.bf16.gmra.mrb[0].mxu0 %v7746
    %v7919 = vpop.f32.mrb[0].mxu0
    %v7920 = vadd.f32 0.0, %v7919
    %v7921 = vpop.f32.mrb[0].mxu0
    %v7922 = vpop.f32.mrb[0].mxu0
    %v7923 = vadd.f32 0.0, %v7922
    %v7924 = vpop.f32.mrb[0].mxu0
    %7925 = vmatprep.mubr.bf16.mxu0 0
    %7926 = vmatmul.mubr.bf16.gmra.mrb[0].mxu0 %v7747
    %v7927 = vpop.f32.mrb[0].mxu0
    %v7928 = vadd.f32 0.0, %v7927
    %v7929 = vpop.f32.mrb[0].mxu0
    %v7930 = vpop.f32.mrb[0].mxu0
    %v7931 = vadd.f32 0.0, %v7930
    %v7932 = vpop.f32.mrb[0].mxu0
    %7933 = vmatprep.mubr.bf16.mxu0 0
    %7934 = vmatmul.mubr.bf16.gmra.mrb[0].mxu0 %v7748
    %v7935 = vpop.f32.mrb[0].mxu0
    %v7936 = vadd.f32 0.0, %v7935
    %v7937 = vpop.f32.mrb[0].mxu0
    %v7938 = vpop.f32.mrb[0].mxu0
    %v7939 = vadd.f32 0.0, %v7938
    %v7940 = vpop.f32.mrb[0].mxu0
    %7941 = vmatprep.mubr.bf16.mxu0 0
    %7942 = vmatmul.mubr.bf16.gmra.mrb[0].mxu0 %v7749
    %v7943 = vpop.f32.mrb[0].mxu0
    %v7944 = vadd.f32 0.0, %v7943
    %v7945 = vpop.f32.mrb[0].mxu0
    %v7946 = vpop.f32.mrb[0].mxu0
    %v7947 = vadd.f32 0.0, %v7946
    %v7948 = vpop.f32.mrb[0].mxu0
    %7949 = vmatprep.mubr.bf16.mxu0 0
    %7950 = vmatmul.mubr.bf16.gmra.mrb[0].mxu0 %v7750
    %v7951 = vpop.f32.mrb[0].mxu0
    %v7952 = vadd.f32 0.0, %v7951
    %v7953 = vpop.f32.mrb[0].mxu0
    %v7954 = vpop.f32.mrb[0].mxu0
    %v7955 = vadd.f32 0.0, %v7954
    %v7956 = vpop.f32.mrb[0].mxu0
    %7957 = vmatprep.mubr.bf16.mxu0 0
    %7958 = vmatmul.mubr.bf16.gmra.mrb[0].mxu0 %v7751
    %v7959 = vpop.f32.mrb[0].mxu0
    %v7960 = vadd.f32 0.0, %v7959
    %v7961 = vpop.f32.mrb[0].mxu0
    %v7962 = vpop.f32.mrb[0].mxu0
    %v7963 = vadd.f32 0.0, %v7962
    %v7964 = vpop.f32.mrb[0].mxu0
    %7965 = vmatprep.mubr.bf16.mxu0 0
    %7966 = vmatmul.mubr.bf16.gmra.mrb[0].mxu0 %v7752
    %v7967 = vpop.f32.mrb[0].mxu0
    %v7968 = vadd.f32 0.0, %v7967
    %v7969 = vpop.f32.mrb[0].mxu0
    %v7970 = vpop.f32.mrb[0].mxu0
    %v7971 = vadd.f32 0.0, %v7970
    %v7972 = vpop.f32.mrb[0].mxu0
    %7973 = vmatprep.mubr.bf16.mxu0 0
    %7974 = vmatmul.mubr.bf16.gmra.mrb[0].mxu0 %v7753
    %v7975 = vpop.f32.mrb[0].mxu0
    %v7976 = vadd.f32 0.0, %v7975
    %v7977 = vpop.f32.mrb[0].mxu0
    %v7978 = vpop.f32.mrb[0].mxu0
    %v7979 = vadd.f32 0.0, %v7978
    %v7980 = vpop.f32.mrb[0].mxu0
    %7981 = vmatprep.mubr.bf16.mxu0 0
    %7982 = vmatmul.mubr.bf16.gmra.mrb[0].mxu0 %v7754
    %v7983 = vpop.f32.mrb[0].mxu0
    %v7984 = vadd.f32 0.0, %v7983
    %v7985 = vpop.f32.mrb[0].mxu0
    %v7986 = vpop.f32.mrb[0].mxu0
    %v7987 = vadd.f32 0.0, %v7986
    %v7988 = vpop.f32.mrb[0].mxu0
    %7989 = vmatprep.mubr.bf16.mxu0 0
    %7990 = vmatmul.mubr.bf16.gmra.mrb[0].mxu0 %v7755
    %v7991 = vpop.f32.mrb[0].mxu0
    %v7992 = vadd.f32 0.0, %v7991
    %v7993 = vpop.f32.mrb[0].mxu0
    %v7994 = vpop.f32.mrb[0].mxu0
    %v7995 = vadd.f32 0.0, %v7994
    %v7996 = vpop.f32.mrb[0].mxu0
    %7997 = vmatprep.mubr.bf16.mxu0 0
    %7998 = vmatmul.mubr.bf16.gmra.mrb[0].mxu0 %v7756
    %v7999 = vpop.f32.mrb[0].mxu0
    %v8000 = vadd.f32 0.0, %v7999
    %v8001 = vpop.f32.mrb[0].mxu0
    %v8002 = vpop.f32.mrb[0].mxu0
    %v8003 = vadd.f32 0.0, %v8002
    %v8004 = vpop.f32.mrb[0].mxu0
    %8005 = vmatprep.mubr.bf16.mxu0 0
    %8006 = vmatmul.mubr.bf16.gmra.mrb[0].mxu0 %v7757
    %v8007 = vpop.f32.mrb[0].mxu0
    %v8008 = vadd.f32 0.0, %v8007
    %v8009 = vpop.f32.mrb[0].mxu0
    %v8010 = vpop.f32.mrb[0].mxu0
    %v8011 = vadd.f32 0.0, %v8010
    %v8012 = vpop.f32.mrb[0].mxu0
    %8013 = vmatprep.mubr.bf16.mxu0 0
    %8014 = vmatmul.mubr.bf16.gmra.mrb[0].mxu0 %v7758
    %v8015 = vpop.f32.mrb[0].mxu0
    %v8016 = vadd.f32 0.0, %v8015
    %v8017 = vpop.f32.mrb[0].mxu0
    %v8018 = vpop.f32.mrb[0].mxu0
    %v8019 = vadd.f32 0.0, %v8018
    %v8020 = vpop.f32.mrb[0].mxu0
    %8021 = vmatprep.mubr.bf16.mxu0 0
    %8022 = vmatmul.mubr.bf16.gmra.mrb[0].mxu0 %v7759
    %v8023 = vpop.f32.mrb[0].mxu0
    %v8024 = vadd.f32 0.0, %v8023
    %v8025 = vpop.f32.mrb[0].mxu0
    %v8026 = vpop.f32.mrb[0].mxu0
    %v8027 = vadd.f32 0.0, %v8026
    %v8028 = vpop.f32.mrb[0].mxu0
    %8029 = vmatprep.mubr.bf16.mxu0 0
    %8030 = vmatmul.mubr.bf16.gmra.mrb[0].mxu0 %v7760
    %v8031 = vpop.f32.mrb[0].mxu0
    %v8032 = vadd.f32 0.0, %v8031
    %v8033 = vpop.f32.mrb[0].mxu0
    %v8034 = vpop.f32.mrb[0].mxu0
    %v8035 = vadd.f32 0.0, %v8034
    %v8036 = vpop.f32.mrb[0].mxu0
    %8037 = vmatprep.mubr.bf16.mxu0 0
    %8038 = vmatmul.mubr.bf16.gmra.mrb[0].mxu0 %v7761
    %v8039 = vpop.f32.mrb[0].mxu0
    %v8040 = vadd.f32 0.0, %v8039
    %v8041 = vpop.f32.mrb[0].mxu0
    %v8042 = vpop.f32.mrb[0].mxu0
    %v8043 = vadd.f32 0.0, %v8042
    %v8044 = vpop.f32.mrb[0].mxu0
    %8045 = vmatprep.mubr.bf16.mxu0 0
    %8046 = vmatmul.mubr.bf16.gmra.mrb[0].mxu0 %v7762
    %v8047 = vpop.f32.mrb[0].mxu0
    %v8048 = vadd.f32 0.0, %v8047
    %v8049 = vpop.f32.mrb[0].mxu0
    %v8050 = vpop.f32.mrb[0].mxu0
    %v8051 = vadd.f32 0.0, %v8050
    %v8052 = vpop.f32.mrb[0].mxu0
    %8053 = vmatprep.mubr.bf16.mxu0 0
    %8054 = vmatmul.mubr.bf16.gmra.mrb[0].mxu0 %v7763
    %v8055 = vpop.f32.mrb[0].mxu0
    %v8056 = vadd.f32 0.0, %v8055
    %v8057 = vpop.f32.mrb[0].mxu0
    %v8058 = vpop.f32.mrb[0].mxu0
    %v8059 = vadd.f32 0.0, %v8058
    %v8060 = vpop.f32.mrb[0].mxu0
    %8061 = vmatprep.mubr.bf16.mxu0 0
    %8062 = vmatmul.mubr.bf16.gmra.mrb[0].mxu0 %v7764
    %v8063 = vpop.f32.mrb[0].mxu0
    %v8064 = vadd.f32 0.0, %v8063
    %v8065 = vpop.f32.mrb[0].mxu0
    %v8066 = vpop.f32.mrb[0].mxu0
    %v8067 = vadd.f32 0.0, %v8066
    %v8068 = vpop.f32.mrb[0].mxu0
    %8069 = vmatprep.mubr.bf16.mxu0 0
    %8070 = vmatmul.mubr.bf16.gmra.mrb[0].mxu0 %v7765
    %v8071 = vpop.f32.mrb[0].mxu0
    %v8072 = vadd.f32 0.0, %v8071
    %v8073 = vpop.f32.mrb[0].mxu0
    %v8074 = vpop.f32.mrb[0].mxu0
    %v8075 = vadd.f32 0.0, %v8074
    %v8076 = vpop.f32.mrb[0].mxu0
    %8077 = vmatprep.mubr.bf16.mxu0 0
    %8078 = vmatmul.mubr.bf16.gmra.mrb[0].mxu0 %v7766
    %v8079 = vpop.f32.mrb[0].mxu0
    %v8080 = vadd.f32 0.0, %v8079
    %v8081 = vpop.f32.mrb[0].mxu0
    %v8082 = vpop.f32.mrb[0].mxu0
    %v8083 = vadd.f32 0.0, %v8082
    %v8084 = vpop.f32.mrb[0].mxu0
    %8085 = vmatprep.mubr.bf16.mxu0 0
    %8086 = vmatmul.mubr.bf16.gmra.mrb[0].mxu0 %v7767
    %v8087 = vpop.f32.mrb[0].mxu0
    %v8088 = vadd.f32 0.0, %v8087
    %v8089 = vpop.f32.mrb[0].mxu0
    %v8090 = vpop.f32.mrb[0].mxu0
    %v8091 = vadd.f32 0.0, %v8090
    %v8092 = vpop.f32.mrb[0].mxu0
    %8093 = vmatprep.mubr.bf16.mxu0 0
    %8094 = vmatmul.mubr.bf16.gmra.mrb[0].mxu0 %v7768
    %v8095 = vpop.f32.mrb[0].mxu0
    %v8096 = vadd.f32 0.0, %v8095
    %v8097 = vpop.f32.mrb[0].mxu0
    %v8098 = vpop.f32.mrb[0].mxu0
    %v8099 = vadd.f32 0.0, %v8098
    %v8100 = vpop.f32.mrb[0].mxu0
    %8101 = vmatprep.mubr.bf16.mxu0 0
    %8102 = vmatmul.mubr.bf16.gmra.mrb[0].mxu0 %v7769
    %v8103 = vpop.f32.mrb[0].mxu0
    %v8104 = vadd.f32 0.0, %v8103
    %v8105 = vpop.f32.mrb[0].mxu0
    %v8106 = vpop.f32.mrb[0].mxu0
    %v8107 = vadd.f32 0.0, %v8106
    %v8108 = vpop.f32.mrb[0].mxu0
    %8109 = vmatprep.mubr.bf16.mxu0 0
    %8110 = vmatmul.mubr.bf16.gmra.mrb[0].mxu0 %v7770
    %v8111 = vpop.f32.mrb[0].mxu0
    %v8112 = vadd.f32 0.0, %v8111
    %v8113 = vpop.f32.mrb[0].mxu0
    %v8114 = vpop.f32.mrb[0].mxu0
    %v8115 = vadd.f32 0.0, %v8114
    %v8116 = vpop.f32.mrb[0].mxu0
    %8117 = vmatprep.mubr.bf16.mxu0 0
    %8118 = vmatmul.mubr.bf16.gmra.mrb[0].mxu0 %v7771
    %v8119 = vpop.f32.mrb[0].mxu0
    %v8120 = vadd.f32 0.0, %v8119
    %v8121 = vpop.f32.mrb[0].mxu0
    %v8122 = vpop.f32.mrb[0].mxu0
    %v8123 = vadd.f32 0.0, %v8122
    %v8124 = vpop.f32.mrb[0].mxu0
    %8125 = vdwg.mxu0
    %v8126 = vadd.f32 %v7872, %v7875
    %v8127 = vadd.f32 %v8126, %v7880
    %v8128 = vadd.f32 %v8127, %v7883
    %v8129 = vadd.f32 %v8128, %v7888
    %v8130 = vadd.f32 %v8129, %v7891
    %v8131 = vadd.f32 %v8130, %v7896
    %v8132 = vadd.f32 %v8131, %v7899
    %v8133 = vadd.f32 %v8132, %v7904
    %v8134 = vadd.f32 %v8133, %v7907
    %v8135 = vadd.f32 %v8134, %v7912
    %v8136 = vadd.f32 %v8135, %v7915
    %v8137 = vadd.f32 %v8136, %v7920
    %v8138 = vadd.f32 %v8137, %v7923
    %v8139 = vadd.f32 %v8138, %v7928
    %v8140 = vadd.f32 %v8139, %v7931
    %v8141 = vadd.f32 %v8140, %v7936
    %v8142 = vadd.f32 %v8141, %v7939
    %v8143 = vadd.f32 %v8142, %v7944
    %v8144 = vadd.f32 %v8143, %v7947
    %v8145 = vadd.f32 %v8144, %v7952
    %v8146 = vadd.f32 %v8145, %v7955
    %v8147 = vadd.f32 %v8146, %v7960
    %v8148 = vadd.f32 %v8147, %v7963
    %v8149 = vadd.f32 %v8148, %v7968
    %v8150 = vadd.f32 %v8149, %v7971
    %v8151 = vadd.f32 %v8150, %v7976
    %v8152 = vadd.f32 %v8151, %v7979
    %v8153 = vadd.f32 %v8152, %v7984
    %v8154 = vadd.f32 %v8153, %v7987
    %v8155 = vadd.f32 %v8154, %v7992
    %v8156 = vadd.f32 %v8155, %v7995
    %v8157 = vadd.f32 %v8156, %v8000
    %v8158 = vadd.f32 %v8157, %v8003
    %v8159 = vadd.f32 %v8158, %v8008
    %v8160 = vadd.f32 %v8159, %v8011
    %v8161 = vadd.f32 %v8160, %v8016
    %v8162 = vadd.f32 %v8161, %v8019
    %v8163 = vadd.f32 %v8162, %v8024
    %v8164 = vadd.f32 %v8163, %v8027
    %v8165 = vadd.f32 %v8164, %v8032
    %v8166 = vadd.f32 %v8165, %v8035
    %v8167 = vadd.f32 %v8166, %v8040
    %v8168 = vadd.f32 %v8167, %v8043
    %v8169 = vadd.f32 %v8168, %v8048
    %v8170 = vadd.f32 %v8169, %v8051
    %v8171 = vadd.f32 %v8170, %v8056
    %v8172 = vadd.f32 %v8171, %v8059
    %v8173 = vadd.f32 %v8172, %v8064
    %v8174 = vadd.f32 %v8173, %v8067
    %v8175 = vadd.f32 %v8174, %v8072
    %v8176 = vadd.f32 %v8175, %v8075
    %v8177 = vadd.f32 %v8176, %v8080
    %v8178 = vadd.f32 %v8177, %v8083
    %v8179 = vadd.f32 %v8178, %v8088
    %v8180 = vadd.f32 %v8179, %v8091
    %v8181 = vadd.f32 %v8180, %v8096
    %v8182 = vadd.f32 %v8181, %v8099
    %v8183 = vadd.f32 %v8182, %v8104
    %v8184 = vadd.f32 %v8183, %v8107
    %v8185 = vadd.f32 %v8184, %v8112
    %v8186 = vadd.f32 %v8185, %v8115
    %v8187 = vadd.f32 %v8186, %v8120
    %v8188 = vadd.f32 %v8187, %v8123
    %v8189 = vrot.slane %v8188, 4
    %v8190 = vadd.f32 %v8188, %v8189
    %v8191 = vrot.slane %v8190, 2
    %v8192 = vadd.f32 %v8190, %v8191
    %v8193 = vrot.slane %v8192, 1
    %v8194 = vadd.f32 %v8192, %v8193
    %v8195 = vmul.f32 %v7872, %v7872
    %v8196 = vmul.f32 %v7875, %v7875
    %v8197 = vmul.f32 %v7880, %v7880
    %v8198 = vmul.f32 %v7883, %v7883
    %v8199 = vmul.f32 %v7888, %v7888
    %v8200 = vmul.f32 %v7891, %v7891
    %v8201 = vmul.f32 %v7896, %v7896
    %v8202 = vmul.f32 %v7899, %v7899
    %v8203 = vmul.f32 %v7904, %v7904
    %v8204 = vmul.f32 %v7907, %v7907
    %v8205 = vmul.f32 %v7912, %v7912
    %v8206 = vmul.f32 %v7915, %v7915
    %v8207 = vmul.f32 %v7920, %v7920
    %v8208 = vmul.f32 %v7923, %v7923
    %v8209 = vmul.f32 %v7928, %v7928
    %v8210 = vmul.f32 %v7931, %v7931
    %v8211 = vmul.f32 %v7936, %v7936
    %v8212 = vmul.f32 %v7939, %v7939
    %v8213 = vmul.f32 %v7944, %v7944
    %v8214 = vmul.f32 %v7947, %v7947
    %v8215 = vmul.f32 %v7952, %v7952
    %v8216 = vmul.f32 %v7955, %v7955
    %v8217 = vmul.f32 %v7960, %v7960
    %v8218 = vmul.f32 %v7963, %v7963
    %v8219 = vmul.f32 %v7968, %v7968
    %v8220 = vmul.f32 %v7971, %v7971
    %v8221 = vmul.f32 %v7976, %v7976
    %v8222 = vmul.f32 %v7979, %v7979
    %v8223 = vmul.f32 %v7984, %v7984
    %v8224 = vmul.f32 %v7987, %v7987
    %v8225 = vmul.f32 %v7992, %v7992
    %v8226 = vmul.f32 %v7995, %v7995
    %v8227 = vmul.f32 %v8000, %v8000
    %v8228 = vmul.f32 %v8003, %v8003
    %v8229 = vmul.f32 %v8008, %v8008
    %v8230 = vmul.f32 %v8011, %v8011
    %v8231 = vmul.f32 %v8016, %v8016
    %v8232 = vmul.f32 %v8019, %v8019
    %v8233 = vmul.f32 %v8024, %v8024
    %v8234 = vmul.f32 %v8027, %v8027
    %v8235 = vmul.f32 %v8032, %v8032
    %v8236 = vmul.f32 %v8035, %v8035
    %v8237 = vmul.f32 %v8040, %v8040
    %v8238 = vmul.f32 %v8043, %v8043
    %v8239 = vmul.f32 %v8048, %v8048
    %v8240 = vmul.f32 %v8051, %v8051
    %v8241 = vmul.f32 %v8056, %v8056
    %v8242 = vmul.f32 %v8059, %v8059
    %v8243 = vmul.f32 %v8064, %v8064
    %v8244 = vmul.f32 %v8067, %v8067
    %v8245 = vmul.f32 %v8072, %v8072
    %v8246 = vmul.f32 %v8075, %v8075
    %v8247 = vmul.f32 %v8080, %v8080
    %v8248 = vmul.f32 %v8083, %v8083
    %v8249 = vmul.f32 %v8088, %v8088
    %v8250 = vmul.f32 %v8091, %v8091
    %v8251 = vmul.f32 %v8096, %v8096
    %v8252 = vmul.f32 %v8099, %v8099
    %v8253 = vmul.f32 %v8104, %v8104
    %v8254 = vmul.f32 %v8107, %v8107
    %v8255 = vmul.f32 %v8112, %v8112
    %v8256 = vmul.f32 %v8115, %v8115
    %v8257 = vmul.f32 %v8120, %v8120
    %v8258 = vmul.f32 %v8123, %v8123
    %v8259 = vadd.f32 %v8195, %v8196
    %v8260 = vadd.f32 %v8259, %v8197
    %v8261 = vadd.f32 %v8260, %v8198
    %v8262 = vadd.f32 %v8261, %v8199
    %v8263 = vadd.f32 %v8262, %v8200
    %v8264 = vadd.f32 %v8263, %v8201
    %v8265 = vadd.f32 %v8264, %v8202
    %v8266 = vadd.f32 %v8265, %v8203
    %v8267 = vadd.f32 %v8266, %v8204
    %v8268 = vadd.f32 %v8267, %v8205
    %v8269 = vadd.f32 %v8268, %v8206
    %v8270 = vadd.f32 %v8269, %v8207
    %v8271 = vadd.f32 %v8270, %v8208
    %v8272 = vadd.f32 %v8271, %v8209
    %v8273 = vadd.f32 %v8272, %v8210
    %v8274 = vadd.f32 %v8273, %v8211
    %v8275 = vadd.f32 %v8274, %v8212
    %v8276 = vadd.f32 %v8275, %v8213
    %v8277 = vadd.f32 %v8276, %v8214
    %v8278 = vadd.f32 %v8277, %v8215
    %v8279 = vadd.f32 %v8278, %v8216
    %v8280 = vadd.f32 %v8279, %v8217
    %v8281 = vadd.f32 %v8280, %v8218
    %v8282 = vadd.f32 %v8281, %v8219
    %v8283 = vadd.f32 %v8282, %v8220
    %v8284 = vadd.f32 %v8283, %v8221
    %v8285 = vadd.f32 %v8284, %v8222
    %v8286 = vadd.f32 %v8285, %v8223
    %v8287 = vadd.f32 %v8286, %v8224
    %v8288 = vadd.f32 %v8287, %v8225
    %v8289 = vadd.f32 %v8288, %v8226
    %v8290 = vadd.f32 %v8289, %v8227
    %v8291 = vadd.f32 %v8290, %v8228
    %v8292 = vadd.f32 %v8291, %v8229
    %v8293 = vadd.f32 %v8292, %v8230
    %v8294 = vadd.f32 %v8293, %v8231
    %v8295 = vadd.f32 %v8294, %v8232
    %v8296 = vadd.f32 %v8295, %v8233
    %v8297 = vadd.f32 %v8296, %v8234
    %v8298 = vadd.f32 %v8297, %v8235
    %v8299 = vadd.f32 %v8298, %v8236
    %v8300 = vadd.f32 %v8299, %v8237
    %v8301 = vadd.f32 %v8300, %v8238
    %v8302 = vadd.f32 %v8301, %v8239
    %v8303 = vadd.f32 %v8302, %v8240
    %v8304 = vadd.f32 %v8303, %v8241
    %v8305 = vadd.f32 %v8304, %v8242
    %v8306 = vadd.f32 %v8305, %v8243
    %v8307 = vadd.f32 %v8306, %v8244
    %v8308 = vadd.f32 %v8307, %v8245
    %v8309 = vadd.f32 %v8308, %v8246
    %v8310 = vadd.f32 %v8309, %v8247
    %v8311 = vadd.f32 %v8310, %v8248
    %v8312 = vadd.f32 %v8311, %v8249
    %v8313 = vadd.f32 %v8312, %v8250
    %v8314 = vadd.f32 %v8313, %v8251
    %v8315 = vadd.f32 %v8314, %v8252
    %v8316 = vadd.f32 %v8315, %v8253
    %v8317 = vadd.f32 %v8316, %v8254
    %v8318 = vadd.f32 %v8317, %v8255
    %v8319 = vadd.f32 %v8318, %v8256
    %v8320 = vadd.f32 %v8319, %v8257
    %v8321 = vadd.f32 %v8320, %v8258
    %v8322 = vrot.slane %v8321, 4
    %v8323 = vadd.f32 %v8321, %v8322
    %v8324 = vrot.slane %v8323, 2
    %v8325 = vadd.f32 %v8323, %v8324
    %v8326 = vrot.slane %v8325, 1
    %v8327 = vadd.f32 %v8325, %v8326
    %v8328 = vmul.f32 %v8194, 0.001953125
    %v8329 = vmul.f32 %v8327, 0.001953125
    %v8330 = vmul.f32 %v8328, %v8328
    %v8331 = vsub.f32 %v8329, %v8330
    %v8332 = vmax.f32 %v8331, 0.0
    %v8333 = vld [vmem:[%s2 + $0x2] sm:$0x1]
    %v8334 = vld [vmem:[%s2 + $0x3] sm:$0x1]
    %v8335 = vadd.f32 %v8332, 1e-05
    %v8336 = vrsqrt.pop %v8335
    %v8337 = vmul.f32 %v8333, %v8336
    %v8338 = vmul.f32 %v8328, %v8337
    %v8339 = vsub.f32 %v8334, %v8338
    %v8340 = vlaneseq
    %v8341 = vshrl.u32 %v8340, 7
    %v8342 = vsub.s32 0, %v8341
    %v8343 = vrot.slane %v8337, %v8342
    %v8344 = vmul.f32 %v7872, %v8343
    %v8345 = vmul.f32 %v7875, %v8343
    %v8346 = vmul.f32 %v7880, %v8343
    %v8347 = vmul.f32 %v7883, %v8343
    %v8348 = vmul.f32 %v7888, %v8343
    %v8349 = vmul.f32 %v7891, %v8343
    %v8350 = vmul.f32 %v7896, %v8343
    %v8351 = vmul.f32 %v7899, %v8343
    %v8352 = vmul.f32 %v7904, %v8343
    %v8353 = vmul.f32 %v7907, %v8343
    %v8354 = vmul.f32 %v7912, %v8343
    %v8355 = vmul.f32 %v7915, %v8343
    %v8356 = vmul.f32 %v7920, %v8343
    %v8357 = vmul.f32 %v7923, %v8343
    %v8358 = vmul.f32 %v7928, %v8343
    %v8359 = vmul.f32 %v7931, %v8343
    %v8360 = vmul.f32 %v7936, %v8343
    %v8361 = vmul.f32 %v7939, %v8343
    %v8362 = vmul.f32 %v7944, %v8343
    %v8363 = vmul.f32 %v7947, %v8343
    %v8364 = vmul.f32 %v7952, %v8343
    %v8365 = vmul.f32 %v7955, %v8343
    %v8366 = vmul.f32 %v7960, %v8343
    %v8367 = vmul.f32 %v7963, %v8343
    %v8368 = vmul.f32 %v7968, %v8343
    %v8369 = vmul.f32 %v7971, %v8343
    %v8370 = vmul.f32 %v7976, %v8343
    %v8371 = vmul.f32 %v7979, %v8343
    %v8372 = vmul.f32 %v7984, %v8343
    %v8373 = vmul.f32 %v7987, %v8343
    %v8374 = vmul.f32 %v7992, %v8343
    %v8375 = vmul.f32 %v7995, %v8343
    %v8376 = vmul.f32 %v8000, %v8343
    %v8377 = vmul.f32 %v8003, %v8343
    %v8378 = vmul.f32 %v8008, %v8343
    %v8379 = vmul.f32 %v8011, %v8343
    %v8380 = vmul.f32 %v8016, %v8343
    %v8381 = vmul.f32 %v8019, %v8343
    %v8382 = vmul.f32 %v8024, %v8343
    %v8383 = vmul.f32 %v8027, %v8343
    %v8384 = vmul.f32 %v8032, %v8343
    %v8385 = vmul.f32 %v8035, %v8343
    %v8386 = vmul.f32 %v8040, %v8343
    %v8387 = vmul.f32 %v8043, %v8343
    %v8388 = vmul.f32 %v8048, %v8343
    %v8389 = vmul.f32 %v8051, %v8343
    %v8390 = vmul.f32 %v8056, %v8343
    %v8391 = vmul.f32 %v8059, %v8343
    %v8392 = vmul.f32 %v8064, %v8343
    %v8393 = vmul.f32 %v8067, %v8343
    %v8394 = vmul.f32 %v8072, %v8343
    %v8395 = vmul.f32 %v8075, %v8343
    %v8396 = vmul.f32 %v8080, %v8343
    %v8397 = vmul.f32 %v8083, %v8343
    %v8398 = vmul.f32 %v8088, %v8343
    %v8399 = vmul.f32 %v8091, %v8343
    %v8400 = vmul.f32 %v8096, %v8343
    %v8401 = vmul.f32 %v8099, %v8343
    %v8402 = vmul.f32 %v8104, %v8343
    %v8403 = vmul.f32 %v8107, %v8343
    %v8404 = vmul.f32 %v8112, %v8343
    %v8405 = vmul.f32 %v8115, %v8343
    %v8406 = vmul.f32 %v8120, %v8343
    %v8407 = vmul.f32 %v8123, %v8343
    %v8408 = vlaneseq
    %v8409 = vshrl.u32 %v8408, 7
    %v8410 = vsub.s32 0, %v8409
    %v8411 = vrot.slane %v8339, %v8410
    %v8412 = vadd.f32 %v8344, %v8411
    %v8413 = vadd.f32 %v8345, %v8411
    %v8414 = vadd.f32 %v8346, %v8411
    %v8415 = vadd.f32 %v8347, %v8411
    %v8416 = vadd.f32 %v8348, %v8411
    %v8417 = vadd.f32 %v8349, %v8411
    %v8418 = vadd.f32 %v8350, %v8411
    %v8419 = vadd.f32 %v8351, %v8411
    %v8420 = vadd.f32 %v8352, %v8411
    %v8421 = vadd.f32 %v8353, %v8411
    %v8422 = vadd.f32 %v8354, %v8411
    %v8423 = vadd.f32 %v8355, %v8411
    %v8424 = vadd.f32 %v8356, %v8411
    %v8425 = vadd.f32 %v8357, %v8411
    %v8426 = vadd.f32 %v8358, %v8411
    %v8427 = vadd.f32 %v8359, %v8411
    %v8428 = vadd.f32 %v8360, %v8411
    %v8429 = vadd.f32 %v8361, %v8411
    %v8430 = vadd.f32 %v8362, %v8411
    %v8431 = vadd.f32 %v8363, %v8411
    %v8432 = vadd.f32 %v8364, %v8411
    %v8433 = vadd.f32 %v8365, %v8411
    %v8434 = vadd.f32 %v8366, %v8411
    %v8435 = vadd.f32 %v8367, %v8411
    %v8436 = vadd.f32 %v8368, %v8411
    %v8437 = vadd.f32 %v8369, %v8411
    %v8438 = vadd.f32 %v8370, %v8411
    %v8439 = vadd.f32 %v8371, %v8411
    %v8440 = vadd.f32 %v8372, %v8411
    %v8441 = vadd.f32 %v8373, %v8411
    %v8442 = vadd.f32 %v8374, %v8411
    %v8443 = vadd.f32 %v8375, %v8411
    %v8444 = vadd.f32 %v8376, %v8411
    %v8445 = vadd.f32 %v8377, %v8411
    %v8446 = vadd.f32 %v8378, %v8411
    %v8447 = vadd.f32 %v8379, %v8411
    %v8448 = vadd.f32 %v8380, %v8411
    %v8449 = vadd.f32 %v8381, %v8411
    %v8450 = vadd.f32 %v8382, %v8411
    %v8451 = vadd.f32 %v8383, %v8411
    %v8452 = vadd.f32 %v8384, %v8411
    %v8453 = vadd.f32 %v8385, %v8411
    %v8454 = vadd.f32 %v8386, %v8411
    %v8455 = vadd.f32 %v8387, %v8411
    %v8456 = vadd.f32 %v8388, %v8411
    %v8457 = vadd.f32 %v8389, %v8411
    %v8458 = vadd.f32 %v8390, %v8411
    %v8459 = vadd.f32 %v8391, %v8411
    %v8460 = vadd.f32 %v8392, %v8411
    %v8461 = vadd.f32 %v8393, %v8411
    %v8462 = vadd.f32 %v8394, %v8411
    %v8463 = vadd.f32 %v8395, %v8411
    %v8464 = vadd.f32 %v8396, %v8411
    %v8465 = vadd.f32 %v8397, %v8411
    %v8466 = vadd.f32 %v8398, %v8411
    %v8467 = vadd.f32 %v8399, %v8411
    %v8468 = vadd.f32 %v8400, %v8411
    %v8469 = vadd.f32 %v8401, %v8411
    %v8470 = vadd.f32 %v8402, %v8411
    %v8471 = vadd.f32 %v8403, %v8411
    %v8472 = vadd.f32 %v8404, %v8411
    %v8473 = vadd.f32 %v8405, %v8411
    %v8474 = vadd.f32 %v8406, %v8411
    %v8475 = vadd.f32 %v8407, %v8411
    %v8476 = vmax.f32 %v8412, 0.0
    %v8477 = vmax.f32 %v8413, 0.0
    %v8478 = vmax.f32 %v8414, 0.0
    %v8479 = vmax.f32 %v8415, 0.0
    %v8480 = vmax.f32 %v8416, 0.0
    %v8481 = vmax.f32 %v8417, 0.0
    %v8482 = vmax.f32 %v8418, 0.0
    %v8483 = vmax.f32 %v8419, 0.0
    %v8484 = vmax.f32 %v8420, 0.0
    %v8485 = vmax.f32 %v8421, 0.0
    %v8486 = vmax.f32 %v8422, 0.0
    %v8487 = vmax.f32 %v8423, 0.0
    %v8488 = vmax.f32 %v8424, 0.0
    %v8489 = vmax.f32 %v8425, 0.0
    %v8490 = vmax.f32 %v8426, 0.0
    %v8491 = vmax.f32 %v8427, 0.0
    %v8492 = vmax.f32 %v8428, 0.0
    %v8493 = vmax.f32 %v8429, 0.0
    %v8494 = vmax.f32 %v8430, 0.0
    %v8495 = vmax.f32 %v8431, 0.0
    %v8496 = vmax.f32 %v8432, 0.0
    %v8497 = vmax.f32 %v8433, 0.0
    %v8498 = vmax.f32 %v8434, 0.0
    %v8499 = vmax.f32 %v8435, 0.0
    %v8500 = vmax.f32 %v8436, 0.0
    %v8501 = vmax.f32 %v8437, 0.0
    %v8502 = vmax.f32 %v8438, 0.0
    %v8503 = vmax.f32 %v8439, 0.0
    %v8504 = vmax.f32 %v8440, 0.0
    %v8505 = vmax.f32 %v8441, 0.0
    %v8506 = vmax.f32 %v8442, 0.0
    %v8507 = vmax.f32 %v8443, 0.0
    %v8508 = vmax.f32 %v8444, 0.0
    %v8509 = vmax.f32 %v8445, 0.0
    %v8510 = vmax.f32 %v8446, 0.0
    %v8511 = vmax.f32 %v8447, 0.0
    %v8512 = vmax.f32 %v8448, 0.0
    %v8513 = vmax.f32 %v8449, 0.0
    %v8514 = vmax.f32 %v8450, 0.0
    %v8515 = vmax.f32 %v8451, 0.0
    %v8516 = vmax.f32 %v8452, 0.0
    %v8517 = vmax.f32 %v8453, 0.0
    %v8518 = vmax.f32 %v8454, 0.0
    %v8519 = vmax.f32 %v8455, 0.0
    %v8520 = vmax.f32 %v8456, 0.0
    %v8521 = vmax.f32 %v8457, 0.0
    %v8522 = vmax.f32 %v8458, 0.0
    %v8523 = vmax.f32 %v8459, 0.0
    %v8524 = vmax.f32 %v8460, 0.0
    %v8525 = vmax.f32 %v8461, 0.0
    %v8526 = vmax.f32 %v8462, 0.0
    %v8527 = vmax.f32 %v8463, 0.0
    %v8528 = vmax.f32 %v8464, 0.0
    %v8529 = vmax.f32 %v8465, 0.0
    %v8530 = vmax.f32 %v8466, 0.0
    %v8531 = vmax.f32 %v8467, 0.0
    %v8532 = vmax.f32 %v8468, 0.0
    %v8533 = vmax.f32 %v8469, 0.0
    %v8534 = vmax.f32 %v8470, 0.0
    %v8535 = vmax.f32 %v8471, 0.0
    %v8536 = vmax.f32 %v8472, 0.0
    %v8537 = vmax.f32 %v8473, 0.0
    %v8538 = vmax.f32 %v8474, 0.0
    %v8539 = vmax.f32 %v8475, 0.0
    %v8540 = vrot.slane %v8476, 1
    %v8541 = vrot.slane %v8477, 1
    %v8542 = vrot.slane %v8478, 1
    %v8543 = vrot.slane %v8479, 1
    %v8544 = vrot.slane %v8480, 1
    %v8545 = vrot.slane %v8481, 1
    %v8546 = vrot.slane %v8482, 1
    %v8547 = vrot.slane %v8483, 1
    %v8548 = vrot.slane %v8484, 1
    %v8549 = vrot.slane %v8485, 1
    %v8550 = vrot.slane %v8486, 1
    %v8551 = vrot.slane %v8487, 1
    %v8552 = vrot.slane %v8488, 1
    %v8553 = vrot.slane %v8489, 1
    %v8554 = vrot.slane %v8490, 1
    %v8555 = vrot.slane %v8491, 1
    %v8556 = vrot.slane %v8492, 1
    %v8557 = vrot.slane %v8493, 1
    %v8558 = vrot.slane %v8494, 1
    %v8559 = vrot.slane %v8495, 1
    %v8560 = vrot.slane %v8496, 1
    %v8561 = vrot.slane %v8497, 1
    %v8562 = vrot.slane %v8498, 1
    %v8563 = vrot.slane %v8499, 1
    %v8564 = vrot.slane %v8500, 1
    %v8565 = vrot.slane %v8501, 1
    %v8566 = vrot.slane %v8502, 1
    %v8567 = vrot.slane %v8503, 1
    %v8568 = vrot.slane %v8504, 1
    %v8569 = vrot.slane %v8505, 1
    %v8570 = vrot.slane %v8506, 1
    %v8571 = vrot.slane %v8507, 1
    %v8572 = vrot.slane %v8508, 1
    %v8573 = vrot.slane %v8509, 1
    %v8574 = vrot.slane %v8510, 1
    %v8575 = vrot.slane %v8511, 1
    %v8576 = vrot.slane %v8512, 1
    %v8577 = vrot.slane %v8513, 1
    %v8578 = vrot.slane %v8514, 1
    %v8579 = vrot.slane %v8515, 1
    %v8580 = vrot.slane %v8516, 1
    %v8581 = vrot.slane %v8517, 1
    %v8582 = vrot.slane %v8518, 1
    %v8583 = vrot.slane %v8519, 1
    %v8584 = vrot.slane %v8520, 1
    %v8585 = vrot.slane %v8521, 1
    %v8586 = vrot.slane %v8522, 1
    %v8587 = vrot.slane %v8523, 1
    %v8588 = vrot.slane %v8524, 1
    %v8589 = vrot.slane %v8525, 1
    %v8590 = vrot.slane %v8526, 1
    %v8591 = vrot.slane %v8527, 1
    %v8592 = vrot.slane %v8528, 1
    %v8593 = vrot.slane %v8529, 1
    %v8594 = vrot.slane %v8530, 1
    %v8595 = vrot.slane %v8531, 1
    %v8596 = vrot.slane %v8532, 1
    %v8597 = vrot.slane %v8533, 1
    %v8598 = vrot.slane %v8534, 1
    %v8599 = vrot.slane %v8535, 1
    %v8600 = vrot.slane %v8536, 1
    %v8601 = vrot.slane %v8537, 1
    %v8602 = vrot.slane %v8538, 1
    %v8603 = vrot.slane %v8539, 1
    %v8604 = vsel %vm1308, %v8602, %v8603
    %v8605 = vsel %vm1308, %v8601, %v8602
    %v8606 = vsel %vm1308, %v8600, %v8601
    %v8607 = vsel %vm1308, %v8599, %v8600
    %v8608 = vsel %vm1308, %v8598, %v8599
    %v8609 = vsel %vm1308, %v8597, %v8598
    %v8610 = vsel %vm1308, %v8596, %v8597
    %v8611 = vsel %vm1308, %v8595, %v8596
    %v8612 = vsel %vm1308, %v8594, %v8595
    %v8613 = vsel %vm1308, %v8593, %v8594
    %v8614 = vsel %vm1308, %v8592, %v8593
    %v8615 = vsel %vm1308, %v8591, %v8592
    %v8616 = vsel %vm1308, %v8590, %v8591
    %v8617 = vsel %vm1308, %v8589, %v8590
    %v8618 = vsel %vm1308, %v8588, %v8589
    %v8619 = vsel %vm1308, %v8587, %v8588
    %v8620 = vsel %vm1308, %v8586, %v8587
    %v8621 = vsel %vm1308, %v8585, %v8586
    %v8622 = vsel %vm1308, %v8584, %v8585
    %v8623 = vsel %vm1308, %v8583, %v8584
    %v8624 = vsel %vm1308, %v8582, %v8583
    %v8625 = vsel %vm1308, %v8581, %v8582
    %v8626 = vsel %vm1308, %v8580, %v8581
    %v8627 = vsel %vm1308, %v8579, %v8580
    %v8628 = vsel %vm1308, %v8578, %v8579
    %v8629 = vsel %vm1308, %v8577, %v8578
    %v8630 = vsel %vm1308, %v8576, %v8577
    %v8631 = vsel %vm1308, %v8575, %v8576
    %v8632 = vsel %vm1308, %v8574, %v8575
    %v8633 = vsel %vm1308, %v8573, %v8574
    %v8634 = vsel %vm1308, %v8572, %v8573
    %v8635 = vsel %vm1308, %v8571, %v8572
    %v8636 = vsel %vm1308, %v8570, %v8571
    %v8637 = vsel %vm1308, %v8569, %v8570
    %v8638 = vsel %vm1308, %v8568, %v8569
    %v8639 = vsel %vm1308, %v8567, %v8568
    %v8640 = vsel %vm1308, %v8566, %v8567
    %v8641 = vsel %vm1308, %v8565, %v8566
    %v8642 = vsel %vm1308, %v8564, %v8565
    %v8643 = vsel %vm1308, %v8563, %v8564
    %v8644 = vsel %vm1308, %v8562, %v8563
    %v8645 = vsel %vm1308, %v8561, %v8562
    %v8646 = vsel %vm1308, %v8560, %v8561
    %v8647 = vsel %vm1308, %v8559, %v8560
    %v8648 = vsel %vm1308, %v8558, %v8559
    %v8649 = vsel %vm1308, %v8557, %v8558
    %v8650 = vsel %vm1308, %v8556, %v8557
    %v8651 = vsel %vm1308, %v8555, %v8556
    %v8652 = vsel %vm1308, %v8554, %v8555
    %v8653 = vsel %vm1308, %v8553, %v8554
    %v8654 = vsel %vm1308, %v8552, %v8553
    %v8655 = vsel %vm1308, %v8551, %v8552
    %v8656 = vsel %vm1308, %v8550, %v8551
    %v8657 = vsel %vm1308, %v8549, %v8550
    %v8658 = vsel %vm1308, %v8548, %v8549
    %v8659 = vsel %vm1308, %v8547, %v8548
    %v8660 = vsel %vm1308, %v8546, %v8547
    %v8661 = vsel %vm1308, %v8545, %v8546
    %v8662 = vsel %vm1308, %v8544, %v8545
    %v8663 = vsel %vm1308, %v8543, %v8544
    %v8664 = vsel %vm1308, %v8542, %v8543
    %v8665 = vsel %vm1308, %v8541, %v8542
    %v8666 = vsel %vm1308, %v8540, %v8541
    %v8667 = vsel %vm1308, %v8603, %v8540
    %v8668 = vmax.f32 %v8476, %v8666
    %v8669 = vmax.f32 %v8477, %v8665
    %v8670 = vmax.f32 %v8478, %v8664
    %v8671 = vmax.f32 %v8479, %v8663
    %v8672 = vmax.f32 %v8480, %v8662
    %v8673 = vmax.f32 %v8481, %v8661
    %v8674 = vmax.f32 %v8482, %v8660
    %v8675 = vmax.f32 %v8483, %v8659
    %v8676 = vmax.f32 %v8484, %v8658
    %v8677 = vmax.f32 %v8485, %v8657
    %v8678 = vmax.f32 %v8486, %v8656
    %v8679 = vmax.f32 %v8487, %v8655
    %v8680 = vmax.f32 %v8488, %v8654
    %v8681 = vmax.f32 %v8489, %v8653
    %v8682 = vmax.f32 %v8490, %v8652
    %v8683 = vmax.f32 %v8491, %v8651
    %v8684 = vmax.f32 %v8492, %v8650
    %v8685 = vmax.f32 %v8493, %v8649
    %v8686 = vmax.f32 %v8494, %v8648
    %v8687 = vmax.f32 %v8495, %v8647
    %v8688 = vmax.f32 %v8496, %v8646
    %v8689 = vmax.f32 %v8497, %v8645
    %v8690 = vmax.f32 %v8498, %v8644
    %v8691 = vmax.f32 %v8499, %v8643
    %v8692 = vmax.f32 %v8500, %v8642
    %v8693 = vmax.f32 %v8501, %v8641
    %v8694 = vmax.f32 %v8502, %v8640
    %v8695 = vmax.f32 %v8503, %v8639
    %v8696 = vmax.f32 %v8504, %v8638
    %v8697 = vmax.f32 %v8505, %v8637
    %v8698 = vmax.f32 %v8506, %v8636
    %v8699 = vmax.f32 %v8507, %v8635
    %v8700 = vmax.f32 %v8508, %v8634
    %v8701 = vmax.f32 %v8509, %v8633
    %v8702 = vmax.f32 %v8510, %v8632
    %v8703 = vmax.f32 %v8511, %v8631
    %v8704 = vmax.f32 %v8512, %v8630
    %v8705 = vmax.f32 %v8513, %v8629
    %v8706 = vmax.f32 %v8514, %v8628
    %v8707 = vmax.f32 %v8515, %v8627
    %v8708 = vmax.f32 %v8516, %v8626
    %v8709 = vmax.f32 %v8517, %v8625
    %v8710 = vmax.f32 %v8518, %v8624
    %v8711 = vmax.f32 %v8519, %v8623
    %v8712 = vmax.f32 %v8520, %v8622
    %v8713 = vmax.f32 %v8521, %v8621
    %v8714 = vmax.f32 %v8522, %v8620
    %v8715 = vmax.f32 %v8523, %v8619
    %v8716 = vmax.f32 %v8524, %v8618
    %v8717 = vmax.f32 %v8525, %v8617
    %v8718 = vmax.f32 %v8526, %v8616
    %v8719 = vmax.f32 %v8527, %v8615
    %v8720 = vmax.f32 %v8528, %v8614
    %v8721 = vmax.f32 %v8529, %v8613
    %v8722 = vmax.f32 %v8530, %v8612
    %v8723 = vmax.f32 %v8531, %v8611
    %v8724 = vmax.f32 %v8532, %v8610
    %v8725 = vmax.f32 %v8533, %v8609
    %v8726 = vmax.f32 %v8534, %v8608
    %v8727 = vmax.f32 %v8535, %v8607
    %v8728 = vmax.f32 %v8536, %v8606
    %v8729 = vmax.f32 %v8537, %v8605
    %v8730 = vmax.f32 %v8538, %v8604
    %v8731 = vmax.f32 %v8539, %v8667
    %v8732 = vmax.f32 %v8668, %v8670
    %v8733 = vmax.f32 %v8669, %v8671
    %v8734 = vmax.f32 %v8670, %v8672
    %v8735 = vmax.f32 %v8671, %v8673
    %v8736 = vmax.f32 %v8672, %v8674
    %v8737 = vmax.f32 %v8673, %v8675
    %v8738 = vmax.f32 %v8674, %v8676
    %v8739 = vmax.f32 %v8675, %v8677
    %v8740 = vmax.f32 %v8676, %v8678
    %v8741 = vmax.f32 %v8677, %v8679
    %v8742 = vmax.f32 %v8678, %v8680
    %v8743 = vmax.f32 %v8679, %v8681
    %v8744 = vmax.f32 %v8680, %v8682
    %v8745 = vmax.f32 %v8681, %v8683
    %v8746 = vmax.f32 %v8682, %v8684
    %v8747 = vmax.f32 %v8683, %v8685
    %v8748 = vmax.f32 %v8684, %v8686
    %v8749 = vmax.f32 %v8685, %v8687
    %v8750 = vmax.f32 %v8686, %v8688
    %v8751 = vmax.f32 %v8687, %v8689
    %v8752 = vmax.f32 %v8688, %v8690
    %v8753 = vmax.f32 %v8689, %v8691
    %v8754 = vmax.f32 %v8690, %v8692
    %v8755 = vmax.f32 %v8691, %v8693
    %v8756 = vmax.f32 %v8692, %v8694
    %v8757 = vmax.f32 %v8693, %v8695
    %v8758 = vmax.f32 %v8694, %v8696
    %v8759 = vmax.f32 %v8695, %v8697
    %v8760 = vmax.f32 %v8696, %v8698
    %v8761 = vmax.f32 %v8697, %v8699
    %v8762 = vmax.f32 %v8698, %v8700
    %v8763 = vmax.f32 %v8699, %v8701
    %v8764 = vmax.f32 %v8700, %v8702
    %v8765 = vmax.f32 %v8701, %v8703
    %v8766 = vmax.f32 %v8702, %v8704
    %v8767 = vmax.f32 %v8703, %v8705
    %v8768 = vmax.f32 %v8704, %v8706
    %v8769 = vmax.f32 %v8705, %v8707
    %v8770 = vmax.f32 %v8706, %v8708
    %v8771 = vmax.f32 %v8707, %v8709
    %v8772 = vmax.f32 %v8708, %v8710
    %v8773 = vmax.f32 %v8709, %v8711
    %v8774 = vmax.f32 %v8710, %v8712
    %v8775 = vmax.f32 %v8711, %v8713
    %v8776 = vmax.f32 %v8712, %v8714
    %v8777 = vmax.f32 %v8713, %v8715
    %v8778 = vmax.f32 %v8714, %v8716
    %v8779 = vmax.f32 %v8715, %v8717
    %v8780 = vmax.f32 %v8716, %v8718
    %v8781 = vmax.f32 %v8717, %v8719
    %v8782 = vmax.f32 %v8718, %v8720
    %v8783 = vmax.f32 %v8719, %v8721
    %v8784 = vmax.f32 %v8720, %v8722
    %v8785 = vmax.f32 %v8721, %v8723
    %v8786 = vmax.f32 %v8722, %v8724
    %v8787 = vmax.f32 %v8723, %v8725
    %v8788 = vmax.f32 %v8724, %v8726
    %v8789 = vmax.f32 %v8725, %v8727
    %v8790 = vmax.f32 %v8726, %v8728
    %v8791 = vmax.f32 %v8727, %v8729
    %v8792 = vmax.f32 %v8728, %v8730
    %v8793 = vmax.f32 %v8729, %v8731
    %v8794 = vmax.f32 %v8730, %v8668
    %v8795 = vmax.f32 %v8731, %v8669
    %v8796 = vld [vmem:[%s5] sm:$0xff]
    %v8797 = vld [vmem:[%s5 + $0x8] sm:$0xff]
    %v8798 = vld [vmem:[%s5 + $0x10] sm:$0xff]
    %v8799 = vld [vmem:[%s5 + $0x18] sm:$0xff]
    %v8800 = vld [vmem:[%s5 + $0x20] sm:$0xff]
    %v8801 = vld [vmem:[%s5 + $0x28] sm:$0xff]
    %v8802 = vld [vmem:[%s5 + $0x30] sm:$0xff]
    %v8803 = vld [vmem:[%s5 + $0x38] sm:$0xff]
    %v8804 = vld [vmem:[%s5 + $0x40] sm:$0xff]
    %v8805 = vld [vmem:[%s5 + $0x48] sm:$0xff]
    %v8806 = vld [vmem:[%s5 + $0x50] sm:$0xff]
    %v8807 = vld [vmem:[%s5 + $0x58] sm:$0xff]
    %v8808 = vld [vmem:[%s5 + $0x60] sm:$0xff]
    %v8809 = vld [vmem:[%s5 + $0x68] sm:$0xff]
    %v8810 = vld [vmem:[%s5 + $0x70] sm:$0xff]
    %v8811 = vld [vmem:[%s5 + $0x78] sm:$0xff]
    %v8812 = vld [vmem:[%s5 + $0x80] sm:$0xff]
    %v8813 = vld [vmem:[%s5 + $0x88] sm:$0xff]
    %v8814 = vld [vmem:[%s5 + $0x90] sm:$0xff]
    %v8815 = vld [vmem:[%s5 + $0x98] sm:$0xff]
    %v8816 = vld [vmem:[%s5 + $0xa0] sm:$0xff]
    %v8817 = vld [vmem:[%s5 + $0xa8] sm:$0xff]
    %v8818 = vld [vmem:[%s5 + $0xb0] sm:$0xff]
    %v8819 = vld [vmem:[%s5 + $0xb8] sm:$0xff]
    %v8820 = vld [vmem:[%s5 + $0xc0] sm:$0xff]
    %v8821 = vld [vmem:[%s5 + $0xc8] sm:$0xff]
    %v8822 = vld [vmem:[%s5 + $0xd0] sm:$0xff]
    %v8823 = vld [vmem:[%s5 + $0xd8] sm:$0xff]
    %v8824 = vld [vmem:[%s5 + $0xe0] sm:$0xff]
    %v8825 = vld [vmem:[%s5 + $0xe8] sm:$0xff]
    %v8826 = vld [vmem:[%s5 + $0xf0] sm:$0xff]
    %v8827 = vld [vmem:[%s5 + $0xf8] sm:$0xff]
    %v8828 = vpack.c.bf16 %v8733, %v8732
    %v8829 = vpack.c.bf16 %v8735, %v8734
    %v8830 = vpack.c.bf16 %v8737, %v8736
    %v8831 = vpack.c.bf16 %v8739, %v8738
    %v8832 = vpack.c.bf16 %v8741, %v8740
    %v8833 = vpack.c.bf16 %v8743, %v8742
    %v8834 = vpack.c.bf16 %v8745, %v8744
    %v8835 = vpack.c.bf16 %v8747, %v8746
    %v8836 = vpack.c.bf16 %v8749, %v8748
    %v8837 = vpack.c.bf16 %v8751, %v8750
    %v8838 = vpack.c.bf16 %v8753, %v8752
    %v8839 = vpack.c.bf16 %v8755, %v8754
    %v8840 = vpack.c.bf16 %v8757, %v8756
    %v8841 = vpack.c.bf16 %v8759, %v8758
    %v8842 = vpack.c.bf16 %v8761, %v8760
    %v8843 = vpack.c.bf16 %v8763, %v8762
    %v8844 = vpack.c.bf16 %v8765, %v8764
    %v8845 = vpack.c.bf16 %v8767, %v8766
    %v8846 = vpack.c.bf16 %v8769, %v8768
    %v8847 = vpack.c.bf16 %v8771, %v8770
    %v8848 = vpack.c.bf16 %v8773, %v8772
    %v8849 = vpack.c.bf16 %v8775, %v8774
    %v8850 = vpack.c.bf16 %v8777, %v8776
    %v8851 = vpack.c.bf16 %v8779, %v8778
    %v8852 = vpack.c.bf16 %v8781, %v8780
    %v8853 = vpack.c.bf16 %v8783, %v8782
    %v8854 = vpack.c.bf16 %v8785, %v8784
    %v8855 = vpack.c.bf16 %v8787, %v8786
    %v8856 = vpack.c.bf16 %v8789, %v8788
    %v8857 = vpack.c.bf16 %v8791, %v8790
    %v8858 = vpack.c.bf16 %v8793, %v8792
    %v8859 = vpack.c.bf16 %v8795, %v8794
    %v8892 = vunpack.c.l.b16 %v8796
    %v8893 = vunpack.c.h.b16 %v8796
    %v8894 = vunpack.c.l.b16 %v8797
    %v8895 = vunpack.c.h.b16 %v8797
    %v8896 = vunpack.c.l.b16 %v8798
    %v8897 = vunpack.c.h.b16 %v8798
    %v8898 = vunpack.c.l.b16 %v8799
    %v8899 = vunpack.c.h.b16 %v8799
    %v8900 = vunpack.c.l.b16 %v8800
    %v8901 = vunpack.c.h.b16 %v8800
    %v8902 = vunpack.c.l.b16 %v8801
    %v8903 = vunpack.c.h.b16 %v8801
    %v8904 = vunpack.c.l.b16 %v8802
    %v8905 = vunpack.c.h.b16 %v8802
    %v8906 = vunpack.c.l.b16 %v8803
    %v8907 = vunpack.c.h.b16 %v8803
    %v8908 = vunpack.c.l.b16 %v8804
    %v8909 = vunpack.c.h.b16 %v8804
    %v8910 = vunpack.c.l.b16 %v8805
    %v8911 = vunpack.c.h.b16 %v8805
    %v8912 = vunpack.c.l.b16 %v8806
    %v8913 = vunpack.c.h.b16 %v8806
    %v8914 = vunpack.c.l.b16 %v8807
    %v8915 = vunpack.c.h.b16 %v8807
    %v8916 = vunpack.c.l.b16 %v8808
    %v8917 = vunpack.c.h.b16 %v8808
    %v8918 = vunpack.c.l.b16 %v8809
    %v8919 = vunpack.c.h.b16 %v8809
    %v8920 = vunpack.c.l.b16 %v8810
    %v8921 = vunpack.c.h.b16 %v8810
    %v8922 = vunpack.c.l.b16 %v8811
    %v8923 = vunpack.c.h.b16 %v8811
    %v8924 = vunpack.c.l.b16 %v8812
    %v8925 = vunpack.c.h.b16 %v8812
    %v8926 = vunpack.c.l.b16 %v8813
    %v8927 = vunpack.c.h.b16 %v8813
    %v8928 = vunpack.c.l.b16 %v8814
    %v8929 = vunpack.c.h.b16 %v8814
    %v8930 = vunpack.c.l.b16 %v8815
    %v8931 = vunpack.c.h.b16 %v8815
    %v8932 = vunpack.c.l.b16 %v8816
    %v8933 = vunpack.c.h.b16 %v8816
    %v8934 = vunpack.c.l.b16 %v8817
    %v8935 = vunpack.c.h.b16 %v8817
    %v8936 = vunpack.c.l.b16 %v8818
    %v8937 = vunpack.c.h.b16 %v8818
    %v8938 = vunpack.c.l.b16 %v8819
    %v8939 = vunpack.c.h.b16 %v8819
    %v8940 = vunpack.c.l.b16 %v8820
    %v8941 = vunpack.c.h.b16 %v8820
    %v8942 = vunpack.c.l.b16 %v8821
    %v8943 = vunpack.c.h.b16 %v8821
    %v8944 = vunpack.c.l.b16 %v8822
    %v8945 = vunpack.c.h.b16 %v8822
    %v8946 = vunpack.c.l.b16 %v8823
    %v8947 = vunpack.c.h.b16 %v8823
    %v8948 = vunpack.c.l.b16 %v8824
    %v8949 = vunpack.c.h.b16 %v8824
    %v8950 = vunpack.c.l.b16 %v8825
    %v8951 = vunpack.c.h.b16 %v8825
    %v8952 = vunpack.c.l.b16 %v8826
    %v8953 = vunpack.c.h.b16 %v8826
    %v8954 = vunpack.c.l.b16 %v8827
    %v8955 = vunpack.c.h.b16 %v8827
    %v8956 = vpack.c.b16 %v8896, %v8892
    %v8957 = vpack.c.b16 %v8897, %v8893
    %v8958 = vpack.c.b16 %v8898, %v8894
    %v8959 = vpack.c.b16 %v8899, %v8895
    %v8960 = vpack.c.b16 %v8904, %v8900
    %v8961 = vpack.c.b16 %v8905, %v8901
    %v8962 = vpack.c.b16 %v8906, %v8902
    %v8963 = vpack.c.b16 %v8907, %v8903
    %v8964 = vpack.c.b16 %v8912, %v8908
    %v8965 = vpack.c.b16 %v8913, %v8909
    %v8966 = vpack.c.b16 %v8914, %v8910
    %v8967 = vpack.c.b16 %v8915, %v8911
    %v8968 = vpack.c.b16 %v8920, %v8916
    %v8969 = vpack.c.b16 %v8921, %v8917
    %v8970 = vpack.c.b16 %v8922, %v8918
    %v8971 = vpack.c.b16 %v8923, %v8919
    %v8972 = vpack.c.b16 %v8928, %v8924
    %v8973 = vpack.c.b16 %v8929, %v8925
    %v8974 = vpack.c.b16 %v8930, %v8926
    %v8975 = vpack.c.b16 %v8931, %v8927
    %v8976 = vpack.c.b16 %v8936, %v8932
    %v8977 = vpack.c.b16 %v8937, %v8933
    %v8978 = vpack.c.b16 %v8938, %v8934
    %v8979 = vpack.c.b16 %v8939, %v8935
    %v8980 = vpack.c.b16 %v8944, %v8940
    %v8981 = vpack.c.b16 %v8945, %v8941
    %v8982 = vpack.c.b16 %v8946, %v8942
    %v8983 = vpack.c.b16 %v8947, %v8943
    %v8984 = vpack.c.b16 %v8952, %v8948
    %v8985 = vpack.c.b16 %v8953, %v8949
    %v8986 = vpack.c.b16 %v8954, %v8950
    %v8987 = vpack.c.b16 %v8955, %v8951
    %9020 = vmatprep.subr.bf16.mxu0 0
    %9021 = vmatpush1.bf16.msra.mxu0 %v8828
    %9022 = vmatprep.subr.bf16.mxu0 0
    %9023 = vmatpush1.bf16.msra.mxu0 %v8829
    %9024 = vmatprep.subr.bf16.mxu0 0
    %9025 = vmatpush1.bf16.msra.mxu0 %v8830
    %9026 = vmatprep.subr.bf16.mxu0 0
    %9027 = vmatpush1.bf16.msra.mxu0 %v8831
    %9028 = vmatprep.subr.bf16.mxu0 0
    %9029 = vmatpush1.bf16.msra.mxu0 %v8832
    %9030 = vmatprep.subr.bf16.mxu0 0
    %9031 = vmatpush1.bf16.msra.mxu0 %v8833
    %9032 = vmatprep.subr.bf16.mxu0 0
    %9033 = vmatpush1.bf16.msra.mxu0 %v8834
    %9034 = vmatprep.subr.bf16.mxu0 0
    %9035 = vmatpush1.bf16.msra.mxu0 %v8835
    %9036 = vmatprep.subr.bf16.mxu0 0
    %9037 = vmatpush1.bf16.msra.mxu0 %v8836
    %9038 = vmatprep.subr.bf16.mxu0 0
    %9039 = vmatpush1.bf16.msra.mxu0 %v8837
    %9040 = vmatprep.subr.bf16.mxu0 0
    %9041 = vmatpush1.bf16.msra.mxu0 %v8838
    %9042 = vmatprep.subr.bf16.mxu0 0
    %9043 = vmatpush1.bf16.msra.mxu0 %v8839
    %9044 = vmatprep.subr.bf16.mxu0 0
    %9045 = vmatpush1.bf16.msra.mxu0 %v8840
    %9046 = vmatprep.subr.bf16.mxu0 0
    %9047 = vmatpush1.bf16.msra.mxu0 %v8841
    %9048 = vmatprep.subr.bf16.mxu0 0
    %9049 = vmatpush1.bf16.msra.mxu0 %v8842
    %9050 = vmatprep.subr.bf16.mxu0 0
    %9051 = vmatpush1.bf16.msra.mxu0 %v8843
    %9052 = vmatprep.mubr.bf16.mxu0 %v8957
    %9053 = vmatmul.mubr.bf16.gmra.mrb[0].mxu0 %v8956
    %v9054 = vpop.f32.mrb[0].mxu0
    %v9055 = vadd.f32 0.0, %v9054
    %v9056 = vpop.f32.mrb[0].mxu0
    %v9057 = vpop.f32.mrb[0].mxu0
    %v9058 = vadd.f32 0.0, %v9057
    %v9059 = vpop.f32.mrb[0].mxu0
    %9060 = vmatprep.mubr.bf16.mxu0 %v8961
    %9061 = vmatmul.mubr.bf16.gmra.mrb[0].mxu0 %v8960
    %v9062 = vpop.f32.mrb[0].mxu0
    %v9063 = vadd.f32 0.0, %v9062
    %v9064 = vpop.f32.mrb[0].mxu0
    %v9065 = vpop.f32.mrb[0].mxu0
    %v9066 = vadd.f32 0.0, %v9065
    %v9067 = vpop.f32.mrb[0].mxu0
    %9068 = vmatprep.mubr.bf16.mxu0 %v8965
    %9069 = vmatmul.mubr.bf16.gmra.mrb[0].mxu0 %v8964
    %v9070 = vpop.f32.mrb[0].mxu0
    %v9071 = vadd.f32 0.0, %v9070
    %v9072 = vpop.f32.mrb[0].mxu0
    %v9073 = vpop.f32.mrb[0].mxu0
    %v9074 = vadd.f32 0.0, %v9073
    %v9075 = vpop.f32.mrb[0].mxu0
    %9076 = vmatprep.mubr.bf16.mxu0 %v8969
    %9077 = vmatmul.mubr.bf16.gmra.mrb[0].mxu0 %v8968
    %v9078 = vpop.f32.mrb[0].mxu0
    %v9079 = vadd.f32 0.0, %v9078
    %v9080 = vpop.f32.mrb[0].mxu0
    %v9081 = vpop.f32.mrb[0].mxu0
    %v9082 = vadd.f32 0.0, %v9081
    %v9083 = vpop.f32.mrb[0].mxu0
    %9084 = vmatprep.mubr.bf16.mxu0 %v8973
    %9085 = vmatmul.mubr.bf16.gmra.mrb[0].mxu0 %v8972
    %v9086 = vpop.f32.mrb[0].mxu0
    %v9087 = vadd.f32 0.0, %v9086
    %v9088 = vpop.f32.mrb[0].mxu0
    %v9089 = vpop.f32.mrb[0].mxu0
    %v9090 = vadd.f32 0.0, %v9089
    %v9091 = vpop.f32.mrb[0].mxu0
    %9092 = vmatprep.mubr.bf16.mxu0 %v8977
    %9093 = vmatmul.mubr.bf16.gmra.mrb[0].mxu0 %v8976
    %v9094 = vpop.f32.mrb[0].mxu0
    %v9095 = vadd.f32 0.0, %v9094
    %v9096 = vpop.f32.mrb[0].mxu0
    %v9097 = vpop.f32.mrb[0].mxu0
    %v9098 = vadd.f32 0.0, %v9097
    %v9099 = vpop.f32.mrb[0].mxu0
    %9100 = vmatprep.mubr.bf16.mxu0 %v8981
    %9101 = vmatmul.mubr.bf16.gmra.mrb[0].mxu0 %v8980
    %v9102 = vpop.f32.mrb[0].mxu0
    %v9103 = vadd.f32 0.0, %v9102
    %v9104 = vpop.f32.mrb[0].mxu0
    %v9105 = vpop.f32.mrb[0].mxu0
    %v9106 = vadd.f32 0.0, %v9105
    %v9107 = vpop.f32.mrb[0].mxu0
    %9108 = vmatprep.mubr.bf16.mxu0 %v8985
    %9109 = vmatmul.mubr.bf16.gmra.mrb[0].mxu0 %v8984
    %v9110 = vpop.f32.mrb[0].mxu0
    %v9111 = vadd.f32 0.0, %v9110
    %v9112 = vpop.f32.mrb[0].mxu0
    %v9113 = vpop.f32.mrb[0].mxu0
    %v9114 = vadd.f32 0.0, %v9113
    %v9115 = vpop.f32.mrb[0].mxu0
    %9116 = vdwg.mxu0
    %9117 = vmatprep.subr.bf16.mxu0 0
    %9118 = vmatpush1.bf16.msra.mxu0 %v8844
    %9119 = vmatprep.subr.bf16.mxu0 0
    %9120 = vmatpush1.bf16.msra.mxu0 %v8845
    %9121 = vmatprep.subr.bf16.mxu0 0
    %9122 = vmatpush1.bf16.msra.mxu0 %v8846
    %9123 = vmatprep.subr.bf16.mxu0 0
    %9124 = vmatpush1.bf16.msra.mxu0 %v8847
    %9125 = vmatprep.subr.bf16.mxu0 0
    %9126 = vmatpush1.bf16.msra.mxu0 %v8848
    %9127 = vmatprep.subr.bf16.mxu0 0
    %9128 = vmatpush1.bf16.msra.mxu0 %v8849
    %9129 = vmatprep.subr.bf16.mxu0 0
    %9130 = vmatpush1.bf16.msra.mxu0 %v8850
    %9131 = vmatprep.subr.bf16.mxu0 0
    %9132 = vmatpush1.bf16.msra.mxu0 %v8851
    %9133 = vmatprep.subr.bf16.mxu0 0
    %9134 = vmatpush1.bf16.msra.mxu0 %v8852
    %9135 = vmatprep.subr.bf16.mxu0 0
    %9136 = vmatpush1.bf16.msra.mxu0 %v8853
    %9137 = vmatprep.subr.bf16.mxu0 0
    %9138 = vmatpush1.bf16.msra.mxu0 %v8854
    %9139 = vmatprep.subr.bf16.mxu0 0
    %9140 = vmatpush1.bf16.msra.mxu0 %v8855
    %9141 = vmatprep.subr.bf16.mxu0 0
    %9142 = vmatpush1.bf16.msra.mxu0 %v8856
    %9143 = vmatprep.subr.bf16.mxu0 0
    %9144 = vmatpush1.bf16.msra.mxu0 %v8857
    %9145 = vmatprep.subr.bf16.mxu0 0
    %9146 = vmatpush1.bf16.msra.mxu0 %v8858
    %9147 = vmatprep.subr.bf16.mxu0 0
    %9148 = vmatpush1.bf16.msra.mxu0 %v8859
    %9149 = vmatprep.mubr.bf16.mxu0 %v8959
    %9150 = vmatmul.mubr.bf16.gmra.mrb[0].mxu0 %v8958
    %v9151 = vpop.f32.mrb[0].mxu0
    %v9152 = vadd.f32 %v9055, %v9151
    %v9153 = vpop.f32.mrb[0].mxu0
    %v9154 = vpop.f32.mrb[0].mxu0
    %v9155 = vadd.f32 %v9058, %v9154
    %v9156 = vpop.f32.mrb[0].mxu0
    %9157 = vmatprep.mubr.bf16.mxu0 %v8963
    %9158 = vmatmul.mubr.bf16.gmra.mrb[0].mxu0 %v8962
    %v9159 = vpop.f32.mrb[0].mxu0
    %v9160 = vadd.f32 %v9063, %v9159
    %v9161 = vpop.f32.mrb[0].mxu0
    %v9162 = vpop.f32.mrb[0].mxu0
    %v9163 = vadd.f32 %v9066, %v9162
    %v9164 = vpop.f32.mrb[0].mxu0
    %9165 = vmatprep.mubr.bf16.mxu0 %v8967
    %9166 = vmatmul.mubr.bf16.gmra.mrb[0].mxu0 %v8966
    %v9167 = vpop.f32.mrb[0].mxu0
    %v9168 = vadd.f32 %v9071, %v9167
    %v9169 = vpop.f32.mrb[0].mxu0
    %v9170 = vpop.f32.mrb[0].mxu0
    %v9171 = vadd.f32 %v9074, %v9170
    %v9172 = vpop.f32.mrb[0].mxu0
    %9173 = vmatprep.mubr.bf16.mxu0 %v8971
    %9174 = vmatmul.mubr.bf16.gmra.mrb[0].mxu0 %v8970
    %v9175 = vpop.f32.mrb[0].mxu0
    %v9176 = vadd.f32 %v9079, %v9175
    %v9177 = vpop.f32.mrb[0].mxu0
    %v9178 = vpop.f32.mrb[0].mxu0
    %v9179 = vadd.f32 %v9082, %v9178
    %v9180 = vpop.f32.mrb[0].mxu0
    %9181 = vmatprep.mubr.bf16.mxu0 %v8975
    %9182 = vmatmul.mubr.bf16.gmra.mrb[0].mxu0 %v8974
    %v9183 = vpop.f32.mrb[0].mxu0
    %v9184 = vadd.f32 %v9087, %v9183
    %v9185 = vpop.f32.mrb[0].mxu0
    %v9186 = vpop.f32.mrb[0].mxu0
    %v9187 = vadd.f32 %v9090, %v9186
    %v9188 = vpop.f32.mrb[0].mxu0
    %9189 = vmatprep.mubr.bf16.mxu0 %v8979
    %9190 = vmatmul.mubr.bf16.gmra.mrb[0].mxu0 %v8978
    %v9191 = vpop.f32.mrb[0].mxu0
    %v9192 = vadd.f32 %v9095, %v9191
    %v9193 = vpop.f32.mrb[0].mxu0
    %v9194 = vpop.f32.mrb[0].mxu0
    %v9195 = vadd.f32 %v9098, %v9194
    %v9196 = vpop.f32.mrb[0].mxu0
    %9197 = vmatprep.mubr.bf16.mxu0 %v8983
    %9198 = vmatmul.mubr.bf16.gmra.mrb[0].mxu0 %v8982
    %v9199 = vpop.f32.mrb[0].mxu0
    %v9200 = vadd.f32 %v9103, %v9199
    %v9201 = vpop.f32.mrb[0].mxu0
    %v9202 = vpop.f32.mrb[0].mxu0
    %v9203 = vadd.f32 %v9106, %v9202
    %v9204 = vpop.f32.mrb[0].mxu0
    %9205 = vmatprep.mubr.bf16.mxu0 %v8987
    %9206 = vmatmul.mubr.bf16.gmra.mrb[0].mxu0 %v8986
    %v9207 = vpop.f32.mrb[0].mxu0
    %v9208 = vadd.f32 %v9111, %v9207
    %v9209 = vpop.f32.mrb[0].mxu0
    %v9210 = vpop.f32.mrb[0].mxu0
    %v9211 = vadd.f32 %v9114, %v9210
    %v9212 = vpop.f32.mrb[0].mxu0
    %9213 = vdwg.mxu0
    %v9214 = vrot.slane %v9152, 7
    %v9215 = vrot.slane %v9155, 7
    %v9216 = vrot.slane %v9160, 7
    %v9217 = vrot.slane %v9163, 7
    %v9218 = vrot.slane %v9168, 7
    %v9219 = vrot.slane %v9171, 7
    %v9220 = vrot.slane %v9176, 7
    %v9221 = vrot.slane %v9179, 7
    %v9222 = vrot.slane %v9184, 7
    %v9223 = vrot.slane %v9187, 7
    %v9224 = vrot.slane %v9192, 7
    %v9225 = vrot.slane %v9195, 7
    %v9226 = vrot.slane %v9200, 7
    %v9227 = vrot.slane %v9203, 7
    %v9228 = vrot.slane %v9208, 7
    %v9229 = vrot.slane %v9211, 7
    %v9230 = vsel %vm219, %v9228, %v9229
    %v9231 = vsel %vm219, %v9227, %v9228
    %v9232 = vsel %vm219, %v9226, %v9227
    %v9233 = vsel %vm219, %v9225, %v9226
    %v9234 = vsel %vm219, %v9224, %v9225
    %v9235 = vsel %vm219, %v9223, %v9224
    %v9236 = vsel %vm219, %v9222, %v9223
    %v9237 = vsel %vm219, %v9221, %v9222
    %v9238 = vsel %vm219, %v9220, %v9221
    %v9239 = vsel %vm219, %v9219, %v9220
    %v9240 = vsel %vm219, %v9218, %v9219
    %v9241 = vsel %vm219, %v9217, %v9218
    %v9242 = vsel %vm219, %v9216, %v9217
    %v9243 = vsel %vm219, %v9215, %v9216
    %v9244 = vsel %vm219, %v9214, %v9215
    %v9245 = vsel %vm219, %v9229, %v9214
    %v9246 = vld [vmem:[%s4] sm:$0xff]
    %v9247 = vld [vmem:[%s4 + $0x8] sm:$0xff]
    %v9248 = vld [vmem:[%s4 + $0x10] sm:$0xff]
    %v9249 = vld [vmem:[%s4 + $0x18] sm:$0xff]
    %v9250 = vld [vmem:[%s4 + $0x20] sm:$0xff]
    %v9251 = vld [vmem:[%s4 + $0x28] sm:$0xff]
    %v9252 = vld [vmem:[%s4 + $0x30] sm:$0xff]
    %v9253 = vld [vmem:[%s4 + $0x38] sm:$0xff]
    %v9254 = vld [vmem:[%s4 + $0x40] sm:$0xff]
    %v9255 = vld [vmem:[%s4 + $0x48] sm:$0xff]
    %v9256 = vld [vmem:[%s4 + $0x50] sm:$0xff]
    %v9257 = vld [vmem:[%s4 + $0x58] sm:$0xff]
    %v9258 = vld [vmem:[%s4 + $0x60] sm:$0xff]
    %v9259 = vld [vmem:[%s4 + $0x68] sm:$0xff]
    %v9260 = vld [vmem:[%s4 + $0x70] sm:$0xff]
    %v9261 = vld [vmem:[%s4 + $0x78] sm:$0xff]
    %9263 = vset.pattern.permute.xlu0 0
    %9264 = vperm.xlu0 %9263, %v9246
    %v9265 = vpop.permute.xlu0 %9264
    %9268 = vset.pattern.permute.xlu0 0
    %9269 = vperm.xlu0 %9268, %v9247
    %v9270 = vpop.permute.xlu0 %9269
    %9273 = vset.pattern.permute.xlu0 0
    %9274 = vperm.xlu0 %9273, %v9248
    %v9275 = vpop.permute.xlu0 %9274
    %9278 = vset.pattern.permute.xlu0 0
    %9279 = vperm.xlu0 %9278, %v9249
    %v9280 = vpop.permute.xlu0 %9279
    %9283 = vset.pattern.permute.xlu0 0
    %9284 = vperm.xlu0 %9283, %v9250
    %v9285 = vpop.permute.xlu0 %9284
    %9288 = vset.pattern.permute.xlu0 0
    %9289 = vperm.xlu0 %9288, %v9251
    %v9290 = vpop.permute.xlu0 %9289
    %9293 = vset.pattern.permute.xlu0 0
    %9294 = vperm.xlu0 %9293, %v9252
    %v9295 = vpop.permute.xlu0 %9294
    %9298 = vset.pattern.permute.xlu0 0
    %9299 = vperm.xlu0 %9298, %v9253
    %v9300 = vpop.permute.xlu0 %9299
    %9303 = vset.pattern.permute.xlu0 0
    %9304 = vperm.xlu0 %9303, %v9254
    %v9305 = vpop.permute.xlu0 %9304
    %9308 = vset.pattern.permute.xlu0 0
    %9309 = vperm.xlu0 %9308, %v9255
    %v9310 = vpop.permute.xlu0 %9309
    %9313 = vset.pattern.permute.xlu0 0
    %9314 = vperm.xlu0 %9313, %v9256
    %v9315 = vpop.permute.xlu0 %9314
    %9318 = vset.pattern.permute.xlu0 0
    %9319 = vperm.xlu0 %9318, %v9257
    %v9320 = vpop.permute.xlu0 %9319
    %9323 = vset.pattern.permute.xlu0 0
    %9324 = vperm.xlu0 %9323, %v9258
    %v9325 = vpop.permute.xlu0 %9324
    %9328 = vset.pattern.permute.xlu0 0
    %9329 = vperm.xlu0 %9328, %v9259
    %v9330 = vpop.permute.xlu0 %9329
    %9333 = vset.pattern.permute.xlu0 0
    %9334 = vperm.xlu0 %9333, %v9260
    %v9335 = vpop.permute.xlu0 %9334
    %9338 = vset.pattern.permute.xlu0 0
    %9339 = vperm.xlu0 %9338, %v9261
    %v9340 = vpop.permute.xlu0 %9339
    %v9342 = vmul.f32 %v9230, %v9265
    %v9343 = vmul.f32 %v9245, %v9270
    %v9344 = vmul.f32 %v9244, %v9275
    %v9345 = vmul.f32 %v9243, %v9280
    %v9346 = vmul.f32 %v9242, %v9285
    %v9347 = vmul.f32 %v9241, %v9290
    %v9348 = vmul.f32 %v9240, %v9295
    %v9349 = vmul.f32 %v9239, %v9300
    %v9350 = vmul.f32 %v9238, %v9305
    %v9351 = vmul.f32 %v9237, %v9310
    %v9352 = vmul.f32 %v9236, %v9315
    %v9353 = vmul.f32 %v9235, %v9320
    %v9354 = vmul.f32 %v9234, %v9325
    %v9355 = vmul.f32 %v9233, %v9330
    %v9356 = vmul.f32 %v9232, %v9335
    %v9357 = vmul.f32 %v9231, %v9340
    %9358 = vset.pattern.permute.xlu0 1
    %9359 = vperm.xlu0 %9358, %v9246
    %v9360 = vpop.permute.xlu0 %9359
    %9362 = vset.pattern.permute.xlu0 1
    %9363 = vperm.xlu0 %9362, %v9247
    %v9364 = vpop.permute.xlu0 %9363
    %9366 = vset.pattern.permute.xlu0 1
    %9367 = vperm.xlu0 %9366, %v9248
    %v9368 = vpop.permute.xlu0 %9367
    %9370 = vset.pattern.permute.xlu0 1
    %9371 = vperm.xlu0 %9370, %v9249
    %v9372 = vpop.permute.xlu0 %9371
    %9374 = vset.pattern.permute.xlu0 1
    %9375 = vperm.xlu0 %9374, %v9250
    %v9376 = vpop.permute.xlu0 %9375
    %9378 = vset.pattern.permute.xlu0 1
    %9379 = vperm.xlu0 %9378, %v9251
    %v9380 = vpop.permute.xlu0 %9379
    %9382 = vset.pattern.permute.xlu0 1
    %9383 = vperm.xlu0 %9382, %v9252
    %v9384 = vpop.permute.xlu0 %9383
    %9386 = vset.pattern.permute.xlu0 1
    %9387 = vperm.xlu0 %9386, %v9253
    %v9388 = vpop.permute.xlu0 %9387
    %9390 = vset.pattern.permute.xlu0 1
    %9391 = vperm.xlu0 %9390, %v9254
    %v9392 = vpop.permute.xlu0 %9391
    %9394 = vset.pattern.permute.xlu0 1
    %9395 = vperm.xlu0 %9394, %v9255
    %v9396 = vpop.permute.xlu0 %9395
    %9398 = vset.pattern.permute.xlu0 1
    %9399 = vperm.xlu0 %9398, %v9256
    %v9400 = vpop.permute.xlu0 %9399
    %9402 = vset.pattern.permute.xlu0 1
    %9403 = vperm.xlu0 %9402, %v9257
    %v9404 = vpop.permute.xlu0 %9403
    %9406 = vset.pattern.permute.xlu0 1
    %9407 = vperm.xlu0 %9406, %v9258
    %v9408 = vpop.permute.xlu0 %9407
    %9410 = vset.pattern.permute.xlu0 1
    %9411 = vperm.xlu0 %9410, %v9259
    %v9412 = vpop.permute.xlu0 %9411
    %9414 = vset.pattern.permute.xlu0 1
    %9415 = vperm.xlu0 %9414, %v9260
    %v9416 = vpop.permute.xlu0 %9415
    %9418 = vset.pattern.permute.xlu0 1
    %9419 = vperm.xlu0 %9418, %v9261
    %v9420 = vpop.permute.xlu0 %9419
    %v9422 = vmul.f32 %v9211, %v9360
    %v9423 = vmul.f32 %v9152, %v9364
    %v9424 = vmul.f32 %v9155, %v9368
    %v9425 = vmul.f32 %v9160, %v9372
    %v9426 = vmul.f32 %v9163, %v9376
    %v9427 = vmul.f32 %v9168, %v9380
    %v9428 = vmul.f32 %v9171, %v9384
    %v9429 = vmul.f32 %v9176, %v9388
    %v9430 = vmul.f32 %v9179, %v9392
    %v9431 = vmul.f32 %v9184, %v9396
    %v9432 = vmul.f32 %v9187, %v9400
    %v9433 = vmul.f32 %v9192, %v9404
    %v9434 = vmul.f32 %v9195, %v9408
    %v9435 = vmul.f32 %v9200, %v9412
    %v9436 = vmul.f32 %v9203, %v9416
    %v9437 = vmul.f32 %v9208, %v9420
    %9438 = vrot.lane.b32.xlu0 %v9422, 8
    %v9439 = vpop.permute.xlu0 %9438
    %9440 = vrot.lane.b32.xlu0 %v9423, 8
    %v9441 = vpop.permute.xlu0 %9440
    %9442 = vrot.lane.b32.xlu0 %v9424, 8
    %v9443 = vpop.permute.xlu0 %9442
    %9444 = vrot.lane.b32.xlu0 %v9425, 8
    %v9445 = vpop.permute.xlu0 %9444
    %9446 = vrot.lane.b32.xlu0 %v9426, 8
    %v9447 = vpop.permute.xlu0 %9446
    %9448 = vrot.lane.b32.xlu0 %v9427, 8
    %v9449 = vpop.permute.xlu0 %9448
    %9450 = vrot.lane.b32.xlu0 %v9428, 8
    %v9451 = vpop.permute.xlu0 %9450
    %9452 = vrot.lane.b32.xlu0 %v9429, 8
    %v9453 = vpop.permute.xlu0 %9452
    %9454 = vrot.lane.b32.xlu0 %v9430, 8
    %v9455 = vpop.permute.xlu0 %9454
    %9456 = vrot.lane.b32.xlu0 %v9431, 8
    %v9457 = vpop.permute.xlu0 %9456
    %9458 = vrot.lane.b32.xlu0 %v9432, 8
    %v9459 = vpop.permute.xlu0 %9458
    %9460 = vrot.lane.b32.xlu0 %v9433, 8
    %v9461 = vpop.permute.xlu0 %9460
    %9462 = vrot.lane.b32.xlu0 %v9434, 8
    %v9463 = vpop.permute.xlu0 %9462
    %9464 = vrot.lane.b32.xlu0 %v9435, 8
    %v9465 = vpop.permute.xlu0 %9464
    %9466 = vrot.lane.b32.xlu0 %v9436, 8
    %v9467 = vpop.permute.xlu0 %9466
    %9468 = vrot.lane.b32.xlu0 %v9437, 8
    %v9469 = vpop.permute.xlu0 %9468
    %v9470 = vadd.f32 %v9342, %v9439
    %v9471 = vadd.f32 %v9343, %v9441
    %v9472 = vadd.f32 %v9344, %v9443
    %v9473 = vadd.f32 %v9345, %v9445
    %v9474 = vadd.f32 %v9346, %v9447
    %v9475 = vadd.f32 %v9347, %v9449
    %v9476 = vadd.f32 %v9348, %v9451
    %v9477 = vadd.f32 %v9349, %v9453
    %v9478 = vadd.f32 %v9350, %v9455
    %v9479 = vadd.f32 %v9351, %v9457
    %v9480 = vadd.f32 %v9352, %v9459
    %v9481 = vadd.f32 %v9353, %v9461
    %v9482 = vadd.f32 %v9354, %v9463
    %v9483 = vadd.f32 %v9355, %v9465
    %v9484 = vadd.f32 %v9356, %v9467
    %v9485 = vadd.f32 %v9357, %v9469
    %v9486 = vrot.slane %v9152, 1
    %v9487 = vrot.slane %v9155, 1
    %v9488 = vrot.slane %v9160, 1
    %v9489 = vrot.slane %v9163, 1
    %v9490 = vrot.slane %v9168, 1
    %v9491 = vrot.slane %v9171, 1
    %v9492 = vrot.slane %v9176, 1
    %v9493 = vrot.slane %v9179, 1
    %v9494 = vrot.slane %v9184, 1
    %v9495 = vrot.slane %v9187, 1
    %v9496 = vrot.slane %v9192, 1
    %v9497 = vrot.slane %v9195, 1
    %v9498 = vrot.slane %v9200, 1
    %v9499 = vrot.slane %v9203, 1
    %v9500 = vrot.slane %v9208, 1
    %v9501 = vrot.slane %v9211, 1
    %v9502 = vsel %vm1308, %v9500, %v9501
    %v9503 = vsel %vm1308, %v9499, %v9500
    %v9504 = vsel %vm1308, %v9498, %v9499
    %v9505 = vsel %vm1308, %v9497, %v9498
    %v9506 = vsel %vm1308, %v9496, %v9497
    %v9507 = vsel %vm1308, %v9495, %v9496
    %v9508 = vsel %vm1308, %v9494, %v9495
    %v9509 = vsel %vm1308, %v9493, %v9494
    %v9510 = vsel %vm1308, %v9492, %v9493
    %v9511 = vsel %vm1308, %v9491, %v9492
    %v9512 = vsel %vm1308, %v9490, %v9491
    %v9513 = vsel %vm1308, %v9489, %v9490
    %v9514 = vsel %vm1308, %v9488, %v9489
    %v9515 = vsel %vm1308, %v9487, %v9488
    %v9516 = vsel %vm1308, %v9486, %v9487
    %v9517 = vsel %vm1308, %v9501, %v9486
    %9518 = vset.pattern.permute.xlu0 2
    %9519 = vperm.xlu0 %9518, %v9246
    %v9520 = vpop.permute.xlu0 %9519
    %9522 = vset.pattern.permute.xlu0 2
    %9523 = vperm.xlu0 %9522, %v9247
    %v9524 = vpop.permute.xlu0 %9523
    %9526 = vset.pattern.permute.xlu0 2
    %9527 = vperm.xlu0 %9526, %v9248
    %v9528 = vpop.permute.xlu0 %9527
    %9530 = vset.pattern.permute.xlu0 2
    %9531 = vperm.xlu0 %9530, %v9249
    %v9532 = vpop.permute.xlu0 %9531
    %9534 = vset.pattern.permute.xlu0 2
    %9535 = vperm.xlu0 %9534, %v9250
    %v9536 = vpop.permute.xlu0 %9535
    %9538 = vset.pattern.permute.xlu0 2
    %9539 = vperm.xlu0 %9538, %v9251
    %v9540 = vpop.permute.xlu0 %9539
    %9542 = vset.pattern.permute.xlu0 2
    %9543 = vperm.xlu0 %9542, %v9252
    %v9544 = vpop.permute.xlu0 %9543
    %9546 = vset.pattern.permute.xlu0 2
    %9547 = vperm.xlu0 %9546, %v9253
    %v9548 = vpop.permute.xlu0 %9547
    %9550 = vset.pattern.permute.xlu0 2
    %9551 = vperm.xlu0 %9550, %v9254
    %v9552 = vpop.permute.xlu0 %9551
    %9554 = vset.pattern.permute.xlu0 2
    %9555 = vperm.xlu0 %9554, %v9255
    %v9556 = vpop.permute.xlu0 %9555
    %9558 = vset.pattern.permute.xlu0 2
    %9559 = vperm.xlu0 %9558, %v9256
    %v9560 = vpop.permute.xlu0 %9559
    %9562 = vset.pattern.permute.xlu0 2
    %9563 = vperm.xlu0 %9562, %v9257
    %v9564 = vpop.permute.xlu0 %9563
    %9566 = vset.pattern.permute.xlu0 2
    %9567 = vperm.xlu0 %9566, %v9258
    %v9568 = vpop.permute.xlu0 %9567
    %9570 = vset.pattern.permute.xlu0 2
    %9571 = vperm.xlu0 %9570, %v9259
    %v9572 = vpop.permute.xlu0 %9571
    %9574 = vset.pattern.permute.xlu0 2
    %9575 = vperm.xlu0 %9574, %v9260
    %v9576 = vpop.permute.xlu0 %9575
    %9578 = vset.pattern.permute.xlu0 2
    %9579 = vperm.xlu0 %9578, %v9261
    %v9580 = vpop.permute.xlu0 %9579
    %v9582 = vmul.f32 %v9517, %v9520
    %v9583 = vmul.f32 %v9516, %v9524
    %v9584 = vmul.f32 %v9515, %v9528
    %v9585 = vmul.f32 %v9514, %v9532
    %v9586 = vmul.f32 %v9513, %v9536
    %v9587 = vmul.f32 %v9512, %v9540
    %v9588 = vmul.f32 %v9511, %v9544
    %v9589 = vmul.f32 %v9510, %v9548
    %v9590 = vmul.f32 %v9509, %v9552
    %v9591 = vmul.f32 %v9508, %v9556
    %v9592 = vmul.f32 %v9507, %v9560
    %v9593 = vmul.f32 %v9506, %v9564
    %v9594 = vmul.f32 %v9505, %v9568
    %v9595 = vmul.f32 %v9504, %v9572
    %v9596 = vmul.f32 %v9503, %v9576
    %v9597 = vmul.f32 %v9502, %v9580
    %9598 = vrot.lane.b32.xlu0 %v9582, 16
    %v9599 = vpop.permute.xlu0 %9598
    %9600 = vrot.lane.b32.xlu0 %v9583, 16
    %v9601 = vpop.permute.xlu0 %9600
    %9602 = vrot.lane.b32.xlu0 %v9584, 16
    %v9603 = vpop.permute.xlu0 %9602
    %9604 = vrot.lane.b32.xlu0 %v9585, 16
    %v9605 = vpop.permute.xlu0 %9604
    %9606 = vrot.lane.b32.xlu0 %v9586, 16
    %v9607 = vpop.permute.xlu0 %9606
    %9608 = vrot.lane.b32.xlu0 %v9587, 16
    %v9609 = vpop.permute.xlu0 %9608
    %9610 = vrot.lane.b32.xlu0 %v9588, 16
    %v9611 = vpop.permute.xlu0 %9610
    %9612 = vrot.lane.b32.xlu0 %v9589, 16
    %v9613 = vpop.permute.xlu0 %9612
    %9614 = vrot.lane.b32.xlu0 %v9590, 16
    %v9615 = vpop.permute.xlu0 %9614
    %9616 = vrot.lane.b32.xlu0 %v9591, 16
    %v9617 = vpop.permute.xlu0 %9616
    %9618 = vrot.lane.b32.xlu0 %v9592, 16
    %v9619 = vpop.permute.xlu0 %9618
    %9620 = vrot.lane.b32.xlu0 %v9593, 16
    %v9621 = vpop.permute.xlu0 %9620
    %9622 = vrot.lane.b32.xlu0 %v9594, 16
    %v9623 = vpop.permute.xlu0 %9622
    %9624 = vrot.lane.b32.xlu0 %v9595, 16
    %v9625 = vpop.permute.xlu0 %9624
    %9626 = vrot.lane.b32.xlu0 %v9596, 16
    %v9627 = vpop.permute.xlu0 %9626
    %9628 = vrot.lane.b32.xlu0 %v9597, 16
    %v9629 = vpop.permute.xlu0 %9628
    %v9630 = vadd.f32 %v9470, %v9599
    %v9631 = vadd.f32 %v9471, %v9601
    %v9632 = vadd.f32 %v9472, %v9603
    %v9633 = vadd.f32 %v9473, %v9605
    %v9634 = vadd.f32 %v9474, %v9607
    %v9635 = vadd.f32 %v9475, %v9609
    %v9636 = vadd.f32 %v9476, %v9611
    %v9637 = vadd.f32 %v9477, %v9613
    %v9638 = vadd.f32 %v9478, %v9615
    %v9639 = vadd.f32 %v9479, %v9617
    %v9640 = vadd.f32 %v9480, %v9619
    %v9641 = vadd.f32 %v9481, %v9621
    %v9642 = vadd.f32 %v9482, %v9623
    %v9643 = vadd.f32 %v9483, %v9625
    %v9644 = vadd.f32 %v9484, %v9627
    %v9645 = vadd.f32 %v9485, %v9629
    %9646 = vset.pattern.permute.xlu0 3
    %9647 = vperm.xlu0 %9646, %v9246
    %v9648 = vpop.permute.xlu0 %9647
    %9650 = vset.pattern.permute.xlu0 3
    %9651 = vperm.xlu0 %9650, %v9247
    %v9652 = vpop.permute.xlu0 %9651
    %9654 = vset.pattern.permute.xlu0 3
    %9655 = vperm.xlu0 %9654, %v9248
    %v9656 = vpop.permute.xlu0 %9655
    %9658 = vset.pattern.permute.xlu0 3
    %9659 = vperm.xlu0 %9658, %v9249
    %v9660 = vpop.permute.xlu0 %9659
    %9662 = vset.pattern.permute.xlu0 3
    %9663 = vperm.xlu0 %9662, %v9250
    %v9664 = vpop.permute.xlu0 %9663
    %9666 = vset.pattern.permute.xlu0 3
    %9667 = vperm.xlu0 %9666, %v9251
    %v9668 = vpop.permute.xlu0 %9667
    %9670 = vset.pattern.permute.xlu0 3
    %9671 = vperm.xlu0 %9670, %v9252
    %v9672 = vpop.permute.xlu0 %9671
    %9674 = vset.pattern.permute.xlu0 3
    %9675 = vperm.xlu0 %9674, %v9253
    %v9676 = vpop.permute.xlu0 %9675
    %9678 = vset.pattern.permute.xlu0 3
    %9679 = vperm.xlu0 %9678, %v9254
    %v9680 = vpop.permute.xlu0 %9679
    %9682 = vset.pattern.permute.xlu0 3
    %9683 = vperm.xlu0 %9682, %v9255
    %v9684 = vpop.permute.xlu0 %9683
    %9686 = vset.pattern.permute.xlu0 3
    %9687 = vperm.xlu0 %9686, %v9256
    %v9688 = vpop.permute.xlu0 %9687
    %9690 = vset.pattern.permute.xlu0 3
    %9691 = vperm.xlu0 %9690, %v9257
    %v9692 = vpop.permute.xlu0 %9691
    %9694 = vset.pattern.permute.xlu0 3
    %9695 = vperm.xlu0 %9694, %v9258
    %v9696 = vpop.permute.xlu0 %9695
    %9698 = vset.pattern.permute.xlu0 3
    %9699 = vperm.xlu0 %9698, %v9259
    %v9700 = vpop.permute.xlu0 %9699
    %9702 = vset.pattern.permute.xlu0 3
    %9703 = vperm.xlu0 %9702, %v9260
    %v9704 = vpop.permute.xlu0 %9703
    %9706 = vset.pattern.permute.xlu0 3
    %9707 = vperm.xlu0 %9706, %v9261
    %v9708 = vpop.permute.xlu0 %9707
    %v9710 = vmul.f32 %v9245, %v9648
    %v9711 = vmul.f32 %v9244, %v9652
    %v9712 = vmul.f32 %v9243, %v9656
    %v9713 = vmul.f32 %v9242, %v9660
    %v9714 = vmul.f32 %v9241, %v9664
    %v9715 = vmul.f32 %v9240, %v9668
    %v9716 = vmul.f32 %v9239, %v9672
    %v9717 = vmul.f32 %v9238, %v9676
    %v9718 = vmul.f32 %v9237, %v9680
    %v9719 = vmul.f32 %v9236, %v9684
    %v9720 = vmul.f32 %v9235, %v9688
    %v9721 = vmul.f32 %v9234, %v9692
    %v9722 = vmul.f32 %v9233, %v9696
    %v9723 = vmul.f32 %v9232, %v9700
    %v9724 = vmul.f32 %v9231, %v9704
    %v9725 = vmul.f32 %v9230, %v9708
    %9726 = vrot.lane.b32.xlu0 %v9710, 24
    %v9727 = vpop.permute.xlu0 %9726
    %9728 = vrot.lane.b32.xlu0 %v9711, 24
    %v9729 = vpop.permute.xlu0 %9728
    %9730 = vrot.lane.b32.xlu0 %v9712, 24
    %v9731 = vpop.permute.xlu0 %9730
    %9732 = vrot.lane.b32.xlu0 %v9713, 24
    %v9733 = vpop.permute.xlu0 %9732
    %9734 = vrot.lane.b32.xlu0 %v9714, 24
    %v9735 = vpop.permute.xlu0 %9734
    %9736 = vrot.lane.b32.xlu0 %v9715, 24
    %v9737 = vpop.permute.xlu0 %9736
    %9738 = vrot.lane.b32.xlu0 %v9716, 24
    %v9739 = vpop.permute.xlu0 %9738
    %9740 = vrot.lane.b32.xlu0 %v9717, 24
    %v9741 = vpop.permute.xlu0 %9740
    %9742 = vrot.lane.b32.xlu0 %v9718, 24
    %v9743 = vpop.permute.xlu0 %9742
    %9744 = vrot.lane.b32.xlu0 %v9719, 24
    %v9745 = vpop.permute.xlu0 %9744
    %9746 = vrot.lane.b32.xlu0 %v9720, 24
    %v9747 = vpop.permute.xlu0 %9746
    %9748 = vrot.lane.b32.xlu0 %v9721, 24
    %v9749 = vpop.permute.xlu0 %9748
    %9750 = vrot.lane.b32.xlu0 %v9722, 24
    %v9751 = vpop.permute.xlu0 %9750
    %9752 = vrot.lane.b32.xlu0 %v9723, 24
    %v9753 = vpop.permute.xlu0 %9752
    %9754 = vrot.lane.b32.xlu0 %v9724, 24
    %v9755 = vpop.permute.xlu0 %9754
    %9756 = vrot.lane.b32.xlu0 %v9725, 24
    %v9757 = vpop.permute.xlu0 %9756
    %v9758 = vadd.f32 %v9630, %v9727
    %v9759 = vadd.f32 %v9631, %v9729
    %v9760 = vadd.f32 %v9632, %v9731
    %v9761 = vadd.f32 %v9633, %v9733
    %v9762 = vadd.f32 %v9634, %v9735
    %v9763 = vadd.f32 %v9635, %v9737
    %v9764 = vadd.f32 %v9636, %v9739
    %v9765 = vadd.f32 %v9637, %v9741
    %v9766 = vadd.f32 %v9638, %v9743
    %v9767 = vadd.f32 %v9639, %v9745
    %v9768 = vadd.f32 %v9640, %v9747
    %v9769 = vadd.f32 %v9641, %v9749
    %v9770 = vadd.f32 %v9642, %v9751
    %v9771 = vadd.f32 %v9643, %v9753
    %v9772 = vadd.f32 %v9644, %v9755
    %v9773 = vadd.f32 %v9645, %v9757
    %9774 = vrot.lane.b32.xlu0 %v9152, 32
    %v9775 = vpop.permute.xlu0 %9774
    %9776 = vrot.lane.b32.xlu0 %v9155, 32
    %v9777 = vpop.permute.xlu0 %9776
    %9778 = vrot.lane.b32.xlu0 %v9160, 32
    %v9779 = vpop.permute.xlu0 %9778
    %9780 = vrot.lane.b32.xlu0 %v9163, 32
    %v9781 = vpop.permute.xlu0 %9780
    %9782 = vrot.lane.b32.xlu0 %v9168, 32
    %v9783 = vpop.permute.xlu0 %9782
    %9784 = vrot.lane.b32.xlu0 %v9171, 32
    %v9785 = vpop.permute.xlu0 %9784
    %9786 = vrot.lane.b32.xlu0 %v9176, 32
    %v9787 = vpop.permute.xlu0 %9786
    %9788 = vrot.lane.b32.xlu0 %v9179, 32
    %v9789 = vpop.permute.xlu0 %9788
    %9790 = vrot.lane.b32.xlu0 %v9184, 32
    %v9791 = vpop.permute.xlu0 %9790
    %9792 = vrot.lane.b32.xlu0 %v9187, 32
    %v9793 = vpop.permute.xlu0 %9792
    %9794 = vrot.lane.b32.xlu0 %v9192, 32
    %v9795 = vpop.permute.xlu0 %9794
    %9796 = vrot.lane.b32.xlu0 %v9195, 32
    %v9797 = vpop.permute.xlu0 %9796
    %9798 = vrot.lane.b32.xlu0 %v9200, 32
    %v9799 = vpop.permute.xlu0 %9798
    %9800 = vrot.lane.b32.xlu0 %v9203, 32
    %v9801 = vpop.permute.xlu0 %9800
    %9802 = vrot.lane.b32.xlu0 %v9208, 32
    %v9803 = vpop.permute.xlu0 %9802
    %9804 = vrot.lane.b32.xlu0 %v9211, 32
    %v9805 = vpop.permute.xlu0 %9804
    %v9806 = vadd.f32 %v9758, %v9775
    %v9807 = vadd.f32 %v9759, %v9777
    %v9808 = vadd.f32 %v9760, %v9779
    %v9809 = vadd.f32 %v9761, %v9781
    %v9810 = vadd.f32 %v9762, %v9783
    %v9811 = vadd.f32 %v9763, %v9785
    %v9812 = vadd.f32 %v9764, %v9787
    %v9813 = vadd.f32 %v9765, %v9789
    %v9814 = vadd.f32 %v9766, %v9791
    %v9815 = vadd.f32 %v9767, %v9793
    %v9816 = vadd.f32 %v9768, %v9795
    %v9817 = vadd.f32 %v9769, %v9797
    %v9818 = vadd.f32 %v9770, %v9799
    %v9819 = vadd.f32 %v9771, %v9801
    %v9820 = vadd.f32 %v9772, %v9803
    %v9821 = vadd.f32 %v9773, %v9805
    %9822 = vset.pattern.permute.xlu0 5
    %9823 = vperm.xlu0 %9822, %v9246
    %v9824 = vpop.permute.xlu0 %9823
    %9826 = vset.pattern.permute.xlu0 5
    %9827 = vperm.xlu0 %9826, %v9247
    %v9828 = vpop.permute.xlu0 %9827
    %9830 = vset.pattern.permute.xlu0 5
    %9831 = vperm.xlu0 %9830, %v9248
    %v9832 = vpop.permute.xlu0 %9831
    %9834 = vset.pattern.permute.xlu0 5
    %9835 = vperm.xlu0 %9834, %v9249
    %v9836 = vpop.permute.xlu0 %9835
    %9838 = vset.pattern.permute.xlu0 5
    %9839 = vperm.xlu0 %9838, %v9250
    %v9840 = vpop.permute.xlu0 %9839
    %9842 = vset.pattern.permute.xlu0 5
    %9843 = vperm.xlu0 %9842, %v9251
    %v9844 = vpop.permute.xlu0 %9843
    %9846 = vset.pattern.permute.xlu0 5
    %9847 = vperm.xlu0 %9846, %v9252
    %v9848 = vpop.permute.xlu0 %9847
    %9850 = vset.pattern.permute.xlu0 5
    %9851 = vperm.xlu0 %9850, %v9253
    %v9852 = vpop.permute.xlu0 %9851
    %9854 = vset.pattern.permute.xlu0 5
    %9855 = vperm.xlu0 %9854, %v9254
    %v9856 = vpop.permute.xlu0 %9855
    %9858 = vset.pattern.permute.xlu0 5
    %9859 = vperm.xlu0 %9858, %v9255
    %v9860 = vpop.permute.xlu0 %9859
    %9862 = vset.pattern.permute.xlu0 5
    %9863 = vperm.xlu0 %9862, %v9256
    %v9864 = vpop.permute.xlu0 %9863
    %9866 = vset.pattern.permute.xlu0 5
    %9867 = vperm.xlu0 %9866, %v9257
    %v9868 = vpop.permute.xlu0 %9867
    %9870 = vset.pattern.permute.xlu0 5
    %9871 = vperm.xlu0 %9870, %v9258
    %v9872 = vpop.permute.xlu0 %9871
    %9874 = vset.pattern.permute.xlu0 5
    %9875 = vperm.xlu0 %9874, %v9259
    %v9876 = vpop.permute.xlu0 %9875
    %9878 = vset.pattern.permute.xlu0 5
    %9879 = vperm.xlu0 %9878, %v9260
    %v9880 = vpop.permute.xlu0 %9879
    %9882 = vset.pattern.permute.xlu0 5
    %9883 = vperm.xlu0 %9882, %v9261
    %v9884 = vpop.permute.xlu0 %9883
    %v9886 = vmul.f32 %v9516, %v9824
    %v9887 = vmul.f32 %v9515, %v9828
    %v9888 = vmul.f32 %v9514, %v9832
    %v9889 = vmul.f32 %v9513, %v9836
    %v9890 = vmul.f32 %v9512, %v9840
    %v9891 = vmul.f32 %v9511, %v9844
    %v9892 = vmul.f32 %v9510, %v9848
    %v9893 = vmul.f32 %v9509, %v9852
    %v9894 = vmul.f32 %v9508, %v9856
    %v9895 = vmul.f32 %v9507, %v9860
    %v9896 = vmul.f32 %v9506, %v9864
    %v9897 = vmul.f32 %v9505, %v9868
    %v9898 = vmul.f32 %v9504, %v9872
    %v9899 = vmul.f32 %v9503, %v9876
    %v9900 = vmul.f32 %v9502, %v9880
    %v9901 = vmul.f32 %v9517, %v9884
    %9902 = vrot.lane.b32.xlu0 %v9886, 40
    %v9903 = vpop.permute.xlu0 %9902
    %9904 = vrot.lane.b32.xlu0 %v9887, 40
    %v9905 = vpop.permute.xlu0 %9904
    %9906 = vrot.lane.b32.xlu0 %v9888, 40
    %v9907 = vpop.permute.xlu0 %9906
    %9908 = vrot.lane.b32.xlu0 %v9889, 40
    %v9909 = vpop.permute.xlu0 %9908
    %9910 = vrot.lane.b32.xlu0 %v9890, 40
    %v9911 = vpop.permute.xlu0 %9910
    %9912 = vrot.lane.b32.xlu0 %v9891, 40
    %v9913 = vpop.permute.xlu0 %9912
    %9914 = vrot.lane.b32.xlu0 %v9892, 40
    %v9915 = vpop.permute.xlu0 %9914
    %9916 = vrot.lane.b32.xlu0 %v9893, 40
    %v9917 = vpop.permute.xlu0 %9916
    %9918 = vrot.lane.b32.xlu0 %v9894, 40
    %v9919 = vpop.permute.xlu0 %9918
    %9920 = vrot.lane.b32.xlu0 %v9895, 40
    %v9921 = vpop.permute.xlu0 %9920
    %9922 = vrot.lane.b32.xlu0 %v9896, 40
    %v9923 = vpop.permute.xlu0 %9922
    %9924 = vrot.lane.b32.xlu0 %v9897, 40
    %v9925 = vpop.permute.xlu0 %9924
    %9926 = vrot.lane.b32.xlu0 %v9898, 40
    %v9927 = vpop.permute.xlu0 %9926
    %9928 = vrot.lane.b32.xlu0 %v9899, 40
    %v9929 = vpop.permute.xlu0 %9928
    %9930 = vrot.lane.b32.xlu0 %v9900, 40
    %v9931 = vpop.permute.xlu0 %9930
    %9932 = vrot.lane.b32.xlu0 %v9901, 40
    %v9933 = vpop.permute.xlu0 %9932
    %v9934 = vadd.f32 %v9806, %v9903
    %v9935 = vadd.f32 %v9807, %v9905
    %v9936 = vadd.f32 %v9808, %v9907
    %v9937 = vadd.f32 %v9809, %v9909
    %v9938 = vadd.f32 %v9810, %v9911
    %v9939 = vadd.f32 %v9811, %v9913
    %v9940 = vadd.f32 %v9812, %v9915
    %v9941 = vadd.f32 %v9813, %v9917
    %v9942 = vadd.f32 %v9814, %v9919
    %v9943 = vadd.f32 %v9815, %v9921
    %v9944 = vadd.f32 %v9816, %v9923
    %v9945 = vadd.f32 %v9817, %v9925
    %v9946 = vadd.f32 %v9818, %v9927
    %v9947 = vadd.f32 %v9819, %v9929
    %v9948 = vadd.f32 %v9820, %v9931
    %v9949 = vadd.f32 %v9821, %v9933
    %9950 = vset.pattern.permute.xlu0 6
    %9951 = vperm.xlu0 %9950, %v9246
    %v9952 = vpop.permute.xlu0 %9951
    %9954 = vset.pattern.permute.xlu0 6
    %9955 = vperm.xlu0 %9954, %v9247
    %v9956 = vpop.permute.xlu0 %9955
    %9958 = vset.pattern.permute.xlu0 6
    %9959 = vperm.xlu0 %9958, %v9248
    %v9960 = vpop.permute.xlu0 %9959
    %9962 = vset.pattern.permute.xlu0 6
    %9963 = vperm.xlu0 %9962, %v9249
    %v9964 = vpop.permute.xlu0 %9963
    %9966 = vset.pattern.permute.xlu0 6
    %9967 = vperm.xlu0 %9966, %v9250
    %v9968 = vpop.permute.xlu0 %9967
    %9970 = vset.pattern.permute.xlu0 6
    %9971 = vperm.xlu0 %9970, %v9251
    %v9972 = vpop.permute.xlu0 %9971
    %9974 = vset.pattern.permute.xlu0 6
    %9975 = vperm.xlu0 %9974, %v9252
    %v9976 = vpop.permute.xlu0 %9975
    %9978 = vset.pattern.permute.xlu0 6
    %9979 = vperm.xlu0 %9978, %v9253
    %v9980 = vpop.permute.xlu0 %9979
    %9982 = vset.pattern.permute.xlu0 6
    %9983 = vperm.xlu0 %9982, %v9254
    %v9984 = vpop.permute.xlu0 %9983
    %9986 = vset.pattern.permute.xlu0 6
    %9987 = vperm.xlu0 %9986, %v9255
    %v9988 = vpop.permute.xlu0 %9987
    %9990 = vset.pattern.permute.xlu0 6
    %9991 = vperm.xlu0 %9990, %v9256
    %v9992 = vpop.permute.xlu0 %9991
    %9994 = vset.pattern.permute.xlu0 6
    %9995 = vperm.xlu0 %9994, %v9257
    %v9996 = vpop.permute.xlu0 %9995
    %9998 = vset.pattern.permute.xlu0 6
    %9999 = vperm.xlu0 %9998, %v9258
    %v10000 = vpop.permute.xlu0 %9999
    %10002 = vset.pattern.permute.xlu0 6
    %10003 = vperm.xlu0 %10002, %v9259
    %v10004 = vpop.permute.xlu0 %10003
    %10006 = vset.pattern.permute.xlu0 6
    %10007 = vperm.xlu0 %10006, %v9260
    %v10008 = vpop.permute.xlu0 %10007
    %10010 = vset.pattern.permute.xlu0 6
    %10011 = vperm.xlu0 %10010, %v9261
    %v10012 = vpop.permute.xlu0 %10011
    %v10014 = vmul.f32 %v9244, %v9952
    %v10015 = vmul.f32 %v9243, %v9956
    %v10016 = vmul.f32 %v9242, %v9960
    %v10017 = vmul.f32 %v9241, %v9964
    %v10018 = vmul.f32 %v9240, %v9968
    %v10019 = vmul.f32 %v9239, %v9972
    %v10020 = vmul.f32 %v9238, %v9976
    %v10021 = vmul.f32 %v9237, %v9980
    %v10022 = vmul.f32 %v9236, %v9984
    %v10023 = vmul.f32 %v9235, %v9988
    %v10024 = vmul.f32 %v9234, %v9992
    %v10025 = vmul.f32 %v9233, %v9996
    %v10026 = vmul.f32 %v9232, %v10000
    %v10027 = vmul.f32 %v9231, %v10004
    %v10028 = vmul.f32 %v9230, %v10008
    %v10029 = vmul.f32 %v9245, %v10012
    %10030 = vrot.lane.b32.xlu0 %v10014, 48
    %v10031 = vpop.permute.xlu0 %10030
    %10032 = vrot.lane.b32.xlu0 %v10015, 48
    %v10033 = vpop.permute.xlu0 %10032
    %10034 = vrot.lane.b32.xlu0 %v10016, 48
    %v10035 = vpop.permute.xlu0 %10034
    %10036 = vrot.lane.b32.xlu0 %v10017, 48
    %v10037 = vpop.permute.xlu0 %10036
    %10038 = vrot.lane.b32.xlu0 %v10018, 48
    %v10039 = vpop.permute.xlu0 %10038
    %10040 = vrot.lane.b32.xlu0 %v10019, 48
    %v10041 = vpop.permute.xlu0 %10040
    %10042 = vrot.lane.b32.xlu0 %v10020, 48
    %v10043 = vpop.permute.xlu0 %10042
    %10044 = vrot.lane.b32.xlu0 %v10021, 48
    %v10045 = vpop.permute.xlu0 %10044
    %10046 = vrot.lane.b32.xlu0 %v10022, 48
    %v10047 = vpop.permute.xlu0 %10046
    %10048 = vrot.lane.b32.xlu0 %v10023, 48
    %v10049 = vpop.permute.xlu0 %10048
    %10050 = vrot.lane.b32.xlu0 %v10024, 48
    %v10051 = vpop.permute.xlu0 %10050
    %10052 = vrot.lane.b32.xlu0 %v10025, 48
    %v10053 = vpop.permute.xlu0 %10052
    %10054 = vrot.lane.b32.xlu0 %v10026, 48
    %v10055 = vpop.permute.xlu0 %10054
    %10056 = vrot.lane.b32.xlu0 %v10027, 48
    %v10057 = vpop.permute.xlu0 %10056
    %10058 = vrot.lane.b32.xlu0 %v10028, 48
    %v10059 = vpop.permute.xlu0 %10058
    %10060 = vrot.lane.b32.xlu0 %v10029, 48
    %v10061 = vpop.permute.xlu0 %10060
    %v10062 = vadd.f32 %v9934, %v10031
    %v10063 = vadd.f32 %v9935, %v10033
    %v10064 = vadd.f32 %v9936, %v10035
    %v10065 = vadd.f32 %v9937, %v10037
    %v10066 = vadd.f32 %v9938, %v10039
    %v10067 = vadd.f32 %v9939, %v10041
    %v10068 = vadd.f32 %v9940, %v10043
    %v10069 = vadd.f32 %v9941, %v10045
    %v10070 = vadd.f32 %v9942, %v10047
    %v10071 = vadd.f32 %v9943, %v10049
    %v10072 = vadd.f32 %v9944, %v10051
    %v10073 = vadd.f32 %v9945, %v10053
    %v10074 = vadd.f32 %v9946, %v10055
    %v10075 = vadd.f32 %v9947, %v10057
    %v10076 = vadd.f32 %v9948, %v10059
    %v10077 = vadd.f32 %v9949, %v10061
    %10078 = vset.pattern.permute.xlu0 7
    %10079 = vperm.xlu0 %10078, %v9246
    %v10080 = vpop.permute.xlu0 %10079
    %10082 = vset.pattern.permute.xlu0 7
    %10083 = vperm.xlu0 %10082, %v9247
    %v10084 = vpop.permute.xlu0 %10083
    %10086 = vset.pattern.permute.xlu0 7
    %10087 = vperm.xlu0 %10086, %v9248
    %v10088 = vpop.permute.xlu0 %10087
    %10090 = vset.pattern.permute.xlu0 7
    %10091 = vperm.xlu0 %10090, %v9249
    %v10092 = vpop.permute.xlu0 %10091
    %10094 = vset.pattern.permute.xlu0 7
    %10095 = vperm.xlu0 %10094, %v9250
    %v10096 = vpop.permute.xlu0 %10095
    %10098 = vset.pattern.permute.xlu0 7
    %10099 = vperm.xlu0 %10098, %v9251
    %v10100 = vpop.permute.xlu0 %10099
    %10102 = vset.pattern.permute.xlu0 7
    %10103 = vperm.xlu0 %10102, %v9252
    %v10104 = vpop.permute.xlu0 %10103
    %10106 = vset.pattern.permute.xlu0 7
    %10107 = vperm.xlu0 %10106, %v9253
    %v10108 = vpop.permute.xlu0 %10107
    %10110 = vset.pattern.permute.xlu0 7
    %10111 = vperm.xlu0 %10110, %v9254
    %v10112 = vpop.permute.xlu0 %10111
    %10114 = vset.pattern.permute.xlu0 7
    %10115 = vperm.xlu0 %10114, %v9255
    %v10116 = vpop.permute.xlu0 %10115
    %10118 = vset.pattern.permute.xlu0 7
    %10119 = vperm.xlu0 %10118, %v9256
    %v10120 = vpop.permute.xlu0 %10119
    %10122 = vset.pattern.permute.xlu0 7
    %10123 = vperm.xlu0 %10122, %v9257
    %v10124 = vpop.permute.xlu0 %10123
    %10126 = vset.pattern.permute.xlu0 7
    %10127 = vperm.xlu0 %10126, %v9258
    %v10128 = vpop.permute.xlu0 %10127
    %10130 = vset.pattern.permute.xlu0 7
    %10131 = vperm.xlu0 %10130, %v9259
    %v10132 = vpop.permute.xlu0 %10131
    %10134 = vset.pattern.permute.xlu0 7
    %10135 = vperm.xlu0 %10134, %v9260
    %v10136 = vpop.permute.xlu0 %10135
    %10138 = vset.pattern.permute.xlu0 7
    %10139 = vperm.xlu0 %10138, %v9261
    %v10140 = vpop.permute.xlu0 %10139
    %v10142 = vmul.f32 %v9155, %v10080
    %v10143 = vmul.f32 %v9160, %v10084
    %v10144 = vmul.f32 %v9163, %v10088
    %v10145 = vmul.f32 %v9168, %v10092
    %v10146 = vmul.f32 %v9171, %v10096
    %v10147 = vmul.f32 %v9176, %v10100
    %v10148 = vmul.f32 %v9179, %v10104
    %v10149 = vmul.f32 %v9184, %v10108
    %v10150 = vmul.f32 %v9187, %v10112
    %v10151 = vmul.f32 %v9192, %v10116
    %v10152 = vmul.f32 %v9195, %v10120
    %v10153 = vmul.f32 %v9200, %v10124
    %v10154 = vmul.f32 %v9203, %v10128
    %v10155 = vmul.f32 %v9208, %v10132
    %v10156 = vmul.f32 %v9211, %v10136
    %v10157 = vmul.f32 %v9152, %v10140
    %10158 = vrot.lane.b32.xlu0 %v10142, 56
    %v10159 = vpop.permute.xlu0 %10158
    %10160 = vrot.lane.b32.xlu0 %v10143, 56
    %v10161 = vpop.permute.xlu0 %10160
    %10162 = vrot.lane.b32.xlu0 %v10144, 56
    %v10163 = vpop.permute.xlu0 %10162
    %10164 = vrot.lane.b32.xlu0 %v10145, 56
    %v10165 = vpop.permute.xlu0 %10164
    %10166 = vrot.lane.b32.xlu0 %v10146, 56
    %v10167 = vpop.permute.xlu0 %10166
    %10168 = vrot.lane.b32.xlu0 %v10147, 56
    %v10169 = vpop.permute.xlu0 %10168
    %10170 = vrot.lane.b32.xlu0 %v10148, 56
    %v10171 = vpop.permute.xlu0 %10170
    %10172 = vrot.lane.b32.xlu0 %v10149, 56
    %v10173 = vpop.permute.xlu0 %10172
    %10174 = vrot.lane.b32.xlu0 %v10150, 56
    %v10175 = vpop.permute.xlu0 %10174
    %10176 = vrot.lane.b32.xlu0 %v10151, 56
    %v10177 = vpop.permute.xlu0 %10176
    %10178 = vrot.lane.b32.xlu0 %v10152, 56
    %v10179 = vpop.permute.xlu0 %10178
    %10180 = vrot.lane.b32.xlu0 %v10153, 56
    %v10181 = vpop.permute.xlu0 %10180
    %10182 = vrot.lane.b32.xlu0 %v10154, 56
    %v10183 = vpop.permute.xlu0 %10182
    %10184 = vrot.lane.b32.xlu0 %v10155, 56
    %v10185 = vpop.permute.xlu0 %10184
    %10186 = vrot.lane.b32.xlu0 %v10156, 56
    %v10187 = vpop.permute.xlu0 %10186
    %10188 = vrot.lane.b32.xlu0 %v10157, 56
    %v10189 = vpop.permute.xlu0 %10188
    %v10190 = vadd.f32 %v10062, %v10159
    %v10191 = vadd.f32 %v10063, %v10161
    %v10192 = vadd.f32 %v10064, %v10163
    %v10193 = vadd.f32 %v10065, %v10165
    %v10194 = vadd.f32 %v10066, %v10167
    %v10195 = vadd.f32 %v10067, %v10169
    %v10196 = vadd.f32 %v10068, %v10171
    %v10197 = vadd.f32 %v10069, %v10173
    %v10198 = vadd.f32 %v10070, %v10175
    %v10199 = vadd.f32 %v10071, %v10177
    %v10200 = vadd.f32 %v10072, %v10179
    %v10201 = vadd.f32 %v10073, %v10181
    %v10202 = vadd.f32 %v10074, %v10183
    %v10203 = vadd.f32 %v10075, %v10185
    %v10204 = vadd.f32 %v10076, %v10187
    %v10205 = vadd.f32 %v10077, %v10189
    %10206 = vset.pattern.permute.xlu0 8
    %10207 = vperm.xlu0 %10206, %v9246
    %v10208 = vpop.permute.xlu0 %10207
    %10210 = vset.pattern.permute.xlu0 8
    %10211 = vperm.xlu0 %10210, %v9247
    %v10212 = vpop.permute.xlu0 %10211
    %10214 = vset.pattern.permute.xlu0 8
    %10215 = vperm.xlu0 %10214, %v9248
    %v10216 = vpop.permute.xlu0 %10215
    %10218 = vset.pattern.permute.xlu0 8
    %10219 = vperm.xlu0 %10218, %v9249
    %v10220 = vpop.permute.xlu0 %10219
    %10222 = vset.pattern.permute.xlu0 8
    %10223 = vperm.xlu0 %10222, %v9250
    %v10224 = vpop.permute.xlu0 %10223
    %10226 = vset.pattern.permute.xlu0 8
    %10227 = vperm.xlu0 %10226, %v9251
    %v10228 = vpop.permute.xlu0 %10227
    %10230 = vset.pattern.permute.xlu0 8
    %10231 = vperm.xlu0 %10230, %v9252
    %v10232 = vpop.permute.xlu0 %10231
    %10234 = vset.pattern.permute.xlu0 8
    %10235 = vperm.xlu0 %10234, %v9253
    %v10236 = vpop.permute.xlu0 %10235
    %10238 = vset.pattern.permute.xlu0 8
    %10239 = vperm.xlu0 %10238, %v9254
    %v10240 = vpop.permute.xlu0 %10239
    %10242 = vset.pattern.permute.xlu0 8
    %10243 = vperm.xlu0 %10242, %v9255
    %v10244 = vpop.permute.xlu0 %10243
    %10246 = vset.pattern.permute.xlu0 8
    %10247 = vperm.xlu0 %10246, %v9256
    %v10248 = vpop.permute.xlu0 %10247
    %10250 = vset.pattern.permute.xlu0 8
    %10251 = vperm.xlu0 %10250, %v9257
    %v10252 = vpop.permute.xlu0 %10251
    %10254 = vset.pattern.permute.xlu0 8
    %10255 = vperm.xlu0 %10254, %v9258
    %v10256 = vpop.permute.xlu0 %10255
    %10258 = vset.pattern.permute.xlu0 8
    %10259 = vperm.xlu0 %10258, %v9259
    %v10260 = vpop.permute.xlu0 %10259
    %10262 = vset.pattern.permute.xlu0 8
    %10263 = vperm.xlu0 %10262, %v9260
    %v10264 = vpop.permute.xlu0 %10263
    %10266 = vset.pattern.permute.xlu0 8
    %10267 = vperm.xlu0 %10266, %v9261
    %v10268 = vpop.permute.xlu0 %10267
    %v10270 = vmul.f32 %v9515, %v10208
    %v10271 = vmul.f32 %v9514, %v10212
    %v10272 = vmul.f32 %v9513, %v10216
    %v10273 = vmul.f32 %v9512, %v10220
    %v10274 = vmul.f32 %v9511, %v10224
    %v10275 = vmul.f32 %v9510, %v10228
    %v10276 = vmul.f32 %v9509, %v10232
    %v10277 = vmul.f32 %v9508, %v10236
    %v10278 = vmul.f32 %v9507, %v10240
    %v10279 = vmul.f32 %v9506, %v10244
    %v10280 = vmul.f32 %v9505, %v10248
    %v10281 = vmul.f32 %v9504, %v10252
    %v10282 = vmul.f32 %v9503, %v10256
    %v10283 = vmul.f32 %v9502, %v10260
    %v10284 = vmul.f32 %v9517, %v10264
    %v10285 = vmul.f32 %v9516, %v10268
    %10286 = vrot.lane.b32.xlu0 %v10270, 64
    %v10287 = vpop.permute.xlu0 %10286
    %10288 = vrot.lane.b32.xlu0 %v10271, 64
    %v10289 = vpop.permute.xlu0 %10288
    %10290 = vrot.lane.b32.xlu0 %v10272, 64
    %v10291 = vpop.permute.xlu0 %10290
    %10292 = vrot.lane.b32.xlu0 %v10273, 64
    %v10293 = vpop.permute.xlu0 %10292
    %10294 = vrot.lane.b32.xlu0 %v10274, 64
    %v10295 = vpop.permute.xlu0 %10294
    %10296 = vrot.lane.b32.xlu0 %v10275, 64
    %v10297 = vpop.permute.xlu0 %10296
    %10298 = vrot.lane.b32.xlu0 %v10276, 64
    %v10299 = vpop.permute.xlu0 %10298
    %10300 = vrot.lane.b32.xlu0 %v10277, 64
    %v10301 = vpop.permute.xlu0 %10300
    %10302 = vrot.lane.b32.xlu0 %v10278, 64
    %v10303 = vpop.permute.xlu0 %10302
    %10304 = vrot.lane.b32.xlu0 %v10279, 64
    %v10305 = vpop.permute.xlu0 %10304
    %10306 = vrot.lane.b32.xlu0 %v10280, 64
    %v10307 = vpop.permute.xlu0 %10306
    %10308 = vrot.lane.b32.xlu0 %v10281, 64
    %v10309 = vpop.permute.xlu0 %10308
    %10310 = vrot.lane.b32.xlu0 %v10282, 64
    %v10311 = vpop.permute.xlu0 %10310
    %10312 = vrot.lane.b32.xlu0 %v10283, 64
    %v10313 = vpop.permute.xlu0 %10312
    %10314 = vrot.lane.b32.xlu0 %v10284, 64
    %v10315 = vpop.permute.xlu0 %10314
    %10316 = vrot.lane.b32.xlu0 %v10285, 64
    %v10317 = vpop.permute.xlu0 %10316
    %v10318 = vadd.f32 %v10190, %v10287
    %v10319 = vadd.f32 %v10191, %v10289
    %v10320 = vadd.f32 %v10192, %v10291
    %v10321 = vadd.f32 %v10193, %v10293
    %v10322 = vadd.f32 %v10194, %v10295
    %v10323 = vadd.f32 %v10195, %v10297
    %v10324 = vadd.f32 %v10196, %v10299
    %v10325 = vadd.f32 %v10197, %v10301
    %v10326 = vadd.f32 %v10198, %v10303
    %v10327 = vadd.f32 %v10199, %v10305
    %v10328 = vadd.f32 %v10200, %v10307
    %v10329 = vadd.f32 %v10201, %v10309
    %v10330 = vadd.f32 %v10202, %v10311
    %v10331 = vadd.f32 %v10203, %v10313
    %v10332 = vadd.f32 %v10204, %v10315
    %v10333 = vadd.f32 %v10205, %v10317
    %v10334 = vpack.c.bf16 %v10319, %v10318
    %v10335 = vpack.c.bf16 %v10321, %v10320
    %v10336 = vpack.c.bf16 %v10323, %v10322
    %v10337 = vpack.c.bf16 %v10325, %v10324
    %v10338 = vpack.c.bf16 %v10327, %v10326
    %v10339 = vpack.c.bf16 %v10329, %v10328
    %v10340 = vpack.c.bf16 %v10331, %v10330
    %v10341 = vpack.c.bf16 %v10333, %v10332
    %s10342 = scalar_lea.vmem %s1, 128
    %v10343 = vld [vmem:[%s10342] sm:$0xf]
    %v10344 = vld [vmem:[%s10342 + $0x4] sm:$0xf]
    %v10345 = vld [vmem:[%s10342 + $0x8] sm:$0xf]
    %v10346 = vld [vmem:[%s10342 + $0xc] sm:$0xf]
    %v10347 = vld [vmem:[%s10342 + $0x10] sm:$0xf]
    %v10348 = vld [vmem:[%s10342 + $0x14] sm:$0xf]
    %v10349 = vld [vmem:[%s10342 + $0x18] sm:$0xf]
    %v10350 = vld [vmem:[%s10342 + $0x1c] sm:$0xf]
    %v10351 = vld [vmem:[%s10342 + $0x20] sm:$0xf]
    %v10352 = vld [vmem:[%s10342 + $0x24] sm:$0xf]
    %v10353 = vld [vmem:[%s10342 + $0x28] sm:$0xf]
    %v10354 = vld [vmem:[%s10342 + $0x2c] sm:$0xf]
    %v10355 = vld [vmem:[%s10342 + $0x30] sm:$0xf]
    %v10356 = vld [vmem:[%s10342 + $0x34] sm:$0xf]
    %v10357 = vld [vmem:[%s10342 + $0x38] sm:$0xf]
    %v10358 = vld [vmem:[%s10342 + $0x3c] sm:$0xf]
    %v10375 = vunpack.c.l.b16 %v10343
    %v10376 = vunpack.c.l.b16 %v10344
    %v10377 = vunpack.c.l.b16 %v10345
    %v10378 = vunpack.c.l.b16 %v10346
    %v10379 = vunpack.c.l.b16 %v10347
    %v10380 = vunpack.c.l.b16 %v10348
    %v10381 = vunpack.c.l.b16 %v10349
    %v10382 = vunpack.c.l.b16 %v10350
    %v10383 = vunpack.c.l.b16 %v10351
    %v10384 = vunpack.c.l.b16 %v10352
    %v10385 = vunpack.c.l.b16 %v10353
    %v10386 = vunpack.c.l.b16 %v10354
    %v10387 = vunpack.c.l.b16 %v10355
    %v10388 = vunpack.c.l.b16 %v10356
    %v10389 = vunpack.c.l.b16 %v10357
    %v10390 = vunpack.c.l.b16 %v10358
    %v10391 = vpack.c.b16 %v10376, %v10375
    %v10392 = vpack.c.b16 %v10378, %v10377
    %v10393 = vpack.c.b16 %v10380, %v10379
    %v10394 = vpack.c.b16 %v10382, %v10381
    %v10395 = vpack.c.b16 %v10384, %v10383
    %v10396 = vpack.c.b16 %v10386, %v10385
    %v10397 = vpack.c.b16 %v10388, %v10387
    %v10398 = vpack.c.b16 %v10390, %v10389
    %10407 = vmatprep.subr.bf16.mxu0 0
    %10408 = vmatpush1.bf16.msra.mxu0 %v10391
    %10409 = vmatprep.subr.bf16.mxu0 0
    %10410 = vmatpush1.bf16.msra.mxu0 %v10392
    %10411 = vmatprep.subr.bf16.mxu0 0
    %10412 = vmatpush1.bf16.msra.mxu0 %v10393
    %10413 = vmatprep.subr.bf16.mxu0 0
    %10414 = vmatpush1.bf16.msra.mxu0 %v10394
    %10415 = vmatprep.subr.bf16.mxu0 0
    %10416 = vmatpush1.bf16.msra.mxu0 %v10395
    %10417 = vmatprep.subr.bf16.mxu0 0
    %10418 = vmatpush1.bf16.msra.mxu0 %v10396
    %10419 = vmatprep.subr.bf16.mxu0 0
    %10420 = vmatpush1.bf16.msra.mxu0 %v10397
    %10421 = vmatprep.subr.bf16.mxu0 0
    %10422 = vmatpush1.bf16.msra.mxu0 %v10398
    %10423 = vmatprep.subr.bf16.mxu0 0
    %10424 = vmatpush1.bf16.msra.mxu0 0
    %10425 = vmatprep.subr.bf16.mxu0 0
    %10426 = vmatpush1.bf16.msra.mxu0 0
    %10427 = vmatprep.subr.bf16.mxu0 0
    %10428 = vmatpush1.bf16.msra.mxu0 0
    %10429 = vmatprep.subr.bf16.mxu0 0
    %10430 = vmatpush1.bf16.msra.mxu0 0
    %10431 = vmatprep.subr.bf16.mxu0 0
    %10432 = vmatpush1.bf16.msra.mxu0 0
    %10433 = vmatprep.subr.bf16.mxu0 0
    %10434 = vmatpush1.bf16.msra.mxu0 0
    %10435 = vmatprep.subr.bf16.mxu0 0
    %10436 = vmatpush1.bf16.msra.mxu0 0
    %10437 = vmatprep.subr.bf16.mxu0 0
    %10438 = vmatpush1.bf16.msra.mxu0 0
    %10439 = vmatprep.mubr.bf16.mxu0 0
    %10440 = vmatmul.mubr.bf16.gmra.mrb[0].mxu0 %v10334
    %v10441 = vpop.f32.mrb[0].mxu0
    %v10442 = vadd.f32 0.0, %v10441
    %v10443 = vpop.f32.mrb[0].mxu0
    %v10444 = vpop.f32.mrb[0].mxu0
    %v10445 = vadd.f32 0.0, %v10444
    %v10446 = vpop.f32.mrb[0].mxu0
    %10447 = vmatprep.mubr.bf16.mxu0 0
    %10448 = vmatmul.mubr.bf16.gmra.mrb[0].mxu0 %v10335
    %v10449 = vpop.f32.mrb[0].mxu0
    %v10450 = vadd.f32 0.0, %v10449
    %v10451 = vpop.f32.mrb[0].mxu0
    %v10452 = vpop.f32.mrb[0].mxu0
    %v10453 = vadd.f32 0.0, %v10452
    %v10454 = vpop.f32.mrb[0].mxu0
    %10455 = vmatprep.mubr.bf16.mxu0 0
    %10456 = vmatmul.mubr.bf16.gmra.mrb[0].mxu0 %v10336
    %v10457 = vpop.f32.mrb[0].mxu0
    %v10458 = vadd.f32 0.0, %v10457
    %v10459 = vpop.f32.mrb[0].mxu0
    %v10460 = vpop.f32.mrb[0].mxu0
    %v10461 = vadd.f32 0.0, %v10460
    %v10462 = vpop.f32.mrb[0].mxu0
    %10463 = vmatprep.mubr.bf16.mxu0 0
    %10464 = vmatmul.mubr.bf16.gmra.mrb[0].mxu0 %v10337
    %v10465 = vpop.f32.mrb[0].mxu0
    %v10466 = vadd.f32 0.0, %v10465
    %v10467 = vpop.f32.mrb[0].mxu0
    %v10468 = vpop.f32.mrb[0].mxu0
    %v10469 = vadd.f32 0.0, %v10468
    %v10470 = vpop.f32.mrb[0].mxu0
    %10471 = vmatprep.mubr.bf16.mxu0 0
    %10472 = vmatmul.mubr.bf16.gmra.mrb[0].mxu0 %v10338
    %v10473 = vpop.f32.mrb[0].mxu0
    %v10474 = vadd.f32 0.0, %v10473
    %v10475 = vpop.f32.mrb[0].mxu0
    %v10476 = vpop.f32.mrb[0].mxu0
    %v10477 = vadd.f32 0.0, %v10476
    %v10478 = vpop.f32.mrb[0].mxu0
    %10479 = vmatprep.mubr.bf16.mxu0 0
    %10480 = vmatmul.mubr.bf16.gmra.mrb[0].mxu0 %v10339
    %v10481 = vpop.f32.mrb[0].mxu0
    %v10482 = vadd.f32 0.0, %v10481
    %v10483 = vpop.f32.mrb[0].mxu0
    %v10484 = vpop.f32.mrb[0].mxu0
    %v10485 = vadd.f32 0.0, %v10484
    %v10486 = vpop.f32.mrb[0].mxu0
    %10487 = vmatprep.mubr.bf16.mxu0 0
    %10488 = vmatmul.mubr.bf16.gmra.mrb[0].mxu0 %v10340
    %v10489 = vpop.f32.mrb[0].mxu0
    %v10490 = vadd.f32 0.0, %v10489
    %v10491 = vpop.f32.mrb[0].mxu0
    %v10492 = vpop.f32.mrb[0].mxu0
    %v10493 = vadd.f32 0.0, %v10492
    %v10494 = vpop.f32.mrb[0].mxu0
    %10495 = vmatprep.mubr.bf16.mxu0 0
    %10496 = vmatmul.mubr.bf16.gmra.mrb[0].mxu0 %v10341
    %v10497 = vpop.f32.mrb[0].mxu0
    %v10498 = vadd.f32 0.0, %v10497
    %v10499 = vpop.f32.mrb[0].mxu0
    %v10500 = vpop.f32.mrb[0].mxu0
    %v10501 = vadd.f32 0.0, %v10500
    %v10502 = vpop.f32.mrb[0].mxu0
    %10503 = vdwg.mxu0
    %v10504 = vadd.f32 %v10442, %v10445
    %v10505 = vadd.f32 %v10504, %v10450
    %v10506 = vadd.f32 %v10505, %v10453
    %v10507 = vadd.f32 %v10506, %v10458
    %v10508 = vadd.f32 %v10507, %v10461
    %v10509 = vadd.f32 %v10508, %v10466
    %v10510 = vadd.f32 %v10509, %v10469
    %v10511 = vadd.f32 %v10510, %v10474
    %v10512 = vadd.f32 %v10511, %v10477
    %v10513 = vadd.f32 %v10512, %v10482
    %v10514 = vadd.f32 %v10513, %v10485
    %v10515 = vadd.f32 %v10514, %v10490
    %v10516 = vadd.f32 %v10515, %v10493
    %v10517 = vadd.f32 %v10516, %v10498
    %v10518 = vadd.f32 %v10517, %v10501
    %v10519 = vrot.slane %v10518, 4
    %v10520 = vadd.f32 %v10518, %v10519
    %v10521 = vrot.slane %v10520, 2
    %v10522 = vadd.f32 %v10520, %v10521
    %v10523 = vrot.slane %v10522, 1
    %v10524 = vadd.f32 %v10522, %v10523
    %v10525 = vmul.f32 %v10442, %v10442
    %v10526 = vmul.f32 %v10445, %v10445
    %v10527 = vmul.f32 %v10450, %v10450
    %v10528 = vmul.f32 %v10453, %v10453
    %v10529 = vmul.f32 %v10458, %v10458
    %v10530 = vmul.f32 %v10461, %v10461
    %v10531 = vmul.f32 %v10466, %v10466
    %v10532 = vmul.f32 %v10469, %v10469
    %v10533 = vmul.f32 %v10474, %v10474
    %v10534 = vmul.f32 %v10477, %v10477
    %v10535 = vmul.f32 %v10482, %v10482
    %v10536 = vmul.f32 %v10485, %v10485
    %v10537 = vmul.f32 %v10490, %v10490
    %v10538 = vmul.f32 %v10493, %v10493
    %v10539 = vmul.f32 %v10498, %v10498
    %v10540 = vmul.f32 %v10501, %v10501
    %v10541 = vadd.f32 %v10525, %v10526
    %v10542 = vadd.f32 %v10541, %v10527
    %v10543 = vadd.f32 %v10542, %v10528
    %v10544 = vadd.f32 %v10543, %v10529
    %v10545 = vadd.f32 %v10544, %v10530
    %v10546 = vadd.f32 %v10545, %v10531
    %v10547 = vadd.f32 %v10546, %v10532
    %v10548 = vadd.f32 %v10547, %v10533
    %v10549 = vadd.f32 %v10548, %v10534
    %v10550 = vadd.f32 %v10549, %v10535
    %v10551 = vadd.f32 %v10550, %v10536
    %v10552 = vadd.f32 %v10551, %v10537
    %v10553 = vadd.f32 %v10552, %v10538
    %v10554 = vadd.f32 %v10553, %v10539
    %v10555 = vadd.f32 %v10554, %v10540
    %v10556 = vrot.slane %v10555, 4
    %v10557 = vadd.f32 %v10555, %v10556
    %v10558 = vrot.slane %v10557, 2
    %v10559 = vadd.f32 %v10557, %v10558
    %v10560 = vrot.slane %v10559, 1
    %v10561 = vadd.f32 %v10559, %v10560
    %v10562 = vmul.f32 %v10524, 0.0078125
    %v10563 = vmul.f32 %v10561, 0.0078125
    %v10564 = vmul.f32 %v10562, %v10562
    %v10565 = vsub.f32 %v10563, %v10564
    %v10566 = vmax.f32 %v10565, 0.0
    %v10567 = vld [vmem:[%s2 + $0x4] sm:$0x1]
    %v10568 = vld [vmem:[%s2 + $0x5] sm:$0x1]
    %v10569 = vadd.f32 %v10566, 1e-05
    %v10570 = vrsqrt.pop %v10569
    %v10571 = vmul.f32 %v10567, %v10570
    %v10572 = vmul.f32 %v10562, %v10571
    %v10573 = vsub.f32 %v10568, %v10572
    %v10574 = vlaneseq
    %v10575 = vshrl.u32 %v10574, 7
    %v10576 = vsub.s32 0, %v10575
    %v10577 = vrot.slane %v10571, %v10576
    %v10578 = vmul.f32 %v10442, %v10577
    %v10579 = vmul.f32 %v10445, %v10577
    %v10580 = vmul.f32 %v10450, %v10577
    %v10581 = vmul.f32 %v10453, %v10577
    %v10582 = vmul.f32 %v10458, %v10577
    %v10583 = vmul.f32 %v10461, %v10577
    %v10584 = vmul.f32 %v10466, %v10577
    %v10585 = vmul.f32 %v10469, %v10577
    %v10586 = vmul.f32 %v10474, %v10577
    %v10587 = vmul.f32 %v10477, %v10577
    %v10588 = vmul.f32 %v10482, %v10577
    %v10589 = vmul.f32 %v10485, %v10577
    %v10590 = vmul.f32 %v10490, %v10577
    %v10591 = vmul.f32 %v10493, %v10577
    %v10592 = vmul.f32 %v10498, %v10577
    %v10593 = vmul.f32 %v10501, %v10577
    %v10594 = vlaneseq
    %v10595 = vshrl.u32 %v10594, 7
    %v10596 = vsub.s32 0, %v10595
    %v10597 = vrot.slane %v10573, %v10596
    %v10598 = vadd.f32 %v10578, %v10597
    %v10599 = vadd.f32 %v10579, %v10597
    %v10600 = vadd.f32 %v10580, %v10597
    %v10601 = vadd.f32 %v10581, %v10597
    %v10602 = vadd.f32 %v10582, %v10597
    %v10603 = vadd.f32 %v10583, %v10597
    %v10604 = vadd.f32 %v10584, %v10597
    %v10605 = vadd.f32 %v10585, %v10597
    %v10606 = vadd.f32 %v10586, %v10597
    %v10607 = vadd.f32 %v10587, %v10597
    %v10608 = vadd.f32 %v10588, %v10597
    %v10609 = vadd.f32 %v10589, %v10597
    %v10610 = vadd.f32 %v10590, %v10597
    %v10611 = vadd.f32 %v10591, %v10597
    %v10612 = vadd.f32 %v10592, %v10597
    %v10613 = vadd.f32 %v10593, %v10597
    %v10614 = vmax.f32 %v10598, 0.0
    %v10615 = vmax.f32 %v10599, 0.0
    %v10616 = vmax.f32 %v10600, 0.0
    %v10617 = vmax.f32 %v10601, 0.0
    %v10618 = vmax.f32 %v10602, 0.0
    %v10619 = vmax.f32 %v10603, 0.0
    %v10620 = vmax.f32 %v10604, 0.0
    %v10621 = vmax.f32 %v10605, 0.0
    %v10622 = vmax.f32 %v10606, 0.0
    %v10623 = vmax.f32 %v10607, 0.0
    %v10624 = vmax.f32 %v10608, 0.0
    %v10625 = vmax.f32 %v10609, 0.0
    %v10626 = vmax.f32 %v10610, 0.0
    %v10627 = vmax.f32 %v10611, 0.0
    %v10628 = vmax.f32 %v10612, 0.0
    %v10629 = vmax.f32 %v10613, 0.0
    %10630 = vst [vmem:[#allocation2] sm:$0xff] %v10614
    %10631 = vst [vmem:[#allocation2 + $0x8] sm:$0xff] %v10615
    %10632 = vst [vmem:[#allocation2 + $0x10] sm:$0xff] %v10616
    %10633 = vst [vmem:[#allocation2 + $0x18] sm:$0xff] %v10617
    %10634 = vst [vmem:[#allocation2 + $0x20] sm:$0xff] %v10618
    %10635 = vst [vmem:[#allocation2 + $0x28] sm:$0xff] %v10619
    %10636 = vst [vmem:[#allocation2 + $0x30] sm:$0xff] %v10620
    %10637 = vst [vmem:[#allocation2 + $0x38] sm:$0xff] %v10621
    %10638 = vst [vmem:[#allocation2 + $0x40] sm:$0xff] %v10622
    %10639 = vst [vmem:[#allocation2 + $0x48] sm:$0xff] %v10623
    %10640 = vst [vmem:[#allocation2 + $0x50] sm:$0xff] %v10624
    %10641 = vst [vmem:[#allocation2 + $0x58] sm:$0xff] %v10625
    %10642 = vst [vmem:[#allocation2 + $0x60] sm:$0xff] %v10626
    %10643 = vst [vmem:[#allocation2 + $0x68] sm:$0xff] %v10627
    %10644 = vst [vmem:[#allocation2 + $0x70] sm:$0xff] %v10628
    %10645 = vst [vmem:[#allocation2 + $0x78] sm:$0xff] %v10629
    // Predicated region
    $region26: #{convnet_forward.1} parent=1 // pred_check
      _
    $region27: #{convnet_forward.1} parent=1 // pred_check_branch
      %10647 = sbr.rel (0) target = $region29
    $region28: #{convnet_forward.1} parent=1 // pred_region
      %s10649 = ssub.s32 2048, 2048
      %10650 = vsyncadd [#allocation3], %s10649
      %s10651 = sshll.u32 [#allocation2], 4
      %s10652 = int_to_ptr.vmem [resolvable:$true] %s10651
      %10657 = dma.vmem_to_hbm [thread:$0]  %s10652, 2048, %s6, [#allocation3], 128, 128, 8
    $region29: #{convnet_forward.1} parent=1 // pred_fallthru
      _
    // Predicated region
    $region30: #{convnet_forward.1} parent=1 // pred_check
      _
    $region31: #{convnet_forward.1} parent=1 // pred_check_branch
      %10659 = sbr.rel (0) target = $region33
    $region32: #{convnet_forward.1} parent=1 // pred_region
      %10660 = dma.done [#allocation3], 2048
    $region33: #{convnet_forward.1} parent=1 // pred_fallthru
      _
    %10661 = vsyncpa [#allocation3], 1

</llo_original>
